<compile_context>
chip_gen: v7x
topology: tpu7x:2x2x1
jax: 0.10.0
libtpu: 0.0.40
codegen_flags: <defaults>
</compile_context>

<pallas_src>
import jax
import jax.numpy as jnp
from jax.experimental import pallas as pl
from jax.experimental.pallas import tpu as pltpu

# ---------------- Config (stand-ins for the C.* constants) ----------------
NUM_PARTICLE_TYPES = 3
PARTICLE_EMB_SIZE = 8
HIDDEN_SIZE = 32
GNN_LAYER = 2
RADIUS = 1.0
SELF_EDGE = True
OUT_SIZE = 2            # -> forward takes the "pred_accn.shape[1] == 2" branch
N_BODIES = 8            # particles
POS_DIM = 2
VEL_STEPS = 1           # velocity history length (keeps node feat dim constant)
POS_STEPS = 4           # position history length
NODE_FEAT_DIM_IN = VEL_STEPS * POS_DIM + 2 * POS_DIM + PARTICLE_EMB_SIZE   # 14
EDGE_FEAT_DIM_IN = POS_DIM + 1                                             # 3
LN_EPS = 1e-5

_H = HIDDEN_SIZE
_NF_DYN = VEL_STEPS * POS_DIM + 2 * POS_DIM          # dynamic node feats (6)

# ------------- packed weight-slab row offsets (all multiples of 8) ---------
_OFF_NE_W1 = 0                       # 16 rows (14 real: 0:6 vel|lo|hi, 6:14 emb)
_OFF_NE_W2 = 16
_OFF_NE_W3 = 48
_OFF_EE_W1 = 80                      # 8 rows (3 real: dvec(2)|dist(1))
_OFF_EE_W2 = 88
_OFF_EE_W3 = 120
_OFF_GNN = 152                       # per layer: ew1e(32) ew2(32) nw1(64) nw2(32)
_GNN_STRIDE = 5 * _H                 # 160
_OFF_DEC = _OFF_GNN + GNN_LAYER * _GNN_STRIDE        # de_w1(32) de_w2(32) de_w3(32)

# ------------- packed bias/LN-slab row indices ------------------------------
_B_NE = 0                            # b1 b2 b3 g bt
_B_EE = 5                            # b1 b2 b3 g bt
_B_GNN = 10                          # per layer: eb1 eb2 eg ebt nb1 nb2 ng nbt
_B_GNN_STRIDE = 8
_B_DEC = _B_GNN + GNN_LAYER * _B_GNN_STRIDE          # b1 b2 b3


# =========================== kernel helpers ===============================
def _dot(a, b):
    return jnp.dot(a, b, preferred_element_type=jnp.float32)


def _layernorm(h, g, b):
    # single-pass stats: two independent cross-lane reductions (XLU overlap)
    d = h.shape[-1]
    s1 = jnp.sum(h, axis=-1, keepdims=True)
    s2 = jnp.sum(h * h, axis=-1, keepdims=True)
    mu = s1 * (1.0 / d)
    var = jnp.maximum(s2 * (1.0 / d) - mu * mu, 0.0)
    return (h - mu) * jax.lax.rsqrt(var + LN_EPS) * g + b


def _tree_sum(parts):
    # balanced VPU add tree over a Python list of equal-shaped arrays
    while len(parts) > 1:
        nxt = [parts[i] + parts[i + 1] for i in range(0, len(parts) - 1, 2)]
        if len(parts) % 2:
            nxt.append(parts[-1])
        parts = nxt
    return parts[0]


def _make_gns_rollout_kernel(n_steps, n_gnn_layers, n):
    """Fused kernel: full GNS forward + rollout integration for `n_steps` steps."""

    def kernel(state_ref, bounds_ref, w_ref, wsr_ref, b_ref, out_ref):
        # ---- point-of-use slab readers (weights stay in VMEM; no eager load) ----
        def W(off, rows=_H):
            return w_ref[off:off + rows, :]

        def B(idx):
            return b_ref[idx:idx + 1, :]

        inv_r = jnp.float32(1.0 / RADIUS)

        # ---- rollout state & per-rollout constants (tiny, loaded once) ----
        pos = state_ref[:, 0:POS_DIM]                       # [N, 2]
        vel = state_ref[:, POS_DIM:2 * POS_DIM]             # [N, 2]
        tgt = state_ref[:, 2 * POS_DIM:3 * POS_DIM]         # [N, 2] kinematic target
        nonk = state_ref[:, 3 * POS_DIM:3 * POS_DIM + 1]    # [N, 1]
        emb = state_ref[:, 8:8 + PARTICLE_EMB_SIZE]         # [N, EMB]
        blo = bounds_ref[:, 0:POS_DIM]                      # [1, 2]
        bhi = bounds_ref[:, POS_DIM:2 * POS_DIM]            # [1, 2]

        # particle-type embedding projection (+ node-encoder bias): once per rollout
        emb_proj = _dot(emb, w_ref[_NF_DYN:_NF_DYN + PARTICLE_EMB_SIZE, :]) + B(_B_NE + 0)

        for step in range(n_steps):        # unrolled rollout, state stays on-chip
            # ---------------- node features + node encoder ----------------
            d_lo = jnp.clip((pos - blo) * inv_r, -1.0, 1.0)
            d_hi = jnp.clip((bhi - pos) * inv_r, -1.0, 1.0)
            nf = jnp.concatenate([vel, d_lo, d_hi], axis=-1)            # [N, 6]
            x = _dot(nf, w_ref[0:_NF_DYN, :]) + emb_proj                # fused 1st layer
            x = jnp.maximum(x, 0.0)
            x = jnp.maximum(_dot(x, W(_OFF_NE_W2)) + B(_B_NE + 1), 0.0)
            x = _dot(x, W(_OFF_NE_W3)) + B(_B_NE + 2)
            nodes = _layernorm(x, B(_B_NE + 3), B(_B_NE + 4))           # [N, H]

            # ---------------- edge features + edge encoder ----------------
            # dense edge slot (i, j): sender i, receiver j (VPU broadcasts, no S/R matmuls)
            dvec = (pos[:, None, :] - pos[None, :, :]) * inv_r          # [N, N, 2]
            d2 = sum(dvec[..., k:k + 1] * dvec[..., k:k + 1] for k in range(POS_DIM))
            dist = jnp.sqrt(d2)                                         # [N, N, 1]
            # SELF_EDGE == True: diagonal (dist == 0) is kept by the radius test.
            emask = (dist <= 1.0).astype(jnp.float32)                   # [N, N, 1]
            ef = jnp.concatenate([dvec, dist], axis=-1).reshape(n * n, EDGE_FEAT_DIM_IN)
            xe = _dot(ef, w_ref[_OFF_EE_W1:_OFF_EE_W1 + EDGE_FEAT_DIM_IN, :]) + B(_B_EE + 0)
            xe = jnp.maximum(xe, 0.0)
            xe = jnp.maximum(_dot(xe, W(_OFF_EE_W2)) + B(_B_EE + 1), 0.0)
            xe = _dot(xe, W(_OFF_EE_W3)) + B(_B_EE + 2)
            edges = _layernorm(xe, B(_B_EE + 3), B(_B_EE + 4))          # [N*N, H]

            # ---------------- GNN message-passing layers ----------------
            for l in range(n_gnn_layers):
                wb = _OFF_GNN + l * _GNN_STRIDE
                bb = _B_GNN + l * _B_GNN_STRIDE
                # fused sender|receiver projection at node granularity, then broadcast
                sr = _dot(nodes, wsr_ref[l * _H:(l + 1) * _H, :])       # [N, 2H]
                s_proj, r_proj = sr[:, 0:_H], sr[:, _H:2 * _H]
                he = _dot(edges, W(wb)).reshape(n, n, _H)               # [N, N, H]
                he = he + s_proj[:, None, :] + r_proj[None, :, :] + B(bb + 0)
                he = jnp.maximum(he, 0.0).reshape(n * n, _H)
                he = _dot(he, W(wb + _H)) + B(bb + 1)
                new_edges = _layernorm(he, B(bb + 2), B(bb + 3))        # [N*N, H]
                # masked scatter-add of messages to receivers: balanced VPU tree-sum
                masked = emask * new_edges.reshape(n, n, _H)            # [N, N, H]
                agg = _tree_sum([masked[i] for i in range(n)])          # [N, H]
                hn = _dot(jnp.concatenate([nodes, agg], axis=-1), W(wb + 2 * _H, 2 * _H))
                hn = jnp.maximum(hn + B(bb + 4), 0.0)
                hn = _dot(hn, W(wb + 4 * _H)) + B(bb + 5)
                hn = _layernorm(hn, B(bb + 6), B(bb + 7))
                nodes = nodes + hn
                edges = edges + new_edges

            # ---------------- decoder ----------------
            hd = jnp.maximum(_dot(nodes, W(_OFF_DEC)) + B(_B_DEC + 0), 0.0)
            hd = jnp.maximum(_dot(hd, W(_OFF_DEC + _H)) + B(_B_DEC + 1), 0.0)
            acc = (_dot(hd, W(_OFF_DEC + 2 * _H)) + B(_B_DEC + 2))[:, 0:OUT_SIZE]

            # -------- rollout integration (out_size == 2 branch) --------
            pred_pos = pos + vel + acc
            pred_pos = nonk * pred_pos + (1.0 - nonk) * tgt             # kinematic clamp
            out_ref[step] = jnp.concatenate([acc, pred_pos], axis=-1)   # packed acc|pos
            vel = pred_pos - pos
            pos = pred_pos

    return kernel


# ============================ parameters ===================================
def _init_linear(key, fan_in, fan_out):
    kw, kb = jax.random.split(key)
    lim = 1.0 / jnp.sqrt(jnp.float32(fan_in))
    w = jax.random.uniform(kw, (fan_in, fan_out), jnp.float32, -lim, lim)
    b = jax.random.uniform(kb, (1, fan_out), jnp.float32, -lim, lim)
    return w, b


def init_params(key):
    H = HIDDEN_SIZE
    ones = jnp.ones((1, H), jnp.float32)
    zeros = jnp.zeros((1, H), jnp.float32)
    keys = iter(jax.random.split(key, 24))
    p = {}
    p['emb'] = 0.1 * jax.random.normal(
        next(keys), (NUM_PARTICLE_TYPES, PARTICLE_EMB_SIZE), jnp.float32)
    # node encoder (input feature order: [vel (2) | pos-lo (2) | hi-pos (2) | type_emb (8)])
    p['ne_w1'], p['ne_b1'] = _init_linear(next(keys), NODE_FEAT_DIM_IN, H)
    p['ne_w2'], p['ne_b2'] = _init_linear(next(keys), H, H)
    p['ne_w3'], p['ne_b3'] = _init_linear(next(keys), H, H)
    p['ne_g'], p['ne_bt'] = ones, zeros
    # edge encoder (input feature order: [dist_vec (2) | dist (1)])
    p['ee_w1'], p['ee_b1'] = _init_linear(next(keys), EDGE_FEAT_DIM_IN, H)
    p['ee_w2'], p['ee_b2'] = _init_linear(next(keys), H, H)
    p['ee_w3'], p['ee_b3'] = _init_linear(next(keys), H, H)
    p['ee_g'], p['ee_bt'] = ones, zeros
    # GNN layers (edge MLP input: [edge | sender | receiver]; node MLP input: [node | agg])
    p['gnn'] = []
    for _ in range(GNN_LAYER):
        d = {}
        d['ew1'], d['eb1'] = _init_linear(next(keys), 3 * H, H)
        d['ew2'], d['eb2'] = _init_linear(next(keys), H, H)
        d['eg'], d['ebt'] = ones, zeros
        d['nw1'], d['nb1'] = _init_linear(next(keys), 2 * H, H)
        d['nw2'], d['nb2'] = _init_linear(next(keys), H, H)
        d['ng'], d['nbt'] = ones, zeros
        p['gnn'].append(d)
    # decoder
    p['de_w1'], p['de_b1'] = _init_linear(next(keys), H, H)
    p['de_w2'], p['de_b2'] = _init_linear(next(keys), H, H)
    p['de_w3'], p['de_b3'] = _init_linear(next(keys), H, OUT_SIZE)
    return p


# ===================== host-side operand packing ============================
def _pad_rows(w, rows):
    if w.shape[0] == rows:
        return w
    return jnp.concatenate([w, jnp.zeros((rows - w.shape[0], w.shape[1]), w.dtype)], 0)


def _pad_cols(w, cols):
    if w.shape[1] == cols:
        return w
    return jnp.concatenate([w, jnp.zeros((w.shape[0], cols - w.shape[1]), w.dtype)], 1)


def _pack_params(params):
    H = HIDDEN_SIZE
    wblocks = [
        _pad_rows(params['ne_w1'], 16),        # rows 0:16
        params['ne_w2'],                       # 16:48
        params['ne_w3'],                       # 48:80
        _pad_rows(params['ee_w1'], 8),         # 80:88
        params['ee_w2'],                       # 88:120
        params['ee_w3'],                       # 120:152
    ]
    wsr_blocks = []
    for d in params['gnn']:
        ew1 = d['ew1']                         # [3H, H]: rows [edge | sender | receiver]
        wblocks += [ew1[:H], d['ew2'], d['nw1'], d['nw2']]
        wsr_blocks.append(jnp.concatenate([ew1[H:2 * H], ew1[2 * H:]], axis=1))  # [H, 2H]
    wblocks += [params['de_w1'], params['de_w2'], _pad_cols(params['de_w3'], H)]
    w_slab = jnp.concatenate(wblocks, axis=0)              # [_OFF_DEC + 96, 32]
    wsr_slab = jnp.concatenate(wsr_blocks, axis=0)          # [GNN_LAYER*32, 64]

    bvecs = [params['ne_b1'], params['ne_b2'], params['ne_b3'], params['ne_g'], params['ne_bt'],
             params['ee_b1'], params['ee_b2'], params['ee_b3'], params['ee_g'], params['ee_bt']]
    for d in params['gnn']:
        bvecs += [d['eb1'], d['eb2'], d['eg'], d['ebt'],
                  d['nb1'], d['nb2'], d['ng'], d['nbt']]
    bvecs += [params['de_b1'], params['de_b2'], _pad_cols(params['de_b3'], H)]
    b_slab = jnp.concatenate(bvecs, axis=0)                  # [_B_DEC + 3, 32]
    return w_slab, wsr_slab, b_slab


# =========================== host-side wrapper ==============================
def gns_forward(params, poss, vel, particle_type, bounds, nonk_mask, tgt_poss,
                num_rollouts=2):
    n = poss.shape[0]
    n_steps = int(num_rollouts // (OUT_SIZE // 2))

    pos0 = poss[:, -1]                                       # [N, 2]
    vel0 = vel.reshape(n, -1)                                # [N, VEL_STEPS*2]
    type_emb = params['emb'][particle_type]                  # [N, EMB] (host gather)
    nonk = nonk_mask.astype(jnp.float32).reshape(n, 1)       # [N, 1]
    tgt0 = tgt_poss[:, 0]                                    # [N, 2]

    # packed per-node state: [pos | vel | tgt | nonk | pad | type_emb] -> [N, 16]
    state = jnp.concatenate(
        [pos0, vel0, tgt0, nonk, jnp.zeros((n, 1), jnp.float32), type_emb], axis=1)
    bvec = jnp.concatenate([bounds[:, 0].reshape(1, POS_DIM),
                            bounds[:, 1].reshape(1, POS_DIM)], axis=1)   # [1, 4]
    w_slab, wsr_slab, b_slab = _pack_params(params)

    kernel = _make_gns_rollout_kernel(n_steps, len(params['gnn']), n)
    vmem = pl.BlockSpec(memory_space=pltpu.MemorySpace.VMEM)
    out = pl.pallas_call(
        kernel,
        out_shape=jax.ShapeDtypeStruct((n_steps, n, OUT_SIZE + POS_DIM), jnp.float32),
        in_specs=[vmem] * 5,
        out_specs=vmem,
    )(state, bvec, w_slab, wsr_slab, b_slab)

    acc_steps = out[..., 0:OUT_SIZE]                         # [steps, N, 2]
    pos_steps = out[..., OUT_SIZE:OUT_SIZE + POS_DIM]        # [steps, N, 2]
    return {'pred_accns': jnp.transpose(acc_steps, (1, 0, 2)),
            'pred_poss': jnp.transpose(pos_steps, (1, 0, 2)),
            'pred_collaposed': False}


# ================================ main =====================================
if __name__ == "__main__":
    key = jax.random.PRNGKey(0)
    kp, k1, k2, k3, k4, k5 = jax.random.split(key, 6)
    params = init_params(kp)

    n = N_BODIES
    poss = jax.random.uniform(k1, (n, POS_STEPS, POS_DIM), jnp.float32, 0.0, 1.0)
    vel = 0.01 * jax.random.normal(k2, (n, VEL_STEPS, POS_DIM), jnp.float32)
    particle_type = jax.random.randint(k3, (n,), 0, NUM_PARTICLE_TYPES)
    bounds = jnp.array([[0.0, 1.0], [0.0, 1.0]], jnp.float32)   # metadata['bounds']
    nonk_mask = (jax.random.uniform(k4, (n,)) > 0.2).astype(jnp.int32)
    tgt_poss = jax.random.uniform(k5, (n, 2, POS_DIM), jnp.float32)

    fwd = jax.jit(gns_forward, static_argnames=('num_rollouts',))
    out = fwd(params, poss, vel, particle_type, bounds, nonk_mask, tgt_poss,
              num_rollouts=2)
    jax.block_until_ready(out['pred_poss'])

    assert out['pred_poss'].shape == (n, 2, POS_DIM)
    assert out['pred_accns'].shape == (n, 2, POS_DIM)
    assert bool(jnp.all(jnp.isfinite(out['pred_poss'])))
    assert bool(jnp.all(jnp.isfinite(out['pred_accns'])))
    print("KERNEL_OK")
</pallas_src>

<mosaic_0001>
module attributes {stable_mosaic.version = 11 : i64} {
  func.func @kernel(%arg0: memref<8x16xf32, #tpu.memory_space<vmem>>, %arg1: memref<1x4xf32, #tpu.memory_space<vmem>>, %arg2: memref<568x32xf32, #tpu.memory_space<vmem>>, %arg3: memref<64x64xf32, #tpu.memory_space<vmem>>, %arg4: memref<29x32xf32, #tpu.memory_space<vmem>>, %arg5: memref<2x8x4xf32, #tpu.memory_space<vmem>>) attributes {dimension_semantics = [], scalar_prefetch = 0 : i64, scratch_operands = 0 : i64, tpu.core_type = #tpu.core_type<tc>} {
    %c0 = arith.constant 0 : index
    %c0_0 = arith.constant 0 : index
    %0 = vector.load %arg0[%c0, %c0_0] : memref<8x16xf32, #tpu.memory_space<vmem>>, vector<8x2xf32>
    %c0_1 = arith.constant 0 : index
    %c2 = arith.constant 2 : index
    %1 = vector.load %arg0[%c0_1, %c2] : memref<8x16xf32, #tpu.memory_space<vmem>>, vector<8x2xf32>
    %c0_2 = arith.constant 0 : index
    %c4 = arith.constant 4 : index
    %2 = vector.load %arg0[%c0_2, %c4] : memref<8x16xf32, #tpu.memory_space<vmem>>, vector<8x2xf32>
    %c0_3 = arith.constant 0 : index
    %c6 = arith.constant 6 : index
    %3 = vector.load %arg0[%c0_3, %c6] : memref<8x16xf32, #tpu.memory_space<vmem>>, vector<8x1xf32>
    %c0_4 = arith.constant 0 : index
    %c8 = arith.constant 8 : index
    %4 = vector.load %arg0[%c0_4, %c8] : memref<8x16xf32, #tpu.memory_space<vmem>>, vector<8x8xf32>
    %c0_5 = arith.constant 0 : index
    %c0_6 = arith.constant 0 : index
    %5 = vector.load %arg1[%c0_5, %c0_6] : memref<1x4xf32, #tpu.memory_space<vmem>>, vector<1x2xf32>
    %c0_7 = arith.constant 0 : index
    %c2_8 = arith.constant 2 : index
    %6 = vector.load %arg1[%c0_7, %c2_8] : memref<1x4xf32, #tpu.memory_space<vmem>>, vector<1x2xf32>
    %c6_9 = arith.constant 6 : index
    %c0_10 = arith.constant 0 : index
    %7 = vector.load %arg2[%c6_9, %c0_10] : memref<568x32xf32, #tpu.memory_space<vmem>>, vector<8x32xf32>
    %cst = arith.constant dense<0.000000e+00> : vector<8x32xf32>
    %8 = tpu.matmul %4, %7, %cst {dimension_numbers = #tpu.dot_dimension_numbers<[1], [0], [0], [1], [0, 0, 1, 1], [], []>} : vector<8x8xf32>, vector<8x32xf32>, vector<8x32xf32> -> vector<8x32xf32>
    %c0_11 = arith.constant 0 : index
    %c0_12 = arith.constant 0 : index
    %9 = vector.load %arg4[%c0_11, %c0_12] : memref<29x32xf32, #tpu.memory_space<vmem>>, vector<1x32xf32>
    %10 = vector.broadcast %9 : vector<1x32xf32> to vector<8x32xf32>
    %11 = arith.addf %8, %10 : vector<8x32xf32>
    %12 = vector.broadcast %5 : vector<1x2xf32> to vector<8x2xf32>
    %13 = arith.subf %0, %12 : vector<8x2xf32>
    %cst_13 = arith.constant 1.000000e+00 : f32
    %14 = vector.broadcast %cst_13 : f32 to vector<8x2xf32>
    %15 = arith.mulf %13, %14 : vector<8x2xf32>
    %cst_14 = arith.constant -1.000000e+00 : f32
    %cst_15 = arith.constant 1.000000e+00 : f32
    %16 = vector.broadcast %cst_14 : f32 to vector<8x2xf32>
    %17 = arith.maximumf %16, %15 : vector<8x2xf32>
    %18 = vector.broadcast %cst_15 : f32 to vector<8x2xf32>
    %19 = arith.minimumf %18, %17 : vector<8x2xf32>
    %20 = vector.broadcast %6 : vector<1x2xf32> to vector<8x2xf32>
    %21 = arith.subf %20, %0 : vector<8x2xf32>
    %cst_16 = arith.constant 1.000000e+00 : f32
    %22 = vector.broadcast %cst_16 : f32 to vector<8x2xf32>
    %23 = arith.mulf %21, %22 : vector<8x2xf32>
    %cst_17 = arith.constant -1.000000e+00 : f32
    %cst_18 = arith.constant 1.000000e+00 : f32
    %24 = vector.broadcast %cst_17 : f32 to vector<8x2xf32>
    %25 = arith.maximumf %24, %23 : vector<8x2xf32>
    %26 = vector.broadcast %cst_18 : f32 to vector<8x2xf32>
    %27 = arith.minimumf %26, %25 : vector<8x2xf32>
    %28 = tpu.concatenate %1, %19, %27 in 1 : vector<8x2xf32>, vector<8x2xf32>, vector<8x2xf32> -> vector<8x6xf32>
    %c0_19 = arith.constant 0 : index
    %c0_20 = arith.constant 0 : index
    %29 = vector.load %arg2[%c0_19, %c0_20] : memref<568x32xf32, #tpu.memory_space<vmem>>, vector<6x32xf32>
    %cst_21 = arith.constant dense<0.000000e+00> : vector<8x32xf32>
    %30 = tpu.matmul %28, %29, %cst_21 {dimension_numbers = #tpu.dot_dimension_numbers<[1], [0], [0], [1], [0, 0, 1, 1], [], []>} : vector<8x6xf32>, vector<6x32xf32>, vector<8x32xf32> -> vector<8x32xf32>
    %31 = arith.addf %30, %11 : vector<8x32xf32>
    %cst_22 = arith.constant 0.000000e+00 : f32
    %32 = vector.broadcast %cst_22 : f32 to vector<8x32xf32>
    %33 = arith.maximumf %31, %32 : vector<8x32xf32>
    %c16 = arith.constant 16 : index
    %c0_23 = arith.constant 0 : index
    %34 = vector.load %arg2[%c16, %c0_23] : memref<568x32xf32, #tpu.memory_space<vmem>>, vector<32x32xf32>
    %cst_24 = arith.constant dense<0.000000e+00> : vector<8x32xf32>
    %35 = tpu.matmul %33, %34, %cst_24 {dimension_numbers = #tpu.dot_dimension_numbers<[1], [0], [0], [1], [0, 0, 1, 1], [], []>} : vector<8x32xf32>, vector<32x32xf32>, vector<8x32xf32> -> vector<8x32xf32>
    %c1 = arith.constant 1 : index
    %c0_25 = arith.constant 0 : index
    %36 = vector.load %arg4[%c1, %c0_25] : memref<29x32xf32, #tpu.memory_space<vmem>>, vector<1x32xf32>
    %37 = vector.broadcast %36 : vector<1x32xf32> to vector<8x32xf32>
    %38 = arith.addf %35, %37 : vector<8x32xf32>
    %cst_26 = arith.constant 0.000000e+00 : f32
    %39 = vector.broadcast %cst_26 : f32 to vector<8x32xf32>
    %40 = arith.maximumf %38, %39 : vector<8x32xf32>
    %c48 = arith.constant 48 : index
    %c0_27 = arith.constant 0 : index
    %41 = vector.load %arg2[%c48, %c0_27] : memref<568x32xf32, #tpu.memory_space<vmem>>, vector<32x32xf32>
    %cst_28 = arith.constant dense<0.000000e+00> : vector<8x32xf32>
    %42 = tpu.matmul %40, %41, %cst_28 {dimension_numbers = #tpu.dot_dimension_numbers<[1], [0], [0], [1], [0, 0, 1, 1], [], []>} : vector<8x32xf32>, vector<32x32xf32>, vector<8x32xf32> -> vector<8x32xf32>
    %c2_29 = arith.constant 2 : index
    %c0_30 = arith.constant 0 : index
    %43 = vector.load %arg4[%c2_29, %c0_30] : memref<29x32xf32, #tpu.memory_space<vmem>>, vector<1x32xf32>
    %44 = vector.broadcast %43 : vector<1x32xf32> to vector<8x32xf32>
    %45 = arith.addf %42, %44 : vector<8x32xf32>
    %c3 = arith.constant 3 : index
    %c0_31 = arith.constant 0 : index
    %46 = vector.load %arg4[%c3, %c0_31] : memref<29x32xf32, #tpu.memory_space<vmem>>, vector<1x32xf32>
    %c4_32 = arith.constant 4 : index
    %c0_33 = arith.constant 0 : index
    %47 = vector.load %arg4[%c4_32, %c0_33] : memref<29x32xf32, #tpu.memory_space<vmem>>, vector<1x32xf32>
    %cst_34 = arith.constant dense<0.000000e+00> : vector<8xf32>
    %48 = vector.multi_reduction <add>, %45, %cst_34 [1] : vector<8x32xf32> to vector<8xf32>
    %49 = vector.shape_cast %48 : vector<8xf32> to vector<8x1xf32>
    %50 = arith.mulf %45, %45 : vector<8x32xf32>
    %cst_35 = arith.constant dense<0.000000e+00> : vector<8xf32>
    %51 = vector.multi_reduction <add>, %50, %cst_35 [1] : vector<8x32xf32> to vector<8xf32>
    %52 = vector.shape_cast %51 : vector<8xf32> to vector<8x1xf32>
    %cst_36 = arith.constant 3.125000e-02 : f32
    %53 = vector.broadcast %cst_36 : f32 to vector<8x1xf32>
    %54 = arith.mulf %49, %53 : vector<8x1xf32>
    %cst_37 = arith.constant 3.125000e-02 : f32
    %55 = vector.broadcast %cst_37 : f32 to vector<8x1xf32>
    %56 = arith.mulf %52, %55 : vector<8x1xf32>
    %57 = arith.mulf %54, %54 : vector<8x1xf32>
    %58 = arith.subf %56, %57 : vector<8x1xf32>
    %cst_38 = arith.constant 0.000000e+00 : f32
    %59 = vector.broadcast %cst_38 : f32 to vector<8x1xf32>
    %60 = arith.maximumf %58, %59 : vector<8x1xf32>
    %61 = vector.broadcast %54 : vector<8x1xf32> to vector<8x32xf32>
    %62 = arith.subf %45, %61 : vector<8x32xf32>
    %cst_39 = arith.constant 9.99999974E-6 : f32
    %63 = vector.broadcast %cst_39 : f32 to vector<8x1xf32>
    %64 = arith.addf %60, %63 : vector<8x1xf32>
    %65 = math.rsqrt %64 : vector<8x1xf32>
    %66 = vector.broadcast %65 : vector<8x1xf32> to vector<8x32xf32>
    %67 = arith.mulf %62, %66 : vector<8x32xf32>
    %68 = vector.broadcast %46 : vector<1x32xf32> to vector<8x32xf32>
    %69 = arith.mulf %67, %68 : vector<8x32xf32>
    %70 = vector.broadcast %47 : vector<1x32xf32> to vector<8x32xf32>
    %71 = arith.addf %69, %70 : vector<8x32xf32>
    %72 = vector.shape_cast %0 : vector<8x2xf32> to vector<8x1x2xf32>
    %73 = vector.shape_cast %0 : vector<8x2xf32> to vector<1x8x2xf32>
    %74 = vector.broadcast %72 : vector<8x1x2xf32> to vector<8x8x2xf32>
    %75 = vector.broadcast %73 : vector<1x8x2xf32> to vector<8x8x2xf32>
    %76 = arith.subf %74, %75 : vector<8x8x2xf32>
    %cst_40 = arith.constant 1.000000e+00 : f32
    %77 = vector.broadcast %cst_40 : f32 to vector<8x8x2xf32>
    %78 = arith.mulf %76, %77 : vector<8x8x2xf32>
    %79 = vector.extract_strided_slice %78 {offsets = [0, 0, 0], sizes = [8, 8, 1], strides = [1, 1, 1]} : vector<8x8x2xf32> to vector<8x8x1xf32>
    %80 = vector.extract_strided_slice %78 {offsets = [0, 0, 0], sizes = [8, 8, 1], strides = [1, 1, 1]} : vector<8x8x2xf32> to vector<8x8x1xf32>
    %81 = arith.mulf %79, %80 : vector<8x8x1xf32>
    %cst_41 = arith.constant 0.000000e+00 : f32
    %82 = vector.broadcast %cst_41 : f32 to vector<8x8x1xf32>
    %83 = arith.addf %82, %81 : vector<8x8x1xf32>
    %84 = vector.extract_strided_slice %78 {offsets = [0, 0, 1], sizes = [8, 8, 1], strides = [1, 1, 1]} : vector<8x8x2xf32> to vector<8x8x1xf32>
    %85 = vector.extract_strided_slice %78 {offsets = [0, 0, 1], sizes = [8, 8, 1], strides = [1, 1, 1]} : vector<8x8x2xf32> to vector<8x8x1xf32>
    %86 = arith.mulf %84, %85 : vector<8x8x1xf32>
    %87 = arith.addf %83, %86 : vector<8x8x1xf32>
    %88 = math.sqrt %87 : vector<8x8x1xf32>
    %cst_42 = arith.constant 1.000000e+00 : f32
    %89 = vector.broadcast %cst_42 : f32 to vector<8x8x1xf32>
    %90 = arith.cmpf ole, %88, %89 : vector<8x8x1xf32>
    %91 = arith.extui %90 : vector<8x8x1xi1> to vector<8x8x1xi32>
    %92 = arith.sitofp %91 : vector<8x8x1xi32> to vector<8x8x1xf32>
    %93 = tpu.concatenate %78, %88 in 2 : vector<8x8x2xf32>, vector<8x8x1xf32> -> vector<8x8x3xf32>
    %94 = vector.shape_cast %93 : vector<8x8x3xf32> to vector<64x3xf32>
    %c80 = arith.constant 80 : index
    %c0_43 = arith.constant 0 : index
    %95 = vector.load %arg2[%c80, %c0_43] : memref<568x32xf32, #tpu.memory_space<vmem>>, vector<3x32xf32>
    %cst_44 = arith.constant dense<0.000000e+00> : vector<64x32xf32>
    %96 = tpu.matmul %94, %95, %cst_44 {dimension_numbers = #tpu.dot_dimension_numbers<[1], [0], [0], [1], [0, 0, 1, 1], [], []>} : vector<64x3xf32>, vector<3x32xf32>, vector<64x32xf32> -> vector<64x32xf32>
    %c5 = arith.constant 5 : index
    %c0_45 = arith.constant 0 : index
    %97 = vector.load %arg4[%c5, %c0_45] : memref<29x32xf32, #tpu.memory_space<vmem>>, vector<1x32xf32>
    %98 = vector.broadcast %97 : vector<1x32xf32> to vector<64x32xf32>
    %99 = arith.addf %96, %98 : vector<64x32xf32>
    %cst_46 = arith.constant 0.000000e+00 : f32
    %100 = vector.broadcast %cst_46 : f32 to vector<64x32xf32>
    %101 = arith.maximumf %99, %100 : vector<64x32xf32>
    %c88 = arith.constant 88 : index
    %c0_47 = arith.constant 0 : index
    %102 = vector.load %arg2[%c88, %c0_47] : memref<568x32xf32, #tpu.memory_space<vmem>>, vector<32x32xf32>
    %cst_48 = arith.constant dense<0.000000e+00> : vector<64x32xf32>
    %103 = tpu.matmul %101, %102, %cst_48 {dimension_numbers = #tpu.dot_dimension_numbers<[1], [0], [0], [1], [0, 0, 1, 1], [], []>} : vector<64x32xf32>, vector<32x32xf32>, vector<64x32xf32> -> vector<64x32xf32>
    %c6_49 = arith.constant 6 : index
    %c0_50 = arith.constant 0 : index
    %104 = vector.load %arg4[%c6_49, %c0_50] : memref<29x32xf32, #tpu.memory_space<vmem>>, vector<1x32xf32>
    %105 = vector.broadcast %104 : vector<1x32xf32> to vector<64x32xf32>
    %106 = arith.addf %103, %105 : vector<64x32xf32>
    %cst_51 = arith.constant 0.000000e+00 : f32
    %107 = vector.broadcast %cst_51 : f32 to vector<64x32xf32>
    %108 = arith.maximumf %106, %107 : vector<64x32xf32>
    %c120 = arith.constant 120 : index
    %c0_52 = arith.constant 0 : index
    %109 = vector.load %arg2[%c120, %c0_52] : memref<568x32xf32, #tpu.memory_space<vmem>>, vector<32x32xf32>
    %cst_53 = arith.constant dense<0.000000e+00> : vector<64x32xf32>
    %110 = tpu.matmul %108, %109, %cst_53 {dimension_numbers = #tpu.dot_dimension_numbers<[1], [0], [0], [1], [0, 0, 1, 1], [], []>} : vector<64x32xf32>, vector<32x32xf32>, vector<64x32xf32> -> vector<64x32xf32>
    %c7 = arith.constant 7 : index
    %c0_54 = arith.constant 0 : index
    %111 = vector.load %arg4[%c7, %c0_54] : memref<29x32xf32, #tpu.memory_space<vmem>>, vector<1x32xf32>
    %112 = vector.broadcast %111 : vector<1x32xf32> to vector<64x32xf32>
    %113 = arith.addf %110, %112 : vector<64x32xf32>
    %c8_55 = arith.constant 8 : index
    %c0_56 = arith.constant 0 : index
    %114 = vector.load %arg4[%c8_55, %c0_56] : memref<29x32xf32, #tpu.memory_space<vmem>>, vector<1x32xf32>
    %c9 = arith.constant 9 : index
    %c0_57 = arith.constant 0 : index
    %115 = vector.load %arg4[%c9, %c0_57] : memref<29x32xf32, #tpu.memory_space<vmem>>, vector<1x32xf32>
    %cst_58 = arith.constant dense<0.000000e+00> : vector<64xf32>
    %116 = vector.multi_reduction <add>, %113, %cst_58 [1] : vector<64x32xf32> to vector<64xf32>
    %117 = vector.shape_cast %116 : vector<64xf32> to vector<64x1xf32>
    %118 = arith.mulf %113, %113 : vector<64x32xf32>
    %cst_59 = arith.constant dense<0.000000e+00> : vector<64xf32>
    %119 = vector.multi_reduction <add>, %118, %cst_59 [1] : vector<64x32xf32> to vector<64xf32>
    %120 = vector.shape_cast %119 : vector<64xf32> to vector<64x1xf32>
    %cst_60 = arith.constant 3.125000e-02 : f32
    %121 = vector.broadcast %cst_60 : f32 to vector<64x1xf32>
    %122 = arith.mulf %117, %121 : vector<64x1xf32>
    %cst_61 = arith.constant 3.125000e-02 : f32
    %123 = vector.broadcast %cst_61 : f32 to vector<64x1xf32>
    %124 = arith.mulf %120, %123 : vector<64x1xf32>
    %125 = arith.mulf %122, %122 : vector<64x1xf32>
    %126 = arith.subf %124, %125 : vector<64x1xf32>
    %cst_62 = arith.constant 0.000000e+00 : f32
    %127 = vector.broadcast %cst_62 : f32 to vector<64x1xf32>
    %128 = arith.maximumf %126, %127 : vector<64x1xf32>
    %129 = vector.broadcast %122 : vector<64x1xf32> to vector<64x32xf32>
    %130 = arith.subf %113, %129 : vector<64x32xf32>
    %cst_63 = arith.constant 9.99999974E-6 : f32
    %131 = vector.broadcast %cst_63 : f32 to vector<64x1xf32>
    %132 = arith.addf %128, %131 : vector<64x1xf32>
    %133 = math.rsqrt %132 : vector<64x1xf32>
    %134 = vector.broadcast %133 : vector<64x1xf32> to vector<64x32xf32>
    %135 = arith.mulf %130, %134 : vector<64x32xf32>
    %136 = vector.broadcast %114 : vector<1x32xf32> to vector<64x32xf32>
    %137 = arith.mulf %135, %136 : vector<64x32xf32>
    %138 = vector.broadcast %115 : vector<1x32xf32> to vector<64x32xf32>
    %139 = arith.addf %137, %138 : vector<64x32xf32>
    %c0_64 = arith.constant 0 : index
    %c0_65 = arith.constant 0 : index
    %140 = vector.load %arg3[%c0_64, %c0_65] : memref<64x64xf32, #tpu.memory_space<vmem>>, vector<32x64xf32>
    %cst_66 = arith.constant dense<0.000000e+00> : vector<8x64xf32>
    %141 = tpu.matmul %71, %140, %cst_66 {dimension_numbers = #tpu.dot_dimension_numbers<[1], [0], [0], [1], [0, 0, 1, 1], [], []>} : vector<8x32xf32>, vector<32x64xf32>, vector<8x64xf32> -> vector<8x64xf32>
    %142 = vector.extract_strided_slice %141 {offsets = [0, 0], sizes = [8, 32], strides = [1, 1]} : vector<8x64xf32> to vector<8x32xf32>
    %143 = vector.extract_strided_slice %141 {offsets = [0, 32], sizes = [8, 32], strides = [1, 1]} : vector<8x64xf32> to vector<8x32xf32>
    %c152 = arith.constant 152 : index
    %c0_67 = arith.constant 0 : index
    %144 = vector.load %arg2[%c152, %c0_67] : memref<568x32xf32, #tpu.memory_space<vmem>>, vector<32x32xf32>
    %cst_68 = arith.constant dense<0.000000e+00> : vector<64x32xf32>
    %145 = tpu.matmul %139, %144, %cst_68 {dimension_numbers = #tpu.dot_dimension_numbers<[1], [0], [0], [1], [0, 0, 1, 1], [], []>} : vector<64x32xf32>, vector<32x32xf32>, vector<64x32xf32> -> vector<64x32xf32>
    %146 = vector.shape_cast %145 : vector<64x32xf32> to vector<8x8x32xf32>
    %147 = vector.shape_cast %142 : vector<8x32xf32> to vector<8x1x32xf32>
    %148 = vector.broadcast %147 : vector<8x1x32xf32> to vector<8x8x32xf32>
    %149 = arith.addf %146, %148 : vector<8x8x32xf32>
    %150 = vector.shape_cast %143 : vector<8x32xf32> to vector<1x8x32xf32>
    %151 = vector.broadcast %150 : vector<1x8x32xf32> to vector<8x8x32xf32>
    %152 = arith.addf %149, %151 : vector<8x8x32xf32>
    %c10 = arith.constant 10 : index
    %c0_69 = arith.constant 0 : index
    %153 = vector.load %arg4[%c10, %c0_69] : memref<29x32xf32, #tpu.memory_space<vmem>>, vector<1x32xf32>
    %154 = vector.shape_cast %153 : vector<1x32xf32> to vector<1x1x32xf32>
    %155 = vector.broadcast %154 : vector<1x1x32xf32> to vector<8x8x32xf32>
    %156 = arith.addf %152, %155 : vector<8x8x32xf32>
    %cst_70 = arith.constant 0.000000e+00 : f32
    %157 = vector.broadcast %cst_70 : f32 to vector<8x8x32xf32>
    %158 = arith.maximumf %156, %157 : vector<8x8x32xf32>
    %159 = vector.shape_cast %158 : vector<8x8x32xf32> to vector<64x32xf32>
    %c184 = arith.constant 184 : index
    %c0_71 = arith.constant 0 : index
    %160 = vector.load %arg2[%c184, %c0_71] : memref<568x32xf32, #tpu.memory_space<vmem>>, vector<32x32xf32>
    %cst_72 = arith.constant dense<0.000000e+00> : vector<64x32xf32>
    %161 = tpu.matmul %159, %160, %cst_72 {dimension_numbers = #tpu.dot_dimension_numbers<[1], [0], [0], [1], [0, 0, 1, 1], [], []>} : vector<64x32xf32>, vector<32x32xf32>, vector<64x32xf32> -> vector<64x32xf32>
    %c11 = arith.constant 11 : index
    %c0_73 = arith.constant 0 : index
    %162 = vector.load %arg4[%c11, %c0_73] : memref<29x32xf32, #tpu.memory_space<vmem>>, vector<1x32xf32>
    %163 = vector.broadcast %162 : vector<1x32xf32> to vector<64x32xf32>
    %164 = arith.addf %161, %163 : vector<64x32xf32>
    %c12 = arith.constant 12 : index
    %c0_74 = arith.constant 0 : index
    %165 = vector.load %arg4[%c12, %c0_74] : memref<29x32xf32, #tpu.memory_space<vmem>>, vector<1x32xf32>
    %c13 = arith.constant 13 : index
    %c0_75 = arith.constant 0 : index
    %166 = vector.load %arg4[%c13, %c0_75] : memref<29x32xf32, #tpu.memory_space<vmem>>, vector<1x32xf32>
    %cst_76 = arith.constant dense<0.000000e+00> : vector<64xf32>
    %167 = vector.multi_reduction <add>, %164, %cst_76 [1] : vector<64x32xf32> to vector<64xf32>
    %168 = vector.shape_cast %167 : vector<64xf32> to vector<64x1xf32>
    %169 = arith.mulf %164, %164 : vector<64x32xf32>
    %cst_77 = arith.constant dense<0.000000e+00> : vector<64xf32>
    %170 = vector.multi_reduction <add>, %169, %cst_77 [1] : vector<64x32xf32> to vector<64xf32>
    %171 = vector.shape_cast %170 : vector<64xf32> to vector<64x1xf32>
    %cst_78 = arith.constant 3.125000e-02 : f32
    %172 = vector.broadcast %cst_78 : f32 to vector<64x1xf32>
    %173 = arith.mulf %168, %172 : vector<64x1xf32>
    %cst_79 = arith.constant 3.125000e-02 : f32
    %174 = vector.broadcast %cst_79 : f32 to vector<64x1xf32>
    %175 = arith.mulf %171, %174 : vector<64x1xf32>
    %176 = arith.mulf %173, %173 : vector<64x1xf32>
    %177 = arith.subf %175, %176 : vector<64x1xf32>
    %cst_80 = arith.constant 0.000000e+00 : f32
    %178 = vector.broadcast %cst_80 : f32 to vector<64x1xf32>
    %179 = arith.maximumf %177, %178 : vector<64x1xf32>
    %180 = vector.broadcast %173 : vector<64x1xf32> to vector<64x32xf32>
    %181 = arith.subf %164, %180 : vector<64x32xf32>
    %cst_81 = arith.constant 9.99999974E-6 : f32
    %182 = vector.broadcast %cst_81 : f32 to vector<64x1xf32>
    %183 = arith.addf %179, %182 : vector<64x1xf32>
    %184 = math.rsqrt %183 : vector<64x1xf32>
    %185 = vector.broadcast %184 : vector<64x1xf32> to vector<64x32xf32>
    %186 = arith.mulf %181, %185 : vector<64x32xf32>
    %187 = vector.broadcast %165 : vector<1x32xf32> to vector<64x32xf32>
    %188 = arith.mulf %186, %187 : vector<64x32xf32>
    %189 = vector.broadcast %166 : vector<1x32xf32> to vector<64x32xf32>
    %190 = arith.addf %188, %189 : vector<64x32xf32>
    %191 = vector.shape_cast %190 : vector<64x32xf32> to vector<8x8x32xf32>
    %192 = vector.broadcast %92 : vector<8x8x1xf32> to vector<8x8x32xf32>
    %193 = arith.mulf %192, %191 : vector<8x8x32xf32>
    %194 = vector.extract_strided_slice %193 {offsets = [0, 0, 0], sizes = [1, 8, 32], strides = [1, 1, 1]} : vector<8x8x32xf32> to vector<1x8x32xf32>
    %195 = vector.shape_cast %194 : vector<1x8x32xf32> to vector<8x32xf32>
    %196 = vector.extract_strided_slice %193 {offsets = [1, 0, 0], sizes = [1, 8, 32], strides = [1, 1, 1]} : vector<8x8x32xf32> to vector<1x8x32xf32>
    %197 = vector.shape_cast %196 : vector<1x8x32xf32> to vector<8x32xf32>
    %198 = vector.extract_strided_slice %193 {offsets = [2, 0, 0], sizes = [1, 8, 32], strides = [1, 1, 1]} : vector<8x8x32xf32> to vector<1x8x32xf32>
    %199 = vector.shape_cast %198 : vector<1x8x32xf32> to vector<8x32xf32>
    %200 = vector.extract_strided_slice %193 {offsets = [3, 0, 0], sizes = [1, 8, 32], strides = [1, 1, 1]} : vector<8x8x32xf32> to vector<1x8x32xf32>
    %201 = vector.shape_cast %200 : vector<1x8x32xf32> to vector<8x32xf32>
    %202 = vector.extract_strided_slice %193 {offsets = [4, 0, 0], sizes = [1, 8, 32], strides = [1, 1, 1]} : vector<8x8x32xf32> to vector<1x8x32xf32>
    %203 = vector.shape_cast %202 : vector<1x8x32xf32> to vector<8x32xf32>
    %204 = vector.extract_strided_slice %193 {offsets = [5, 0, 0], sizes = [1, 8, 32], strides = [1, 1, 1]} : vector<8x8x32xf32> to vector<1x8x32xf32>
    %205 = vector.shape_cast %204 : vector<1x8x32xf32> to vector<8x32xf32>
    %206 = vector.extract_strided_slice %193 {offsets = [6, 0, 0], sizes = [1, 8, 32], strides = [1, 1, 1]} : vector<8x8x32xf32> to vector<1x8x32xf32>
    %207 = vector.shape_cast %206 : vector<1x8x32xf32> to vector<8x32xf32>
    %208 = vector.extract_strided_slice %193 {offsets = [7, 0, 0], sizes = [1, 8, 32], strides = [1, 1, 1]} : vector<8x8x32xf32> to vector<1x8x32xf32>
    %209 = vector.shape_cast %208 : vector<1x8x32xf32> to vector<8x32xf32>
    %210 = arith.addf %195, %197 : vector<8x32xf32>
    %211 = arith.addf %199, %201 : vector<8x32xf32>
    %212 = arith.addf %203, %205 : vector<8x32xf32>
    %213 = arith.addf %207, %209 : vector<8x32xf32>
    %214 = arith.addf %210, %211 : vector<8x32xf32>
    %215 = arith.addf %212, %213 : vector<8x32xf32>
    %216 = arith.addf %214, %215 : vector<8x32xf32>
    %217 = tpu.concatenate %71, %216 in 1 : vector<8x32xf32>, vector<8x32xf32> -> vector<8x64xf32>
    %c216 = arith.constant 216 : index
    %c0_82 = arith.constant 0 : index
    %218 = vector.load %arg2[%c216, %c0_82] : memref<568x32xf32, #tpu.memory_space<vmem>>, vector<64x32xf32>
    %cst_83 = arith.constant dense<0.000000e+00> : vector<8x32xf32>
    %219 = tpu.matmul %217, %218, %cst_83 {dimension_numbers = #tpu.dot_dimension_numbers<[1], [0], [0], [1], [0, 0, 1, 1], [], []>} : vector<8x64xf32>, vector<64x32xf32>, vector<8x32xf32> -> vector<8x32xf32>
    %c14 = arith.constant 14 : index
    %c0_84 = arith.constant 0 : index
    %220 = vector.load %arg4[%c14, %c0_84] : memref<29x32xf32, #tpu.memory_space<vmem>>, vector<1x32xf32>
    %221 = vector.broadcast %220 : vector<1x32xf32> to vector<8x32xf32>
    %222 = arith.addf %219, %221 : vector<8x32xf32>
    %cst_85 = arith.constant 0.000000e+00 : f32
    %223 = vector.broadcast %cst_85 : f32 to vector<8x32xf32>
    %224 = arith.maximumf %222, %223 : vector<8x32xf32>
    %c280 = arith.constant 280 : index
    %c0_86 = arith.constant 0 : index
    %225 = vector.load %arg2[%c280, %c0_86] : memref<568x32xf32, #tpu.memory_space<vmem>>, vector<32x32xf32>
    %cst_87 = arith.constant dense<0.000000e+00> : vector<8x32xf32>
    %226 = tpu.matmul %224, %225, %cst_87 {dimension_numbers = #tpu.dot_dimension_numbers<[1], [0], [0], [1], [0, 0, 1, 1], [], []>} : vector<8x32xf32>, vector<32x32xf32>, vector<8x32xf32> -> vector<8x32xf32>
    %c15 = arith.constant 15 : index
    %c0_88 = arith.constant 0 : index
    %227 = vector.load %arg4[%c15, %c0_88] : memref<29x32xf32, #tpu.memory_space<vmem>>, vector<1x32xf32>
    %228 = vector.broadcast %227 : vector<1x32xf32> to vector<8x32xf32>
    %229 = arith.addf %226, %228 : vector<8x32xf32>
    %c16_89 = arith.constant 16 : index
    %c0_90 = arith.constant 0 : index
    %230 = vector.load %arg4[%c16_89, %c0_90] : memref<29x32xf32, #tpu.memory_space<vmem>>, vector<1x32xf32>
    %c17 = arith.constant 17 : index
    %c0_91 = arith.constant 0 : index
    %231 = vector.load %arg4[%c17, %c0_91] : memref<29x32xf32, #tpu.memory_space<vmem>>, vector<1x32xf32>
    %cst_92 = arith.constant dense<0.000000e+00> : vector<8xf32>
    %232 = vector.multi_reduction <add>, %229, %cst_92 [1] : vector<8x32xf32> to vector<8xf32>
    %233 = vector.shape_cast %232 : vector<8xf32> to vector<8x1xf32>
    %234 = arith.mulf %229, %229 : vector<8x32xf32>
    %cst_93 = arith.constant dense<0.000000e+00> : vector<8xf32>
    %235 = vector.multi_reduction <add>, %234, %cst_93 [1] : vector<8x32xf32> to vector<8xf32>
    %236 = vector.shape_cast %235 : vector<8xf32> to vector<8x1xf32>
    %cst_94 = arith.constant 3.125000e-02 : f32
    %237 = vector.broadcast %cst_94 : f32 to vector<8x1xf32>
    %238 = arith.mulf %233, %237 : vector<8x1xf32>
    %cst_95 = arith.constant 3.125000e-02 : f32
    %239 = vector.broadcast %cst_95 : f32 to vector<8x1xf32>
    %240 = arith.mulf %236, %239 : vector<8x1xf32>
    %241 = arith.mulf %238, %238 : vector<8x1xf32>
    %242 = arith.subf %240, %241 : vector<8x1xf32>
    %cst_96 = arith.constant 0.000000e+00 : f32
    %243 = vector.broadcast %cst_96 : f32 to vector<8x1xf32>
    %244 = arith.maximumf %242, %243 : vector<8x1xf32>
    %245 = vector.broadcast %238 : vector<8x1xf32> to vector<8x32xf32>
    %246 = arith.subf %229, %245 : vector<8x32xf32>
    %cst_97 = arith.constant 9.99999974E-6 : f32
    %247 = vector.broadcast %cst_97 : f32 to vector<8x1xf32>
    %248 = arith.addf %244, %247 : vector<8x1xf32>
    %249 = math.rsqrt %248 : vector<8x1xf32>
    %250 = vector.broadcast %249 : vector<8x1xf32> to vector<8x32xf32>
    %251 = arith.mulf %246, %250 : vector<8x32xf32>
    %252 = vector.broadcast %230 : vector<1x32xf32> to vector<8x32xf32>
    %253 = arith.mulf %251, %252 : vector<8x32xf32>
    %254 = vector.broadcast %231 : vector<1x32xf32> to vector<8x32xf32>
    %255 = arith.addf %253, %254 : vector<8x32xf32>
    %256 = arith.addf %71, %255 : vector<8x32xf32>
    %257 = arith.addf %139, %190 : vector<64x32xf32>
    %c32 = arith.constant 32 : index
    %c0_98 = arith.constant 0 : index
    %258 = vector.load %arg3[%c32, %c0_98] : memref<64x64xf32, #tpu.memory_space<vmem>>, vector<32x64xf32>
    %cst_99 = arith.constant dense<0.000000e+00> : vector<8x64xf32>
    %259 = tpu.matmul %256, %258, %cst_99 {dimension_numbers = #tpu.dot_dimension_numbers<[1], [0], [0], [1], [0, 0, 1, 1], [], []>} : vector<8x32xf32>, vector<32x64xf32>, vector<8x64xf32> -> vector<8x64xf32>
    %260 = vector.extract_strided_slice %259 {offsets = [0, 0], sizes = [8, 32], strides = [1, 1]} : vector<8x64xf32> to vector<8x32xf32>
    %261 = vector.extract_strided_slice %259 {offsets = [0, 32], sizes = [8, 32], strides = [1, 1]} : vector<8x64xf32> to vector<8x32xf32>
    %c312 = arith.constant 312 : index
    %c0_100 = arith.constant 0 : index
    %262 = vector.load %arg2[%c312, %c0_100] : memref<568x32xf32, #tpu.memory_space<vmem>>, vector<32x32xf32>
    %cst_101 = arith.constant dense<0.000000e+00> : vector<64x32xf32>
    %263 = tpu.matmul %257, %262, %cst_101 {dimension_numbers = #tpu.dot_dimension_numbers<[1], [0], [0], [1], [0, 0, 1, 1], [], []>} : vector<64x32xf32>, vector<32x32xf32>, vector<64x32xf32> -> vector<64x32xf32>
    %264 = vector.shape_cast %263 : vector<64x32xf32> to vector<8x8x32xf32>
    %265 = vector.shape_cast %260 : vector<8x32xf32> to vector<8x1x32xf32>
    %266 = vector.broadcast %265 : vector<8x1x32xf32> to vector<8x8x32xf32>
    %267 = arith.addf %264, %266 : vector<8x8x32xf32>
    %268 = vector.shape_cast %261 : vector<8x32xf32> to vector<1x8x32xf32>
    %269 = vector.broadcast %268 : vector<1x8x32xf32> to vector<8x8x32xf32>
    %270 = arith.addf %267, %269 : vector<8x8x32xf32>
    %c18 = arith.constant 18 : index
    %c0_102 = arith.constant 0 : index
    %271 = vector.load %arg4[%c18, %c0_102] : memref<29x32xf32, #tpu.memory_space<vmem>>, vector<1x32xf32>
    %272 = vector.shape_cast %271 : vector<1x32xf32> to vector<1x1x32xf32>
    %273 = vector.broadcast %272 : vector<1x1x32xf32> to vector<8x8x32xf32>
    %274 = arith.addf %270, %273 : vector<8x8x32xf32>
    %cst_103 = arith.constant 0.000000e+00 : f32
    %275 = vector.broadcast %cst_103 : f32 to vector<8x8x32xf32>
    %276 = arith.maximumf %274, %275 : vector<8x8x32xf32>
    %277 = vector.shape_cast %276 : vector<8x8x32xf32> to vector<64x32xf32>
    %c344 = arith.constant 344 : index
    %c0_104 = arith.constant 0 : index
    %278 = vector.load %arg2[%c344, %c0_104] : memref<568x32xf32, #tpu.memory_space<vmem>>, vector<32x32xf32>
    %cst_105 = arith.constant dense<0.000000e+00> : vector<64x32xf32>
    %279 = tpu.matmul %277, %278, %cst_105 {dimension_numbers = #tpu.dot_dimension_numbers<[1], [0], [0], [1], [0, 0, 1, 1], [], []>} : vector<64x32xf32>, vector<32x32xf32>, vector<64x32xf32> -> vector<64x32xf32>
    %c19 = arith.constant 19 : index
    %c0_106 = arith.constant 0 : index
    %280 = vector.load %arg4[%c19, %c0_106] : memref<29x32xf32, #tpu.memory_space<vmem>>, vector<1x32xf32>
    %281 = vector.broadcast %280 : vector<1x32xf32> to vector<64x32xf32>
    %282 = arith.addf %279, %281 : vector<64x32xf32>
    %c20 = arith.constant 20 : index
    %c0_107 = arith.constant 0 : index
    %283 = vector.load %arg4[%c20, %c0_107] : memref<29x32xf32, #tpu.memory_space<vmem>>, vector<1x32xf32>
    %c21 = arith.constant 21 : index
    %c0_108 = arith.constant 0 : index
    %284 = vector.load %arg4[%c21, %c0_108] : memref<29x32xf32, #tpu.memory_space<vmem>>, vector<1x32xf32>
    %cst_109 = arith.constant dense<0.000000e+00> : vector<64xf32>
    %285 = vector.multi_reduction <add>, %282, %cst_109 [1] : vector<64x32xf32> to vector<64xf32>
    %286 = vector.shape_cast %285 : vector<64xf32> to vector<64x1xf32>
    %287 = arith.mulf %282, %282 : vector<64x32xf32>
    %cst_110 = arith.constant dense<0.000000e+00> : vector<64xf32>
    %288 = vector.multi_reduction <add>, %287, %cst_110 [1] : vector<64x32xf32> to vector<64xf32>
    %289 = vector.shape_cast %288 : vector<64xf32> to vector<64x1xf32>
    %cst_111 = arith.constant 3.125000e-02 : f32
    %290 = vector.broadcast %cst_111 : f32 to vector<64x1xf32>
    %291 = arith.mulf %286, %290 : vector<64x1xf32>
    %cst_112 = arith.constant 3.125000e-02 : f32
    %292 = vector.broadcast %cst_112 : f32 to vector<64x1xf32>
    %293 = arith.mulf %289, %292 : vector<64x1xf32>
    %294 = arith.mulf %291, %291 : vector<64x1xf32>
    %295 = arith.subf %293, %294 : vector<64x1xf32>
    %cst_113 = arith.constant 0.000000e+00 : f32
    %296 = vector.broadcast %cst_113 : f32 to vector<64x1xf32>
    %297 = arith.maximumf %295, %296 : vector<64x1xf32>
    %298 = vector.broadcast %291 : vector<64x1xf32> to vector<64x32xf32>
    %299 = arith.subf %282, %298 : vector<64x32xf32>
    %cst_114 = arith.constant 9.99999974E-6 : f32
    %300 = vector.broadcast %cst_114 : f32 to vector<64x1xf32>
    %301 = arith.addf %297, %300 : vector<64x1xf32>
    %302 = math.rsqrt %301 : vector<64x1xf32>
    %303 = vector.broadcast %302 : vector<64x1xf32> to vector<64x32xf32>
    %304 = arith.mulf %299, %303 : vector<64x32xf32>
    %305 = vector.broadcast %283 : vector<1x32xf32> to vector<64x32xf32>
    %306 = arith.mulf %304, %305 : vector<64x32xf32>
    %307 = vector.broadcast %284 : vector<1x32xf32> to vector<64x32xf32>
    %308 = arith.addf %306, %307 : vector<64x32xf32>
    %309 = vector.shape_cast %308 : vector<64x32xf32> to vector<8x8x32xf32>
    %310 = vector.broadcast %92 : vector<8x8x1xf32> to vector<8x8x32xf32>
    %311 = arith.mulf %310, %309 : vector<8x8x32xf32>
    %312 = vector.extract_strided_slice %311 {offsets = [0, 0, 0], sizes = [1, 8, 32], strides = [1, 1, 1]} : vector<8x8x32xf32> to vector<1x8x32xf32>
    %313 = vector.shape_cast %312 : vector<1x8x32xf32> to vector<8x32xf32>
    %314 = vector.extract_strided_slice %311 {offsets = [1, 0, 0], sizes = [1, 8, 32], strides = [1, 1, 1]} : vector<8x8x32xf32> to vector<1x8x32xf32>
    %315 = vector.shape_cast %314 : vector<1x8x32xf32> to vector<8x32xf32>
    %316 = vector.extract_strided_slice %311 {offsets = [2, 0, 0], sizes = [1, 8, 32], strides = [1, 1, 1]} : vector<8x8x32xf32> to vector<1x8x32xf32>
    %317 = vector.shape_cast %316 : vector<1x8x32xf32> to vector<8x32xf32>
    %318 = vector.extract_strided_slice %311 {offsets = [3, 0, 0], sizes = [1, 8, 32], strides = [1, 1, 1]} : vector<8x8x32xf32> to vector<1x8x32xf32>
    %319 = vector.shape_cast %318 : vector<1x8x32xf32> to vector<8x32xf32>
    %320 = vector.extract_strided_slice %311 {offsets = [4, 0, 0], sizes = [1, 8, 32], strides = [1, 1, 1]} : vector<8x8x32xf32> to vector<1x8x32xf32>
    %321 = vector.shape_cast %320 : vector<1x8x32xf32> to vector<8x32xf32>
    %322 = vector.extract_strided_slice %311 {offsets = [5, 0, 0], sizes = [1, 8, 32], strides = [1, 1, 1]} : vector<8x8x32xf32> to vector<1x8x32xf32>
    %323 = vector.shape_cast %322 : vector<1x8x32xf32> to vector<8x32xf32>
    %324 = vector.extract_strided_slice %311 {offsets = [6, 0, 0], sizes = [1, 8, 32], strides = [1, 1, 1]} : vector<8x8x32xf32> to vector<1x8x32xf32>
    %325 = vector.shape_cast %324 : vector<1x8x32xf32> to vector<8x32xf32>
    %326 = vector.extract_strided_slice %311 {offsets = [7, 0, 0], sizes = [1, 8, 32], strides = [1, 1, 1]} : vector<8x8x32xf32> to vector<1x8x32xf32>
    %327 = vector.shape_cast %326 : vector<1x8x32xf32> to vector<8x32xf32>
    %328 = arith.addf %313, %315 : vector<8x32xf32>
    %329 = arith.addf %317, %319 : vector<8x32xf32>
    %330 = arith.addf %321, %323 : vector<8x32xf32>
    %331 = arith.addf %325, %327 : vector<8x32xf32>
    %332 = arith.addf %328, %329 : vector<8x32xf32>
    %333 = arith.addf %330, %331 : vector<8x32xf32>
    %334 = arith.addf %332, %333 : vector<8x32xf32>
    %335 = tpu.concatenate %256, %334 in 1 : vector<8x32xf32>, vector<8x32xf32> -> vector<8x64xf32>
    %c376 = arith.constant 376 : index
    %c0_115 = arith.constant 0 : index
    %336 = vector.load %arg2[%c376, %c0_115] : memref<568x32xf32, #tpu.memory_space<vmem>>, vector<64x32xf32>
    %cst_116 = arith.constant dense<0.000000e+00> : vector<8x32xf32>
    %337 = tpu.matmul %335, %336, %cst_116 {dimension_numbers = #tpu.dot_dimension_numbers<[1], [0], [0], [1], [0, 0, 1, 1], [], []>} : vector<8x64xf32>, vector<64x32xf32>, vector<8x32xf32> -> vector<8x32xf32>
    %c22 = arith.constant 22 : index
    %c0_117 = arith.constant 0 : index
    %338 = vector.load %arg4[%c22, %c0_117] : memref<29x32xf32, #tpu.memory_space<vmem>>, vector<1x32xf32>
    %339 = vector.broadcast %338 : vector<1x32xf32> to vector<8x32xf32>
    %340 = arith.addf %337, %339 : vector<8x32xf32>
    %cst_118 = arith.constant 0.000000e+00 : f32
    %341 = vector.broadcast %cst_118 : f32 to vector<8x32xf32>
    %342 = arith.maximumf %340, %341 : vector<8x32xf32>
    %c440 = arith.constant 440 : index
    %c0_119 = arith.constant 0 : index
    %343 = vector.load %arg2[%c440, %c0_119] : memref<568x32xf32, #tpu.memory_space<vmem>>, vector<32x32xf32>
    %cst_120 = arith.constant dense<0.000000e+00> : vector<8x32xf32>
    %344 = tpu.matmul %342, %343, %cst_120 {dimension_numbers = #tpu.dot_dimension_numbers<[1], [0], [0], [1], [0, 0, 1, 1], [], []>} : vector<8x32xf32>, vector<32x32xf32>, vector<8x32xf32> -> vector<8x32xf32>
    %c23 = arith.constant 23 : index
    %c0_121 = arith.constant 0 : index
    %345 = vector.load %arg4[%c23, %c0_121] : memref<29x32xf32, #tpu.memory_space<vmem>>, vector<1x32xf32>
    %346 = vector.broadcast %345 : vector<1x32xf32> to vector<8x32xf32>
    %347 = arith.addf %344, %346 : vector<8x32xf32>
    %c24 = arith.constant 24 : index
    %c0_122 = arith.constant 0 : index
    %348 = vector.load %arg4[%c24, %c0_122] : memref<29x32xf32, #tpu.memory_space<vmem>>, vector<1x32xf32>
    %c25 = arith.constant 25 : index
    %c0_123 = arith.constant 0 : index
    %349 = vector.load %arg4[%c25, %c0_123] : memref<29x32xf32, #tpu.memory_space<vmem>>, vector<1x32xf32>
    %cst_124 = arith.constant dense<0.000000e+00> : vector<8xf32>
    %350 = vector.multi_reduction <add>, %347, %cst_124 [1] : vector<8x32xf32> to vector<8xf32>
    %351 = vector.shape_cast %350 : vector<8xf32> to vector<8x1xf32>
    %352 = arith.mulf %347, %347 : vector<8x32xf32>
    %cst_125 = arith.constant dense<0.000000e+00> : vector<8xf32>
    %353 = vector.multi_reduction <add>, %352, %cst_125 [1] : vector<8x32xf32> to vector<8xf32>
    %354 = vector.shape_cast %353 : vector<8xf32> to vector<8x1xf32>
    %cst_126 = arith.constant 3.125000e-02 : f32
    %355 = vector.broadcast %cst_126 : f32 to vector<8x1xf32>
    %356 = arith.mulf %351, %355 : vector<8x1xf32>
    %cst_127 = arith.constant 3.125000e-02 : f32
    %357 = vector.broadcast %cst_127 : f32 to vector<8x1xf32>
    %358 = arith.mulf %354, %357 : vector<8x1xf32>
    %359 = arith.mulf %356, %356 : vector<8x1xf32>
    %360 = arith.subf %358, %359 : vector<8x1xf32>
    %cst_128 = arith.constant 0.000000e+00 : f32
    %361 = vector.broadcast %cst_128 : f32 to vector<8x1xf32>
    %362 = arith.maximumf %360, %361 : vector<8x1xf32>
    %363 = vector.broadcast %356 : vector<8x1xf32> to vector<8x32xf32>
    %364 = arith.subf %347, %363 : vector<8x32xf32>
    %cst_129 = arith.constant 9.99999974E-6 : f32
    %365 = vector.broadcast %cst_129 : f32 to vector<8x1xf32>
    %366 = arith.addf %362, %365 : vector<8x1xf32>
    %367 = math.rsqrt %366 : vector<8x1xf32>
    %368 = vector.broadcast %367 : vector<8x1xf32> to vector<8x32xf32>
    %369 = arith.mulf %364, %368 : vector<8x32xf32>
    %370 = vector.broadcast %348 : vector<1x32xf32> to vector<8x32xf32>
    %371 = arith.mulf %369, %370 : vector<8x32xf32>
    %372 = vector.broadcast %349 : vector<1x32xf32> to vector<8x32xf32>
    %373 = arith.addf %371, %372 : vector<8x32xf32>
    %374 = arith.addf %256, %373 : vector<8x32xf32>
    %c472 = arith.constant 472 : index
    %c0_130 = arith.constant 0 : index
    %375 = vector.load %arg2[%c472, %c0_130] : memref<568x32xf32, #tpu.memory_space<vmem>>, vector<32x32xf32>
    %cst_131 = arith.constant dense<0.000000e+00> : vector<8x32xf32>
    %376 = tpu.matmul %374, %375, %cst_131 {dimension_numbers = #tpu.dot_dimension_numbers<[1], [0], [0], [1], [0, 0, 1, 1], [], []>} : vector<8x32xf32>, vector<32x32xf32>, vector<8x32xf32> -> vector<8x32xf32>
    %c26 = arith.constant 26 : index
    %c0_132 = arith.constant 0 : index
    %377 = vector.load %arg4[%c26, %c0_132] : memref<29x32xf32, #tpu.memory_space<vmem>>, vector<1x32xf32>
    %378 = vector.broadcast %377 : vector<1x32xf32> to vector<8x32xf32>
    %379 = arith.addf %376, %378 : vector<8x32xf32>
    %cst_133 = arith.constant 0.000000e+00 : f32
    %380 = vector.broadcast %cst_133 : f32 to vector<8x32xf32>
    %381 = arith.maximumf %379, %380 : vector<8x32xf32>
    %c504 = arith.constant 504 : index
    %c0_134 = arith.constant 0 : index
    %382 = vector.load %arg2[%c504, %c0_134] : memref<568x32xf32, #tpu.memory_space<vmem>>, vector<32x32xf32>
    %cst_135 = arith.constant dense<0.000000e+00> : vector<8x32xf32>
    %383 = tpu.matmul %381, %382, %cst_135 {dimension_numbers = #tpu.dot_dimension_numbers<[1], [0], [0], [1], [0, 0, 1, 1], [], []>} : vector<8x32xf32>, vector<32x32xf32>, vector<8x32xf32> -> vector<8x32xf32>
    %c27 = arith.constant 27 : index
    %c0_136 = arith.constant 0 : index
    %384 = vector.load %arg4[%c27, %c0_136] : memref<29x32xf32, #tpu.memory_space<vmem>>, vector<1x32xf32>
    %385 = vector.broadcast %384 : vector<1x32xf32> to vector<8x32xf32>
    %386 = arith.addf %383, %385 : vector<8x32xf32>
    %cst_137 = arith.constant 0.000000e+00 : f32
    %387 = vector.broadcast %cst_137 : f32 to vector<8x32xf32>
    %388 = arith.maximumf %386, %387 : vector<8x32xf32>
    %c536 = arith.constant 536 : index
    %c0_138 = arith.constant 0 : index
    %389 = vector.load %arg2[%c536, %c0_138] : memref<568x32xf32, #tpu.memory_space<vmem>>, vector<32x32xf32>
    %cst_139 = arith.constant dense<0.000000e+00> : vector<8x32xf32>
    %390 = tpu.matmul %388, %389, %cst_139 {dimension_numbers = #tpu.dot_dimension_numbers<[1], [0], [0], [1], [0, 0, 1, 1], [], []>} : vector<8x32xf32>, vector<32x32xf32>, vector<8x32xf32> -> vector<8x32xf32>
    %c28 = arith.constant 28 : index
    %c0_140 = arith.constant 0 : index
    %391 = vector.load %arg4[%c28, %c0_140] : memref<29x32xf32, #tpu.memory_space<vmem>>, vector<1x32xf32>
    %392 = vector.broadcast %391 : vector<1x32xf32> to vector<8x32xf32>
    %393 = arith.addf %390, %392 : vector<8x32xf32>
    %394 = vector.extract_strided_slice %393 {offsets = [0, 0], sizes = [8, 2], strides = [1, 1]} : vector<8x32xf32> to vector<8x2xf32>
    %395 = arith.addf %0, %1 : vector<8x2xf32>
    %396 = arith.addf %395, %394 : vector<8x2xf32>
    %397 = vector.broadcast %3 : vector<8x1xf32> to vector<8x2xf32>
    %398 = arith.mulf %397, %396 : vector<8x2xf32>
    %cst_141 = arith.constant 1.000000e+00 : f32
    %399 = vector.broadcast %cst_141 : f32 to vector<8x1xf32>
    %400 = arith.subf %399, %3 : vector<8x1xf32>
    %401 = vector.broadcast %400 : vector<8x1xf32> to vector<8x2xf32>
    %402 = arith.mulf %401, %2 : vector<8x2xf32>
    %403 = arith.addf %398, %402 : vector<8x2xf32>
    %404 = tpu.concatenate %394, %403 in 1 : vector<8x2xf32>, vector<8x2xf32> -> vector<8x4xf32>
    %c0_142 = arith.constant 0 : index
    %c0_143 = arith.constant 0 : index
    %c0_144 = arith.constant 0 : index
    %405 = vector.load %arg5[%c0_142, %c0_143, %c0_144] : memref<2x8x4xf32, #tpu.memory_space<vmem>>, vector<1x8x4xf32>
    %406 = vector.shape_cast %405 : vector<1x8x4xf32> to vector<8x4xf32>
    %407 = vector.shape_cast %404 : vector<8x4xf32> to vector<1x8x4xf32>
    tpu.vector_store %arg5[%c0_142, %c0_143, %c0_144], %407 {strides = array<i32>} : memref<2x8x4xf32, #tpu.memory_space<vmem>>, vector<1x8x4xf32>,
    %408 = arith.subf %403, %0 : vector<8x2xf32>
    %409 = vector.broadcast %5 : vector<1x2xf32> to vector<8x2xf32>
    %410 = arith.subf %403, %409 : vector<8x2xf32>
    %cst_145 = arith.constant 1.000000e+00 : f32
    %411 = vector.broadcast %cst_145 : f32 to vector<8x2xf32>
    %412 = arith.mulf %410, %411 : vector<8x2xf32>
    %cst_146 = arith.constant -1.000000e+00 : f32
    %cst_147 = arith.constant 1.000000e+00 : f32
    %413 = vector.broadcast %cst_146 : f32 to vector<8x2xf32>
    %414 = arith.maximumf %413, %412 : vector<8x2xf32>
    %415 = vector.broadcast %cst_147 : f32 to vector<8x2xf32>
    %416 = arith.minimumf %415, %414 : vector<8x2xf32>
    %417 = vector.broadcast %6 : vector<1x2xf32> to vector<8x2xf32>
    %418 = arith.subf %417, %403 : vector<8x2xf32>
    %cst_148 = arith.constant 1.000000e+00 : f32
    %419 = vector.broadcast %cst_148 : f32 to vector<8x2xf32>
    %420 = arith.mulf %418, %419 : vector<8x2xf32>
    %cst_149 = arith.constant -1.000000e+00 : f32
    %cst_150 = arith.constant 1.000000e+00 : f32
    %421 = vector.broadcast %cst_149 : f32 to vector<8x2xf32>
    %422 = arith.maximumf %421, %420 : vector<8x2xf32>
    %423 = vector.broadcast %cst_150 : f32 to vector<8x2xf32>
    %424 = arith.minimumf %423, %422 : vector<8x2xf32>
    %425 = tpu.concatenate %408, %416, %424 in 1 : vector<8x2xf32>, vector<8x2xf32>, vector<8x2xf32> -> vector<8x6xf32>
    %c0_151 = arith.constant 0 : index
    %c0_152 = arith.constant 0 : index
    %426 = vector.load %arg2[%c0_151, %c0_152] : memref<568x32xf32, #tpu.memory_space<vmem>>, vector<6x32xf32>
    %cst_153 = arith.constant dense<0.000000e+00> : vector<8x32xf32>
    %427 = tpu.matmul %425, %426, %cst_153 {dimension_numbers = #tpu.dot_dimension_numbers<[1], [0], [0], [1], [0, 0, 1, 1], [], []>} : vector<8x6xf32>, vector<6x32xf32>, vector<8x32xf32> -> vector<8x32xf32>
    %428 = arith.addf %427, %11 : vector<8x32xf32>
    %cst_154 = arith.constant 0.000000e+00 : f32
    %429 = vector.broadcast %cst_154 : f32 to vector<8x32xf32>
    %430 = arith.maximumf %428, %429 : vector<8x32xf32>
    %c16_155 = arith.constant 16 : index
    %c0_156 = arith.constant 0 : index
    %431 = vector.load %arg2[%c16_155, %c0_156] : memref<568x32xf32, #tpu.memory_space<vmem>>, vector<32x32xf32>
    %cst_157 = arith.constant dense<0.000000e+00> : vector<8x32xf32>
    %432 = tpu.matmul %430, %431, %cst_157 {dimension_numbers = #tpu.dot_dimension_numbers<[1], [0], [0], [1], [0, 0, 1, 1], [], []>} : vector<8x32xf32>, vector<32x32xf32>, vector<8x32xf32> -> vector<8x32xf32>
    %c1_158 = arith.constant 1 : index
    %c0_159 = arith.constant 0 : index
    %433 = vector.load %arg4[%c1_158, %c0_159] : memref<29x32xf32, #tpu.memory_space<vmem>>, vector<1x32xf32>
    %434 = vector.broadcast %433 : vector<1x32xf32> to vector<8x32xf32>
    %435 = arith.addf %432, %434 : vector<8x32xf32>
    %cst_160 = arith.constant 0.000000e+00 : f32
    %436 = vector.broadcast %cst_160 : f32 to vector<8x32xf32>
    %437 = arith.maximumf %435, %436 : vector<8x32xf32>
    %c48_161 = arith.constant 48 : index
    %c0_162 = arith.constant 0 : index
    %438 = vector.load %arg2[%c48_161, %c0_162] : memref<568x32xf32, #tpu.memory_space<vmem>>, vector<32x32xf32>
    %cst_163 = arith.constant dense<0.000000e+00> : vector<8x32xf32>
    %439 = tpu.matmul %437, %438, %cst_163 {dimension_numbers = #tpu.dot_dimension_numbers<[1], [0], [0], [1], [0, 0, 1, 1], [], []>} : vector<8x32xf32>, vector<32x32xf32>, vector<8x32xf32> -> vector<8x32xf32>
    %c2_164 = arith.constant 2 : index
    %c0_165 = arith.constant 0 : index
    %440 = vector.load %arg4[%c2_164, %c0_165] : memref<29x32xf32, #tpu.memory_space<vmem>>, vector<1x32xf32>
    %441 = vector.broadcast %440 : vector<1x32xf32> to vector<8x32xf32>
    %442 = arith.addf %439, %441 : vector<8x32xf32>
    %c3_166 = arith.constant 3 : index
    %c0_167 = arith.constant 0 : index
    %443 = vector.load %arg4[%c3_166, %c0_167] : memref<29x32xf32, #tpu.memory_space<vmem>>, vector<1x32xf32>
    %c4_168 = arith.constant 4 : index
    %c0_169 = arith.constant 0 : index
    %444 = vector.load %arg4[%c4_168, %c0_169] : memref<29x32xf32, #tpu.memory_space<vmem>>, vector<1x32xf32>
    %cst_170 = arith.constant dense<0.000000e+00> : vector<8xf32>
    %445 = vector.multi_reduction <add>, %442, %cst_170 [1] : vector<8x32xf32> to vector<8xf32>
    %446 = vector.shape_cast %445 : vector<8xf32> to vector<8x1xf32>
    %447 = arith.mulf %442, %442 : vector<8x32xf32>
    %cst_171 = arith.constant dense<0.000000e+00> : vector<8xf32>
    %448 = vector.multi_reduction <add>, %447, %cst_171 [1] : vector<8x32xf32> to vector<8xf32>
    %449 = vector.shape_cast %448 : vector<8xf32> to vector<8x1xf32>
    %cst_172 = arith.constant 3.125000e-02 : f32
    %450 = vector.broadcast %cst_172 : f32 to vector<8x1xf32>
    %451 = arith.mulf %446, %450 : vector<8x1xf32>
    %cst_173 = arith.constant 3.125000e-02 : f32
    %452 = vector.broadcast %cst_173 : f32 to vector<8x1xf32>
    %453 = arith.mulf %449, %452 : vector<8x1xf32>
    %454 = arith.mulf %451, %451 : vector<8x1xf32>
    %455 = arith.subf %453, %454 : vector<8x1xf32>
    %cst_174 = arith.constant 0.000000e+00 : f32
    %456 = vector.broadcast %cst_174 : f32 to vector<8x1xf32>
    %457 = arith.maximumf %455, %456 : vector<8x1xf32>
    %458 = vector.broadcast %451 : vector<8x1xf32> to vector<8x32xf32>
    %459 = arith.subf %442, %458 : vector<8x32xf32>
    %cst_175 = arith.constant 9.99999974E-6 : f32
    %460 = vector.broadcast %cst_175 : f32 to vector<8x1xf32>
    %461 = arith.addf %457, %460 : vector<8x1xf32>
    %462 = math.rsqrt %461 : vector<8x1xf32>
    %463 = vector.broadcast %462 : vector<8x1xf32> to vector<8x32xf32>
    %464 = arith.mulf %459, %463 : vector<8x32xf32>
    %465 = vector.broadcast %443 : vector<1x32xf32> to vector<8x32xf32>
    %466 = arith.mulf %464, %465 : vector<8x32xf32>
    %467 = vector.broadcast %444 : vector<1x32xf32> to vector<8x32xf32>
    %468 = arith.addf %466, %467 : vector<8x32xf32>
    %469 = vector.shape_cast %403 : vector<8x2xf32> to vector<8x1x2xf32>
    %470 = vector.shape_cast %403 : vector<8x2xf32> to vector<1x8x2xf32>
    %471 = vector.broadcast %469 : vector<8x1x2xf32> to vector<8x8x2xf32>
    %472 = vector.broadcast %470 : vector<1x8x2xf32> to vector<8x8x2xf32>
    %473 = arith.subf %471, %472 : vector<8x8x2xf32>
    %cst_176 = arith.constant 1.000000e+00 : f32
    %474 = vector.broadcast %cst_176 : f32 to vector<8x8x2xf32>
    %475 = arith.mulf %473, %474 : vector<8x8x2xf32>
    %476 = vector.extract_strided_slice %475 {offsets = [0, 0, 0], sizes = [8, 8, 1], strides = [1, 1, 1]} : vector<8x8x2xf32> to vector<8x8x1xf32>
    %477 = vector.extract_strided_slice %475 {offsets = [0, 0, 0], sizes = [8, 8, 1], strides = [1, 1, 1]} : vector<8x8x2xf32> to vector<8x8x1xf32>
    %478 = arith.mulf %476, %477 : vector<8x8x1xf32>
    %cst_177 = arith.constant 0.000000e+00 : f32
    %479 = vector.broadcast %cst_177 : f32 to vector<8x8x1xf32>
    %480 = arith.addf %479, %478 : vector<8x8x1xf32>
    %481 = vector.extract_strided_slice %475 {offsets = [0, 0, 1], sizes = [8, 8, 1], strides = [1, 1, 1]} : vector<8x8x2xf32> to vector<8x8x1xf32>
    %482 = vector.extract_strided_slice %475 {offsets = [0, 0, 1], sizes = [8, 8, 1], strides = [1, 1, 1]} : vector<8x8x2xf32> to vector<8x8x1xf32>
    %483 = arith.mulf %481, %482 : vector<8x8x1xf32>
    %484 = arith.addf %480, %483 : vector<8x8x1xf32>
    %485 = math.sqrt %484 : vector<8x8x1xf32>
    %cst_178 = arith.constant 1.000000e+00 : f32
    %486 = vector.broadcast %cst_178 : f32 to vector<8x8x1xf32>
    %487 = arith.cmpf ole, %485, %486 : vector<8x8x1xf32>
    %488 = arith.extui %487 : vector<8x8x1xi1> to vector<8x8x1xi32>
    %489 = arith.sitofp %488 : vector<8x8x1xi32> to vector<8x8x1xf32>
    %490 = tpu.concatenate %475, %485 in 2 : vector<8x8x2xf32>, vector<8x8x1xf32> -> vector<8x8x3xf32>
    %491 = vector.shape_cast %490 : vector<8x8x3xf32> to vector<64x3xf32>
    %c80_179 = arith.constant 80 : index
    %c0_180 = arith.constant 0 : index
    %492 = vector.load %arg2[%c80_179, %c0_180] : memref<568x32xf32, #tpu.memory_space<vmem>>, vector<3x32xf32>
    %cst_181 = arith.constant dense<0.000000e+00> : vector<64x32xf32>
    %493 = tpu.matmul %491, %492, %cst_181 {dimension_numbers = #tpu.dot_dimension_numbers<[1], [0], [0], [1], [0, 0, 1, 1], [], []>} : vector<64x3xf32>, vector<3x32xf32>, vector<64x32xf32> -> vector<64x32xf32>
    %c5_182 = arith.constant 5 : index
    %c0_183 = arith.constant 0 : index
    %494 = vector.load %arg4[%c5_182, %c0_183] : memref<29x32xf32, #tpu.memory_space<vmem>>, vector<1x32xf32>
    %495 = vector.broadcast %494 : vector<1x32xf32> to vector<64x32xf32>
    %496 = arith.addf %493, %495 : vector<64x32xf32>
    %cst_184 = arith.constant 0.000000e+00 : f32
    %497 = vector.broadcast %cst_184 : f32 to vector<64x32xf32>
    %498 = arith.maximumf %496, %497 : vector<64x32xf32>
    %c88_185 = arith.constant 88 : index
    %c0_186 = arith.constant 0 : index
    %499 = vector.load %arg2[%c88_185, %c0_186] : memref<568x32xf32, #tpu.memory_space<vmem>>, vector<32x32xf32>
    %cst_187 = arith.constant dense<0.000000e+00> : vector<64x32xf32>
    %500 = tpu.matmul %498, %499, %cst_187 {dimension_numbers = #tpu.dot_dimension_numbers<[1], [0], [0], [1], [0, 0, 1, 1], [], []>} : vector<64x32xf32>, vector<32x32xf32>, vector<64x32xf32> -> vector<64x32xf32>
    %c6_188 = arith.constant 6 : index
    %c0_189 = arith.constant 0 : index
    %501 = vector.load %arg4[%c6_188, %c0_189] : memref<29x32xf32, #tpu.memory_space<vmem>>, vector<1x32xf32>
    %502 = vector.broadcast %501 : vector<1x32xf32> to vector<64x32xf32>
    %503 = arith.addf %500, %502 : vector<64x32xf32>
    %cst_190 = arith.constant 0.000000e+00 : f32
    %504 = vector.broadcast %cst_190 : f32 to vector<64x32xf32>
    %505 = arith.maximumf %503, %504 : vector<64x32xf32>
    %c120_191 = arith.constant 120 : index
    %c0_192 = arith.constant 0 : index
    %506 = vector.load %arg2[%c120_191, %c0_192] : memref<568x32xf32, #tpu.memory_space<vmem>>, vector<32x32xf32>
    %cst_193 = arith.constant dense<0.000000e+00> : vector<64x32xf32>
    %507 = tpu.matmul %505, %506, %cst_193 {dimension_numbers = #tpu.dot_dimension_numbers<[1], [0], [0], [1], [0, 0, 1, 1], [], []>} : vector<64x32xf32>, vector<32x32xf32>, vector<64x32xf32> -> vector<64x32xf32>
    %c7_194 = arith.constant 7 : index
    %c0_195 = arith.constant 0 : index
    %508 = vector.load %arg4[%c7_194, %c0_195] : memref<29x32xf32, #tpu.memory_space<vmem>>, vector<1x32xf32>
    %509 = vector.broadcast %508 : vector<1x32xf32> to vector<64x32xf32>
    %510 = arith.addf %507, %509 : vector<64x32xf32>
    %c8_196 = arith.constant 8 : index
    %c0_197 = arith.constant 0 : index
    %511 = vector.load %arg4[%c8_196, %c0_197] : memref<29x32xf32, #tpu.memory_space<vmem>>, vector<1x32xf32>
    %c9_198 = arith.constant 9 : index
    %c0_199 = arith.constant 0 : index
    %512 = vector.load %arg4[%c9_198, %c0_199] : memref<29x32xf32, #tpu.memory_space<vmem>>, vector<1x32xf32>
    %cst_200 = arith.constant dense<0.000000e+00> : vector<64xf32>
    %513 = vector.multi_reduction <add>, %510, %cst_200 [1] : vector<64x32xf32> to vector<64xf32>
    %514 = vector.shape_cast %513 : vector<64xf32> to vector<64x1xf32>
    %515 = arith.mulf %510, %510 : vector<64x32xf32>
    %cst_201 = arith.constant dense<0.000000e+00> : vector<64xf32>
    %516 = vector.multi_reduction <add>, %515, %cst_201 [1] : vector<64x32xf32> to vector<64xf32>
    %517 = vector.shape_cast %516 : vector<64xf32> to vector<64x1xf32>
    %cst_202 = arith.constant 3.125000e-02 : f32
    %518 = vector.broadcast %cst_202 : f32 to vector<64x1xf32>
    %519 = arith.mulf %514, %518 : vector<64x1xf32>
    %cst_203 = arith.constant 3.125000e-02 : f32
    %520 = vector.broadcast %cst_203 : f32 to vector<64x1xf32>
    %521 = arith.mulf %517, %520 : vector<64x1xf32>
    %522 = arith.mulf %519, %519 : vector<64x1xf32>
    %523 = arith.subf %521, %522 : vector<64x1xf32>
    %cst_204 = arith.constant 0.000000e+00 : f32
    %524 = vector.broadcast %cst_204 : f32 to vector<64x1xf32>
    %525 = arith.maximumf %523, %524 : vector<64x1xf32>
    %526 = vector.broadcast %519 : vector<64x1xf32> to vector<64x32xf32>
    %527 = arith.subf %510, %526 : vector<64x32xf32>
    %cst_205 = arith.constant 9.99999974E-6 : f32
    %528 = vector.broadcast %cst_205 : f32 to vector<64x1xf32>
    %529 = arith.addf %525, %528 : vector<64x1xf32>
    %530 = math.rsqrt %529 : vector<64x1xf32>
    %531 = vector.broadcast %530 : vector<64x1xf32> to vector<64x32xf32>
    %532 = arith.mulf %527, %531 : vector<64x32xf32>
    %533 = vector.broadcast %511 : vector<1x32xf32> to vector<64x32xf32>
    %534 = arith.mulf %532, %533 : vector<64x32xf32>
    %535 = vector.broadcast %512 : vector<1x32xf32> to vector<64x32xf32>
    %536 = arith.addf %534, %535 : vector<64x32xf32>
    %c0_206 = arith.constant 0 : index
    %c0_207 = arith.constant 0 : index
    %537 = vector.load %arg3[%c0_206, %c0_207] : memref<64x64xf32, #tpu.memory_space<vmem>>, vector<32x64xf32>
    %cst_208 = arith.constant dense<0.000000e+00> : vector<8x64xf32>
    %538 = tpu.matmul %468, %537, %cst_208 {dimension_numbers = #tpu.dot_dimension_numbers<[1], [0], [0], [1], [0, 0, 1, 1], [], []>} : vector<8x32xf32>, vector<32x64xf32>, vector<8x64xf32> -> vector<8x64xf32>
    %539 = vector.extract_strided_slice %538 {offsets = [0, 0], sizes = [8, 32], strides = [1, 1]} : vector<8x64xf32> to vector<8x32xf32>
    %540 = vector.extract_strided_slice %538 {offsets = [0, 32], sizes = [8, 32], strides = [1, 1]} : vector<8x64xf32> to vector<8x32xf32>
    %c152_209 = arith.constant 152 : index
    %c0_210 = arith.constant 0 : index
    %541 = vector.load %arg2[%c152_209, %c0_210] : memref<568x32xf32, #tpu.memory_space<vmem>>, vector<32x32xf32>
    %cst_211 = arith.constant dense<0.000000e+00> : vector<64x32xf32>
    %542 = tpu.matmul %536, %541, %cst_211 {dimension_numbers = #tpu.dot_dimension_numbers<[1], [0], [0], [1], [0, 0, 1, 1], [], []>} : vector<64x32xf32>, vector<32x32xf32>, vector<64x32xf32> -> vector<64x32xf32>
    %543 = vector.shape_cast %542 : vector<64x32xf32> to vector<8x8x32xf32>
    %544 = vector.shape_cast %539 : vector<8x32xf32> to vector<8x1x32xf32>
    %545 = vector.broadcast %544 : vector<8x1x32xf32> to vector<8x8x32xf32>
    %546 = arith.addf %543, %545 : vector<8x8x32xf32>
    %547 = vector.shape_cast %540 : vector<8x32xf32> to vector<1x8x32xf32>
    %548 = vector.broadcast %547 : vector<1x8x32xf32> to vector<8x8x32xf32>
    %549 = arith.addf %546, %548 : vector<8x8x32xf32>
    %c10_212 = arith.constant 10 : index
    %c0_213 = arith.constant 0 : index
    %550 = vector.load %arg4[%c10_212, %c0_213] : memref<29x32xf32, #tpu.memory_space<vmem>>, vector<1x32xf32>
    %551 = vector.shape_cast %550 : vector<1x32xf32> to vector<1x1x32xf32>
    %552 = vector.broadcast %551 : vector<1x1x32xf32> to vector<8x8x32xf32>
    %553 = arith.addf %549, %552 : vector<8x8x32xf32>
    %cst_214 = arith.constant 0.000000e+00 : f32
    %554 = vector.broadcast %cst_214 : f32 to vector<8x8x32xf32>
    %555 = arith.maximumf %553, %554 : vector<8x8x32xf32>
    %556 = vector.shape_cast %555 : vector<8x8x32xf32> to vector<64x32xf32>
    %c184_215 = arith.constant 184 : index
    %c0_216 = arith.constant 0 : index
    %557 = vector.load %arg2[%c184_215, %c0_216] : memref<568x32xf32, #tpu.memory_space<vmem>>, vector<32x32xf32>
    %cst_217 = arith.constant dense<0.000000e+00> : vector<64x32xf32>
    %558 = tpu.matmul %556, %557, %cst_217 {dimension_numbers = #tpu.dot_dimension_numbers<[1], [0], [0], [1], [0, 0, 1, 1], [], []>} : vector<64x32xf32>, vector<32x32xf32>, vector<64x32xf32> -> vector<64x32xf32>
    %c11_218 = arith.constant 11 : index
    %c0_219 = arith.constant 0 : index
    %559 = vector.load %arg4[%c11_218, %c0_219] : memref<29x32xf32, #tpu.memory_space<vmem>>, vector<1x32xf32>
    %560 = vector.broadcast %559 : vector<1x32xf32> to vector<64x32xf32>
    %561 = arith.addf %558, %560 : vector<64x32xf32>
    %c12_220 = arith.constant 12 : index
    %c0_221 = arith.constant 0 : index
    %562 = vector.load %arg4[%c12_220, %c0_221] : memref<29x32xf32, #tpu.memory_space<vmem>>, vector<1x32xf32>
    %c13_222 = arith.constant 13 : index
    %c0_223 = arith.constant 0 : index
    %563 = vector.load %arg4[%c13_222, %c0_223] : memref<29x32xf32, #tpu.memory_space<vmem>>, vector<1x32xf32>
    %cst_224 = arith.constant dense<0.000000e+00> : vector<64xf32>
    %564 = vector.multi_reduction <add>, %561, %cst_224 [1] : vector<64x32xf32> to vector<64xf32>
    %565 = vector.shape_cast %564 : vector<64xf32> to vector<64x1xf32>
    %566 = arith.mulf %561, %561 : vector<64x32xf32>
    %cst_225 = arith.constant dense<0.000000e+00> : vector<64xf32>
    %567 = vector.multi_reduction <add>, %566, %cst_225 [1] : vector<64x32xf32> to vector<64xf32>
    %568 = vector.shape_cast %567 : vector<64xf32> to vector<64x1xf32>
    %cst_226 = arith.constant 3.125000e-02 : f32
    %569 = vector.broadcast %cst_226 : f32 to vector<64x1xf32>
    %570 = arith.mulf %565, %569 : vector<64x1xf32>
    %cst_227 = arith.constant 3.125000e-02 : f32
    %571 = vector.broadcast %cst_227 : f32 to vector<64x1xf32>
    %572 = arith.mulf %568, %571 : vector<64x1xf32>
    %573 = arith.mulf %570, %570 : vector<64x1xf32>
    %574 = arith.subf %572, %573 : vector<64x1xf32>
    %cst_228 = arith.constant 0.000000e+00 : f32
    %575 = vector.broadcast %cst_228 : f32 to vector<64x1xf32>
    %576 = arith.maximumf %574, %575 : vector<64x1xf32>
    %577 = vector.broadcast %570 : vector<64x1xf32> to vector<64x32xf32>
    %578 = arith.subf %561, %577 : vector<64x32xf32>
    %cst_229 = arith.constant 9.99999974E-6 : f32
    %579 = vector.broadcast %cst_229 : f32 to vector<64x1xf32>
    %580 = arith.addf %576, %579 : vector<64x1xf32>
    %581 = math.rsqrt %580 : vector<64x1xf32>
    %582 = vector.broadcast %581 : vector<64x1xf32> to vector<64x32xf32>
    %583 = arith.mulf %578, %582 : vector<64x32xf32>
    %584 = vector.broadcast %562 : vector<1x32xf32> to vector<64x32xf32>
    %585 = arith.mulf %583, %584 : vector<64x32xf32>
    %586 = vector.broadcast %563 : vector<1x32xf32> to vector<64x32xf32>
    %587 = arith.addf %585, %586 : vector<64x32xf32>
    %588 = vector.shape_cast %587 : vector<64x32xf32> to vector<8x8x32xf32>
    %589 = vector.broadcast %489 : vector<8x8x1xf32> to vector<8x8x32xf32>
    %590 = arith.mulf %589, %588 : vector<8x8x32xf32>
    %591 = vector.extract_strided_slice %590 {offsets = [0, 0, 0], sizes = [1, 8, 32], strides = [1, 1, 1]} : vector<8x8x32xf32> to vector<1x8x32xf32>
    %592 = vector.shape_cast %591 : vector<1x8x32xf32> to vector<8x32xf32>
    %593 = vector.extract_strided_slice %590 {offsets = [1, 0, 0], sizes = [1, 8, 32], strides = [1, 1, 1]} : vector<8x8x32xf32> to vector<1x8x32xf32>
    %594 = vector.shape_cast %593 : vector<1x8x32xf32> to vector<8x32xf32>
    %595 = vector.extract_strided_slice %590 {offsets = [2, 0, 0], sizes = [1, 8, 32], strides = [1, 1, 1]} : vector<8x8x32xf32> to vector<1x8x32xf32>
    %596 = vector.shape_cast %595 : vector<1x8x32xf32> to vector<8x32xf32>
    %597 = vector.extract_strided_slice %590 {offsets = [3, 0, 0], sizes = [1, 8, 32], strides = [1, 1, 1]} : vector<8x8x32xf32> to vector<1x8x32xf32>
    %598 = vector.shape_cast %597 : vector<1x8x32xf32> to vector<8x32xf32>
    %599 = vector.extract_strided_slice %590 {offsets = [4, 0, 0], sizes = [1, 8, 32], strides = [1, 1, 1]} : vector<8x8x32xf32> to vector<1x8x32xf32>
    %600 = vector.shape_cast %599 : vector<1x8x32xf32> to vector<8x32xf32>
    %601 = vector.extract_strided_slice %590 {offsets = [5, 0, 0], sizes = [1, 8, 32], strides = [1, 1, 1]} : vector<8x8x32xf32> to vector<1x8x32xf32>
    %602 = vector.shape_cast %601 : vector<1x8x32xf32> to vector<8x32xf32>
    %603 = vector.extract_strided_slice %590 {offsets = [6, 0, 0], sizes = [1, 8, 32], strides = [1, 1, 1]} : vector<8x8x32xf32> to vector<1x8x32xf32>
    %604 = vector.shape_cast %603 : vector<1x8x32xf32> to vector<8x32xf32>
    %605 = vector.extract_strided_slice %590 {offsets = [7, 0, 0], sizes = [1, 8, 32], strides = [1, 1, 1]} : vector<8x8x32xf32> to vector<1x8x32xf32>
    %606 = vector.shape_cast %605 : vector<1x8x32xf32> to vector<8x32xf32>
    %607 = arith.addf %592, %594 : vector<8x32xf32>
    %608 = arith.addf %596, %598 : vector<8x32xf32>
    %609 = arith.addf %600, %602 : vector<8x32xf32>
    %610 = arith.addf %604, %606 : vector<8x32xf32>
    %611 = arith.addf %607, %608 : vector<8x32xf32>
    %612 = arith.addf %609, %610 : vector<8x32xf32>
    %613 = arith.addf %611, %612 : vector<8x32xf32>
    %614 = tpu.concatenate %468, %613 in 1 : vector<8x32xf32>, vector<8x32xf32> -> vector<8x64xf32>
    %c216_230 = arith.constant 216 : index
    %c0_231 = arith.constant 0 : index
    %615 = vector.load %arg2[%c216_230, %c0_231] : memref<568x32xf32, #tpu.memory_space<vmem>>, vector<64x32xf32>
    %cst_232 = arith.constant dense<0.000000e+00> : vector<8x32xf32>
    %616 = tpu.matmul %614, %615, %cst_232 {dimension_numbers = #tpu.dot_dimension_numbers<[1], [0], [0], [1], [0, 0, 1, 1], [], []>} : vector<8x64xf32>, vector<64x32xf32>, vector<8x32xf32> -> vector<8x32xf32>
    %c14_233 = arith.constant 14 : index
    %c0_234 = arith.constant 0 : index
    %617 = vector.load %arg4[%c14_233, %c0_234] : memref<29x32xf32, #tpu.memory_space<vmem>>, vector<1x32xf32>
    %618 = vector.broadcast %617 : vector<1x32xf32> to vector<8x32xf32>
    %619 = arith.addf %616, %618 : vector<8x32xf32>
    %cst_235 = arith.constant 0.000000e+00 : f32
    %620 = vector.broadcast %cst_235 : f32 to vector<8x32xf32>
    %621 = arith.maximumf %619, %620 : vector<8x32xf32>
    %c280_236 = arith.constant 280 : index
    %c0_237 = arith.constant 0 : index
    %622 = vector.load %arg2[%c280_236, %c0_237] : memref<568x32xf32, #tpu.memory_space<vmem>>, vector<32x32xf32>
    %cst_238 = arith.constant dense<0.000000e+00> : vector<8x32xf32>
    %623 = tpu.matmul %621, %622, %cst_238 {dimension_numbers = #tpu.dot_dimension_numbers<[1], [0], [0], [1], [0, 0, 1, 1], [], []>} : vector<8x32xf32>, vector<32x32xf32>, vector<8x32xf32> -> vector<8x32xf32>
    %c15_239 = arith.constant 15 : index
    %c0_240 = arith.constant 0 : index
    %624 = vector.load %arg4[%c15_239, %c0_240] : memref<29x32xf32, #tpu.memory_space<vmem>>, vector<1x32xf32>
    %625 = vector.broadcast %624 : vector<1x32xf32> to vector<8x32xf32>
    %626 = arith.addf %623, %625 : vector<8x32xf32>
    %c16_241 = arith.constant 16 : index
    %c0_242 = arith.constant 0 : index
    %627 = vector.load %arg4[%c16_241, %c0_242] : memref<29x32xf32, #tpu.memory_space<vmem>>, vector<1x32xf32>
    %c17_243 = arith.constant 17 : index
    %c0_244 = arith.constant 0 : index
    %628 = vector.load %arg4[%c17_243, %c0_244] : memref<29x32xf32, #tpu.memory_space<vmem>>, vector<1x32xf32>
    %cst_245 = arith.constant dense<0.000000e+00> : vector<8xf32>
    %629 = vector.multi_reduction <add>, %626, %cst_245 [1] : vector<8x32xf32> to vector<8xf32>
    %630 = vector.shape_cast %629 : vector<8xf32> to vector<8x1xf32>
    %631 = arith.mulf %626, %626 : vector<8x32xf32>
    %cst_246 = arith.constant dense<0.000000e+00> : vector<8xf32>
    %632 = vector.multi_reduction <add>, %631, %cst_246 [1] : vector<8x32xf32> to vector<8xf32>
    %633 = vector.shape_cast %632 : vector<8xf32> to vector<8x1xf32>
    %cst_247 = arith.constant 3.125000e-02 : f32
    %634 = vector.broadcast %cst_247 : f32 to vector<8x1xf32>
    %635 = arith.mulf %630, %634 : vector<8x1xf32>
    %cst_248 = arith.constant 3.125000e-02 : f32
    %636 = vector.broadcast %cst_248 : f32 to vector<8x1xf32>
    %637 = arith.mulf %633, %636 : vector<8x1xf32>
    %638 = arith.mulf %635, %635 : vector<8x1xf32>
    %639 = arith.subf %637, %638 : vector<8x1xf32>
    %cst_249 = arith.constant 0.000000e+00 : f32
    %640 = vector.broadcast %cst_249 : f32 to vector<8x1xf32>
    %641 = arith.maximumf %639, %640 : vector<8x1xf32>
    %642 = vector.broadcast %635 : vector<8x1xf32> to vector<8x32xf32>
    %643 = arith.subf %626, %642 : vector<8x32xf32>
    %cst_250 = arith.constant 9.99999974E-6 : f32
    %644 = vector.broadcast %cst_250 : f32 to vector<8x1xf32>
    %645 = arith.addf %641, %644 : vector<8x1xf32>
    %646 = math.rsqrt %645 : vector<8x1xf32>
    %647 = vector.broadcast %646 : vector<8x1xf32> to vector<8x32xf32>
    %648 = arith.mulf %643, %647 : vector<8x32xf32>
    %649 = vector.broadcast %627 : vector<1x32xf32> to vector<8x32xf32>
    %650 = arith.mulf %648, %649 : vector<8x32xf32>
    %651 = vector.broadcast %628 : vector<1x32xf32> to vector<8x32xf32>
    %652 = arith.addf %650, %651 : vector<8x32xf32>
    %653 = arith.addf %468, %652 : vector<8x32xf32>
    %654 = arith.addf %536, %587 : vector<64x32xf32>
    %c32_251 = arith.constant 32 : index
    %c0_252 = arith.constant 0 : index
    %655 = vector.load %arg3[%c32_251, %c0_252] : memref<64x64xf32, #tpu.memory_space<vmem>>, vector<32x64xf32>
    %cst_253 = arith.constant dense<0.000000e+00> : vector<8x64xf32>
    %656 = tpu.matmul %653, %655, %cst_253 {dimension_numbers = #tpu.dot_dimension_numbers<[1], [0], [0], [1], [0, 0, 1, 1], [], []>} : vector<8x32xf32>, vector<32x64xf32>, vector<8x64xf32> -> vector<8x64xf32>
    %657 = vector.extract_strided_slice %656 {offsets = [0, 0], sizes = [8, 32], strides = [1, 1]} : vector<8x64xf32> to vector<8x32xf32>
    %658 = vector.extract_strided_slice %656 {offsets = [0, 32], sizes = [8, 32], strides = [1, 1]} : vector<8x64xf32> to vector<8x32xf32>
    %c312_254 = arith.constant 312 : index
    %c0_255 = arith.constant 0 : index
    %659 = vector.load %arg2[%c312_254, %c0_255] : memref<568x32xf32, #tpu.memory_space<vmem>>, vector<32x32xf32>
    %cst_256 = arith.constant dense<0.000000e+00> : vector<64x32xf32>
    %660 = tpu.matmul %654, %659, %cst_256 {dimension_numbers = #tpu.dot_dimension_numbers<[1], [0], [0], [1], [0, 0, 1, 1], [], []>} : vector<64x32xf32>, vector<32x32xf32>, vector<64x32xf32> -> vector<64x32xf32>
    %661 = vector.shape_cast %660 : vector<64x32xf32> to vector<8x8x32xf32>
    %662 = vector.shape_cast %657 : vector<8x32xf32> to vector<8x1x32xf32>
    %663 = vector.broadcast %662 : vector<8x1x32xf32> to vector<8x8x32xf32>
    %664 = arith.addf %661, %663 : vector<8x8x32xf32>
    %665 = vector.shape_cast %658 : vector<8x32xf32> to vector<1x8x32xf32>
    %666 = vector.broadcast %665 : vector<1x8x32xf32> to vector<8x8x32xf32>
    %667 = arith.addf %664, %666 : vector<8x8x32xf32>
    %c18_257 = arith.constant 18 : index
    %c0_258 = arith.constant 0 : index
    %668 = vector.load %arg4[%c18_257, %c0_258] : memref<29x32xf32, #tpu.memory_space<vmem>>, vector<1x32xf32>
    %669 = vector.shape_cast %668 : vector<1x32xf32> to vector<1x1x32xf32>
    %670 = vector.broadcast %669 : vector<1x1x32xf32> to vector<8x8x32xf32>
    %671 = arith.addf %667, %670 : vector<8x8x32xf32>
    %cst_259 = arith.constant 0.000000e+00 : f32
    %672 = vector.broadcast %cst_259 : f32 to vector<8x8x32xf32>
    %673 = arith.maximumf %671, %672 : vector<8x8x32xf32>
    %674 = vector.shape_cast %673 : vector<8x8x32xf32> to vector<64x32xf32>
    %c344_260 = arith.constant 344 : index
    %c0_261 = arith.constant 0 : index
    %675 = vector.load %arg2[%c344_260, %c0_261] : memref<568x32xf32, #tpu.memory_space<vmem>>, vector<32x32xf32>
    %cst_262 = arith.constant dense<0.000000e+00> : vector<64x32xf32>
    %676 = tpu.matmul %674, %675, %cst_262 {dimension_numbers = #tpu.dot_dimension_numbers<[1], [0], [0], [1], [0, 0, 1, 1], [], []>} : vector<64x32xf32>, vector<32x32xf32>, vector<64x32xf32> -> vector<64x32xf32>
    %c19_263 = arith.constant 19 : index
    %c0_264 = arith.constant 0 : index
    %677 = vector.load %arg4[%c19_263, %c0_264] : memref<29x32xf32, #tpu.memory_space<vmem>>, vector<1x32xf32>
    %678 = vector.broadcast %677 : vector<1x32xf32> to vector<64x32xf32>
    %679 = arith.addf %676, %678 : vector<64x32xf32>
    %c20_265 = arith.constant 20 : index
    %c0_266 = arith.constant 0 : index
    %680 = vector.load %arg4[%c20_265, %c0_266] : memref<29x32xf32, #tpu.memory_space<vmem>>, vector<1x32xf32>
    %c21_267 = arith.constant 21 : index
    %c0_268 = arith.constant 0 : index
    %681 = vector.load %arg4[%c21_267, %c0_268] : memref<29x32xf32, #tpu.memory_space<vmem>>, vector<1x32xf32>
    %cst_269 = arith.constant dense<0.000000e+00> : vector<64xf32>
    %682 = vector.multi_reduction <add>, %679, %cst_269 [1] : vector<64x32xf32> to vector<64xf32>
    %683 = vector.shape_cast %682 : vector<64xf32> to vector<64x1xf32>
    %684 = arith.mulf %679, %679 : vector<64x32xf32>
    %cst_270 = arith.constant dense<0.000000e+00> : vector<64xf32>
    %685 = vector.multi_reduction <add>, %684, %cst_270 [1] : vector<64x32xf32> to vector<64xf32>
    %686 = vector.shape_cast %685 : vector<64xf32> to vector<64x1xf32>
    %cst_271 = arith.constant 3.125000e-02 : f32
    %687 = vector.broadcast %cst_271 : f32 to vector<64x1xf32>
    %688 = arith.mulf %683, %687 : vector<64x1xf32>
    %cst_272 = arith.constant 3.125000e-02 : f32
    %689 = vector.broadcast %cst_272 : f32 to vector<64x1xf32>
    %690 = arith.mulf %686, %689 : vector<64x1xf32>
    %691 = arith.mulf %688, %688 : vector<64x1xf32>
    %692 = arith.subf %690, %691 : vector<64x1xf32>
    %cst_273 = arith.constant 0.000000e+00 : f32
    %693 = vector.broadcast %cst_273 : f32 to vector<64x1xf32>
    %694 = arith.maximumf %692, %693 : vector<64x1xf32>
    %695 = vector.broadcast %688 : vector<64x1xf32> to vector<64x32xf32>
    %696 = arith.subf %679, %695 : vector<64x32xf32>
    %cst_274 = arith.constant 9.99999974E-6 : f32
    %697 = vector.broadcast %cst_274 : f32 to vector<64x1xf32>
    %698 = arith.addf %694, %697 : vector<64x1xf32>
    %699 = math.rsqrt %698 : vector<64x1xf32>
    %700 = vector.broadcast %699 : vector<64x1xf32> to vector<64x32xf32>
    %701 = arith.mulf %696, %700 : vector<64x32xf32>
    %702 = vector.broadcast %680 : vector<1x32xf32> to vector<64x32xf32>
    %703 = arith.mulf %701, %702 : vector<64x32xf32>
    %704 = vector.broadcast %681 : vector<1x32xf32> to vector<64x32xf32>
    %705 = arith.addf %703, %704 : vector<64x32xf32>
    %706 = vector.shape_cast %705 : vector<64x32xf32> to vector<8x8x32xf32>
    %707 = vector.broadcast %489 : vector<8x8x1xf32> to vector<8x8x32xf32>
    %708 = arith.mulf %707, %706 : vector<8x8x32xf32>
    %709 = vector.extract_strided_slice %708 {offsets = [0, 0, 0], sizes = [1, 8, 32], strides = [1, 1, 1]} : vector<8x8x32xf32> to vector<1x8x32xf32>
    %710 = vector.shape_cast %709 : vector<1x8x32xf32> to vector<8x32xf32>
    %711 = vector.extract_strided_slice %708 {offsets = [1, 0, 0], sizes = [1, 8, 32], strides = [1, 1, 1]} : vector<8x8x32xf32> to vector<1x8x32xf32>
    %712 = vector.shape_cast %711 : vector<1x8x32xf32> to vector<8x32xf32>
    %713 = vector.extract_strided_slice %708 {offsets = [2, 0, 0], sizes = [1, 8, 32], strides = [1, 1, 1]} : vector<8x8x32xf32> to vector<1x8x32xf32>
    %714 = vector.shape_cast %713 : vector<1x8x32xf32> to vector<8x32xf32>
    %715 = vector.extract_strided_slice %708 {offsets = [3, 0, 0], sizes = [1, 8, 32], strides = [1, 1, 1]} : vector<8x8x32xf32> to vector<1x8x32xf32>
    %716 = vector.shape_cast %715 : vector<1x8x32xf32> to vector<8x32xf32>
    %717 = vector.extract_strided_slice %708 {offsets = [4, 0, 0], sizes = [1, 8, 32], strides = [1, 1, 1]} : vector<8x8x32xf32> to vector<1x8x32xf32>
    %718 = vector.shape_cast %717 : vector<1x8x32xf32> to vector<8x32xf32>
    %719 = vector.extract_strided_slice %708 {offsets = [5, 0, 0], sizes = [1, 8, 32], strides = [1, 1, 1]} : vector<8x8x32xf32> to vector<1x8x32xf32>
    %720 = vector.shape_cast %719 : vector<1x8x32xf32> to vector<8x32xf32>
    %721 = vector.extract_strided_slice %708 {offsets = [6, 0, 0], sizes = [1, 8, 32], strides = [1, 1, 1]} : vector<8x8x32xf32> to vector<1x8x32xf32>
    %722 = vector.shape_cast %721 : vector<1x8x32xf32> to vector<8x32xf32>
    %723 = vector.extract_strided_slice %708 {offsets = [7, 0, 0], sizes = [1, 8, 32], strides = [1, 1, 1]} : vector<8x8x32xf32> to vector<1x8x32xf32>
    %724 = vector.shape_cast %723 : vector<1x8x32xf32> to vector<8x32xf32>
    %725 = arith.addf %710, %712 : vector<8x32xf32>
    %726 = arith.addf %714, %716 : vector<8x32xf32>
    %727 = arith.addf %718, %720 : vector<8x32xf32>
    %728 = arith.addf %722, %724 : vector<8x32xf32>
    %729 = arith.addf %725, %726 : vector<8x32xf32>
    %730 = arith.addf %727, %728 : vector<8x32xf32>
    %731 = arith.addf %729, %730 : vector<8x32xf32>
    %732 = tpu.concatenate %653, %731 in 1 : vector<8x32xf32>, vector<8x32xf32> -> vector<8x64xf32>
    %c376_275 = arith.constant 376 : index
    %c0_276 = arith.constant 0 : index
    %733 = vector.load %arg2[%c376_275, %c0_276] : memref<568x32xf32, #tpu.memory_space<vmem>>, vector<64x32xf32>
    %cst_277 = arith.constant dense<0.000000e+00> : vector<8x32xf32>
    %734 = tpu.matmul %732, %733, %cst_277 {dimension_numbers = #tpu.dot_dimension_numbers<[1], [0], [0], [1], [0, 0, 1, 1], [], []>} : vector<8x64xf32>, vector<64x32xf32>, vector<8x32xf32> -> vector<8x32xf32>
    %c22_278 = arith.constant 22 : index
    %c0_279 = arith.constant 0 : index
    %735 = vector.load %arg4[%c22_278, %c0_279] : memref<29x32xf32, #tpu.memory_space<vmem>>, vector<1x32xf32>
    %736 = vector.broadcast %735 : vector<1x32xf32> to vector<8x32xf32>
    %737 = arith.addf %734, %736 : vector<8x32xf32>
    %cst_280 = arith.constant 0.000000e+00 : f32
    %738 = vector.broadcast %cst_280 : f32 to vector<8x32xf32>
    %739 = arith.maximumf %737, %738 : vector<8x32xf32>
    %c440_281 = arith.constant 440 : index
    %c0_282 = arith.constant 0 : index
    %740 = vector.load %arg2[%c440_281, %c0_282] : memref<568x32xf32, #tpu.memory_space<vmem>>, vector<32x32xf32>
    %cst_283 = arith.constant dense<0.000000e+00> : vector<8x32xf32>
    %741 = tpu.matmul %739, %740, %cst_283 {dimension_numbers = #tpu.dot_dimension_numbers<[1], [0], [0], [1], [0, 0, 1, 1], [], []>} : vector<8x32xf32>, vector<32x32xf32>, vector<8x32xf32> -> vector<8x32xf32>
    %c23_284 = arith.constant 23 : index
    %c0_285 = arith.constant 0 : index
    %742 = vector.load %arg4[%c23_284, %c0_285] : memref<29x32xf32, #tpu.memory_space<vmem>>, vector<1x32xf32>
    %743 = vector.broadcast %742 : vector<1x32xf32> to vector<8x32xf32>
    %744 = arith.addf %741, %743 : vector<8x32xf32>
    %c24_286 = arith.constant 24 : index
    %c0_287 = arith.constant 0 : index
    %745 = vector.load %arg4[%c24_286, %c0_287] : memref<29x32xf32, #tpu.memory_space<vmem>>, vector<1x32xf32>
    %c25_288 = arith.constant 25 : index
    %c0_289 = arith.constant 0 : index
    %746 = vector.load %arg4[%c25_288, %c0_289] : memref<29x32xf32, #tpu.memory_space<vmem>>, vector<1x32xf32>
    %cst_290 = arith.constant dense<0.000000e+00> : vector<8xf32>
    %747 = vector.multi_reduction <add>, %744, %cst_290 [1] : vector<8x32xf32> to vector<8xf32>
    %748 = vector.shape_cast %747 : vector<8xf32> to vector<8x1xf32>
    %749 = arith.mulf %744, %744 : vector<8x32xf32>
    %cst_291 = arith.constant dense<0.000000e+00> : vector<8xf32>
    %750 = vector.multi_reduction <add>, %749, %cst_291 [1] : vector<8x32xf32> to vector<8xf32>
    %751 = vector.shape_cast %750 : vector<8xf32> to vector<8x1xf32>
    %cst_292 = arith.constant 3.125000e-02 : f32
    %752 = vector.broadcast %cst_292 : f32 to vector<8x1xf32>
    %753 = arith.mulf %748, %752 : vector<8x1xf32>
    %cst_293 = arith.constant 3.125000e-02 : f32
    %754 = vector.broadcast %cst_293 : f32 to vector<8x1xf32>
    %755 = arith.mulf %751, %754 : vector<8x1xf32>
    %756 = arith.mulf %753, %753 : vector<8x1xf32>
    %757 = arith.subf %755, %756 : vector<8x1xf32>
    %cst_294 = arith.constant 0.000000e+00 : f32
    %758 = vector.broadcast %cst_294 : f32 to vector<8x1xf32>
    %759 = arith.maximumf %757, %758 : vector<8x1xf32>
    %760 = vector.broadcast %753 : vector<8x1xf32> to vector<8x32xf32>
    %761 = arith.subf %744, %760 : vector<8x32xf32>
    %cst_295 = arith.constant 9.99999974E-6 : f32
    %762 = vector.broadcast %cst_295 : f32 to vector<8x1xf32>
    %763 = arith.addf %759, %762 : vector<8x1xf32>
    %764 = math.rsqrt %763 : vector<8x1xf32>
    %765 = vector.broadcast %764 : vector<8x1xf32> to vector<8x32xf32>
    %766 = arith.mulf %761, %765 : vector<8x32xf32>
    %767 = vector.broadcast %745 : vector<1x32xf32> to vector<8x32xf32>
    %768 = arith.mulf %766, %767 : vector<8x32xf32>
    %769 = vector.broadcast %746 : vector<1x32xf32> to vector<8x32xf32>
    %770 = arith.addf %768, %769 : vector<8x32xf32>
    %771 = arith.addf %653, %770 : vector<8x32xf32>
    %c472_296 = arith.constant 472 : index
    %c0_297 = arith.constant 0 : index
    %772 = vector.load %arg2[%c472_296, %c0_297] : memref<568x32xf32, #tpu.memory_space<vmem>>, vector<32x32xf32>
    %cst_298 = arith.constant dense<0.000000e+00> : vector<8x32xf32>
    %773 = tpu.matmul %771, %772, %cst_298 {dimension_numbers = #tpu.dot_dimension_numbers<[1], [0], [0], [1], [0, 0, 1, 1], [], []>} : vector<8x32xf32>, vector<32x32xf32>, vector<8x32xf32> -> vector<8x32xf32>
    %c26_299 = arith.constant 26 : index
    %c0_300 = arith.constant 0 : index
    %774 = vector.load %arg4[%c26_299, %c0_300] : memref<29x32xf32, #tpu.memory_space<vmem>>, vector<1x32xf32>
    %775 = vector.broadcast %774 : vector<1x32xf32> to vector<8x32xf32>
    %776 = arith.addf %773, %775 : vector<8x32xf32>
    %cst_301 = arith.constant 0.000000e+00 : f32
    %777 = vector.broadcast %cst_301 : f32 to vector<8x32xf32>
    %778 = arith.maximumf %776, %777 : vector<8x32xf32>
    %c504_302 = arith.constant 504 : index
    %c0_303 = arith.constant 0 : index
    %779 = vector.load %arg2[%c504_302, %c0_303] : memref<568x32xf32, #tpu.memory_space<vmem>>, vector<32x32xf32>
    %cst_304 = arith.constant dense<0.000000e+00> : vector<8x32xf32>
    %780 = tpu.matmul %778, %779, %cst_304 {dimension_numbers = #tpu.dot_dimension_numbers<[1], [0], [0], [1], [0, 0, 1, 1], [], []>} : vector<8x32xf32>, vector<32x32xf32>, vector<8x32xf32> -> vector<8x32xf32>
    %c27_305 = arith.constant 27 : index
    %c0_306 = arith.constant 0 : index
    %781 = vector.load %arg4[%c27_305, %c0_306] : memref<29x32xf32, #tpu.memory_space<vmem>>, vector<1x32xf32>
    %782 = vector.broadcast %781 : vector<1x32xf32> to vector<8x32xf32>
    %783 = arith.addf %780, %782 : vector<8x32xf32>
    %cst_307 = arith.constant 0.000000e+00 : f32
    %784 = vector.broadcast %cst_307 : f32 to vector<8x32xf32>
    %785 = arith.maximumf %783, %784 : vector<8x32xf32>
    %c536_308 = arith.constant 536 : index
    %c0_309 = arith.constant 0 : index
    %786 = vector.load %arg2[%c536_308, %c0_309] : memref<568x32xf32, #tpu.memory_space<vmem>>, vector<32x32xf32>
    %cst_310 = arith.constant dense<0.000000e+00> : vector<8x32xf32>
    %787 = tpu.matmul %785, %786, %cst_310 {dimension_numbers = #tpu.dot_dimension_numbers<[1], [0], [0], [1], [0, 0, 1, 1], [], []>} : vector<8x32xf32>, vector<32x32xf32>, vector<8x32xf32> -> vector<8x32xf32>
    %c28_311 = arith.constant 28 : index
    %c0_312 = arith.constant 0 : index
    %788 = vector.load %arg4[%c28_311, %c0_312] : memref<29x32xf32, #tpu.memory_space<vmem>>, vector<1x32xf32>
    %789 = vector.broadcast %788 : vector<1x32xf32> to vector<8x32xf32>
    %790 = arith.addf %787, %789 : vector<8x32xf32>
    %791 = vector.extract_strided_slice %790 {offsets = [0, 0], sizes = [8, 2], strides = [1, 1]} : vector<8x32xf32> to vector<8x2xf32>
    %792 = arith.addf %403, %408 : vector<8x2xf32>
    %793 = arith.addf %792, %791 : vector<8x2xf32>
    %794 = vector.broadcast %3 : vector<8x1xf32> to vector<8x2xf32>
    %795 = arith.mulf %794, %793 : vector<8x2xf32>
    %cst_313 = arith.constant 1.000000e+00 : f32
    %796 = vector.broadcast %cst_313 : f32 to vector<8x1xf32>
    %797 = arith.subf %796, %3 : vector<8x1xf32>
    %798 = vector.broadcast %797 : vector<8x1xf32> to vector<8x2xf32>
    %799 = arith.mulf %798, %2 : vector<8x2xf32>
    %800 = arith.addf %795, %799 : vector<8x2xf32>
    %801 = tpu.concatenate %791, %800 in 1 : vector<8x2xf32>, vector<8x2xf32> -> vector<8x4xf32>
    %c1_314 = arith.constant 1 : index
    %c0_315 = arith.constant 0 : index
    %c0_316 = arith.constant 0 : index
    %802 = vector.load %arg5[%c1_314, %c0_315, %c0_316] : memref<2x8x4xf32, #tpu.memory_space<vmem>>, vector<1x8x4xf32>
    %803 = vector.shape_cast %802 : vector<1x8x4xf32> to vector<8x4xf32>
    %804 = vector.shape_cast %801 : vector<8x4xf32> to vector<1x8x4xf32>
    tpu.vector_store %arg5[%c1_314, %c0_315, %c0_316], %804 {strides = array<i32>} : memref<2x8x4xf32, #tpu.memory_space<vmem>>, vector<1x8x4xf32>,
    return
  }
}

</mosaic_0001>

<llo_original>
// kernel: gns_forward.1
$region0: #{gns_forward.1}
  #allocation0 [shape = 'u32[]', space=smem, size = 0x4, offset = 0x4, fixed_abs, tag = 'smem constant byte address 0x4 - core index']
  #allocation1 [shape = 'u32[144,128]{1,0:T(1,128)}', space=vmem, size = 0x12000, scoped, tag = 'internal scratch']
  %s0 = inlined_call_operand.vmem [shape: f32[8,16], index: 0, kind: input, shape index: {}]
  %s1 = inlined_call_operand.vmem [shape: f32[1,4], index: 1, kind: input, shape index: {}]
  %s2 = inlined_call_operand.vmem [shape: f32[568,32], index: 2, kind: input, shape index: {}]
  %s3 = inlined_call_operand.vmem [shape: f32[64,64], index: 3, kind: input, shape index: {}]
  %s4 = inlined_call_operand.vmem [shape: f32[29,32], index: 4, kind: input, shape index: {}]
  %s5 = inlined_call_operand.vmem [shape: f32[2,8,4], index: 5, kind: output, shape index: {}]
  %s6 = sld [smem:[#allocation0]]
  $region30: #{gns_forward.1} parent=0
    _
  %s8 = ssub.s32 1, %s6
  %s9 = scalar_select 0, %s8, %s6
  // Predicated region
  $region2: #{gns_forward.1} parent=0 // pred_check
    _
  $region3: #{gns_forward.1} parent=0 // pred_check_branch
    %11 = sbr.rel (0) target = $region5
  $region4: #{gns_forward.1} parent=0 // pred_region
    _
  $region5: #{gns_forward.1} parent=0 // pred_fallthru
    _
  // Predicated region
  $region6: #{gns_forward.1} parent=0 // pred_check
    _
  $region7: #{gns_forward.1} parent=0 // pred_check_branch
    %13 = sbr.rel (0) target = $region9
  $region8: #{gns_forward.1} parent=0 // pred_region
    _
  $region9: #{gns_forward.1} parent=0 // pred_fallthru
    _
  // Predicated region
  $region10: #{gns_forward.1} parent=0 // pred_check
    _
  $region11: #{gns_forward.1} parent=0 // pred_check_branch
    %15 = sbr.rel (0) target = $region13
  $region12: #{gns_forward.1} parent=0 // pred_region
    _
  $region13: #{gns_forward.1} parent=0 // pred_fallthru
    _
  // Predicated region
  $region14: #{gns_forward.1} parent=0 // pred_check
    _
  $region15: #{gns_forward.1} parent=0 // pred_check_branch
    %17 = sbr.rel (0) target = $region17
  $region16: #{gns_forward.1} parent=0 // pred_region
    _
  $region17: #{gns_forward.1} parent=0 // pred_fallthru
    _
  // Predicated region
  $region18: #{gns_forward.1} parent=0 // pred_check
    _
  $region19: #{gns_forward.1} parent=0 // pred_check_branch
    %19 = sbr.rel (0) target = $region21
  $region20: #{gns_forward.1} parent=0 // pred_region
    _
  $region21: #{gns_forward.1} parent=0 // pred_fallthru
    _
  %v20 = vld [vmem:[%s0] sm:$0xff]
  %v21 = vld [vmem:[%s1] sm:$0x1]
  %v22 = vld [vmem:[%s2 + $0x6] sm:$0xff]
  %v23 = vld [vmem:[%s4] sm:$0x1]
  %v24 = vlaneseq
  %v25 = vshrl.u32 %v24, 7
  %v26 = vsub.s32 0, %v25
  %v27 = vrot.slane %v23, %v26
  %29 = vrot.lane.b32.xlu0 %v20, 120
  %v30 = vpop.permute.xlu0 %29
  %vm31 = vcmask 64512
  %v32 = vsel %vm31, %v30, 0
  %34 = vmatprep.subr.mxu0 0.0
  %35 = vmatpush1.msra.mxu0 %v22
  %36 = vmatprep.subr.mxu0 0.0
  %37 = vmatpush1.msra.mxu0 0.0
  %38 = vmatprep.subr.mxu0 0.0
  %39 = vmatpush1.msra.mxu0 0.0
  %40 = vmatprep.subr.mxu0 0.0
  %41 = vmatpush1.msra.mxu0 0.0
  %42 = vmatprep.subr.mxu0 0.0
  %43 = vmatpush1.msra.mxu0 0.0
  %44 = vmatprep.subr.mxu0 0.0
  %45 = vmatpush1.msra.mxu0 0.0
  %46 = vmatprep.subr.mxu0 0.0
  %47 = vmatpush1.msra.mxu0 0.0
  %48 = vmatprep.subr.mxu0 0.0
  %49 = vmatpush1.msra.mxu0 0.0
  %50 = vmatprep.subr.mxu0 0.0
  %51 = vmatpush1.msra.mxu0 0.0
  %52 = vmatprep.subr.mxu0 0.0
  %53 = vmatpush1.msra.mxu0 0.0
  %54 = vmatprep.subr.mxu0 0.0
  %55 = vmatpush1.msra.mxu0 0.0
  %56 = vmatprep.subr.mxu0 0.0
  %57 = vmatpush1.msra.mxu0 0.0
  %58 = vmatprep.subr.mxu0 0.0
  %59 = vmatpush1.msra.mxu0 0.0
  %60 = vmatprep.subr.mxu0 0.0
  %61 = vmatpush1.msra.mxu0 0.0
  %62 = vmatprep.subr.mxu0 0.0
  %63 = vmatpush1.msra.mxu0 0.0
  %64 = vmatprep.subr.mxu0 0.0
  %65 = vmatpush1.msra.mxu0 0.0
  %66 = vmatprep.subr.mxu0 0.0
  %67 = vmatpush1.msra.mxu0 0.0
  %68 = vmatprep.subr.mxu0 0.0
  %69 = vmatpush1.msra.mxu0 0.0
  %70 = vmatprep.subr.mxu0 0.0
  %71 = vmatpush1.msra.mxu0 0.0
  %72 = vmatprep.subr.mxu0 0.0
  %73 = vmatpush1.msra.mxu0 0.0
  %74 = vmatprep.subr.mxu0 0.0
  %75 = vmatpush1.msra.mxu0 0.0
  %76 = vmatprep.subr.mxu0 0.0
  %77 = vmatpush1.msra.mxu0 0.0
  %78 = vmatprep.subr.mxu0 0.0
  %79 = vmatpush1.msra.mxu0 0.0
  %80 = vmatprep.subr.mxu0 0.0
  %81 = vmatpush1.msra.mxu0 0.0
  %82 = vmatprep.subr.mxu0 0.0
  %83 = vmatpush1.msra.mxu0 0.0
  %84 = vmatprep.subr.mxu0 0.0
  %85 = vmatpush1.msra.mxu0 0.0
  %86 = vmatprep.subr.mxu0 0.0
  %87 = vmatpush1.msra.mxu0 0.0
  %88 = vmatprep.subr.mxu0 0.0
  %89 = vmatpush1.msra.mxu0 0.0
  %90 = vmatprep.subr.mxu0 0.0
  %91 = vmatpush1.msra.mxu0 0.0
  %92 = vmatprep.subr.mxu0 0.0
  %93 = vmatpush1.msra.mxu0 0.0
  %94 = vmatprep.subr.mxu0 0.0
  %95 = vmatpush1.msra.mxu0 0.0
  %96 = vmatprep.subr.mxu0 0.0
  %97 = vmatpush1.msra.mxu0 0.0
  %98 = vmatprep.mubr.f32.mxu0 0.0
  %99 = vmatmul.mubr.f32.gmra.mrb[0].mxu0 %v32
  %v100 = vpop.f32.mrb[0].mxu0
  %v101 = vadd.f32 %v27, %v100
  %v102 = vpop.f32.mrb[0].mxu0
  %103 = vdwg.mxu0
  %v105 = vlaneseq
  %v106 = vshrl.u32 %v105, 7
  %v107 = vsub.s32 0, %v106
  %v108 = vrot.slane %v21, %v107
  %v110 = vsub.f32 %v20, %v108
  %v111 = vmax.f32 %v110, -1.0
  %v112 = vmin.f32 %v111, 1.0
  %113 = vrot.lane.b32.xlu0 %v20, 2
  %v114 = vpop.permute.xlu0 %113
  %v116 = vsub.f32 %v108, %v114
  %v117 = vmax.f32 %v116, -1.0
  %v118 = vmin.f32 %v117, 1.0
  %119 = vrot.lane.b32.xlu0 %v20, 126
  %v120 = vpop.permute.xlu0 %119
  %123 = vrot.lane.b32.xlu0 %v112, 2
  %v124 = vpop.permute.xlu0 %123
  %127 = vrot.lane.b32.xlu0 %v118, 2
  %v128 = vpop.permute.xlu0 %127
  %vm130 = vcmask 15360
  %v131 = vsel %vm130, %v120, %v124
  %vm132 = vcmask 31744
  %v133 = vsel %vm132, %v131, %v128
  %v134 = vld [vmem:[%s2] sm:$0x3f]
  %vm135 = vcmask 48128
  %v137 = vsel %vm135, %v133, 0
  %vm139 = vcmask 1045504
  %v141 = vsel %vm139, %v134, 0
  %143 = vmatprep.subr.mxu0 0.0
  %144 = vmatpush1.msra.mxu0 %v141
  %145 = vmatprep.subr.mxu0 0.0
  %146 = vmatpush1.msra.mxu0 0.0
  %147 = vmatprep.subr.mxu0 0.0
  %148 = vmatpush1.msra.mxu0 0.0
  %149 = vmatprep.subr.mxu0 0.0
  %150 = vmatpush1.msra.mxu0 0.0
  %151 = vmatprep.subr.mxu0 0.0
  %152 = vmatpush1.msra.mxu0 0.0
  %153 = vmatprep.subr.mxu0 0.0
  %154 = vmatpush1.msra.mxu0 0.0
  %155 = vmatprep.subr.mxu0 0.0
  %156 = vmatpush1.msra.mxu0 0.0
  %157 = vmatprep.subr.mxu0 0.0
  %158 = vmatpush1.msra.mxu0 0.0
  %159 = vmatprep.subr.mxu0 0.0
  %160 = vmatpush1.msra.mxu0 0.0
  %161 = vmatprep.subr.mxu0 0.0
  %162 = vmatpush1.msra.mxu0 0.0
  %163 = vmatprep.subr.mxu0 0.0
  %164 = vmatpush1.msra.mxu0 0.0
  %165 = vmatprep.subr.mxu0 0.0
  %166 = vmatpush1.msra.mxu0 0.0
  %167 = vmatprep.subr.mxu0 0.0
  %168 = vmatpush1.msra.mxu0 0.0
  %169 = vmatprep.subr.mxu0 0.0
  %170 = vmatpush1.msra.mxu0 0.0
  %171 = vmatprep.subr.mxu0 0.0
  %172 = vmatpush1.msra.mxu0 0.0
  %173 = vmatprep.subr.mxu0 0.0
  %174 = vmatpush1.msra.mxu0 0.0
  %175 = vmatprep.subr.mxu0 0.0
  %176 = vmatpush1.msra.mxu0 0.0
  %177 = vmatprep.subr.mxu0 0.0
  %178 = vmatpush1.msra.mxu0 0.0
  %179 = vmatprep.subr.mxu0 0.0
  %180 = vmatpush1.msra.mxu0 0.0
  %181 = vmatprep.subr.mxu0 0.0
  %182 = vmatpush1.msra.mxu0 0.0
  %183 = vmatprep.subr.mxu0 0.0
  %184 = vmatpush1.msra.mxu0 0.0
  %185 = vmatprep.subr.mxu0 0.0
  %186 = vmatpush1.msra.mxu0 0.0
  %187 = vmatprep.subr.mxu0 0.0
  %188 = vmatpush1.msra.mxu0 0.0
  %189 = vmatprep.subr.mxu0 0.0
  %190 = vmatpush1.msra.mxu0 0.0
  %191 = vmatprep.subr.mxu0 0.0
  %192 = vmatpush1.msra.mxu0 0.0
  %193 = vmatprep.subr.mxu0 0.0
  %194 = vmatpush1.msra.mxu0 0.0
  %195 = vmatprep.subr.mxu0 0.0
  %196 = vmatpush1.msra.mxu0 0.0
  %197 = vmatprep.subr.mxu0 0.0
  %198 = vmatpush1.msra.mxu0 0.0
  %199 = vmatprep.subr.mxu0 0.0
  %200 = vmatpush1.msra.mxu0 0.0
  %201 = vmatprep.subr.mxu0 0.0
  %202 = vmatpush1.msra.mxu0 0.0
  %203 = vmatprep.subr.mxu0 0.0
  %204 = vmatpush1.msra.mxu0 0.0
  %205 = vmatprep.subr.mxu0 0.0
  %206 = vmatpush1.msra.mxu0 0.0
  %207 = vmatprep.mubr.f32.mxu0 0.0
  %208 = vmatmul.mubr.f32.gmra.mrb[0].mxu0 %v137
  %v209 = vpop.f32.mrb[0].mxu0
  %v210 = vadd.f32 %v101, %v209
  %v211 = vpop.f32.mrb[0].mxu0
  %212 = vdwg.mxu0
  %v213 = vmax.f32 %v210, 0.0
  %v214 = vld [vmem:[%s2 + $0x10] sm:$0xff]
  %v215 = vld [vmem:[%s2 + $0x18] sm:$0xff]
  %v216 = vld [vmem:[%s2 + $0x20] sm:$0xff]
  %v217 = vld [vmem:[%s2 + $0x28] sm:$0xff]
  %v218 = vld [vmem:[%s4 + $0x1] sm:$0x1]
  %v219 = vlaneseq
  %v220 = vshrl.u32 %v219, 7
  %v221 = vsub.s32 0, %v220
  %v222 = vrot.slane %v218, %v221
  %vm223 = vcmask 261120
  %v225 = vsel %vm223, %v213, 0
  %227 = vmatprep.subr.mxu0 0.0
  %228 = vmatpush1.msra.mxu0 %v214
  %229 = vmatprep.subr.mxu0 0.0
  %230 = vmatpush1.msra.mxu0 %v215
  %231 = vmatprep.subr.mxu0 0.0
  %232 = vmatpush1.msra.mxu0 %v216
  %233 = vmatprep.subr.mxu0 0.0
  %234 = vmatpush1.msra.mxu0 %v217
  %235 = vmatprep.subr.mxu0 0.0
  %236 = vmatpush1.msra.mxu0 0.0
  %237 = vmatprep.subr.mxu0 0.0
  %238 = vmatpush1.msra.mxu0 0.0
  %239 = vmatprep.subr.mxu0 0.0
  %240 = vmatpush1.msra.mxu0 0.0
  %241 = vmatprep.subr.mxu0 0.0
  %242 = vmatpush1.msra.mxu0 0.0
  %243 = vmatprep.subr.mxu0 0.0
  %244 = vmatpush1.msra.mxu0 0.0
  %245 = vmatprep.subr.mxu0 0.0
  %246 = vmatpush1.msra.mxu0 0.0
  %247 = vmatprep.subr.mxu0 0.0
  %248 = vmatpush1.msra.mxu0 0.0
  %249 = vmatprep.subr.mxu0 0.0
  %250 = vmatpush1.msra.mxu0 0.0
  %251 = vmatprep.subr.mxu0 0.0
  %252 = vmatpush1.msra.mxu0 0.0
  %253 = vmatprep.subr.mxu0 0.0
  %254 = vmatpush1.msra.mxu0 0.0
  %255 = vmatprep.subr.mxu0 0.0
  %256 = vmatpush1.msra.mxu0 0.0
  %257 = vmatprep.subr.mxu0 0.0
  %258 = vmatpush1.msra.mxu0 0.0
  %259 = vmatprep.subr.mxu0 0.0
  %260 = vmatpush1.msra.mxu0 0.0
  %261 = vmatprep.subr.mxu0 0.0
  %262 = vmatpush1.msra.mxu0 0.0
  %263 = vmatprep.subr.mxu0 0.0
  %264 = vmatpush1.msra.mxu0 0.0
  %265 = vmatprep.subr.mxu0 0.0
  %266 = vmatpush1.msra.mxu0 0.0
  %267 = vmatprep.subr.mxu0 0.0
  %268 = vmatpush1.msra.mxu0 0.0
  %269 = vmatprep.subr.mxu0 0.0
  %270 = vmatpush1.msra.mxu0 0.0
  %271 = vmatprep.subr.mxu0 0.0
  %272 = vmatpush1.msra.mxu0 0.0
  %273 = vmatprep.subr.mxu0 0.0
  %274 = vmatpush1.msra.mxu0 0.0
  %275 = vmatprep.subr.mxu0 0.0
  %276 = vmatpush1.msra.mxu0 0.0
  %277 = vmatprep.subr.mxu0 0.0
  %278 = vmatpush1.msra.mxu0 0.0
  %279 = vmatprep.subr.mxu0 0.0
  %280 = vmatpush1.msra.mxu0 0.0
  %281 = vmatprep.subr.mxu0 0.0
  %282 = vmatpush1.msra.mxu0 0.0
  %283 = vmatprep.subr.mxu0 0.0
  %284 = vmatpush1.msra.mxu0 0.0
  %285 = vmatprep.subr.mxu0 0.0
  %286 = vmatpush1.msra.mxu0 0.0
  %287 = vmatprep.subr.mxu0 0.0
  %288 = vmatpush1.msra.mxu0 0.0
  %289 = vmatprep.subr.mxu0 0.0
  %290 = vmatpush1.msra.mxu0 0.0
  %291 = vmatprep.mubr.f32.mxu0 0.0
  %292 = vmatmul.mubr.f32.gmra.mrb[0].mxu0 %v225
  %v293 = vpop.f32.mrb[0].mxu0
  %v294 = vadd.f32 %v222, %v293
  %v295 = vpop.f32.mrb[0].mxu0
  %296 = vdwg.mxu0
  %v297 = vmax.f32 %v294, 0.0
  %v298 = vld [vmem:[%s2 + $0x30] sm:$0xff]
  %v299 = vld [vmem:[%s2 + $0x38] sm:$0xff]
  %v300 = vld [vmem:[%s2 + $0x40] sm:$0xff]
  %v301 = vld [vmem:[%s2 + $0x48] sm:$0xff]
  %v302 = vld [vmem:[%s4 + $0x2] sm:$0x1]
  %v303 = vlaneseq
  %v304 = vshrl.u32 %v303, 7
  %v305 = vsub.s32 0, %v304
  %v306 = vrot.slane %v302, %v305
  %v308 = vsel %vm223, %v297, 0
  %310 = vmatprep.subr.mxu0 0.0
  %311 = vmatpush1.msra.mxu0 %v298
  %312 = vmatprep.subr.mxu0 0.0
  %313 = vmatpush1.msra.mxu0 %v299
  %314 = vmatprep.subr.mxu0 0.0
  %315 = vmatpush1.msra.mxu0 %v300
  %316 = vmatprep.subr.mxu0 0.0
  %317 = vmatpush1.msra.mxu0 %v301
  %318 = vmatprep.subr.mxu0 0.0
  %319 = vmatpush1.msra.mxu0 0.0
  %320 = vmatprep.subr.mxu0 0.0
  %321 = vmatpush1.msra.mxu0 0.0
  %322 = vmatprep.subr.mxu0 0.0
  %323 = vmatpush1.msra.mxu0 0.0
  %324 = vmatprep.subr.mxu0 0.0
  %325 = vmatpush1.msra.mxu0 0.0
  %326 = vmatprep.subr.mxu0 0.0
  %327 = vmatpush1.msra.mxu0 0.0
  %328 = vmatprep.subr.mxu0 0.0
  %329 = vmatpush1.msra.mxu0 0.0
  %330 = vmatprep.subr.mxu0 0.0
  %331 = vmatpush1.msra.mxu0 0.0
  %332 = vmatprep.subr.mxu0 0.0
  %333 = vmatpush1.msra.mxu0 0.0
  %334 = vmatprep.subr.mxu0 0.0
  %335 = vmatpush1.msra.mxu0 0.0
  %336 = vmatprep.subr.mxu0 0.0
  %337 = vmatpush1.msra.mxu0 0.0
  %338 = vmatprep.subr.mxu0 0.0
  %339 = vmatpush1.msra.mxu0 0.0
  %340 = vmatprep.subr.mxu0 0.0
  %341 = vmatpush1.msra.mxu0 0.0
  %342 = vmatprep.subr.mxu0 0.0
  %343 = vmatpush1.msra.mxu0 0.0
  %344 = vmatprep.subr.mxu0 0.0
  %345 = vmatpush1.msra.mxu0 0.0
  %346 = vmatprep.subr.mxu0 0.0
  %347 = vmatpush1.msra.mxu0 0.0
  %348 = vmatprep.subr.mxu0 0.0
  %349 = vmatpush1.msra.mxu0 0.0
  %350 = vmatprep.subr.mxu0 0.0
  %351 = vmatpush1.msra.mxu0 0.0
  %352 = vmatprep.subr.mxu0 0.0
  %353 = vmatpush1.msra.mxu0 0.0
  %354 = vmatprep.subr.mxu0 0.0
  %355 = vmatpush1.msra.mxu0 0.0
  %356 = vmatprep.subr.mxu0 0.0
  %357 = vmatpush1.msra.mxu0 0.0
  %358 = vmatprep.subr.mxu0 0.0
  %359 = vmatpush1.msra.mxu0 0.0
  %360 = vmatprep.subr.mxu0 0.0
  %361 = vmatpush1.msra.mxu0 0.0
  %362 = vmatprep.subr.mxu0 0.0
  %363 = vmatpush1.msra.mxu0 0.0
  %364 = vmatprep.subr.mxu0 0.0
  %365 = vmatpush1.msra.mxu0 0.0
  %366 = vmatprep.subr.mxu0 0.0
  %367 = vmatpush1.msra.mxu0 0.0
  %368 = vmatprep.subr.mxu0 0.0
  %369 = vmatpush1.msra.mxu0 0.0
  %370 = vmatprep.subr.mxu0 0.0
  %371 = vmatpush1.msra.mxu0 0.0
  %372 = vmatprep.subr.mxu0 0.0
  %373 = vmatpush1.msra.mxu0 0.0
  %374 = vmatprep.mubr.f32.mxu0 0.0
  %375 = vmatmul.mubr.f32.gmra.mrb[0].mxu0 %v308
  %v376 = vpop.f32.mrb[0].mxu0
  %v377 = vadd.f32 %v306, %v376
  %v378 = vpop.f32.mrb[0].mxu0
  %379 = vdwg.mxu0
  %v380 = vld [vmem:[%s4 + $0x3] sm:$0x1]
  %v381 = vld [vmem:[%s4 + $0x4] sm:$0x1]
  %v382 = vsel %vm223, %v377, 0.0
  %383 = vadd.xlane.f32.xlu0 %v382
  %v384 = vpop.xlane.xlu0 %383
  %v385 = vmul.f32 %v377, %v377
  %v386 = vsel %vm223, %v385, 0.0
  %387 = vadd.xlane.f32.xlu0 %v386
  %v388 = vpop.xlane.xlu0 %387
  %v389 = vmul.f32 %v384, 0.03125
  %v390 = vmul.f32 %v388, 0.03125
  %v391 = vmul.f32 %v389, %v389
  %v392 = vsub.f32 %v390, %v391
  %v393 = vmax.f32 %v392, 0.0
  %v394 = vsub.f32 %v377, %v389
  %v395 = vadd.f32 %v393, 1e-05
  %v396 = vrsqrt.pop %v395
  %v397 = vmul.f32 %v394, %v396
  %v398 = vlaneseq
  %v399 = vshrl.u32 %v398, 7
  %v400 = vsub.s32 0, %v399
  %v401 = vrot.slane %v380, %v400
  %v402 = vmul.f32 %v397, %v401
  %v403 = vlaneseq
  %v404 = vshrl.u32 %v403, 7
  %v405 = vsub.s32 0, %v404
  %v406 = vrot.slane %v381, %v405
  %v407 = vadd.f32 %v402, %v406
  %v408 = vcombine.high %v20, %v20
  %v410 = vunpack.c.l.s4 1966171168
  %v411 = vunpack.c.0.s8 %v410
  %v412 = vlaneseq
  %v413 = vshrl.u32 %v412, 7
  %v414 = vsub.s32 %v411, %v413
  %v415 = vrot.slane %v20, %v414
  %v417 = vunpack.c.l.s4 1966171168
  %v418 = vunpack.c.0.s8 %v417
  %v419 = vlaneseq
  %v420 = vshrl.u32 %v419, 7
  %v421 = vsub.s32 %v418, %v420
  %v422 = vrot.slane %v408, %v421
  %v423 = vcombine.high %v415, %v415
  %v424 = vcombine.high %v422, %v422
  %v426 = vunpack.c.l.s4 1966171168
  %v427 = vunpack.c.0.s8 %v426
  %v428 = vlaneseq
  %v429 = vshrl.u32 %v428, 7
  %v430 = vsub.s32 %v427, %v429
  %v431 = vrot.slane %v415, %v430
  %v433 = vunpack.c.l.s4 1966171168
  %v434 = vunpack.c.0.s8 %v433
  %v435 = vlaneseq
  %v436 = vshrl.u32 %v435, 7
  %v437 = vsub.s32 %v434, %v436
  %v438 = vrot.slane %v422, %v437
  %v440 = vunpack.c.l.s4 1966171168
  %v441 = vunpack.c.0.s8 %v440
  %v442 = vlaneseq
  %v443 = vshrl.u32 %v442, 7
  %v444 = vsub.s32 %v441, %v443
  %v445 = vrot.slane %v423, %v444
  %v447 = vunpack.c.l.s4 1966171168
  %v448 = vunpack.c.0.s8 %v447
  %v449 = vlaneseq
  %v450 = vshrl.u32 %v449, 7
  %v451 = vsub.s32 %v448, %v450
  %v452 = vrot.slane %v424, %v451
  %v453 = vcombine.high %v431, %v431
  %v454 = vcombine.high %v438, %v438
  %v455 = vcombine.high %v445, %v445
  %v456 = vcombine.high %v452, %v452
  %v457 = vlaneseq
  %v458 = vshrl.u32 %v457, 7
  %v459 = vsub.s32 0, %v458
  %v460 = vrot.slane %v431, %v459
  %v461 = vlaneseq
  %v462 = vshrl.u32 %v461, 7
  %v463 = vsub.s32 0, %v462
  %v464 = vrot.slane %v445, %v463
  %v465 = vlaneseq
  %v466 = vshrl.u32 %v465, 7
  %v467 = vsub.s32 0, %v466
  %v468 = vrot.slane %v453, %v467
  %v469 = vlaneseq
  %v470 = vshrl.u32 %v469, 7
  %v471 = vsub.s32 0, %v470
  %v472 = vrot.slane %v455, %v471
  %v473 = vlaneseq
  %v474 = vshrl.u32 %v473, 7
  %v475 = vsub.s32 0, %v474
  %v476 = vrot.slane %v438, %v475
  %v477 = vlaneseq
  %v478 = vshrl.u32 %v477, 7
  %v479 = vsub.s32 0, %v478
  %v480 = vrot.slane %v452, %v479
  %v481 = vlaneseq
  %v482 = vshrl.u32 %v481, 7
  %v483 = vsub.s32 0, %v482
  %v484 = vrot.slane %v454, %v483
  %v485 = vlaneseq
  %v486 = vshrl.u32 %v485, 7
  %v487 = vsub.s32 0, %v486
  %v488 = vrot.slane %v456, %v487
  %v497 = vsub.f32 %v460, %v20
  %v498 = vsub.f32 %v464, %v20
  %v499 = vsub.f32 %v468, %v20
  %v500 = vsub.f32 %v472, %v20
  %v501 = vsub.f32 %v476, %v20
  %v502 = vsub.f32 %v480, %v20
  %v503 = vsub.f32 %v484, %v20
  %v504 = vsub.f32 %v488, %v20
  %v505 = vmul.f32 %v497, %v497
  %v506 = vmul.f32 %v498, %v498
  %v507 = vmul.f32 %v499, %v499
  %v508 = vmul.f32 %v500, %v500
  %v509 = vmul.f32 %v501, %v501
  %v510 = vmul.f32 %v502, %v502
  %v511 = vmul.f32 %v503, %v503
  %v512 = vmul.f32 %v504, %v504
  %v513 = vadd.f32 %v505, 0.0
  %v514 = vadd.f32 %v506, 0.0
  %v515 = vadd.f32 %v507, 0.0
  %v516 = vadd.f32 %v508, 0.0
  %v517 = vadd.f32 %v509, 0.0
  %v518 = vadd.f32 %v510, 0.0
  %v519 = vadd.f32 %v511, 0.0
  %v520 = vadd.f32 %v512, 0.0
  %529 = vrot.lane.b32.xlu0 %v505, 127
  %v530 = vpop.permute.xlu0 %529
  %531 = vrot.lane.b32.xlu0 %v506, 127
  %v532 = vpop.permute.xlu0 %531
  %533 = vrot.lane.b32.xlu0 %v507, 127
  %v534 = vpop.permute.xlu0 %533
  %535 = vrot.lane.b32.xlu0 %v508, 127
  %v536 = vpop.permute.xlu0 %535
  %537 = vrot.lane.b32.xlu0 %v509, 127
  %v538 = vpop.permute.xlu0 %537
  %539 = vrot.lane.b32.xlu0 %v510, 127
  %v540 = vpop.permute.xlu0 %539
  %541 = vrot.lane.b32.xlu0 %v511, 127
  %v542 = vpop.permute.xlu0 %541
  %543 = vrot.lane.b32.xlu0 %v512, 127
  %v544 = vpop.permute.xlu0 %543
  %v553 = vadd.f32 %v513, %v530
  %v554 = vadd.f32 %v514, %v532
  %v555 = vadd.f32 %v515, %v534
  %v556 = vadd.f32 %v516, %v536
  %v557 = vadd.f32 %v517, %v538
  %v558 = vadd.f32 %v518, %v540
  %v559 = vadd.f32 %v519, %v542
  %v560 = vadd.f32 %v520, %v544
  %v561 = vrsqrt.pop %v553
  %v562 = vmul.f32 %v553, %v561
  %vm563 = vcmp.eq.f32.partialorder %v553, inf
  %v564 = vsel %vm563, %v553, %v562
  %vm565 = vcmp.eq.f32.partialorder %v553, 0.0
  %v566 = vand.u32 %v553, 2147483648
  %v567 = vsel %vm565, %v566, %v564
  %v568 = vrsqrt.pop %v554
  %v569 = vmul.f32 %v554, %v568
  %vm570 = vcmp.eq.f32.partialorder %v554, inf
  %v571 = vsel %vm570, %v554, %v569
  %vm572 = vcmp.eq.f32.partialorder %v554, 0.0
  %v573 = vand.u32 %v554, 2147483648
  %v574 = vsel %vm572, %v573, %v571
  %v575 = vrsqrt.pop %v555
  %v576 = vmul.f32 %v555, %v575
  %vm577 = vcmp.eq.f32.partialorder %v555, inf
  %v578 = vsel %vm577, %v555, %v576
  %vm579 = vcmp.eq.f32.partialorder %v555, 0.0
  %v580 = vand.u32 %v555, 2147483648
  %v581 = vsel %vm579, %v580, %v578
  %v582 = vrsqrt.pop %v556
  %v583 = vmul.f32 %v556, %v582
  %vm584 = vcmp.eq.f32.partialorder %v556, inf
  %v585 = vsel %vm584, %v556, %v583
  %vm586 = vcmp.eq.f32.partialorder %v556, 0.0
  %v587 = vand.u32 %v556, 2147483648
  %v588 = vsel %vm586, %v587, %v585
  %v589 = vrsqrt.pop %v557
  %v590 = vmul.f32 %v557, %v589
  %vm591 = vcmp.eq.f32.partialorder %v557, inf
  %v592 = vsel %vm591, %v557, %v590
  %vm593 = vcmp.eq.f32.partialorder %v557, 0.0
  %v594 = vand.u32 %v557, 2147483648
  %v595 = vsel %vm593, %v594, %v592
  %v596 = vrsqrt.pop %v558
  %v597 = vmul.f32 %v558, %v596
  %vm598 = vcmp.eq.f32.partialorder %v558, inf
  %v599 = vsel %vm598, %v558, %v597
  %vm600 = vcmp.eq.f32.partialorder %v558, 0.0
  %v601 = vand.u32 %v558, 2147483648
  %v602 = vsel %vm600, %v601, %v599
  %v603 = vrsqrt.pop %v559
  %v604 = vmul.f32 %v559, %v603
  %vm605 = vcmp.eq.f32.partialorder %v559, inf
  %v606 = vsel %vm605, %v559, %v604
  %vm607 = vcmp.eq.f32.partialorder %v559, 0.0
  %v608 = vand.u32 %v559, 2147483648
  %v609 = vsel %vm607, %v608, %v606
  %v610 = vrsqrt.pop %v560
  %v611 = vmul.f32 %v560, %v610
  %vm612 = vcmp.eq.f32.partialorder %v560, inf
  %v613 = vsel %vm612, %v560, %v611
  %vm614 = vcmp.eq.f32.partialorder %v560, 0.0
  %v615 = vand.u32 %v560, 2147483648
  %v616 = vsel %vm614, %v615, %v613
  %vm617 = vcmp.le.f32.partialorder %v567, 1.0
  %vm618 = vcmp.le.f32.partialorder %v574, 1.0
  %vm619 = vcmp.le.f32.partialorder %v581, 1.0
  %vm620 = vcmp.le.f32.partialorder %v588, 1.0
  %vm621 = vcmp.le.f32.partialorder %v595, 1.0
  %vm622 = vcmp.le.f32.partialorder %v602, 1.0
  %vm623 = vcmp.le.f32.partialorder %v609, 1.0
  %vm624 = vcmp.le.f32.partialorder %v616, 1.0
  %v625 = vsel %vm617, 1, 0
  %v626 = vsel %vm618, 1, 0
  %v627 = vsel %vm619, 1, 0
  %v628 = vsel %vm620, 1, 0
  %v629 = vsel %vm621, 1, 0
  %v630 = vsel %vm622, 1, 0
  %v631 = vsel %vm623, 1, 0
  %v632 = vsel %vm624, 1, 0
  %v633 = vcvt.s32.f32 %v625
  %v634 = vcvt.s32.f32 %v626
  %v635 = vcvt.s32.f32 %v627
  %v636 = vcvt.s32.f32 %v628
  %v637 = vcvt.s32.f32 %v629
  %v638 = vcvt.s32.f32 %v630
  %v639 = vcvt.s32.f32 %v631
  %v640 = vcvt.s32.f32 %v632
  %649 = vrot.lane.b32.xlu0 %v567, 2
  %v650 = vpop.permute.xlu0 %649
  %651 = vrot.lane.b32.xlu0 %v574, 2
  %v652 = vpop.permute.xlu0 %651
  %653 = vrot.lane.b32.xlu0 %v581, 2
  %v654 = vpop.permute.xlu0 %653
  %655 = vrot.lane.b32.xlu0 %v588, 2
  %v656 = vpop.permute.xlu0 %655
  %657 = vrot.lane.b32.xlu0 %v595, 2
  %v658 = vpop.permute.xlu0 %657
  %659 = vrot.lane.b32.xlu0 %v602, 2
  %v660 = vpop.permute.xlu0 %659
  %661 = vrot.lane.b32.xlu0 %v609, 2
  %v662 = vpop.permute.xlu0 %661
  %663 = vrot.lane.b32.xlu0 %v616, 2
  %v664 = vpop.permute.xlu0 %663
  %v673 = vsel %vm130, %v497, %v650
  %v674 = vsel %vm130, %v498, %v652
  %v675 = vsel %vm130, %v499, %v654
  %v676 = vsel %vm130, %v500, %v656
  %v677 = vsel %vm130, %v501, %v658
  %v678 = vsel %vm130, %v502, %v660
  %v679 = vsel %vm130, %v503, %v662
  %v680 = vsel %vm130, %v504, %v664
  %v681 = vld [vmem:[%s2 + $0x50] sm:$0x7]
  %v682 = vld [vmem:[%s4 + $0x5] sm:$0x1]
  %v683 = vlaneseq
  %v684 = vshrl.u32 %v683, 7
  %v685 = vsub.s32 0, %v684
  %v686 = vrot.slane %v682, %v685
  %vm687 = vcmask 23552
  %v689 = vsel %vm687, %v673, 0
  %v692 = vsel %vm687, %v674, 0
  %v695 = vsel %vm687, %v675, 0
  %v698 = vsel %vm687, %v676, 0
  %v701 = vsel %vm687, %v677, 0
  %v704 = vsel %vm687, %v678, 0
  %v707 = vsel %vm687, %v679, 0
  %v710 = vsel %vm687, %v680, 0
  %vm712 = vcmask 1042432
  %v714 = vsel %vm712, %v681, 0
  %716 = vmatprep.subr.mxu0 0.0
  %717 = vmatpush1.msra.mxu0 %v714
  %718 = vmatprep.subr.mxu0 0.0
  %719 = vmatpush1.msra.mxu0 0.0
  %720 = vmatprep.subr.mxu0 0.0
  %721 = vmatpush1.msra.mxu0 0.0
  %722 = vmatprep.subr.mxu0 0.0
  %723 = vmatpush1.msra.mxu0 0.0
  %724 = vmatprep.subr.mxu0 0.0
  %725 = vmatpush1.msra.mxu0 0.0
  %726 = vmatprep.subr.mxu0 0.0
  %727 = vmatpush1.msra.mxu0 0.0
  %728 = vmatprep.subr.mxu0 0.0
  %729 = vmatpush1.msra.mxu0 0.0
  %730 = vmatprep.subr.mxu0 0.0
  %731 = vmatpush1.msra.mxu0 0.0
  %732 = vmatprep.subr.mxu0 0.0
  %733 = vmatpush1.msra.mxu0 0.0
  %734 = vmatprep.subr.mxu0 0.0
  %735 = vmatpush1.msra.mxu0 0.0
  %736 = vmatprep.subr.mxu0 0.0
  %737 = vmatpush1.msra.mxu0 0.0
  %738 = vmatprep.subr.mxu0 0.0
  %739 = vmatpush1.msra.mxu0 0.0
  %740 = vmatprep.subr.mxu0 0.0
  %741 = vmatpush1.msra.mxu0 0.0
  %742 = vmatprep.subr.mxu0 0.0
  %743 = vmatpush1.msra.mxu0 0.0
  %744 = vmatprep.subr.mxu0 0.0
  %745 = vmatpush1.msra.mxu0 0.0
  %746 = vmatprep.subr.mxu0 0.0
  %747 = vmatpush1.msra.mxu0 0.0
  %748 = vmatprep.subr.mxu0 0.0
  %749 = vmatpush1.msra.mxu0 0.0
  %750 = vmatprep.subr.mxu0 0.0
  %751 = vmatpush1.msra.mxu0 0.0
  %752 = vmatprep.subr.mxu0 0.0
  %753 = vmatpush1.msra.mxu0 0.0
  %754 = vmatprep.subr.mxu0 0.0
  %755 = vmatpush1.msra.mxu0 0.0
  %756 = vmatprep.subr.mxu0 0.0
  %757 = vmatpush1.msra.mxu0 0.0
  %758 = vmatprep.subr.mxu0 0.0
  %759 = vmatpush1.msra.mxu0 0.0
  %760 = vmatprep.subr.mxu0 0.0
  %761 = vmatpush1.msra.mxu0 0.0
  %762 = vmatprep.subr.mxu0 0.0
  %763 = vmatpush1.msra.mxu0 0.0
  %764 = vmatprep.subr.mxu0 0.0
  %765 = vmatpush1.msra.mxu0 0.0
  %766 = vmatprep.subr.mxu0 0.0
  %767 = vmatpush1.msra.mxu0 0.0
  %768 = vmatprep.subr.mxu0 0.0
  %769 = vmatpush1.msra.mxu0 0.0
  %770 = vmatprep.subr.mxu0 0.0
  %771 = vmatpush1.msra.mxu0 0.0
  %772 = vmatprep.subr.mxu0 0.0
  %773 = vmatpush1.msra.mxu0 0.0
  %774 = vmatprep.subr.mxu0 0.0
  %775 = vmatpush1.msra.mxu0 0.0
  %776 = vmatprep.subr.mxu0 0.0
  %777 = vmatpush1.msra.mxu0 0.0
  %778 = vmatprep.subr.mxu0 0.0
  %779 = vmatpush1.msra.mxu0 0.0
  %780 = vmatprep.mubr.f32.mxu0 0.0
  %781 = vmatmul.mubr.f32.gmra.mrb[0].mxu0 %v689
  %v782 = vpop.f32.mrb[0].mxu0
  %v783 = vadd.f32 %v686, %v782
  %v784 = vpop.f32.mrb[0].mxu0
  %785 = vmatprep.mubr.f32.mxu0 0.0
  %786 = vmatmul.mubr.f32.gmra.mrb[0].mxu0 %v692
  %v787 = vpop.f32.mrb[0].mxu0
  %v788 = vadd.f32 %v686, %v787
  %v789 = vpop.f32.mrb[0].mxu0
  %790 = vmatprep.mubr.f32.mxu0 0.0
  %791 = vmatmul.mubr.f32.gmra.mrb[0].mxu0 %v695
  %v792 = vpop.f32.mrb[0].mxu0
  %v793 = vadd.f32 %v686, %v792
  %v794 = vpop.f32.mrb[0].mxu0
  %795 = vmatprep.mubr.f32.mxu0 0.0
  %796 = vmatmul.mubr.f32.gmra.mrb[0].mxu0 %v698
  %v797 = vpop.f32.mrb[0].mxu0
  %v798 = vadd.f32 %v686, %v797
  %v799 = vpop.f32.mrb[0].mxu0
  %800 = vmatprep.mubr.f32.mxu0 0.0
  %801 = vmatmul.mubr.f32.gmra.mrb[0].mxu0 %v701
  %v802 = vpop.f32.mrb[0].mxu0
  %v803 = vadd.f32 %v686, %v802
  %v804 = vpop.f32.mrb[0].mxu0
  %805 = vmatprep.mubr.f32.mxu0 0.0
  %806 = vmatmul.mubr.f32.gmra.mrb[0].mxu0 %v704
  %v807 = vpop.f32.mrb[0].mxu0
  %v808 = vadd.f32 %v686, %v807
  %v809 = vpop.f32.mrb[0].mxu0
  %810 = vmatprep.mubr.f32.mxu0 0.0
  %811 = vmatmul.mubr.f32.gmra.mrb[0].mxu0 %v707
  %v812 = vpop.f32.mrb[0].mxu0
  %v813 = vadd.f32 %v686, %v812
  %v814 = vpop.f32.mrb[0].mxu0
  %815 = vmatprep.mubr.f32.mxu0 0.0
  %816 = vmatmul.mubr.f32.gmra.mrb[0].mxu0 %v710
  %v817 = vpop.f32.mrb[0].mxu0
  %v818 = vadd.f32 %v686, %v817
  %v819 = vpop.f32.mrb[0].mxu0
  %820 = vdwg.mxu0
  %v821 = vmax.f32 %v783, 0.0
  %v822 = vmax.f32 %v788, 0.0
  %v823 = vmax.f32 %v793, 0.0
  %v824 = vmax.f32 %v798, 0.0
  %v825 = vmax.f32 %v803, 0.0
  %v826 = vmax.f32 %v808, 0.0
  %v827 = vmax.f32 %v813, 0.0
  %v828 = vmax.f32 %v818, 0.0
  %v829 = vld [vmem:[%s2 + $0x58] sm:$0xff]
  %v830 = vld [vmem:[%s2 + $0x60] sm:$0xff]
  %v831 = vld [vmem:[%s2 + $0x68] sm:$0xff]
  %v832 = vld [vmem:[%s2 + $0x70] sm:$0xff]
  %v833 = vld [vmem:[%s4 + $0x6] sm:$0x1]
  %v834 = vlaneseq
  %v835 = vshrl.u32 %v834, 7
  %v836 = vsub.s32 0, %v835
  %v837 = vrot.slane %v833, %v836
  %v839 = vsel %vm223, %v821, 0
  %v842 = vsel %vm223, %v822, 0
  %v845 = vsel %vm223, %v823, 0
  %v848 = vsel %vm223, %v824, 0
  %v851 = vsel %vm223, %v825, 0
  %v854 = vsel %vm223, %v826, 0
  %v857 = vsel %vm223, %v827, 0
  %v860 = vsel %vm223, %v828, 0
  %862 = vmatprep.subr.mxu0 0.0
  %863 = vmatpush1.msra.mxu0 %v829
  %864 = vmatprep.subr.mxu0 0.0
  %865 = vmatpush1.msra.mxu0 %v830
  %866 = vmatprep.subr.mxu0 0.0
  %867 = vmatpush1.msra.mxu0 %v831
  %868 = vmatprep.subr.mxu0 0.0
  %869 = vmatpush1.msra.mxu0 %v832
  %870 = vmatprep.subr.mxu0 0.0
  %871 = vmatpush1.msra.mxu0 0.0
  %872 = vmatprep.subr.mxu0 0.0
  %873 = vmatpush1.msra.mxu0 0.0
  %874 = vmatprep.subr.mxu0 0.0
  %875 = vmatpush1.msra.mxu0 0.0
  %876 = vmatprep.subr.mxu0 0.0
  %877 = vmatpush1.msra.mxu0 0.0
  %878 = vmatprep.subr.mxu0 0.0
  %879 = vmatpush1.msra.mxu0 0.0
  %880 = vmatprep.subr.mxu0 0.0
  %881 = vmatpush1.msra.mxu0 0.0
  %882 = vmatprep.subr.mxu0 0.0
  %883 = vmatpush1.msra.mxu0 0.0
  %884 = vmatprep.subr.mxu0 0.0
  %885 = vmatpush1.msra.mxu0 0.0
  %886 = vmatprep.subr.mxu0 0.0
  %887 = vmatpush1.msra.mxu0 0.0
  %888 = vmatprep.subr.mxu0 0.0
  %889 = vmatpush1.msra.mxu0 0.0
  %890 = vmatprep.subr.mxu0 0.0
  %891 = vmatpush1.msra.mxu0 0.0
  %892 = vmatprep.subr.mxu0 0.0
  %893 = vmatpush1.msra.mxu0 0.0
  %894 = vmatprep.subr.mxu0 0.0
  %895 = vmatpush1.msra.mxu0 0.0
  %896 = vmatprep.subr.mxu0 0.0
  %897 = vmatpush1.msra.mxu0 0.0
  %898 = vmatprep.subr.mxu0 0.0
  %899 = vmatpush1.msra.mxu0 0.0
  %900 = vmatprep.subr.mxu0 0.0
  %901 = vmatpush1.msra.mxu0 0.0
  %902 = vmatprep.subr.mxu0 0.0
  %903 = vmatpush1.msra.mxu0 0.0
  %904 = vmatprep.subr.mxu0 0.0
  %905 = vmatpush1.msra.mxu0 0.0
  %906 = vmatprep.subr.mxu0 0.0
  %907 = vmatpush1.msra.mxu0 0.0
  %908 = vmatprep.subr.mxu0 0.0
  %909 = vmatpush1.msra.mxu0 0.0
  %910 = vmatprep.subr.mxu0 0.0
  %911 = vmatpush1.msra.mxu0 0.0
  %912 = vmatprep.subr.mxu0 0.0
  %913 = vmatpush1.msra.mxu0 0.0
  %914 = vmatprep.subr.mxu0 0.0
  %915 = vmatpush1.msra.mxu0 0.0
  %916 = vmatprep.subr.mxu0 0.0
  %917 = vmatpush1.msra.mxu0 0.0
  %918 = vmatprep.subr.mxu0 0.0
  %919 = vmatpush1.msra.mxu0 0.0
  %920 = vmatprep.subr.mxu0 0.0
  %921 = vmatpush1.msra.mxu0 0.0
  %922 = vmatprep.subr.mxu0 0.0
  %923 = vmatpush1.msra.mxu0 0.0
  %924 = vmatprep.subr.mxu0 0.0
  %925 = vmatpush1.msra.mxu0 0.0
  %926 = vmatprep.mubr.f32.mxu0 0.0
  %927 = vmatmul.mubr.f32.gmra.mrb[0].mxu0 %v839
  %v928 = vpop.f32.mrb[0].mxu0
  %v929 = vadd.f32 %v837, %v928
  %v930 = vpop.f32.mrb[0].mxu0
  %931 = vmatprep.mubr.f32.mxu0 0.0
  %932 = vmatmul.mubr.f32.gmra.mrb[0].mxu0 %v842
  %v933 = vpop.f32.mrb[0].mxu0
  %v934 = vadd.f32 %v837, %v933
  %v935 = vpop.f32.mrb[0].mxu0
  %936 = vmatprep.mubr.f32.mxu0 0.0
  %937 = vmatmul.mubr.f32.gmra.mrb[0].mxu0 %v845
  %v938 = vpop.f32.mrb[0].mxu0
  %v939 = vadd.f32 %v837, %v938
  %v940 = vpop.f32.mrb[0].mxu0
  %941 = vmatprep.mubr.f32.mxu0 0.0
  %942 = vmatmul.mubr.f32.gmra.mrb[0].mxu0 %v848
  %v943 = vpop.f32.mrb[0].mxu0
  %v944 = vadd.f32 %v837, %v943
  %v945 = vpop.f32.mrb[0].mxu0
  %946 = vmatprep.mubr.f32.mxu0 0.0
  %947 = vmatmul.mubr.f32.gmra.mrb[0].mxu0 %v851
  %v948 = vpop.f32.mrb[0].mxu0
  %v949 = vadd.f32 %v837, %v948
  %v950 = vpop.f32.mrb[0].mxu0
  %951 = vmatprep.mubr.f32.mxu0 0.0
  %952 = vmatmul.mubr.f32.gmra.mrb[0].mxu0 %v854
  %v953 = vpop.f32.mrb[0].mxu0
  %v954 = vadd.f32 %v837, %v953
  %v955 = vpop.f32.mrb[0].mxu0
  %956 = vmatprep.mubr.f32.mxu0 0.0
  %957 = vmatmul.mubr.f32.gmra.mrb[0].mxu0 %v857
  %v958 = vpop.f32.mrb[0].mxu0
  %v959 = vadd.f32 %v837, %v958
  %v960 = vpop.f32.mrb[0].mxu0
  %961 = vmatprep.mubr.f32.mxu0 0.0
  %962 = vmatmul.mubr.f32.gmra.mrb[0].mxu0 %v860
  %v963 = vpop.f32.mrb[0].mxu0
  %v964 = vadd.f32 %v837, %v963
  %v965 = vpop.f32.mrb[0].mxu0
  %966 = vdwg.mxu0
  %v967 = vmax.f32 %v929, 0.0
  %v968 = vmax.f32 %v934, 0.0
  %v969 = vmax.f32 %v939, 0.0
  %v970 = vmax.f32 %v944, 0.0
  %v971 = vmax.f32 %v949, 0.0
  %v972 = vmax.f32 %v954, 0.0
  %v973 = vmax.f32 %v959, 0.0
  %v974 = vmax.f32 %v964, 0.0
  %v975 = vld [vmem:[%s2 + $0x78] sm:$0xff]
  %v976 = vld [vmem:[%s2 + $0x80] sm:$0xff]
  %v977 = vld [vmem:[%s2 + $0x88] sm:$0xff]
  %v978 = vld [vmem:[%s2 + $0x90] sm:$0xff]
  %v979 = vld [vmem:[%s4 + $0x7] sm:$0x1]
  %v980 = vlaneseq
  %v981 = vshrl.u32 %v980, 7
  %v982 = vsub.s32 0, %v981
  %v983 = vrot.slane %v979, %v982
  %v985 = vsel %vm223, %v967, 0
  %v988 = vsel %vm223, %v968, 0
  %v991 = vsel %vm223, %v969, 0
  %v994 = vsel %vm223, %v970, 0
  %v997 = vsel %vm223, %v971, 0
  %v1000 = vsel %vm223, %v972, 0
  %v1003 = vsel %vm223, %v973, 0
  %v1006 = vsel %vm223, %v974, 0
  %1008 = vmatprep.subr.mxu0 0.0
  %1009 = vmatpush1.msra.mxu0 %v975
  %1010 = vmatprep.subr.mxu0 0.0
  %1011 = vmatpush1.msra.mxu0 %v976
  %1012 = vmatprep.subr.mxu0 0.0
  %1013 = vmatpush1.msra.mxu0 %v977
  %1014 = vmatprep.subr.mxu0 0.0
  %1015 = vmatpush1.msra.mxu0 %v978
  %1016 = vmatprep.subr.mxu0 0.0
  %1017 = vmatpush1.msra.mxu0 0.0
  %1018 = vmatprep.subr.mxu0 0.0
  %1019 = vmatpush1.msra.mxu0 0.0
  %1020 = vmatprep.subr.mxu0 0.0
  %1021 = vmatpush1.msra.mxu0 0.0
  %1022 = vmatprep.subr.mxu0 0.0
  %1023 = vmatpush1.msra.mxu0 0.0
  %1024 = vmatprep.subr.mxu0 0.0
  %1025 = vmatpush1.msra.mxu0 0.0
  %1026 = vmatprep.subr.mxu0 0.0
  %1027 = vmatpush1.msra.mxu0 0.0
  %1028 = vmatprep.subr.mxu0 0.0
  %1029 = vmatpush1.msra.mxu0 0.0
  %1030 = vmatprep.subr.mxu0 0.0
  %1031 = vmatpush1.msra.mxu0 0.0
  %1032 = vmatprep.subr.mxu0 0.0
  %1033 = vmatpush1.msra.mxu0 0.0
  %1034 = vmatprep.subr.mxu0 0.0
  %1035 = vmatpush1.msra.mxu0 0.0
  %1036 = vmatprep.subr.mxu0 0.0
  %1037 = vmatpush1.msra.mxu0 0.0
  %1038 = vmatprep.subr.mxu0 0.0
  %1039 = vmatpush1.msra.mxu0 0.0
  %1040 = vmatprep.subr.mxu0 0.0
  %1041 = vmatpush1.msra.mxu0 0.0
  %1042 = vmatprep.subr.mxu0 0.0
  %1043 = vmatpush1.msra.mxu0 0.0
  %1044 = vmatprep.subr.mxu0 0.0
  %1045 = vmatpush1.msra.mxu0 0.0
  %1046 = vmatprep.subr.mxu0 0.0
  %1047 = vmatpush1.msra.mxu0 0.0
  %1048 = vmatprep.subr.mxu0 0.0
  %1049 = vmatpush1.msra.mxu0 0.0
  %1050 = vmatprep.subr.mxu0 0.0
  %1051 = vmatpush1.msra.mxu0 0.0
  %1052 = vmatprep.subr.mxu0 0.0
  %1053 = vmatpush1.msra.mxu0 0.0
  %1054 = vmatprep.subr.mxu0 0.0
  %1055 = vmatpush1.msra.mxu0 0.0
  %1056 = vmatprep.subr.mxu0 0.0
  %1057 = vmatpush1.msra.mxu0 0.0
  %1058 = vmatprep.subr.mxu0 0.0
  %1059 = vmatpush1.msra.mxu0 0.0
  %1060 = vmatprep.subr.mxu0 0.0
  %1061 = vmatpush1.msra.mxu0 0.0
  %1062 = vmatprep.subr.mxu0 0.0
  %1063 = vmatpush1.msra.mxu0 0.0
  %1064 = vmatprep.subr.mxu0 0.0
  %1065 = vmatpush1.msra.mxu0 0.0
  %1066 = vmatprep.subr.mxu0 0.0
  %1067 = vmatpush1.msra.mxu0 0.0
  %1068 = vmatprep.subr.mxu0 0.0
  %1069 = vmatpush1.msra.mxu0 0.0
  %1070 = vmatprep.subr.mxu0 0.0
  %1071 = vmatpush1.msra.mxu0 0.0
  %1072 = vmatprep.mubr.f32.mxu0 0.0
  %1073 = vmatmul.mubr.f32.gmra.mrb[0].mxu0 %v985
  %v1074 = vpop.f32.mrb[0].mxu0
  %v1075 = vadd.f32 %v983, %v1074
  %v1076 = vpop.f32.mrb[0].mxu0
  %1077 = vmatprep.mubr.f32.mxu0 0.0
  %1078 = vmatmul.mubr.f32.gmra.mrb[0].mxu0 %v988
  %v1079 = vpop.f32.mrb[0].mxu0
  %v1080 = vadd.f32 %v983, %v1079
  %v1081 = vpop.f32.mrb[0].mxu0
  %1082 = vmatprep.mubr.f32.mxu0 0.0
  %1083 = vmatmul.mubr.f32.gmra.mrb[0].mxu0 %v991
  %v1084 = vpop.f32.mrb[0].mxu0
  %v1085 = vadd.f32 %v983, %v1084
  %v1086 = vpop.f32.mrb[0].mxu0
  %1087 = vmatprep.mubr.f32.mxu0 0.0
  %1088 = vmatmul.mubr.f32.gmra.mrb[0].mxu0 %v994
  %v1089 = vpop.f32.mrb[0].mxu0
  %v1090 = vadd.f32 %v983, %v1089
  %v1091 = vpop.f32.mrb[0].mxu0
  %1092 = vmatprep.mubr.f32.mxu0 0.0
  %1093 = vmatmul.mubr.f32.gmra.mrb[0].mxu0 %v997
  %v1094 = vpop.f32.mrb[0].mxu0
  %v1095 = vadd.f32 %v983, %v1094
  %v1096 = vpop.f32.mrb[0].mxu0
  %1097 = vmatprep.mubr.f32.mxu0 0.0
  %1098 = vmatmul.mubr.f32.gmra.mrb[0].mxu0 %v1000
  %v1099 = vpop.f32.mrb[0].mxu0
  %v1100 = vadd.f32 %v983, %v1099
  %v1101 = vpop.f32.mrb[0].mxu0
  %1102 = vmatprep.mubr.f32.mxu0 0.0
  %1103 = vmatmul.mubr.f32.gmra.mrb[0].mxu0 %v1003
  %v1104 = vpop.f32.mrb[0].mxu0
  %v1105 = vadd.f32 %v983, %v1104
  %v1106 = vpop.f32.mrb[0].mxu0
  %1107 = vmatprep.mubr.f32.mxu0 0.0
  %1108 = vmatmul.mubr.f32.gmra.mrb[0].mxu0 %v1006
  %v1109 = vpop.f32.mrb[0].mxu0
  %v1110 = vadd.f32 %v983, %v1109
  %v1111 = vpop.f32.mrb[0].mxu0
  %1112 = vdwg.mxu0
  %v1113 = vld [vmem:[%s4 + $0x8] sm:$0x1]
  %v1114 = vld [vmem:[%s4 + $0x9] sm:$0x1]
  %v1115 = vsel %vm223, %v1075, 0.0
  %1116 = vadd.xlane.f32.xlu0 %v1115
  %v1117 = vpop.xlane.xlu0 %1116
  %v1118 = vsel %vm223, %v1080, 0.0
  %1119 = vadd.xlane.f32.xlu0 %v1118
  %v1120 = vpop.xlane.xlu0 %1119
  %v1121 = vsel %vm223, %v1085, 0.0
  %1122 = vadd.xlane.f32.xlu0 %v1121
  %v1123 = vpop.xlane.xlu0 %1122
  %v1124 = vsel %vm223, %v1090, 0.0
  %1125 = vadd.xlane.f32.xlu0 %v1124
  %v1126 = vpop.xlane.xlu0 %1125
  %v1127 = vsel %vm223, %v1095, 0.0
  %1128 = vadd.xlane.f32.xlu0 %v1127
  %v1129 = vpop.xlane.xlu0 %1128
  %v1130 = vsel %vm223, %v1100, 0.0
  %1131 = vadd.xlane.f32.xlu0 %v1130
  %v1132 = vpop.xlane.xlu0 %1131
  %v1133 = vsel %vm223, %v1105, 0.0
  %1134 = vadd.xlane.f32.xlu0 %v1133
  %v1135 = vpop.xlane.xlu0 %1134
  %v1136 = vsel %vm223, %v1110, 0.0
  %1137 = vadd.xlane.f32.xlu0 %v1136
  %v1138 = vpop.xlane.xlu0 %1137
  %v1139 = vmul.f32 %v1075, %v1075
  %v1140 = vmul.f32 %v1080, %v1080
  %v1141 = vmul.f32 %v1085, %v1085
  %v1142 = vmul.f32 %v1090, %v1090
  %v1143 = vmul.f32 %v1095, %v1095
  %v1144 = vmul.f32 %v1100, %v1100
  %v1145 = vmul.f32 %v1105, %v1105
  %v1146 = vmul.f32 %v1110, %v1110
  %v1147 = vsel %vm223, %v1139, 0.0
  %1148 = vadd.xlane.f32.xlu0 %v1147
  %v1149 = vpop.xlane.xlu0 %1148
  %v1150 = vsel %vm223, %v1140, 0.0
  %1151 = vadd.xlane.f32.xlu0 %v1150
  %v1152 = vpop.xlane.xlu0 %1151
  %v1153 = vsel %vm223, %v1141, 0.0
  %1154 = vadd.xlane.f32.xlu0 %v1153
  %v1155 = vpop.xlane.xlu0 %1154
  %v1156 = vsel %vm223, %v1142, 0.0
  %1157 = vadd.xlane.f32.xlu0 %v1156
  %v1158 = vpop.xlane.xlu0 %1157
  %v1159 = vsel %vm223, %v1143, 0.0
  %1160 = vadd.xlane.f32.xlu0 %v1159
  %v1161 = vpop.xlane.xlu0 %1160
  %v1162 = vsel %vm223, %v1144, 0.0
  %1163 = vadd.xlane.f32.xlu0 %v1162
  %v1164 = vpop.xlane.xlu0 %1163
  %v1165 = vsel %vm223, %v1145, 0.0
  %1166 = vadd.xlane.f32.xlu0 %v1165
  %v1167 = vpop.xlane.xlu0 %1166
  %v1168 = vsel %vm223, %v1146, 0.0
  %1169 = vadd.xlane.f32.xlu0 %v1168
  %v1170 = vpop.xlane.xlu0 %1169
  %v1171 = vmul.f32 %v1117, 0.03125
  %v1172 = vmul.f32 %v1120, 0.03125
  %v1173 = vmul.f32 %v1123, 0.03125
  %v1174 = vmul.f32 %v1126, 0.03125
  %v1175 = vmul.f32 %v1129, 0.03125
  %v1176 = vmul.f32 %v1132, 0.03125
  %v1177 = vmul.f32 %v1135, 0.03125
  %v1178 = vmul.f32 %v1138, 0.03125
  %v1179 = vmul.f32 %v1149, 0.03125
  %v1180 = vmul.f32 %v1152, 0.03125
  %v1181 = vmul.f32 %v1155, 0.03125
  %v1182 = vmul.f32 %v1158, 0.03125
  %v1183 = vmul.f32 %v1161, 0.03125
  %v1184 = vmul.f32 %v1164, 0.03125
  %v1185 = vmul.f32 %v1167, 0.03125
  %v1186 = vmul.f32 %v1170, 0.03125
  %v1187 = vmul.f32 %v1171, %v1171
  %v1188 = vmul.f32 %v1172, %v1172
  %v1189 = vmul.f32 %v1173, %v1173
  %v1190 = vmul.f32 %v1174, %v1174
  %v1191 = vmul.f32 %v1175, %v1175
  %v1192 = vmul.f32 %v1176, %v1176
  %v1193 = vmul.f32 %v1177, %v1177
  %v1194 = vmul.f32 %v1178, %v1178
  %v1195 = vsub.f32 %v1179, %v1187
  %v1196 = vsub.f32 %v1180, %v1188
  %v1197 = vsub.f32 %v1181, %v1189
  %v1198 = vsub.f32 %v1182, %v1190
  %v1199 = vsub.f32 %v1183, %v1191
  %v1200 = vsub.f32 %v1184, %v1192
  %v1201 = vsub.f32 %v1185, %v1193
  %v1202 = vsub.f32 %v1186, %v1194
  %v1203 = vmax.f32 %v1195, 0.0
  %v1204 = vmax.f32 %v1196, 0.0
  %v1205 = vmax.f32 %v1197, 0.0
  %v1206 = vmax.f32 %v1198, 0.0
  %v1207 = vmax.f32 %v1199, 0.0
  %v1208 = vmax.f32 %v1200, 0.0
  %v1209 = vmax.f32 %v1201, 0.0
  %v1210 = vmax.f32 %v1202, 0.0
  %v1211 = vsub.f32 %v1075, %v1171
  %v1212 = vsub.f32 %v1080, %v1172
  %v1213 = vsub.f32 %v1085, %v1173
  %v1214 = vsub.f32 %v1090, %v1174
  %v1215 = vsub.f32 %v1095, %v1175
  %v1216 = vsub.f32 %v1100, %v1176
  %v1217 = vsub.f32 %v1105, %v1177
  %v1218 = vsub.f32 %v1110, %v1178
  %v1219 = vadd.f32 %v1203, 1e-05
  %v1220 = vadd.f32 %v1204, 1e-05
  %v1221 = vadd.f32 %v1205, 1e-05
  %v1222 = vadd.f32 %v1206, 1e-05
  %v1223 = vadd.f32 %v1207, 1e-05
  %v1224 = vadd.f32 %v1208, 1e-05
  %v1225 = vadd.f32 %v1209, 1e-05
  %v1226 = vadd.f32 %v1210, 1e-05
  %v1227 = vrsqrt.pop %v1219
  %v1228 = vrsqrt.pop %v1220
  %v1229 = vrsqrt.pop %v1221
  %v1230 = vrsqrt.pop %v1222
  %v1231 = vrsqrt.pop %v1223
  %v1232 = vrsqrt.pop %v1224
  %v1233 = vrsqrt.pop %v1225
  %v1234 = vrsqrt.pop %v1226
  %v1235 = vmul.f32 %v1211, %v1227
  %v1236 = vmul.f32 %v1212, %v1228
  %v1237 = vmul.f32 %v1213, %v1229
  %v1238 = vmul.f32 %v1214, %v1230
  %v1239 = vmul.f32 %v1215, %v1231
  %v1240 = vmul.f32 %v1216, %v1232
  %v1241 = vmul.f32 %v1217, %v1233
  %v1242 = vmul.f32 %v1218, %v1234
  %v1243 = vlaneseq
  %v1244 = vshrl.u32 %v1243, 7
  %v1245 = vsub.s32 0, %v1244
  %v1246 = vrot.slane %v1113, %v1245
  %v1247 = vmul.f32 %v1235, %v1246
  %v1248 = vmul.f32 %v1236, %v1246
  %v1249 = vmul.f32 %v1237, %v1246
  %v1250 = vmul.f32 %v1238, %v1246
  %v1251 = vmul.f32 %v1239, %v1246
  %v1252 = vmul.f32 %v1240, %v1246
  %v1253 = vmul.f32 %v1241, %v1246
  %v1254 = vmul.f32 %v1242, %v1246
  %v1255 = vlaneseq
  %v1256 = vshrl.u32 %v1255, 7
  %v1257 = vsub.s32 0, %v1256
  %v1258 = vrot.slane %v1114, %v1257
  %v1259 = vadd.f32 %v1247, %v1258
  %v1260 = vadd.f32 %v1248, %v1258
  %v1261 = vadd.f32 %v1249, %v1258
  %v1262 = vadd.f32 %v1250, %v1258
  %v1263 = vadd.f32 %v1251, %v1258
  %v1264 = vadd.f32 %v1252, %v1258
  %v1265 = vadd.f32 %v1253, %v1258
  %v1266 = vadd.f32 %v1254, %v1258
  %v1267 = vld [vmem:[%s3] sm:$0xff]
  %v1268 = vld [vmem:[%s3 + $0x8] sm:$0xff]
  %v1269 = vld [vmem:[%s3 + $0x10] sm:$0xff]
  %v1270 = vld [vmem:[%s3 + $0x18] sm:$0xff]
  %v1272 = vsel %vm223, %v407, 0
  %1274 = vmatprep.subr.mxu0 0.0
  %1275 = vmatpush1.msra.mxu0 %v1267
  %1276 = vmatprep.subr.mxu0 0.0
  %1277 = vmatpush1.msra.mxu0 %v1268
  %1278 = vmatprep.subr.mxu0 0.0
  %1279 = vmatpush1.msra.mxu0 %v1269
  %1280 = vmatprep.subr.mxu0 0.0
  %1281 = vmatpush1.msra.mxu0 %v1270
  %1282 = vmatprep.subr.mxu0 0.0
  %1283 = vmatpush1.msra.mxu0 0.0
  %1284 = vmatprep.subr.mxu0 0.0
  %1285 = vmatpush1.msra.mxu0 0.0
  %1286 = vmatprep.subr.mxu0 0.0
  %1287 = vmatpush1.msra.mxu0 0.0
  %1288 = vmatprep.subr.mxu0 0.0
  %1289 = vmatpush1.msra.mxu0 0.0
  %1290 = vmatprep.subr.mxu0 0.0
  %1291 = vmatpush1.msra.mxu0 0.0
  %1292 = vmatprep.subr.mxu0 0.0
  %1293 = vmatpush1.msra.mxu0 0.0
  %1294 = vmatprep.subr.mxu0 0.0
  %1295 = vmatpush1.msra.mxu0 0.0
  %1296 = vmatprep.subr.mxu0 0.0
  %1297 = vmatpush1.msra.mxu0 0.0
  %1298 = vmatprep.subr.mxu0 0.0
  %1299 = vmatpush1.msra.mxu0 0.0
  %1300 = vmatprep.subr.mxu0 0.0
  %1301 = vmatpush1.msra.mxu0 0.0
  %1302 = vmatprep.subr.mxu0 0.0
  %1303 = vmatpush1.msra.mxu0 0.0
  %1304 = vmatprep.subr.mxu0 0.0
  %1305 = vmatpush1.msra.mxu0 0.0
  %1306 = vmatprep.subr.mxu0 0.0
  %1307 = vmatpush1.msra.mxu0 0.0
  %1308 = vmatprep.subr.mxu0 0.0
  %1309 = vmatpush1.msra.mxu0 0.0
  %1310 = vmatprep.subr.mxu0 0.0
  %1311 = vmatpush1.msra.mxu0 0.0
  %1312 = vmatprep.subr.mxu0 0.0
  %1313 = vmatpush1.msra.mxu0 0.0
  %1314 = vmatprep.subr.mxu0 0.0
  %1315 = vmatpush1.msra.mxu0 0.0
  %1316 = vmatprep.subr.mxu0 0.0
  %1317 = vmatpush1.msra.mxu0 0.0
  %1318 = vmatprep.subr.mxu0 0.0
  %1319 = vmatpush1.msra.mxu0 0.0
  %1320 = vmatprep.subr.mxu0 0.0
  %1321 = vmatpush1.msra.mxu0 0.0
  %1322 = vmatprep.subr.mxu0 0.0
  %1323 = vmatpush1.msra.mxu0 0.0
  %1324 = vmatprep.subr.mxu0 0.0
  %1325 = vmatpush1.msra.mxu0 0.0
  %1326 = vmatprep.subr.mxu0 0.0
  %1327 = vmatpush1.msra.mxu0 0.0
  %1328 = vmatprep.subr.mxu0 0.0
  %1329 = vmatpush1.msra.mxu0 0.0
  %1330 = vmatprep.subr.mxu0 0.0
  %1331 = vmatpush1.msra.mxu0 0.0
  %1332 = vmatprep.subr.mxu0 0.0
  %1333 = vmatpush1.msra.mxu0 0.0
  %1334 = vmatprep.subr.mxu0 0.0
  %1335 = vmatpush1.msra.mxu0 0.0
  %1336 = vmatprep.subr.mxu0 0.0
  %1337 = vmatpush1.msra.mxu0 0.0
  %1338 = vmatprep.mubr.f32.mxu0 0.0
  %1339 = vmatmul.mubr.f32.gmra.mrb[0].mxu0 %v1272
  %v1340 = vpop.f32.mrb[0].mxu0
  %v1341 = vadd.f32 0.0, %v1340
  %v1342 = vpop.f32.mrb[0].mxu0
  %1343 = vdwg.mxu0
  %v1344 = vld [vmem:[%s2 + $0x98] sm:$0xff]
  %v1345 = vld [vmem:[%s2 + $0xa0] sm:$0xff]
  %v1346 = vld [vmem:[%s2 + $0xa8] sm:$0xff]
  %v1347 = vld [vmem:[%s2 + $0xb0] sm:$0xff]
  %v1349 = vsel %vm223, %v1259, 0
  %v1352 = vsel %vm223, %v1260, 0
  %v1355 = vsel %vm223, %v1261, 0
  %v1358 = vsel %vm223, %v1262, 0
  %v1361 = vsel %vm223, %v1263, 0
  %v1364 = vsel %vm223, %v1264, 0
  %v1367 = vsel %vm223, %v1265, 0
  %v1370 = vsel %vm223, %v1266, 0
  %1372 = vmatprep.subr.mxu0 0.0
  %1373 = vmatpush1.msra.mxu0 %v1344
  %1374 = vmatprep.subr.mxu0 0.0
  %1375 = vmatpush1.msra.mxu0 %v1345
  %1376 = vmatprep.subr.mxu0 0.0
  %1377 = vmatpush1.msra.mxu0 %v1346
  %1378 = vmatprep.subr.mxu0 0.0
  %1379 = vmatpush1.msra.mxu0 %v1347
  %1380 = vmatprep.subr.mxu0 0.0
  %1381 = vmatpush1.msra.mxu0 0.0
  %1382 = vmatprep.subr.mxu0 0.0
  %1383 = vmatpush1.msra.mxu0 0.0
  %1384 = vmatprep.subr.mxu0 0.0
  %1385 = vmatpush1.msra.mxu0 0.0
  %1386 = vmatprep.subr.mxu0 0.0
  %1387 = vmatpush1.msra.mxu0 0.0
  %1388 = vmatprep.subr.mxu0 0.0
  %1389 = vmatpush1.msra.mxu0 0.0
  %1390 = vmatprep.subr.mxu0 0.0
  %1391 = vmatpush1.msra.mxu0 0.0
  %1392 = vmatprep.subr.mxu0 0.0
  %1393 = vmatpush1.msra.mxu0 0.0
  %1394 = vmatprep.subr.mxu0 0.0
  %1395 = vmatpush1.msra.mxu0 0.0
  %1396 = vmatprep.subr.mxu0 0.0
  %1397 = vmatpush1.msra.mxu0 0.0
  %1398 = vmatprep.subr.mxu0 0.0
  %1399 = vmatpush1.msra.mxu0 0.0
  %1400 = vmatprep.subr.mxu0 0.0
  %1401 = vmatpush1.msra.mxu0 0.0
  %1402 = vmatprep.subr.mxu0 0.0
  %1403 = vmatpush1.msra.mxu0 0.0
  %1404 = vmatprep.subr.mxu0 0.0
  %1405 = vmatpush1.msra.mxu0 0.0
  %1406 = vmatprep.subr.mxu0 0.0
  %1407 = vmatpush1.msra.mxu0 0.0
  %1408 = vmatprep.subr.mxu0 0.0
  %1409 = vmatpush1.msra.mxu0 0.0
  %1410 = vmatprep.subr.mxu0 0.0
  %1411 = vmatpush1.msra.mxu0 0.0
  %1412 = vmatprep.subr.mxu0 0.0
  %1413 = vmatpush1.msra.mxu0 0.0
  %1414 = vmatprep.subr.mxu0 0.0
  %1415 = vmatpush1.msra.mxu0 0.0
  %1416 = vmatprep.subr.mxu0 0.0
  %1417 = vmatpush1.msra.mxu0 0.0
  %1418 = vmatprep.subr.mxu0 0.0
  %1419 = vmatpush1.msra.mxu0 0.0
  %1420 = vmatprep.subr.mxu0 0.0
  %1421 = vmatpush1.msra.mxu0 0.0
  %1422 = vmatprep.subr.mxu0 0.0
  %1423 = vmatpush1.msra.mxu0 0.0
  %1424 = vmatprep.subr.mxu0 0.0
  %1425 = vmatpush1.msra.mxu0 0.0
  %1426 = vmatprep.subr.mxu0 0.0
  %1427 = vmatpush1.msra.mxu0 0.0
  %1428 = vmatprep.subr.mxu0 0.0
  %1429 = vmatpush1.msra.mxu0 0.0
  %1430 = vmatprep.subr.mxu0 0.0
  %1431 = vmatpush1.msra.mxu0 0.0
  %1432 = vmatprep.subr.mxu0 0.0
  %1433 = vmatpush1.msra.mxu0 0.0
  %1434 = vmatprep.subr.mxu0 0.0
  %1435 = vmatpush1.msra.mxu0 0.0
  %1436 = vmatprep.mubr.f32.mxu0 0.0
  %1437 = vmatmul.mubr.f32.gmra.mrb[0].mxu0 %v1349
  %v1438 = vpop.f32.mrb[0].mxu0
  %v1439 = vadd.f32 0.0, %v1438
  %v1440 = vpop.f32.mrb[0].mxu0
  %1441 = vmatprep.mubr.f32.mxu0 0.0
  %1442 = vmatmul.mubr.f32.gmra.mrb[0].mxu0 %v1352
  %v1443 = vpop.f32.mrb[0].mxu0
  %v1444 = vadd.f32 0.0, %v1443
  %v1445 = vpop.f32.mrb[0].mxu0
  %1446 = vmatprep.mubr.f32.mxu0 0.0
  %1447 = vmatmul.mubr.f32.gmra.mrb[0].mxu0 %v1355
  %v1448 = vpop.f32.mrb[0].mxu0
  %v1449 = vadd.f32 0.0, %v1448
  %v1450 = vpop.f32.mrb[0].mxu0
  %1451 = vmatprep.mubr.f32.mxu0 0.0
  %1452 = vmatmul.mubr.f32.gmra.mrb[0].mxu0 %v1358
  %v1453 = vpop.f32.mrb[0].mxu0
  %v1454 = vadd.f32 0.0, %v1453
  %v1455 = vpop.f32.mrb[0].mxu0
  %1456 = vmatprep.mubr.f32.mxu0 0.0
  %1457 = vmatmul.mubr.f32.gmra.mrb[0].mxu0 %v1361
  %v1458 = vpop.f32.mrb[0].mxu0
  %v1459 = vadd.f32 0.0, %v1458
  %v1460 = vpop.f32.mrb[0].mxu0
  %1461 = vmatprep.mubr.f32.mxu0 0.0
  %1462 = vmatmul.mubr.f32.gmra.mrb[0].mxu0 %v1364
  %v1463 = vpop.f32.mrb[0].mxu0
  %v1464 = vadd.f32 0.0, %v1463
  %v1465 = vpop.f32.mrb[0].mxu0
  %1466 = vmatprep.mubr.f32.mxu0 0.0
  %1467 = vmatmul.mubr.f32.gmra.mrb[0].mxu0 %v1367
  %v1468 = vpop.f32.mrb[0].mxu0
  %v1469 = vadd.f32 0.0, %v1468
  %v1470 = vpop.f32.mrb[0].mxu0
  %1471 = vmatprep.mubr.f32.mxu0 0.0
  %1472 = vmatmul.mubr.f32.gmra.mrb[0].mxu0 %v1370
  %v1473 = vpop.f32.mrb[0].mxu0
  %v1474 = vadd.f32 0.0, %v1473
  %v1475 = vpop.f32.mrb[0].mxu0
  %1476 = vdwg.mxu0
  %v1478 = vcombine.high %v1341, %v1341
  %v1480 = vunpack.c.l.s4 1966171168
  %v1481 = vunpack.c.0.s8 %v1480
  %v1482 = vlaneseq
  %v1483 = vshrl.u32 %v1482, 7
  %v1484 = vsub.s32 %v1481, %v1483
  %v1485 = vrot.slane %v1341, %v1484
  %v1487 = vunpack.c.l.s4 1966171168
  %v1488 = vunpack.c.0.s8 %v1487
  %v1489 = vlaneseq
  %v1490 = vshrl.u32 %v1489, 7
  %v1491 = vsub.s32 %v1488, %v1490
  %v1492 = vrot.slane %v1478, %v1491
  %v1493 = vcombine.high %v1485, %v1485
  %v1494 = vcombine.high %v1492, %v1492
  %v1496 = vunpack.c.l.s4 1966171168
  %v1497 = vunpack.c.0.s8 %v1496
  %v1498 = vlaneseq
  %v1499 = vshrl.u32 %v1498, 7
  %v1500 = vsub.s32 %v1497, %v1499
  %v1501 = vrot.slane %v1485, %v1500
  %v1503 = vunpack.c.l.s4 1966171168
  %v1504 = vunpack.c.0.s8 %v1503
  %v1505 = vlaneseq
  %v1506 = vshrl.u32 %v1505, 7
  %v1507 = vsub.s32 %v1504, %v1506
  %v1508 = vrot.slane %v1492, %v1507
  %v1510 = vunpack.c.l.s4 1966171168
  %v1511 = vunpack.c.0.s8 %v1510
  %v1512 = vlaneseq
  %v1513 = vshrl.u32 %v1512, 7
  %v1514 = vsub.s32 %v1511, %v1513
  %v1515 = vrot.slane %v1493, %v1514
  %v1517 = vunpack.c.l.s4 1966171168
  %v1518 = vunpack.c.0.s8 %v1517
  %v1519 = vlaneseq
  %v1520 = vshrl.u32 %v1519, 7
  %v1521 = vsub.s32 %v1518, %v1520
  %v1522 = vrot.slane %v1494, %v1521
  %v1523 = vcombine.high %v1501, %v1501
  %v1524 = vcombine.high %v1508, %v1508
  %v1525 = vcombine.high %v1515, %v1515
  %v1526 = vcombine.high %v1522, %v1522
  %v1527 = vlaneseq
  %v1528 = vshrl.u32 %v1527, 7
  %v1529 = vsub.s32 0, %v1528
  %v1530 = vrot.slane %v1501, %v1529
  %v1531 = vlaneseq
  %v1532 = vshrl.u32 %v1531, 7
  %v1533 = vsub.s32 0, %v1532
  %v1534 = vrot.slane %v1515, %v1533
  %v1535 = vlaneseq
  %v1536 = vshrl.u32 %v1535, 7
  %v1537 = vsub.s32 0, %v1536
  %v1538 = vrot.slane %v1523, %v1537
  %v1539 = vlaneseq
  %v1540 = vshrl.u32 %v1539, 7
  %v1541 = vsub.s32 0, %v1540
  %v1542 = vrot.slane %v1525, %v1541
  %v1543 = vlaneseq
  %v1544 = vshrl.u32 %v1543, 7
  %v1545 = vsub.s32 0, %v1544
  %v1546 = vrot.slane %v1508, %v1545
  %v1547 = vlaneseq
  %v1548 = vshrl.u32 %v1547, 7
  %v1549 = vsub.s32 0, %v1548
  %v1550 = vrot.slane %v1522, %v1549
  %v1551 = vlaneseq
  %v1552 = vshrl.u32 %v1551, 7
  %v1553 = vsub.s32 0, %v1552
  %v1554 = vrot.slane %v1524, %v1553
  %v1555 = vlaneseq
  %v1556 = vshrl.u32 %v1555, 7
  %v1557 = vsub.s32 0, %v1556
  %v1558 = vrot.slane %v1526, %v1557
  %v1567 = vadd.f32 %v1439, %v1530
  %v1568 = vadd.f32 %v1444, %v1534
  %v1569 = vadd.f32 %v1449, %v1538
  %v1570 = vadd.f32 %v1454, %v1542
  %v1571 = vadd.f32 %v1459, %v1546
  %v1572 = vadd.f32 %v1464, %v1550
  %v1573 = vadd.f32 %v1469, %v1554
  %v1574 = vadd.f32 %v1474, %v1558
  %1575 = vrot.lane.b32.xlu0 %v1341, 96
  %v1576 = vpop.permute.xlu0 %1575
  %v1578 = vadd.f32 %v1567, %v1576
  %v1579 = vadd.f32 %v1568, %v1576
  %v1580 = vadd.f32 %v1569, %v1576
  %v1581 = vadd.f32 %v1570, %v1576
  %v1582 = vadd.f32 %v1571, %v1576
  %v1583 = vadd.f32 %v1572, %v1576
  %v1584 = vadd.f32 %v1573, %v1576
  %v1585 = vadd.f32 %v1574, %v1576
  %v1586 = vld [vmem:[%s4 + $0xa] sm:$0x1]
  %v1587 = vlaneseq
  %v1588 = vshrl.u32 %v1587, 7
  %v1589 = vsub.s32 0, %v1588
  %v1590 = vrot.slane %v1586, %v1589
  %v1591 = vadd.f32 %v1578, %v1590
  %v1592 = vadd.f32 %v1579, %v1590
  %v1593 = vadd.f32 %v1580, %v1590
  %v1594 = vadd.f32 %v1581, %v1590
  %v1595 = vadd.f32 %v1582, %v1590
  %v1596 = vadd.f32 %v1583, %v1590
  %v1597 = vadd.f32 %v1584, %v1590
  %v1598 = vadd.f32 %v1585, %v1590
  %v1599 = vmax.f32 %v1591, 0.0
  %v1600 = vmax.f32 %v1592, 0.0
  %v1601 = vmax.f32 %v1593, 0.0
  %v1602 = vmax.f32 %v1594, 0.0
  %v1603 = vmax.f32 %v1595, 0.0
  %v1604 = vmax.f32 %v1596, 0.0
  %v1605 = vmax.f32 %v1597, 0.0
  %v1606 = vmax.f32 %v1598, 0.0
  %v1607 = vld [vmem:[%s2 + $0xb8] sm:$0xff]
  %v1608 = vld [vmem:[%s2 + $0xc0] sm:$0xff]
  %v1609 = vld [vmem:[%s2 + $0xc8] sm:$0xff]
  %v1610 = vld [vmem:[%s2 + $0xd0] sm:$0xff]
  %v1611 = vld [vmem:[%s4 + $0xb] sm:$0x1]
  %v1612 = vlaneseq
  %v1613 = vshrl.u32 %v1612, 7
  %v1614 = vsub.s32 0, %v1613
  %v1615 = vrot.slane %v1611, %v1614
  %v1617 = vsel %vm223, %v1599, 0
  %v1620 = vsel %vm223, %v1600, 0
  %v1623 = vsel %vm223, %v1601, 0
  %v1626 = vsel %vm223, %v1602, 0
  %v1629 = vsel %vm223, %v1603, 0
  %v1632 = vsel %vm223, %v1604, 0
  %v1635 = vsel %vm223, %v1605, 0
  %v1638 = vsel %vm223, %v1606, 0
  %1640 = vmatprep.subr.mxu0 0.0
  %1641 = vmatpush1.msra.mxu0 %v1607
  %1642 = vmatprep.subr.mxu0 0.0
  %1643 = vmatpush1.msra.mxu0 %v1608
  %1644 = vmatprep.subr.mxu0 0.0
  %1645 = vmatpush1.msra.mxu0 %v1609
  %1646 = vmatprep.subr.mxu0 0.0
  %1647 = vmatpush1.msra.mxu0 %v1610
  %1648 = vmatprep.subr.mxu0 0.0
  %1649 = vmatpush1.msra.mxu0 0.0
  %1650 = vmatprep.subr.mxu0 0.0
  %1651 = vmatpush1.msra.mxu0 0.0
  %1652 = vmatprep.subr.mxu0 0.0
  %1653 = vmatpush1.msra.mxu0 0.0
  %1654 = vmatprep.subr.mxu0 0.0
  %1655 = vmatpush1.msra.mxu0 0.0
  %1656 = vmatprep.subr.mxu0 0.0
  %1657 = vmatpush1.msra.mxu0 0.0
  %1658 = vmatprep.subr.mxu0 0.0
  %1659 = vmatpush1.msra.mxu0 0.0
  %1660 = vmatprep.subr.mxu0 0.0
  %1661 = vmatpush1.msra.mxu0 0.0
  %1662 = vmatprep.subr.mxu0 0.0
  %1663 = vmatpush1.msra.mxu0 0.0
  %1664 = vmatprep.subr.mxu0 0.0
  %1665 = vmatpush1.msra.mxu0 0.0
  %1666 = vmatprep.subr.mxu0 0.0
  %1667 = vmatpush1.msra.mxu0 0.0
  %1668 = vmatprep.subr.mxu0 0.0
  %1669 = vmatpush1.msra.mxu0 0.0
  %1670 = vmatprep.subr.mxu0 0.0
  %1671 = vmatpush1.msra.mxu0 0.0
  %1672 = vmatprep.subr.mxu0 0.0
  %1673 = vmatpush1.msra.mxu0 0.0
  %1674 = vmatprep.subr.mxu0 0.0
  %1675 = vmatpush1.msra.mxu0 0.0
  %1676 = vmatprep.subr.mxu0 0.0
  %1677 = vmatpush1.msra.mxu0 0.0
  %1678 = vmatprep.subr.mxu0 0.0
  %1679 = vmatpush1.msra.mxu0 0.0
  %1680 = vmatprep.subr.mxu0 0.0
  %1681 = vmatpush1.msra.mxu0 0.0
  %1682 = vmatprep.subr.mxu0 0.0
  %1683 = vmatpush1.msra.mxu0 0.0
  %1684 = vmatprep.subr.mxu0 0.0
  %1685 = vmatpush1.msra.mxu0 0.0
  %1686 = vmatprep.subr.mxu0 0.0
  %1687 = vmatpush1.msra.mxu0 0.0
  %1688 = vmatprep.subr.mxu0 0.0
  %1689 = vmatpush1.msra.mxu0 0.0
  %1690 = vmatprep.subr.mxu0 0.0
  %1691 = vmatpush1.msra.mxu0 0.0
  %1692 = vmatprep.subr.mxu0 0.0
  %1693 = vmatpush1.msra.mxu0 0.0
  %1694 = vmatprep.subr.mxu0 0.0
  %1695 = vmatpush1.msra.mxu0 0.0
  %1696 = vmatprep.subr.mxu0 0.0
  %1697 = vmatpush1.msra.mxu0 0.0
  %1698 = vmatprep.subr.mxu0 0.0
  %1699 = vmatpush1.msra.mxu0 0.0
  %1700 = vmatprep.subr.mxu0 0.0
  %1701 = vmatpush1.msra.mxu0 0.0
  %1702 = vmatprep.subr.mxu0 0.0
  %1703 = vmatpush1.msra.mxu0 0.0
  %1704 = vmatprep.mubr.f32.mxu0 0.0
  %1705 = vmatmul.mubr.f32.gmra.mrb[0].mxu0 %v1617
  %v1706 = vpop.f32.mrb[0].mxu0
  %v1707 = vadd.f32 %v1615, %v1706
  %v1708 = vpop.f32.mrb[0].mxu0
  %1709 = vmatprep.mubr.f32.mxu0 0.0
  %1710 = vmatmul.mubr.f32.gmra.mrb[0].mxu0 %v1620
  %v1711 = vpop.f32.mrb[0].mxu0
  %v1712 = vadd.f32 %v1615, %v1711
  %v1713 = vpop.f32.mrb[0].mxu0
  %1714 = vmatprep.mubr.f32.mxu0 0.0
  %1715 = vmatmul.mubr.f32.gmra.mrb[0].mxu0 %v1623
  %v1716 = vpop.f32.mrb[0].mxu0
  %v1717 = vadd.f32 %v1615, %v1716
  %v1718 = vpop.f32.mrb[0].mxu0
  %1719 = vmatprep.mubr.f32.mxu0 0.0
  %1720 = vmatmul.mubr.f32.gmra.mrb[0].mxu0 %v1626
  %v1721 = vpop.f32.mrb[0].mxu0
  %v1722 = vadd.f32 %v1615, %v1721
  %v1723 = vpop.f32.mrb[0].mxu0
  %1724 = vmatprep.mubr.f32.mxu0 0.0
  %1725 = vmatmul.mubr.f32.gmra.mrb[0].mxu0 %v1629
  %v1726 = vpop.f32.mrb[0].mxu0
  %v1727 = vadd.f32 %v1615, %v1726
  %v1728 = vpop.f32.mrb[0].mxu0
  %1729 = vmatprep.mubr.f32.mxu0 0.0
  %1730 = vmatmul.mubr.f32.gmra.mrb[0].mxu0 %v1632
  %v1731 = vpop.f32.mrb[0].mxu0
  %v1732 = vadd.f32 %v1615, %v1731
  %v1733 = vpop.f32.mrb[0].mxu0
  %1734 = vmatprep.mubr.f32.mxu0 0.0
  %1735 = vmatmul.mubr.f32.gmra.mrb[0].mxu0 %v1635
  %v1736 = vpop.f32.mrb[0].mxu0
  %v1737 = vadd.f32 %v1615, %v1736
  %v1738 = vpop.f32.mrb[0].mxu0
  %1739 = vmatprep.mubr.f32.mxu0 0.0
  %1740 = vmatmul.mubr.f32.gmra.mrb[0].mxu0 %v1638
  %v1741 = vpop.f32.mrb[0].mxu0
  %v1742 = vadd.f32 %v1615, %v1741
  %v1743 = vpop.f32.mrb[0].mxu0
  %1744 = vdwg.mxu0
  %v1745 = vld [vmem:[%s4 + $0xc] sm:$0x1]
  %v1746 = vld [vmem:[%s4 + $0xd] sm:$0x1]
  %v1747 = vsel %vm223, %v1707, 0.0
  %1748 = vadd.xlane.f32.xlu0 %v1747
  %v1749 = vpop.xlane.xlu0 %1748
  %v1750 = vsel %vm223, %v1712, 0.0
  %1751 = vadd.xlane.f32.xlu0 %v1750
  %v1752 = vpop.xlane.xlu0 %1751
  %v1753 = vsel %vm223, %v1717, 0.0
  %1754 = vadd.xlane.f32.xlu0 %v1753
  %v1755 = vpop.xlane.xlu0 %1754
  %v1756 = vsel %vm223, %v1722, 0.0
  %1757 = vadd.xlane.f32.xlu0 %v1756
  %v1758 = vpop.xlane.xlu0 %1757
  %v1759 = vsel %vm223, %v1727, 0.0
  %1760 = vadd.xlane.f32.xlu0 %v1759
  %v1761 = vpop.xlane.xlu0 %1760
  %v1762 = vsel %vm223, %v1732, 0.0
  %1763 = vadd.xlane.f32.xlu0 %v1762
  %v1764 = vpop.xlane.xlu0 %1763
  %v1765 = vsel %vm223, %v1737, 0.0
  %1766 = vadd.xlane.f32.xlu0 %v1765
  %v1767 = vpop.xlane.xlu0 %1766
  %v1768 = vsel %vm223, %v1742, 0.0
  %1769 = vadd.xlane.f32.xlu0 %v1768
  %v1770 = vpop.xlane.xlu0 %1769
  %v1771 = vmul.f32 %v1707, %v1707
  %v1772 = vmul.f32 %v1712, %v1712
  %v1773 = vmul.f32 %v1717, %v1717
  %v1774 = vmul.f32 %v1722, %v1722
  %v1775 = vmul.f32 %v1727, %v1727
  %v1776 = vmul.f32 %v1732, %v1732
  %v1777 = vmul.f32 %v1737, %v1737
  %v1778 = vmul.f32 %v1742, %v1742
  %v1779 = vsel %vm223, %v1771, 0.0
  %1780 = vadd.xlane.f32.xlu0 %v1779
  %v1781 = vpop.xlane.xlu0 %1780
  %v1782 = vsel %vm223, %v1772, 0.0
  %1783 = vadd.xlane.f32.xlu0 %v1782
  %v1784 = vpop.xlane.xlu0 %1783
  %v1785 = vsel %vm223, %v1773, 0.0
  %1786 = vadd.xlane.f32.xlu0 %v1785
  %v1787 = vpop.xlane.xlu0 %1786
  %v1788 = vsel %vm223, %v1774, 0.0
  %1789 = vadd.xlane.f32.xlu0 %v1788
  %v1790 = vpop.xlane.xlu0 %1789
  %v1791 = vsel %vm223, %v1775, 0.0
  %1792 = vadd.xlane.f32.xlu0 %v1791
  %v1793 = vpop.xlane.xlu0 %1792
  %v1794 = vsel %vm223, %v1776, 0.0
  %1795 = vadd.xlane.f32.xlu0 %v1794
  %v1796 = vpop.xlane.xlu0 %1795
  %v1797 = vsel %vm223, %v1777, 0.0
  %1798 = vadd.xlane.f32.xlu0 %v1797
  %v1799 = vpop.xlane.xlu0 %1798
  %v1800 = vsel %vm223, %v1778, 0.0
  %1801 = vadd.xlane.f32.xlu0 %v1800
  %v1802 = vpop.xlane.xlu0 %1801
  %v1803 = vmul.f32 %v1749, 0.03125
  %v1804 = vmul.f32 %v1752, 0.03125
  %v1805 = vmul.f32 %v1755, 0.03125
  %v1806 = vmul.f32 %v1758, 0.03125
  %v1807 = vmul.f32 %v1761, 0.03125
  %v1808 = vmul.f32 %v1764, 0.03125
  %v1809 = vmul.f32 %v1767, 0.03125
  %v1810 = vmul.f32 %v1770, 0.03125
  %v1811 = vmul.f32 %v1781, 0.03125
  %v1812 = vmul.f32 %v1784, 0.03125
  %v1813 = vmul.f32 %v1787, 0.03125
  %v1814 = vmul.f32 %v1790, 0.03125
  %v1815 = vmul.f32 %v1793, 0.03125
  %v1816 = vmul.f32 %v1796, 0.03125
  %v1817 = vmul.f32 %v1799, 0.03125
  %v1818 = vmul.f32 %v1802, 0.03125
  %v1819 = vmul.f32 %v1803, %v1803
  %v1820 = vmul.f32 %v1804, %v1804
  %v1821 = vmul.f32 %v1805, %v1805
  %v1822 = vmul.f32 %v1806, %v1806
  %v1823 = vmul.f32 %v1807, %v1807
  %v1824 = vmul.f32 %v1808, %v1808
  %v1825 = vmul.f32 %v1809, %v1809
  %v1826 = vmul.f32 %v1810, %v1810
  %v1827 = vsub.f32 %v1811, %v1819
  %v1828 = vsub.f32 %v1812, %v1820
  %v1829 = vsub.f32 %v1813, %v1821
  %v1830 = vsub.f32 %v1814, %v1822
  %v1831 = vsub.f32 %v1815, %v1823
  %v1832 = vsub.f32 %v1816, %v1824
  %v1833 = vsub.f32 %v1817, %v1825
  %v1834 = vsub.f32 %v1818, %v1826
  %v1835 = vmax.f32 %v1827, 0.0
  %v1836 = vmax.f32 %v1828, 0.0
  %v1837 = vmax.f32 %v1829, 0.0
  %v1838 = vmax.f32 %v1830, 0.0
  %v1839 = vmax.f32 %v1831, 0.0
  %v1840 = vmax.f32 %v1832, 0.0
  %v1841 = vmax.f32 %v1833, 0.0
  %v1842 = vmax.f32 %v1834, 0.0
  %v1843 = vsub.f32 %v1707, %v1803
  %v1844 = vsub.f32 %v1712, %v1804
  %v1845 = vsub.f32 %v1717, %v1805
  %v1846 = vsub.f32 %v1722, %v1806
  %v1847 = vsub.f32 %v1727, %v1807
  %v1848 = vsub.f32 %v1732, %v1808
  %v1849 = vsub.f32 %v1737, %v1809
  %v1850 = vsub.f32 %v1742, %v1810
  %v1851 = vadd.f32 %v1835, 1e-05
  %v1852 = vadd.f32 %v1836, 1e-05
  %v1853 = vadd.f32 %v1837, 1e-05
  %v1854 = vadd.f32 %v1838, 1e-05
  %v1855 = vadd.f32 %v1839, 1e-05
  %v1856 = vadd.f32 %v1840, 1e-05
  %v1857 = vadd.f32 %v1841, 1e-05
  %v1858 = vadd.f32 %v1842, 1e-05
  %v1859 = vrsqrt.pop %v1851
  %v1860 = vrsqrt.pop %v1852
  %v1861 = vrsqrt.pop %v1853
  %v1862 = vrsqrt.pop %v1854
  %v1863 = vrsqrt.pop %v1855
  %v1864 = vrsqrt.pop %v1856
  %v1865 = vrsqrt.pop %v1857
  %v1866 = vrsqrt.pop %v1858
  %v1867 = vmul.f32 %v1843, %v1859
  %v1868 = vmul.f32 %v1844, %v1860
  %v1869 = vmul.f32 %v1845, %v1861
  %v1870 = vmul.f32 %v1846, %v1862
  %v1871 = vmul.f32 %v1847, %v1863
  %v1872 = vmul.f32 %v1848, %v1864
  %v1873 = vmul.f32 %v1849, %v1865
  %v1874 = vmul.f32 %v1850, %v1866
  %v1875 = vlaneseq
  %v1876 = vshrl.u32 %v1875, 7
  %v1877 = vsub.s32 0, %v1876
  %v1878 = vrot.slane %v1745, %v1877
  %v1879 = vmul.f32 %v1867, %v1878
  %v1880 = vmul.f32 %v1868, %v1878
  %v1881 = vmul.f32 %v1869, %v1878
  %v1882 = vmul.f32 %v1870, %v1878
  %v1883 = vmul.f32 %v1871, %v1878
  %v1884 = vmul.f32 %v1872, %v1878
  %v1885 = vmul.f32 %v1873, %v1878
  %v1886 = vmul.f32 %v1874, %v1878
  %v1887 = vlaneseq
  %v1888 = vshrl.u32 %v1887, 7
  %v1889 = vsub.s32 0, %v1888
  %v1890 = vrot.slane %v1746, %v1889
  %v1891 = vadd.f32 %v1879, %v1890
  %v1892 = vadd.f32 %v1880, %v1890
  %v1893 = vadd.f32 %v1881, %v1890
  %v1894 = vadd.f32 %v1882, %v1890
  %v1895 = vadd.f32 %v1883, %v1890
  %v1896 = vadd.f32 %v1884, %v1890
  %v1897 = vadd.f32 %v1885, %v1890
  %v1898 = vadd.f32 %v1886, %v1890
  %1900 = vset.pattern.permute.xlu0 0
  %1901 = vperm.xlu0 %1900, %v633
  %v1902 = vpop.permute.xlu0 %1901
  %1905 = vset.pattern.permute.xlu0 0
  %1906 = vperm.xlu0 %1905, %v634
  %v1907 = vpop.permute.xlu0 %1906
  %1910 = vset.pattern.permute.xlu0 0
  %1911 = vperm.xlu0 %1910, %v635
  %v1912 = vpop.permute.xlu0 %1911
  %1915 = vset.pattern.permute.xlu0 0
  %1916 = vperm.xlu0 %1915, %v636
  %v1917 = vpop.permute.xlu0 %1916
  %1920 = vset.pattern.permute.xlu0 0
  %1921 = vperm.xlu0 %1920, %v637
  %v1922 = vpop.permute.xlu0 %1921
  %1925 = vset.pattern.permute.xlu0 0
  %1926 = vperm.xlu0 %1925, %v638
  %v1927 = vpop.permute.xlu0 %1926
  %1930 = vset.pattern.permute.xlu0 0
  %1931 = vperm.xlu0 %1930, %v639
  %v1932 = vpop.permute.xlu0 %1931
  %1935 = vset.pattern.permute.xlu0 0
  %1936 = vperm.xlu0 %1935, %v640
  %v1937 = vpop.permute.xlu0 %1936
  %v1939 = vmul.f32 %v1902, %v1891
  %v1940 = vmul.f32 %v1907, %v1892
  %v1941 = vmul.f32 %v1912, %v1893
  %v1942 = vmul.f32 %v1917, %v1894
  %v1943 = vmul.f32 %v1922, %v1895
  %v1944 = vmul.f32 %v1927, %v1896
  %v1945 = vmul.f32 %v1932, %v1897
  %v1946 = vmul.f32 %v1937, %v1898
  %v1947 = vadd.f32 %v1939, %v1940
  %v1948 = vadd.f32 %v1941, %v1942
  %v1949 = vadd.f32 %v1943, %v1944
  %v1950 = vadd.f32 %v1945, %v1946
  %v1951 = vadd.f32 %v1947, %v1948
  %v1952 = vadd.f32 %v1949, %v1950
  %v1953 = vadd.f32 %v1951, %v1952
  %1955 = vrot.lane.b32.xlu0 %v1953, 32
  %v1956 = vpop.permute.xlu0 %1955
  %v1958 = vsel %vm223, %v407, %v1956
  %v1959 = vld [vmem:[%s2 + $0xd8] sm:$0xff]
  %v1960 = vld [vmem:[%s2 + $0xe0] sm:$0xff]
  %v1961 = vld [vmem:[%s2 + $0xe8] sm:$0xff]
  %v1962 = vld [vmem:[%s2 + $0xf0] sm:$0xff]
  %v1963 = vld [vmem:[%s2 + $0xf8] sm:$0xff]
  %v1964 = vld [vmem:[%s2 + $0x100] sm:$0xff]
  %v1965 = vld [vmem:[%s2 + $0x108] sm:$0xff]
  %v1966 = vld [vmem:[%s2 + $0x110] sm:$0xff]
  %v1967 = vld [vmem:[%s4 + $0xe] sm:$0x1]
  %v1968 = vlaneseq
  %v1969 = vshrl.u32 %v1968, 7
  %v1970 = vsub.s32 0, %v1969
  %v1971 = vrot.slane %v1967, %v1970
  %vm1972 = vcmask 523264
  %v1974 = vsel %vm1972, %v1958, 0
  %1976 = vmatprep.subr.mxu0 0.0
  %1977 = vmatpush1.msra.mxu0 %v1959
  %1978 = vmatprep.subr.mxu0 0.0
  %1979 = vmatpush1.msra.mxu0 %v1960
  %1980 = vmatprep.subr.mxu0 0.0
  %1981 = vmatpush1.msra.mxu0 %v1961
  %1982 = vmatprep.subr.mxu0 0.0
  %1983 = vmatpush1.msra.mxu0 %v1962
  %1984 = vmatprep.subr.mxu0 0.0
  %1985 = vmatpush1.msra.mxu0 %v1963
  %1986 = vmatprep.subr.mxu0 0.0
  %1987 = vmatpush1.msra.mxu0 %v1964
  %1988 = vmatprep.subr.mxu0 0.0
  %1989 = vmatpush1.msra.mxu0 %v1965
  %1990 = vmatprep.subr.mxu0 0.0
  %1991 = vmatpush1.msra.mxu0 %v1966
  %1992 = vmatprep.subr.mxu0 0.0
  %1993 = vmatpush1.msra.mxu0 0.0
  %1994 = vmatprep.subr.mxu0 0.0
  %1995 = vmatpush1.msra.mxu0 0.0
  %1996 = vmatprep.subr.mxu0 0.0
  %1997 = vmatpush1.msra.mxu0 0.0
  %1998 = vmatprep.subr.mxu0 0.0
  %1999 = vmatpush1.msra.mxu0 0.0
  %2000 = vmatprep.subr.mxu0 0.0
  %2001 = vmatpush1.msra.mxu0 0.0
  %2002 = vmatprep.subr.mxu0 0.0
  %2003 = vmatpush1.msra.mxu0 0.0
  %2004 = vmatprep.subr.mxu0 0.0
  %2005 = vmatpush1.msra.mxu0 0.0
  %2006 = vmatprep.subr.mxu0 0.0
  %2007 = vmatpush1.msra.mxu0 0.0
  %2008 = vmatprep.subr.mxu0 0.0
  %2009 = vmatpush1.msra.mxu0 0.0
  %2010 = vmatprep.subr.mxu0 0.0
  %2011 = vmatpush1.msra.mxu0 0.0
  %2012 = vmatprep.subr.mxu0 0.0
  %2013 = vmatpush1.msra.mxu0 0.0
  %2014 = vmatprep.subr.mxu0 0.0
  %2015 = vmatpush1.msra.mxu0 0.0
  %2016 = vmatprep.subr.mxu0 0.0
  %2017 = vmatpush1.msra.mxu0 0.0
  %2018 = vmatprep.subr.mxu0 0.0
  %2019 = vmatpush1.msra.mxu0 0.0
  %2020 = vmatprep.subr.mxu0 0.0
  %2021 = vmatpush1.msra.mxu0 0.0
  %2022 = vmatprep.subr.mxu0 0.0
  %2023 = vmatpush1.msra.mxu0 0.0
  %2024 = vmatprep.subr.mxu0 0.0
  %2025 = vmatpush1.msra.mxu0 0.0
  %2026 = vmatprep.subr.mxu0 0.0
  %2027 = vmatpush1.msra.mxu0 0.0
  %2028 = vmatprep.subr.mxu0 0.0
  %2029 = vmatpush1.msra.mxu0 0.0
  %2030 = vmatprep.subr.mxu0 0.0
  %2031 = vmatpush1.msra.mxu0 0.0
  %2032 = vmatprep.subr.mxu0 0.0
  %2033 = vmatpush1.msra.mxu0 0.0
  %2034 = vmatprep.subr.mxu0 0.0
  %2035 = vmatpush1.msra.mxu0 0.0
  %2036 = vmatprep.subr.mxu0 0.0
  %2037 = vmatpush1.msra.mxu0 0.0
  %2038 = vmatprep.subr.mxu0 0.0
  %2039 = vmatpush1.msra.mxu0 0.0
  %2040 = vmatprep.mubr.f32.mxu0 0.0
  %2041 = vmatmul.mubr.f32.gmra.mrb[0].mxu0 %v1974
  %v2042 = vpop.f32.mrb[0].mxu0
  %v2043 = vadd.f32 %v1971, %v2042
  %v2044 = vpop.f32.mrb[0].mxu0
  %2045 = vdwg.mxu0
  %v2046 = vmax.f32 %v2043, 0.0
  %v2047 = vld [vmem:[%s2 + $0x118] sm:$0xff]
  %v2048 = vld [vmem:[%s2 + $0x120] sm:$0xff]
  %v2049 = vld [vmem:[%s2 + $0x128] sm:$0xff]
  %v2050 = vld [vmem:[%s2 + $0x130] sm:$0xff]
  %v2051 = vld [vmem:[%s4 + $0xf] sm:$0x1]
  %v2052 = vlaneseq
  %v2053 = vshrl.u32 %v2052, 7
  %v2054 = vsub.s32 0, %v2053
  %v2055 = vrot.slane %v2051, %v2054
  %v2057 = vsel %vm223, %v2046, 0
  %2059 = vmatprep.subr.mxu0 0.0
  %2060 = vmatpush1.msra.mxu0 %v2047
  %2061 = vmatprep.subr.mxu0 0.0
  %2062 = vmatpush1.msra.mxu0 %v2048
  %2063 = vmatprep.subr.mxu0 0.0
  %2064 = vmatpush1.msra.mxu0 %v2049
  %2065 = vmatprep.subr.mxu0 0.0
  %2066 = vmatpush1.msra.mxu0 %v2050
  %2067 = vmatprep.subr.mxu0 0.0
  %2068 = vmatpush1.msra.mxu0 0.0
  %2069 = vmatprep.subr.mxu0 0.0
  %2070 = vmatpush1.msra.mxu0 0.0
  %2071 = vmatprep.subr.mxu0 0.0
  %2072 = vmatpush1.msra.mxu0 0.0
  %2073 = vmatprep.subr.mxu0 0.0
  %2074 = vmatpush1.msra.mxu0 0.0
  %2075 = vmatprep.subr.mxu0 0.0
  %2076 = vmatpush1.msra.mxu0 0.0
  %2077 = vmatprep.subr.mxu0 0.0
  %2078 = vmatpush1.msra.mxu0 0.0
  %2079 = vmatprep.subr.mxu0 0.0
  %2080 = vmatpush1.msra.mxu0 0.0
  %2081 = vmatprep.subr.mxu0 0.0
  %2082 = vmatpush1.msra.mxu0 0.0
  %2083 = vmatprep.subr.mxu0 0.0
  %2084 = vmatpush1.msra.mxu0 0.0
  %2085 = vmatprep.subr.mxu0 0.0
  %2086 = vmatpush1.msra.mxu0 0.0
  %2087 = vmatprep.subr.mxu0 0.0
  %2088 = vmatpush1.msra.mxu0 0.0
  %2089 = vmatprep.subr.mxu0 0.0
  %2090 = vmatpush1.msra.mxu0 0.0
  %2091 = vmatprep.subr.mxu0 0.0
  %2092 = vmatpush1.msra.mxu0 0.0
  %2093 = vmatprep.subr.mxu0 0.0
  %2094 = vmatpush1.msra.mxu0 0.0
  %2095 = vmatprep.subr.mxu0 0.0
  %2096 = vmatpush1.msra.mxu0 0.0
  %2097 = vmatprep.subr.mxu0 0.0
  %2098 = vmatpush1.msra.mxu0 0.0
  %2099 = vmatprep.subr.mxu0 0.0
  %2100 = vmatpush1.msra.mxu0 0.0
  %2101 = vmatprep.subr.mxu0 0.0
  %2102 = vmatpush1.msra.mxu0 0.0
  %2103 = vmatprep.subr.mxu0 0.0
  %2104 = vmatpush1.msra.mxu0 0.0
  %2105 = vmatprep.subr.mxu0 0.0
  %2106 = vmatpush1.msra.mxu0 0.0
  %2107 = vmatprep.subr.mxu0 0.0
  %2108 = vmatpush1.msra.mxu0 0.0
  %2109 = vmatprep.subr.mxu0 0.0
  %2110 = vmatpush1.msra.mxu0 0.0
  %2111 = vmatprep.subr.mxu0 0.0
  %2112 = vmatpush1.msra.mxu0 0.0
  %2113 = vmatprep.subr.mxu0 0.0
  %2114 = vmatpush1.msra.mxu0 0.0
  %2115 = vmatprep.subr.mxu0 0.0
  %2116 = vmatpush1.msra.mxu0 0.0
  %2117 = vmatprep.subr.mxu0 0.0
  %2118 = vmatpush1.msra.mxu0 0.0
  %2119 = vmatprep.subr.mxu0 0.0
  %2120 = vmatpush1.msra.mxu0 0.0
  %2121 = vmatprep.subr.mxu0 0.0
  %2122 = vmatpush1.msra.mxu0 0.0
  %2123 = vmatprep.mubr.f32.mxu0 0.0
  %2124 = vmatmul.mubr.f32.gmra.mrb[0].mxu0 %v2057
  %v2125 = vpop.f32.mrb[0].mxu0
  %v2126 = vadd.f32 %v2055, %v2125
  %v2127 = vpop.f32.mrb[0].mxu0
  %2128 = vdwg.mxu0
  %v2129 = vld [vmem:[%s4 + $0x10] sm:$0x1]
  %v2130 = vld [vmem:[%s4 + $0x11] sm:$0x1]
  %v2131 = vsel %vm223, %v2126, 0.0
  %2132 = vadd.xlane.f32.xlu0 %v2131
  %v2133 = vpop.xlane.xlu0 %2132
  %v2134 = vmul.f32 %v2126, %v2126
  %v2135 = vsel %vm223, %v2134, 0.0
  %2136 = vadd.xlane.f32.xlu0 %v2135
  %v2137 = vpop.xlane.xlu0 %2136
  %v2138 = vmul.f32 %v2133, 0.03125
  %v2139 = vmul.f32 %v2137, 0.03125
  %v2140 = vmul.f32 %v2138, %v2138
  %v2141 = vsub.f32 %v2139, %v2140
  %v2142 = vmax.f32 %v2141, 0.0
  %v2143 = vsub.f32 %v2126, %v2138
  %v2144 = vadd.f32 %v2142, 1e-05
  %v2145 = vrsqrt.pop %v2144
  %v2146 = vmul.f32 %v2143, %v2145
  %v2147 = vlaneseq
  %v2148 = vshrl.u32 %v2147, 7
  %v2149 = vsub.s32 0, %v2148
  %v2150 = vrot.slane %v2129, %v2149
  %v2151 = vmul.f32 %v2146, %v2150
  %v2152 = vlaneseq
  %v2153 = vshrl.u32 %v2152, 7
  %v2154 = vsub.s32 0, %v2153
  %v2155 = vrot.slane %v2130, %v2154
  %v2156 = vadd.f32 %v2151, %v2155
  %v2157 = vadd.f32 %v407, %v2156
  %v2158 = vadd.f32 %v1259, %v1891
  %v2159 = vadd.f32 %v1260, %v1892
  %v2160 = vadd.f32 %v1261, %v1893
  %v2161 = vadd.f32 %v1262, %v1894
  %v2162 = vadd.f32 %v1263, %v1895
  %v2163 = vadd.f32 %v1264, %v1896
  %v2164 = vadd.f32 %v1265, %v1897
  %v2165 = vadd.f32 %v1266, %v1898
  %v2166 = vld [vmem:[%s3 + $0x20] sm:$0xff]
  %v2167 = vld [vmem:[%s3 + $0x28] sm:$0xff]
  %v2168 = vld [vmem:[%s3 + $0x30] sm:$0xff]
  %v2169 = vld [vmem:[%s3 + $0x38] sm:$0xff]
  %v2171 = vsel %vm223, %v2157, 0
  %2173 = vmatprep.subr.mxu0 0.0
  %2174 = vmatpush1.msra.mxu0 %v2166
  %2175 = vmatprep.subr.mxu0 0.0
  %2176 = vmatpush1.msra.mxu0 %v2167
  %2177 = vmatprep.subr.mxu0 0.0
  %2178 = vmatpush1.msra.mxu0 %v2168
  %2179 = vmatprep.subr.mxu0 0.0
  %2180 = vmatpush1.msra.mxu0 %v2169
  %2181 = vmatprep.subr.mxu0 0.0
  %2182 = vmatpush1.msra.mxu0 0.0
  %2183 = vmatprep.subr.mxu0 0.0
  %2184 = vmatpush1.msra.mxu0 0.0
  %2185 = vmatprep.subr.mxu0 0.0
  %2186 = vmatpush1.msra.mxu0 0.0
  %2187 = vmatprep.subr.mxu0 0.0
  %2188 = vmatpush1.msra.mxu0 0.0
  %2189 = vmatprep.subr.mxu0 0.0
  %2190 = vmatpush1.msra.mxu0 0.0
  %2191 = vmatprep.subr.mxu0 0.0
  %2192 = vmatpush1.msra.mxu0 0.0
  %2193 = vmatprep.subr.mxu0 0.0
  %2194 = vmatpush1.msra.mxu0 0.0
  %2195 = vmatprep.subr.mxu0 0.0
  %2196 = vmatpush1.msra.mxu0 0.0
  %2197 = vmatprep.subr.mxu0 0.0
  %2198 = vmatpush1.msra.mxu0 0.0
  %2199 = vmatprep.subr.mxu0 0.0
  %2200 = vmatpush1.msra.mxu0 0.0
  %2201 = vmatprep.subr.mxu0 0.0
  %2202 = vmatpush1.msra.mxu0 0.0
  %2203 = vmatprep.subr.mxu0 0.0
  %2204 = vmatpush1.msra.mxu0 0.0
  %2205 = vmatprep.subr.mxu0 0.0
  %2206 = vmatpush1.msra.mxu0 0.0
  %2207 = vmatprep.subr.mxu0 0.0
  %2208 = vmatpush1.msra.mxu0 0.0
  %2209 = vmatprep.subr.mxu0 0.0
  %2210 = vmatpush1.msra.mxu0 0.0
  %2211 = vmatprep.subr.mxu0 0.0
  %2212 = vmatpush1.msra.mxu0 0.0
  %2213 = vmatprep.subr.mxu0 0.0
  %2214 = vmatpush1.msra.mxu0 0.0
  %2215 = vmatprep.subr.mxu0 0.0
  %2216 = vmatpush1.msra.mxu0 0.0
  %2217 = vmatprep.subr.mxu0 0.0
  %2218 = vmatpush1.msra.mxu0 0.0
  %2219 = vmatprep.subr.mxu0 0.0
  %2220 = vmatpush1.msra.mxu0 0.0
  %2221 = vmatprep.subr.mxu0 0.0
  %2222 = vmatpush1.msra.mxu0 0.0
  %2223 = vmatprep.subr.mxu0 0.0
  %2224 = vmatpush1.msra.mxu0 0.0
  %2225 = vmatprep.subr.mxu0 0.0
  %2226 = vmatpush1.msra.mxu0 0.0
  %2227 = vmatprep.subr.mxu0 0.0
  %2228 = vmatpush1.msra.mxu0 0.0
  %2229 = vmatprep.subr.mxu0 0.0
  %2230 = vmatpush1.msra.mxu0 0.0
  %2231 = vmatprep.subr.mxu0 0.0
  %2232 = vmatpush1.msra.mxu0 0.0
  %2233 = vmatprep.subr.mxu0 0.0
  %2234 = vmatpush1.msra.mxu0 0.0
  %2235 = vmatprep.subr.mxu0 0.0
  %2236 = vmatpush1.msra.mxu0 0.0
  %2237 = vmatprep.mubr.f32.mxu0 0.0
  %2238 = vmatmul.mubr.f32.gmra.mrb[0].mxu0 %v2171
  %v2239 = vpop.f32.mrb[0].mxu0
  %v2240 = vadd.f32 0.0, %v2239
  %v2241 = vpop.f32.mrb[0].mxu0
  %2242 = vdwg.mxu0
  %v2243 = vld [vmem:[%s2 + $0x138] sm:$0xff]
  %v2244 = vld [vmem:[%s2 + $0x140] sm:$0xff]
  %v2245 = vld [vmem:[%s2 + $0x148] sm:$0xff]
  %v2246 = vld [vmem:[%s2 + $0x150] sm:$0xff]
  %v2248 = vsel %vm223, %v2158, 0
  %v2251 = vsel %vm223, %v2159, 0
  %v2254 = vsel %vm223, %v2160, 0
  %v2257 = vsel %vm223, %v2161, 0
  %v2260 = vsel %vm223, %v2162, 0
  %v2263 = vsel %vm223, %v2163, 0
  %v2266 = vsel %vm223, %v2164, 0
  %v2269 = vsel %vm223, %v2165, 0
  %2271 = vmatprep.subr.mxu0 0.0
  %2272 = vmatpush1.msra.mxu0 %v2243
  %2273 = vmatprep.subr.mxu0 0.0
  %2274 = vmatpush1.msra.mxu0 %v2244
  %2275 = vmatprep.subr.mxu0 0.0
  %2276 = vmatpush1.msra.mxu0 %v2245
  %2277 = vmatprep.subr.mxu0 0.0
  %2278 = vmatpush1.msra.mxu0 %v2246
  %2279 = vmatprep.subr.mxu0 0.0
  %2280 = vmatpush1.msra.mxu0 0.0
  %2281 = vmatprep.subr.mxu0 0.0
  %2282 = vmatpush1.msra.mxu0 0.0
  %2283 = vmatprep.subr.mxu0 0.0
  %2284 = vmatpush1.msra.mxu0 0.0
  %2285 = vmatprep.subr.mxu0 0.0
  %2286 = vmatpush1.msra.mxu0 0.0
  %2287 = vmatprep.subr.mxu0 0.0
  %2288 = vmatpush1.msra.mxu0 0.0
  %2289 = vmatprep.subr.mxu0 0.0
  %2290 = vmatpush1.msra.mxu0 0.0
  %2291 = vmatprep.subr.mxu0 0.0
  %2292 = vmatpush1.msra.mxu0 0.0
  %2293 = vmatprep.subr.mxu0 0.0
  %2294 = vmatpush1.msra.mxu0 0.0
  %2295 = vmatprep.subr.mxu0 0.0
  %2296 = vmatpush1.msra.mxu0 0.0
  %2297 = vmatprep.subr.mxu0 0.0
  %2298 = vmatpush1.msra.mxu0 0.0
  %2299 = vmatprep.subr.mxu0 0.0
  %2300 = vmatpush1.msra.mxu0 0.0
  %2301 = vmatprep.subr.mxu0 0.0
  %2302 = vmatpush1.msra.mxu0 0.0
  %2303 = vmatprep.subr.mxu0 0.0
  %2304 = vmatpush1.msra.mxu0 0.0
  %2305 = vmatprep.subr.mxu0 0.0
  %2306 = vmatpush1.msra.mxu0 0.0
  %2307 = vmatprep.subr.mxu0 0.0
  %2308 = vmatpush1.msra.mxu0 0.0
  %2309 = vmatprep.subr.mxu0 0.0
  %2310 = vmatpush1.msra.mxu0 0.0
  %2311 = vmatprep.subr.mxu0 0.0
  %2312 = vmatpush1.msra.mxu0 0.0
  %2313 = vmatprep.subr.mxu0 0.0
  %2314 = vmatpush1.msra.mxu0 0.0
  %2315 = vmatprep.subr.mxu0 0.0
  %2316 = vmatpush1.msra.mxu0 0.0
  %2317 = vmatprep.subr.mxu0 0.0
  %2318 = vmatpush1.msra.mxu0 0.0
  %2319 = vmatprep.subr.mxu0 0.0
  %2320 = vmatpush1.msra.mxu0 0.0
  %2321 = vmatprep.subr.mxu0 0.0
  %2322 = vmatpush1.msra.mxu0 0.0
  %2323 = vmatprep.subr.mxu0 0.0
  %2324 = vmatpush1.msra.mxu0 0.0
  %2325 = vmatprep.subr.mxu0 0.0
  %2326 = vmatpush1.msra.mxu0 0.0
  %2327 = vmatprep.subr.mxu0 0.0
  %2328 = vmatpush1.msra.mxu0 0.0
  %2329 = vmatprep.subr.mxu0 0.0
  %2330 = vmatpush1.msra.mxu0 0.0
  %2331 = vmatprep.subr.mxu0 0.0
  %2332 = vmatpush1.msra.mxu0 0.0
  %2333 = vmatprep.subr.mxu0 0.0
  %2334 = vmatpush1.msra.mxu0 0.0
  %2335 = vmatprep.mubr.f32.mxu0 0.0
  %2336 = vmatmul.mubr.f32.gmra.mrb[0].mxu0 %v2248
  %v2337 = vpop.f32.mrb[0].mxu0
  %v2338 = vadd.f32 0.0, %v2337
  %v2339 = vpop.f32.mrb[0].mxu0
  %2340 = vmatprep.mubr.f32.mxu0 0.0
  %2341 = vmatmul.mubr.f32.gmra.mrb[0].mxu0 %v2251
  %v2342 = vpop.f32.mrb[0].mxu0
  %v2343 = vadd.f32 0.0, %v2342
  %v2344 = vpop.f32.mrb[0].mxu0
  %2345 = vmatprep.mubr.f32.mxu0 0.0
  %2346 = vmatmul.mubr.f32.gmra.mrb[0].mxu0 %v2254
  %v2347 = vpop.f32.mrb[0].mxu0
  %v2348 = vadd.f32 0.0, %v2347
  %v2349 = vpop.f32.mrb[0].mxu0
  %2350 = vmatprep.mubr.f32.mxu0 0.0
  %2351 = vmatmul.mubr.f32.gmra.mrb[0].mxu0 %v2257
  %v2352 = vpop.f32.mrb[0].mxu0
  %v2353 = vadd.f32 0.0, %v2352
  %v2354 = vpop.f32.mrb[0].mxu0
  %2355 = vmatprep.mubr.f32.mxu0 0.0
  %2356 = vmatmul.mubr.f32.gmra.mrb[0].mxu0 %v2260
  %v2357 = vpop.f32.mrb[0].mxu0
  %v2358 = vadd.f32 0.0, %v2357
  %v2359 = vpop.f32.mrb[0].mxu0
  %2360 = vmatprep.mubr.f32.mxu0 0.0
  %2361 = vmatmul.mubr.f32.gmra.mrb[0].mxu0 %v2263
  %v2362 = vpop.f32.mrb[0].mxu0
  %v2363 = vadd.f32 0.0, %v2362
  %v2364 = vpop.f32.mrb[0].mxu0
  %2365 = vmatprep.mubr.f32.mxu0 0.0
  %2366 = vmatmul.mubr.f32.gmra.mrb[0].mxu0 %v2266
  %v2367 = vpop.f32.mrb[0].mxu0
  %v2368 = vadd.f32 0.0, %v2367
  %v2369 = vpop.f32.mrb[0].mxu0
  %2370 = vmatprep.mubr.f32.mxu0 0.0
  %2371 = vmatmul.mubr.f32.gmra.mrb[0].mxu0 %v2269
  %v2372 = vpop.f32.mrb[0].mxu0
  %v2373 = vadd.f32 0.0, %v2372
  %v2374 = vpop.f32.mrb[0].mxu0
  %2375 = vdwg.mxu0
  %v2377 = vcombine.high %v2240, %v2240
  %v2379 = vunpack.c.l.s4 1966171168
  %v2380 = vunpack.c.0.s8 %v2379
  %v2381 = vlaneseq
  %v2382 = vshrl.u32 %v2381, 7
  %v2383 = vsub.s32 %v2380, %v2382
  %v2384 = vrot.slane %v2240, %v2383
  %v2386 = vunpack.c.l.s4 1966171168
  %v2387 = vunpack.c.0.s8 %v2386
  %v2388 = vlaneseq
  %v2389 = vshrl.u32 %v2388, 7
  %v2390 = vsub.s32 %v2387, %v2389
  %v2391 = vrot.slane %v2377, %v2390
  %v2392 = vcombine.high %v2384, %v2384
  %v2393 = vcombine.high %v2391, %v2391
  %v2395 = vunpack.c.l.s4 1966171168
  %v2396 = vunpack.c.0.s8 %v2395
  %v2397 = vlaneseq
  %v2398 = vshrl.u32 %v2397, 7
  %v2399 = vsub.s32 %v2396, %v2398
  %v2400 = vrot.slane %v2384, %v2399
  %v2402 = vunpack.c.l.s4 1966171168
  %v2403 = vunpack.c.0.s8 %v2402
  %v2404 = vlaneseq
  %v2405 = vshrl.u32 %v2404, 7
  %v2406 = vsub.s32 %v2403, %v2405
  %v2407 = vrot.slane %v2391, %v2406
  %v2409 = vunpack.c.l.s4 1966171168
  %v2410 = vunpack.c.0.s8 %v2409
  %v2411 = vlaneseq
  %v2412 = vshrl.u32 %v2411, 7
  %v2413 = vsub.s32 %v2410, %v2412
  %v2414 = vrot.slane %v2392, %v2413
  %v2416 = vunpack.c.l.s4 1966171168
  %v2417 = vunpack.c.0.s8 %v2416
  %v2418 = vlaneseq
  %v2419 = vshrl.u32 %v2418, 7
  %v2420 = vsub.s32 %v2417, %v2419
  %v2421 = vrot.slane %v2393, %v2420
  %v2422 = vcombine.high %v2400, %v2400
  %v2423 = vcombine.high %v2407, %v2407
  %v2424 = vcombine.high %v2414, %v2414
  %v2425 = vcombine.high %v2421, %v2421
  %v2426 = vlaneseq
  %v2427 = vshrl.u32 %v2426, 7
  %v2428 = vsub.s32 0, %v2427
  %v2429 = vrot.slane %v2400, %v2428
  %v2430 = vlaneseq
  %v2431 = vshrl.u32 %v2430, 7
  %v2432 = vsub.s32 0, %v2431
  %v2433 = vrot.slane %v2414, %v2432
  %v2434 = vlaneseq
  %v2435 = vshrl.u32 %v2434, 7
  %v2436 = vsub.s32 0, %v2435
  %v2437 = vrot.slane %v2422, %v2436
  %v2438 = vlaneseq
  %v2439 = vshrl.u32 %v2438, 7
  %v2440 = vsub.s32 0, %v2439
  %v2441 = vrot.slane %v2424, %v2440
  %v2442 = vlaneseq
  %v2443 = vshrl.u32 %v2442, 7
  %v2444 = vsub.s32 0, %v2443
  %v2445 = vrot.slane %v2407, %v2444
  %v2446 = vlaneseq
  %v2447 = vshrl.u32 %v2446, 7
  %v2448 = vsub.s32 0, %v2447
  %v2449 = vrot.slane %v2421, %v2448
  %v2450 = vlaneseq
  %v2451 = vshrl.u32 %v2450, 7
  %v2452 = vsub.s32 0, %v2451
  %v2453 = vrot.slane %v2423, %v2452
  %v2454 = vlaneseq
  %v2455 = vshrl.u32 %v2454, 7
  %v2456 = vsub.s32 0, %v2455
  %v2457 = vrot.slane %v2425, %v2456
  %v2466 = vadd.f32 %v2338, %v2429
  %v2467 = vadd.f32 %v2343, %v2433
  %v2468 = vadd.f32 %v2348, %v2437
  %v2469 = vadd.f32 %v2353, %v2441
  %v2470 = vadd.f32 %v2358, %v2445
  %v2471 = vadd.f32 %v2363, %v2449
  %v2472 = vadd.f32 %v2368, %v2453
  %v2473 = vadd.f32 %v2373, %v2457
  %2474 = vrot.lane.b32.xlu0 %v2240, 96
  %v2475 = vpop.permute.xlu0 %2474
  %v2477 = vadd.f32 %v2466, %v2475
  %v2478 = vadd.f32 %v2467, %v2475
  %v2479 = vadd.f32 %v2468, %v2475
  %v2480 = vadd.f32 %v2469, %v2475
  %v2481 = vadd.f32 %v2470, %v2475
  %v2482 = vadd.f32 %v2471, %v2475
  %v2483 = vadd.f32 %v2472, %v2475
  %v2484 = vadd.f32 %v2473, %v2475
  %v2485 = vld [vmem:[%s4 + $0x12] sm:$0x1]
  %v2486 = vlaneseq
  %v2487 = vshrl.u32 %v2486, 7
  %v2488 = vsub.s32 0, %v2487
  %v2489 = vrot.slane %v2485, %v2488
  %v2490 = vadd.f32 %v2477, %v2489
  %v2491 = vadd.f32 %v2478, %v2489
  %v2492 = vadd.f32 %v2479, %v2489
  %v2493 = vadd.f32 %v2480, %v2489
  %v2494 = vadd.f32 %v2481, %v2489
  %v2495 = vadd.f32 %v2482, %v2489
  %v2496 = vadd.f32 %v2483, %v2489
  %v2497 = vadd.f32 %v2484, %v2489
  %v2498 = vmax.f32 %v2490, 0.0
  %v2499 = vmax.f32 %v2491, 0.0
  %v2500 = vmax.f32 %v2492, 0.0
  %v2501 = vmax.f32 %v2493, 0.0
  %v2502 = vmax.f32 %v2494, 0.0
  %v2503 = vmax.f32 %v2495, 0.0
  %v2504 = vmax.f32 %v2496, 0.0
  %v2505 = vmax.f32 %v2497, 0.0
  %v2506 = vld [vmem:[%s2 + $0x158] sm:$0xff]
  %v2507 = vld [vmem:[%s2 + $0x160] sm:$0xff]
  %v2508 = vld [vmem:[%s2 + $0x168] sm:$0xff]
  %v2509 = vld [vmem:[%s2 + $0x170] sm:$0xff]
  %v2510 = vld [vmem:[%s4 + $0x13] sm:$0x1]
  %v2511 = vlaneseq
  %v2512 = vshrl.u32 %v2511, 7
  %v2513 = vsub.s32 0, %v2512
  %v2514 = vrot.slane %v2510, %v2513
  %v2516 = vsel %vm223, %v2498, 0
  %v2519 = vsel %vm223, %v2499, 0
  %v2522 = vsel %vm223, %v2500, 0
  %v2525 = vsel %vm223, %v2501, 0
  %v2528 = vsel %vm223, %v2502, 0
  %v2531 = vsel %vm223, %v2503, 0
  %v2534 = vsel %vm223, %v2504, 0
  %v2537 = vsel %vm223, %v2505, 0
  %2539 = vmatprep.subr.mxu0 0.0
  %2540 = vmatpush1.msra.mxu0 %v2506
  %2541 = vmatprep.subr.mxu0 0.0
  %2542 = vmatpush1.msra.mxu0 %v2507
  %2543 = vmatprep.subr.mxu0 0.0
  %2544 = vmatpush1.msra.mxu0 %v2508
  %2545 = vmatprep.subr.mxu0 0.0
  %2546 = vmatpush1.msra.mxu0 %v2509
  %2547 = vmatprep.subr.mxu0 0.0
  %2548 = vmatpush1.msra.mxu0 0.0
  %2549 = vmatprep.subr.mxu0 0.0
  %2550 = vmatpush1.msra.mxu0 0.0
  %2551 = vmatprep.subr.mxu0 0.0
  %2552 = vmatpush1.msra.mxu0 0.0
  %2553 = vmatprep.subr.mxu0 0.0
  %2554 = vmatpush1.msra.mxu0 0.0
  %2555 = vmatprep.subr.mxu0 0.0
  %2556 = vmatpush1.msra.mxu0 0.0
  %2557 = vmatprep.subr.mxu0 0.0
  %2558 = vmatpush1.msra.mxu0 0.0
  %2559 = vmatprep.subr.mxu0 0.0
  %2560 = vmatpush1.msra.mxu0 0.0
  %2561 = vmatprep.subr.mxu0 0.0
  %2562 = vmatpush1.msra.mxu0 0.0
  %2563 = vmatprep.subr.mxu0 0.0
  %2564 = vmatpush1.msra.mxu0 0.0
  %2565 = vmatprep.subr.mxu0 0.0
  %2566 = vmatpush1.msra.mxu0 0.0
  %2567 = vmatprep.subr.mxu0 0.0
  %2568 = vmatpush1.msra.mxu0 0.0
  %2569 = vmatprep.subr.mxu0 0.0
  %2570 = vmatpush1.msra.mxu0 0.0
  %2571 = vmatprep.subr.mxu0 0.0
  %2572 = vmatpush1.msra.mxu0 0.0
  %2573 = vmatprep.subr.mxu0 0.0
  %2574 = vmatpush1.msra.mxu0 0.0
  %2575 = vmatprep.subr.mxu0 0.0
  %2576 = vmatpush1.msra.mxu0 0.0
  %2577 = vmatprep.subr.mxu0 0.0
  %2578 = vmatpush1.msra.mxu0 0.0
  %2579 = vmatprep.subr.mxu0 0.0
  %2580 = vmatpush1.msra.mxu0 0.0
  %2581 = vmatprep.subr.mxu0 0.0
  %2582 = vmatpush1.msra.mxu0 0.0
  %2583 = vmatprep.subr.mxu0 0.0
  %2584 = vmatpush1.msra.mxu0 0.0
  %2585 = vmatprep.subr.mxu0 0.0
  %2586 = vmatpush1.msra.mxu0 0.0
  %2587 = vmatprep.subr.mxu0 0.0
  %2588 = vmatpush1.msra.mxu0 0.0
  %2589 = vmatprep.subr.mxu0 0.0
  %2590 = vmatpush1.msra.mxu0 0.0
  %2591 = vmatprep.subr.mxu0 0.0
  %2592 = vmatpush1.msra.mxu0 0.0
  %2593 = vmatprep.subr.mxu0 0.0
  %2594 = vmatpush1.msra.mxu0 0.0
  %2595 = vmatprep.subr.mxu0 0.0
  %2596 = vmatpush1.msra.mxu0 0.0
  %2597 = vmatprep.subr.mxu0 0.0
  %2598 = vmatpush1.msra.mxu0 0.0
  %2599 = vmatprep.subr.mxu0 0.0
  %2600 = vmatpush1.msra.mxu0 0.0
  %2601 = vmatprep.subr.mxu0 0.0
  %2602 = vmatpush1.msra.mxu0 0.0
  %2603 = vmatprep.mubr.f32.mxu0 0.0
  %2604 = vmatmul.mubr.f32.gmra.mrb[0].mxu0 %v2516
  %v2605 = vpop.f32.mrb[0].mxu0
  %v2606 = vadd.f32 %v2514, %v2605
  %v2607 = vpop.f32.mrb[0].mxu0
  %2608 = vmatprep.mubr.f32.mxu0 0.0
  %2609 = vmatmul.mubr.f32.gmra.mrb[0].mxu0 %v2519
  %v2610 = vpop.f32.mrb[0].mxu0
  %v2611 = vadd.f32 %v2514, %v2610
  %v2612 = vpop.f32.mrb[0].mxu0
  %2613 = vmatprep.mubr.f32.mxu0 0.0
  %2614 = vmatmul.mubr.f32.gmra.mrb[0].mxu0 %v2522
  %v2615 = vpop.f32.mrb[0].mxu0
  %v2616 = vadd.f32 %v2514, %v2615
  %v2617 = vpop.f32.mrb[0].mxu0
  %2618 = vmatprep.mubr.f32.mxu0 0.0
  %2619 = vmatmul.mubr.f32.gmra.mrb[0].mxu0 %v2525
  %v2620 = vpop.f32.mrb[0].mxu0
  %v2621 = vadd.f32 %v2514, %v2620
  %v2622 = vpop.f32.mrb[0].mxu0
  %2623 = vmatprep.mubr.f32.mxu0 0.0
  %2624 = vmatmul.mubr.f32.gmra.mrb[0].mxu0 %v2528
  %v2625 = vpop.f32.mrb[0].mxu0
  %v2626 = vadd.f32 %v2514, %v2625
  %v2627 = vpop.f32.mrb[0].mxu0
  %2628 = vmatprep.mubr.f32.mxu0 0.0
  %2629 = vmatmul.mubr.f32.gmra.mrb[0].mxu0 %v2531
  %v2630 = vpop.f32.mrb[0].mxu0
  %v2631 = vadd.f32 %v2514, %v2630
  %v2632 = vpop.f32.mrb[0].mxu0
  %2633 = vmatprep.mubr.f32.mxu0 0.0
  %2634 = vmatmul.mubr.f32.gmra.mrb[0].mxu0 %v2534
  %v2635 = vpop.f32.mrb[0].mxu0
  %v2636 = vadd.f32 %v2514, %v2635
  %v2637 = vpop.f32.mrb[0].mxu0
  %2638 = vmatprep.mubr.f32.mxu0 0.0
  %2639 = vmatmul.mubr.f32.gmra.mrb[0].mxu0 %v2537
  %v2640 = vpop.f32.mrb[0].mxu0
  %v2641 = vadd.f32 %v2514, %v2640
  %v2642 = vpop.f32.mrb[0].mxu0
  %2643 = vdwg.mxu0
  %v2644 = vld [vmem:[%s4 + $0x14] sm:$0x1]
  %v2645 = vld [vmem:[%s4 + $0x15] sm:$0x1]
  %v2646 = vsel %vm223, %v2606, 0.0
  %2647 = vadd.xlane.f32.xlu0 %v2646
  %v2648 = vpop.xlane.xlu0 %2647
  %v2649 = vsel %vm223, %v2611, 0.0
  %2650 = vadd.xlane.f32.xlu0 %v2649
  %v2651 = vpop.xlane.xlu0 %2650
  %v2652 = vsel %vm223, %v2616, 0.0
  %2653 = vadd.xlane.f32.xlu0 %v2652
  %v2654 = vpop.xlane.xlu0 %2653
  %v2655 = vsel %vm223, %v2621, 0.0
  %2656 = vadd.xlane.f32.xlu0 %v2655
  %v2657 = vpop.xlane.xlu0 %2656
  %v2658 = vsel %vm223, %v2626, 0.0
  %2659 = vadd.xlane.f32.xlu0 %v2658
  %v2660 = vpop.xlane.xlu0 %2659
  %v2661 = vsel %vm223, %v2631, 0.0
  %2662 = vadd.xlane.f32.xlu0 %v2661
  %v2663 = vpop.xlane.xlu0 %2662
  %v2664 = vsel %vm223, %v2636, 0.0
  %2665 = vadd.xlane.f32.xlu0 %v2664
  %v2666 = vpop.xlane.xlu0 %2665
  %v2667 = vsel %vm223, %v2641, 0.0
  %2668 = vadd.xlane.f32.xlu0 %v2667
  %v2669 = vpop.xlane.xlu0 %2668
  %v2670 = vmul.f32 %v2606, %v2606
  %v2671 = vmul.f32 %v2611, %v2611
  %v2672 = vmul.f32 %v2616, %v2616
  %v2673 = vmul.f32 %v2621, %v2621
  %v2674 = vmul.f32 %v2626, %v2626
  %v2675 = vmul.f32 %v2631, %v2631
  %v2676 = vmul.f32 %v2636, %v2636
  %v2677 = vmul.f32 %v2641, %v2641
  %v2678 = vsel %vm223, %v2670, 0.0
  %2679 = vadd.xlane.f32.xlu0 %v2678
  %v2680 = vpop.xlane.xlu0 %2679
  %v2681 = vsel %vm223, %v2671, 0.0
  %2682 = vadd.xlane.f32.xlu0 %v2681
  %v2683 = vpop.xlane.xlu0 %2682
  %v2684 = vsel %vm223, %v2672, 0.0
  %2685 = vadd.xlane.f32.xlu0 %v2684
  %v2686 = vpop.xlane.xlu0 %2685
  %v2687 = vsel %vm223, %v2673, 0.0
  %2688 = vadd.xlane.f32.xlu0 %v2687
  %v2689 = vpop.xlane.xlu0 %2688
  %v2690 = vsel %vm223, %v2674, 0.0
  %2691 = vadd.xlane.f32.xlu0 %v2690
  %v2692 = vpop.xlane.xlu0 %2691
  %v2693 = vsel %vm223, %v2675, 0.0
  %2694 = vadd.xlane.f32.xlu0 %v2693
  %v2695 = vpop.xlane.xlu0 %2694
  %v2696 = vsel %vm223, %v2676, 0.0
  %2697 = vadd.xlane.f32.xlu0 %v2696
  %v2698 = vpop.xlane.xlu0 %2697
  %v2699 = vsel %vm223, %v2677, 0.0
  %2700 = vadd.xlane.f32.xlu0 %v2699
  %v2701 = vpop.xlane.xlu0 %2700
  %v2702 = vmul.f32 %v2648, 0.03125
  %v2703 = vmul.f32 %v2651, 0.03125
  %v2704 = vmul.f32 %v2654, 0.03125
  %v2705 = vmul.f32 %v2657, 0.03125
  %v2706 = vmul.f32 %v2660, 0.03125
  %v2707 = vmul.f32 %v2663, 0.03125
  %v2708 = vmul.f32 %v2666, 0.03125
  %v2709 = vmul.f32 %v2669, 0.03125
  %v2710 = vmul.f32 %v2680, 0.03125
  %v2711 = vmul.f32 %v2683, 0.03125
  %v2712 = vmul.f32 %v2686, 0.03125
  %v2713 = vmul.f32 %v2689, 0.03125
  %v2714 = vmul.f32 %v2692, 0.03125
  %v2715 = vmul.f32 %v2695, 0.03125
  %v2716 = vmul.f32 %v2698, 0.03125
  %v2717 = vmul.f32 %v2701, 0.03125
  %v2718 = vmul.f32 %v2702, %v2702
  %v2719 = vmul.f32 %v2703, %v2703
  %v2720 = vmul.f32 %v2704, %v2704
  %v2721 = vmul.f32 %v2705, %v2705
  %v2722 = vmul.f32 %v2706, %v2706
  %v2723 = vmul.f32 %v2707, %v2707
  %v2724 = vmul.f32 %v2708, %v2708
  %v2725 = vmul.f32 %v2709, %v2709
  %v2726 = vsub.f32 %v2710, %v2718
  %v2727 = vsub.f32 %v2711, %v2719
  %v2728 = vsub.f32 %v2712, %v2720
  %v2729 = vsub.f32 %v2713, %v2721
  %v2730 = vsub.f32 %v2714, %v2722
  %v2731 = vsub.f32 %v2715, %v2723
  %v2732 = vsub.f32 %v2716, %v2724
  %v2733 = vsub.f32 %v2717, %v2725
  %v2734 = vmax.f32 %v2726, 0.0
  %v2735 = vmax.f32 %v2727, 0.0
  %v2736 = vmax.f32 %v2728, 0.0
  %v2737 = vmax.f32 %v2729, 0.0
  %v2738 = vmax.f32 %v2730, 0.0
  %v2739 = vmax.f32 %v2731, 0.0
  %v2740 = vmax.f32 %v2732, 0.0
  %v2741 = vmax.f32 %v2733, 0.0
  %v2742 = vsub.f32 %v2606, %v2702
  %v2743 = vsub.f32 %v2611, %v2703
  %v2744 = vsub.f32 %v2616, %v2704
  %v2745 = vsub.f32 %v2621, %v2705
  %v2746 = vsub.f32 %v2626, %v2706
  %v2747 = vsub.f32 %v2631, %v2707
  %v2748 = vsub.f32 %v2636, %v2708
  %v2749 = vsub.f32 %v2641, %v2709
  %v2750 = vadd.f32 %v2734, 1e-05
  %v2751 = vadd.f32 %v2735, 1e-05
  %v2752 = vadd.f32 %v2736, 1e-05
  %v2753 = vadd.f32 %v2737, 1e-05
  %v2754 = vadd.f32 %v2738, 1e-05
  %v2755 = vadd.f32 %v2739, 1e-05
  %v2756 = vadd.f32 %v2740, 1e-05
  %v2757 = vadd.f32 %v2741, 1e-05
  %v2758 = vrsqrt.pop %v2750
  %v2759 = vrsqrt.pop %v2751
  %v2760 = vrsqrt.pop %v2752
  %v2761 = vrsqrt.pop %v2753
  %v2762 = vrsqrt.pop %v2754
  %v2763 = vrsqrt.pop %v2755
  %v2764 = vrsqrt.pop %v2756
  %v2765 = vrsqrt.pop %v2757
  %v2766 = vmul.f32 %v2742, %v2758
  %v2767 = vmul.f32 %v2743, %v2759
  %v2768 = vmul.f32 %v2744, %v2760
  %v2769 = vmul.f32 %v2745, %v2761
  %v2770 = vmul.f32 %v2746, %v2762
  %v2771 = vmul.f32 %v2747, %v2763
  %v2772 = vmul.f32 %v2748, %v2764
  %v2773 = vmul.f32 %v2749, %v2765
  %v2774 = vlaneseq
  %v2775 = vshrl.u32 %v2774, 7
  %v2776 = vsub.s32 0, %v2775
  %v2777 = vrot.slane %v2644, %v2776
  %v2778 = vmul.f32 %v2766, %v2777
  %v2779 = vmul.f32 %v2767, %v2777
  %v2780 = vmul.f32 %v2768, %v2777
  %v2781 = vmul.f32 %v2769, %v2777
  %v2782 = vmul.f32 %v2770, %v2777
  %v2783 = vmul.f32 %v2771, %v2777
  %v2784 = vmul.f32 %v2772, %v2777
  %v2785 = vmul.f32 %v2773, %v2777
  %v2786 = vlaneseq
  %v2787 = vshrl.u32 %v2786, 7
  %v2788 = vsub.s32 0, %v2787
  %v2789 = vrot.slane %v2645, %v2788
  %v2790 = vadd.f32 %v2778, %v2789
  %v2791 = vadd.f32 %v2779, %v2789
  %v2792 = vadd.f32 %v2780, %v2789
  %v2793 = vadd.f32 %v2781, %v2789
  %v2794 = vadd.f32 %v2782, %v2789
  %v2795 = vadd.f32 %v2783, %v2789
  %v2796 = vadd.f32 %v2784, %v2789
  %v2797 = vadd.f32 %v2785, %v2789
  %v2798 = vmul.f32 %v1902, %v2790
  %v2799 = vmul.f32 %v1907, %v2791
  %v2800 = vmul.f32 %v1912, %v2792
  %v2801 = vmul.f32 %v1917, %v2793
  %v2802 = vmul.f32 %v1922, %v2794
  %v2803 = vmul.f32 %v1927, %v2795
  %v2804 = vmul.f32 %v1932, %v2796
  %v2805 = vmul.f32 %v1937, %v2797
  %v2806 = vadd.f32 %v2798, %v2799
  %v2807 = vadd.f32 %v2800, %v2801
  %v2808 = vadd.f32 %v2802, %v2803
  %v2809 = vadd.f32 %v2804, %v2805
  %v2810 = vadd.f32 %v2806, %v2807
  %v2811 = vadd.f32 %v2808, %v2809
  %v2812 = vadd.f32 %v2810, %v2811
  %2814 = vrot.lane.b32.xlu0 %v2812, 32
  %v2815 = vpop.permute.xlu0 %2814
  %v2817 = vsel %vm223, %v2157, %v2815
  %v2818 = vld [vmem:[%s2 + $0x178] sm:$0xff]
  %v2819 = vld [vmem:[%s2 + $0x180] sm:$0xff]
  %v2820 = vld [vmem:[%s2 + $0x188] sm:$0xff]
  %v2821 = vld [vmem:[%s2 + $0x190] sm:$0xff]
  %v2822 = vld [vmem:[%s2 + $0x198] sm:$0xff]
  %v2823 = vld [vmem:[%s2 + $0x1a0] sm:$0xff]
  %v2824 = vld [vmem:[%s2 + $0x1a8] sm:$0xff]
  %v2825 = vld [vmem:[%s2 + $0x1b0] sm:$0xff]
  %v2826 = vld [vmem:[%s4 + $0x16] sm:$0x1]
  %v2827 = vlaneseq
  %v2828 = vshrl.u32 %v2827, 7
  %v2829 = vsub.s32 0, %v2828
  %v2830 = vrot.slane %v2826, %v2829
  %v2832 = vsel %vm1972, %v2817, 0
  %2834 = vmatprep.subr.mxu0 0.0
  %2835 = vmatpush1.msra.mxu0 %v2818
  %2836 = vmatprep.subr.mxu0 0.0
  %2837 = vmatpush1.msra.mxu0 %v2819
  %2838 = vmatprep.subr.mxu0 0.0
  %2839 = vmatpush1.msra.mxu0 %v2820
  %2840 = vmatprep.subr.mxu0 0.0
  %2841 = vmatpush1.msra.mxu0 %v2821
  %2842 = vmatprep.subr.mxu0 0.0
  %2843 = vmatpush1.msra.mxu0 %v2822
  %2844 = vmatprep.subr.mxu0 0.0
  %2845 = vmatpush1.msra.mxu0 %v2823
  %2846 = vmatprep.subr.mxu0 0.0
  %2847 = vmatpush1.msra.mxu0 %v2824
  %2848 = vmatprep.subr.mxu0 0.0
  %2849 = vmatpush1.msra.mxu0 %v2825
  %2850 = vmatprep.subr.mxu0 0.0
  %2851 = vmatpush1.msra.mxu0 0.0
  %2852 = vmatprep.subr.mxu0 0.0
  %2853 = vmatpush1.msra.mxu0 0.0
  %2854 = vmatprep.subr.mxu0 0.0
  %2855 = vmatpush1.msra.mxu0 0.0
  %2856 = vmatprep.subr.mxu0 0.0
  %2857 = vmatpush1.msra.mxu0 0.0
  %2858 = vmatprep.subr.mxu0 0.0
  %2859 = vmatpush1.msra.mxu0 0.0
  %2860 = vmatprep.subr.mxu0 0.0
  %2861 = vmatpush1.msra.mxu0 0.0
  %2862 = vmatprep.subr.mxu0 0.0
  %2863 = vmatpush1.msra.mxu0 0.0
  %2864 = vmatprep.subr.mxu0 0.0
  %2865 = vmatpush1.msra.mxu0 0.0
  %2866 = vmatprep.subr.mxu0 0.0
  %2867 = vmatpush1.msra.mxu0 0.0
  %2868 = vmatprep.subr.mxu0 0.0
  %2869 = vmatpush1.msra.mxu0 0.0
  %2870 = vmatprep.subr.mxu0 0.0
  %2871 = vmatpush1.msra.mxu0 0.0
  %2872 = vmatprep.subr.mxu0 0.0
  %2873 = vmatpush1.msra.mxu0 0.0
  %2874 = vmatprep.subr.mxu0 0.0
  %2875 = vmatpush1.msra.mxu0 0.0
  %2876 = vmatprep.subr.mxu0 0.0
  %2877 = vmatpush1.msra.mxu0 0.0
  %2878 = vmatprep.subr.mxu0 0.0
  %2879 = vmatpush1.msra.mxu0 0.0
  %2880 = vmatprep.subr.mxu0 0.0
  %2881 = vmatpush1.msra.mxu0 0.0
  %2882 = vmatprep.subr.mxu0 0.0
  %2883 = vmatpush1.msra.mxu0 0.0
  %2884 = vmatprep.subr.mxu0 0.0
  %2885 = vmatpush1.msra.mxu0 0.0
  %2886 = vmatprep.subr.mxu0 0.0
  %2887 = vmatpush1.msra.mxu0 0.0
  %2888 = vmatprep.subr.mxu0 0.0
  %2889 = vmatpush1.msra.mxu0 0.0
  %2890 = vmatprep.subr.mxu0 0.0
  %2891 = vmatpush1.msra.mxu0 0.0
  %2892 = vmatprep.subr.mxu0 0.0
  %2893 = vmatpush1.msra.mxu0 0.0
  %2894 = vmatprep.subr.mxu0 0.0
  %2895 = vmatpush1.msra.mxu0 0.0
  %2896 = vmatprep.subr.mxu0 0.0
  %2897 = vmatpush1.msra.mxu0 0.0
  %2898 = vmatprep.mubr.f32.mxu0 0.0
  %2899 = vmatmul.mubr.f32.gmra.mrb[0].mxu0 %v2832
  %v2900 = vpop.f32.mrb[0].mxu0
  %v2901 = vadd.f32 %v2830, %v2900
  %v2902 = vpop.f32.mrb[0].mxu0
  %2903 = vdwg.mxu0
  %v2904 = vmax.f32 %v2901, 0.0
  %v2905 = vld [vmem:[%s2 + $0x1b8] sm:$0xff]
  %v2906 = vld [vmem:[%s2 + $0x1c0] sm:$0xff]
  %v2907 = vld [vmem:[%s2 + $0x1c8] sm:$0xff]
  %v2908 = vld [vmem:[%s2 + $0x1d0] sm:$0xff]
  %v2909 = vld [vmem:[%s4 + $0x17] sm:$0x1]
  %v2910 = vlaneseq
  %v2911 = vshrl.u32 %v2910, 7
  %v2912 = vsub.s32 0, %v2911
  %v2913 = vrot.slane %v2909, %v2912
  %v2915 = vsel %vm223, %v2904, 0
  %2917 = vmatprep.subr.mxu0 0.0
  %2918 = vmatpush1.msra.mxu0 %v2905
  %2919 = vmatprep.subr.mxu0 0.0
  %2920 = vmatpush1.msra.mxu0 %v2906
  %2921 = vmatprep.subr.mxu0 0.0
  %2922 = vmatpush1.msra.mxu0 %v2907
  %2923 = vmatprep.subr.mxu0 0.0
  %2924 = vmatpush1.msra.mxu0 %v2908
  %2925 = vmatprep.subr.mxu0 0.0
  %2926 = vmatpush1.msra.mxu0 0.0
  %2927 = vmatprep.subr.mxu0 0.0
  %2928 = vmatpush1.msra.mxu0 0.0
  %2929 = vmatprep.subr.mxu0 0.0
  %2930 = vmatpush1.msra.mxu0 0.0
  %2931 = vmatprep.subr.mxu0 0.0
  %2932 = vmatpush1.msra.mxu0 0.0
  %2933 = vmatprep.subr.mxu0 0.0
  %2934 = vmatpush1.msra.mxu0 0.0
  %2935 = vmatprep.subr.mxu0 0.0
  %2936 = vmatpush1.msra.mxu0 0.0
  %2937 = vmatprep.subr.mxu0 0.0
  %2938 = vmatpush1.msra.mxu0 0.0
  %2939 = vmatprep.subr.mxu0 0.0
  %2940 = vmatpush1.msra.mxu0 0.0
  %2941 = vmatprep.subr.mxu0 0.0
  %2942 = vmatpush1.msra.mxu0 0.0
  %2943 = vmatprep.subr.mxu0 0.0
  %2944 = vmatpush1.msra.mxu0 0.0
  %2945 = vmatprep.subr.mxu0 0.0
  %2946 = vmatpush1.msra.mxu0 0.0
  %2947 = vmatprep.subr.mxu0 0.0
  %2948 = vmatpush1.msra.mxu0 0.0
  %2949 = vmatprep.subr.mxu0 0.0
  %2950 = vmatpush1.msra.mxu0 0.0
  %2951 = vmatprep.subr.mxu0 0.0
  %2952 = vmatpush1.msra.mxu0 0.0
  %2953 = vmatprep.subr.mxu0 0.0
  %2954 = vmatpush1.msra.mxu0 0.0
  %2955 = vmatprep.subr.mxu0 0.0
  %2956 = vmatpush1.msra.mxu0 0.0
  %2957 = vmatprep.subr.mxu0 0.0
  %2958 = vmatpush1.msra.mxu0 0.0
  %2959 = vmatprep.subr.mxu0 0.0
  %2960 = vmatpush1.msra.mxu0 0.0
  %2961 = vmatprep.subr.mxu0 0.0
  %2962 = vmatpush1.msra.mxu0 0.0
  %2963 = vmatprep.subr.mxu0 0.0
  %2964 = vmatpush1.msra.mxu0 0.0
  %2965 = vmatprep.subr.mxu0 0.0
  %2966 = vmatpush1.msra.mxu0 0.0
  %2967 = vmatprep.subr.mxu0 0.0
  %2968 = vmatpush1.msra.mxu0 0.0
  %2969 = vmatprep.subr.mxu0 0.0
  %2970 = vmatpush1.msra.mxu0 0.0
  %2971 = vmatprep.subr.mxu0 0.0
  %2972 = vmatpush1.msra.mxu0 0.0
  %2973 = vmatprep.subr.mxu0 0.0
  %2974 = vmatpush1.msra.mxu0 0.0
  %2975 = vmatprep.subr.mxu0 0.0
  %2976 = vmatpush1.msra.mxu0 0.0
  %2977 = vmatprep.subr.mxu0 0.0
  %2978 = vmatpush1.msra.mxu0 0.0
  %2979 = vmatprep.subr.mxu0 0.0
  %2980 = vmatpush1.msra.mxu0 0.0
  %2981 = vmatprep.mubr.f32.mxu0 0.0
  %2982 = vmatmul.mubr.f32.gmra.mrb[0].mxu0 %v2915
  %v2983 = vpop.f32.mrb[0].mxu0
  %v2984 = vadd.f32 %v2913, %v2983
  %v2985 = vpop.f32.mrb[0].mxu0
  %2986 = vdwg.mxu0
  %v2987 = vld [vmem:[%s4 + $0x18] sm:$0x1]
  %v2988 = vld [vmem:[%s4 + $0x19] sm:$0x1]
  %v2989 = vsel %vm223, %v2984, 0.0
  %2990 = vadd.xlane.f32.xlu0 %v2989
  %v2991 = vpop.xlane.xlu0 %2990
  %v2992 = vmul.f32 %v2984, %v2984
  %v2993 = vsel %vm223, %v2992, 0.0
  %2994 = vadd.xlane.f32.xlu0 %v2993
  %v2995 = vpop.xlane.xlu0 %2994
  %v2996 = vmul.f32 %v2991, 0.03125
  %v2997 = vmul.f32 %v2995, 0.03125
  %v2998 = vmul.f32 %v2996, %v2996
  %v2999 = vsub.f32 %v2997, %v2998
  %v3000 = vmax.f32 %v2999, 0.0
  %v3001 = vsub.f32 %v2984, %v2996
  %v3002 = vadd.f32 %v3000, 1e-05
  %v3003 = vrsqrt.pop %v3002
  %v3004 = vmul.f32 %v3001, %v3003
  %v3005 = vlaneseq
  %v3006 = vshrl.u32 %v3005, 7
  %v3007 = vsub.s32 0, %v3006
  %v3008 = vrot.slane %v2987, %v3007
  %v3009 = vmul.f32 %v3004, %v3008
  %v3010 = vlaneseq
  %v3011 = vshrl.u32 %v3010, 7
  %v3012 = vsub.s32 0, %v3011
  %v3013 = vrot.slane %v2988, %v3012
  %v3014 = vadd.f32 %v3009, %v3013
  %v3015 = vadd.f32 %v2157, %v3014
  %v3016 = vld [vmem:[%s2 + $0x1d8] sm:$0xff]
  %v3017 = vld [vmem:[%s2 + $0x1e0] sm:$0xff]
  %v3018 = vld [vmem:[%s2 + $0x1e8] sm:$0xff]
  %v3019 = vld [vmem:[%s2 + $0x1f0] sm:$0xff]
  %v3020 = vld [vmem:[%s4 + $0x1a] sm:$0x1]
  %v3021 = vlaneseq
  %v3022 = vshrl.u32 %v3021, 7
  %v3023 = vsub.s32 0, %v3022
  %v3024 = vrot.slane %v3020, %v3023
  %v3026 = vsel %vm223, %v3015, 0
  %3028 = vmatprep.subr.mxu0 0.0
  %3029 = vmatpush1.msra.mxu0 %v3016
  %3030 = vmatprep.subr.mxu0 0.0
  %3031 = vmatpush1.msra.mxu0 %v3017
  %3032 = vmatprep.subr.mxu0 0.0
  %3033 = vmatpush1.msra.mxu0 %v3018
  %3034 = vmatprep.subr.mxu0 0.0
  %3035 = vmatpush1.msra.mxu0 %v3019
  %3036 = vmatprep.subr.mxu0 0.0
  %3037 = vmatpush1.msra.mxu0 0.0
  %3038 = vmatprep.subr.mxu0 0.0
  %3039 = vmatpush1.msra.mxu0 0.0
  %3040 = vmatprep.subr.mxu0 0.0
  %3041 = vmatpush1.msra.mxu0 0.0
  %3042 = vmatprep.subr.mxu0 0.0
  %3043 = vmatpush1.msra.mxu0 0.0
  %3044 = vmatprep.subr.mxu0 0.0
  %3045 = vmatpush1.msra.mxu0 0.0
  %3046 = vmatprep.subr.mxu0 0.0
  %3047 = vmatpush1.msra.mxu0 0.0
  %3048 = vmatprep.subr.mxu0 0.0
  %3049 = vmatpush1.msra.mxu0 0.0
  %3050 = vmatprep.subr.mxu0 0.0
  %3051 = vmatpush1.msra.mxu0 0.0
  %3052 = vmatprep.subr.mxu0 0.0
  %3053 = vmatpush1.msra.mxu0 0.0
  %3054 = vmatprep.subr.mxu0 0.0
  %3055 = vmatpush1.msra.mxu0 0.0
  %3056 = vmatprep.subr.mxu0 0.0
  %3057 = vmatpush1.msra.mxu0 0.0
  %3058 = vmatprep.subr.mxu0 0.0
  %3059 = vmatpush1.msra.mxu0 0.0
  %3060 = vmatprep.subr.mxu0 0.0
  %3061 = vmatpush1.msra.mxu0 0.0
  %3062 = vmatprep.subr.mxu0 0.0
  %3063 = vmatpush1.msra.mxu0 0.0
  %3064 = vmatprep.subr.mxu0 0.0
  %3065 = vmatpush1.msra.mxu0 0.0
  %3066 = vmatprep.subr.mxu0 0.0
  %3067 = vmatpush1.msra.mxu0 0.0
  %3068 = vmatprep.subr.mxu0 0.0
  %3069 = vmatpush1.msra.mxu0 0.0
  %3070 = vmatprep.subr.mxu0 0.0
  %3071 = vmatpush1.msra.mxu0 0.0
  %3072 = vmatprep.subr.mxu0 0.0
  %3073 = vmatpush1.msra.mxu0 0.0
  %3074 = vmatprep.subr.mxu0 0.0
  %3075 = vmatpush1.msra.mxu0 0.0
  %3076 = vmatprep.subr.mxu0 0.0
  %3077 = vmatpush1.msra.mxu0 0.0
  %3078 = vmatprep.subr.mxu0 0.0
  %3079 = vmatpush1.msra.mxu0 0.0
  %3080 = vmatprep.subr.mxu0 0.0
  %3081 = vmatpush1.msra.mxu0 0.0
  %3082 = vmatprep.subr.mxu0 0.0
  %3083 = vmatpush1.msra.mxu0 0.0
  %3084 = vmatprep.subr.mxu0 0.0
  %3085 = vmatpush1.msra.mxu0 0.0
  %3086 = vmatprep.subr.mxu0 0.0
  %3087 = vmatpush1.msra.mxu0 0.0
  %3088 = vmatprep.subr.mxu0 0.0
  %3089 = vmatpush1.msra.mxu0 0.0
  %3090 = vmatprep.subr.mxu0 0.0
  %3091 = vmatpush1.msra.mxu0 0.0
  %3092 = vmatprep.mubr.f32.mxu0 0.0
  %3093 = vmatmul.mubr.f32.gmra.mrb[0].mxu0 %v3026
  %v3094 = vpop.f32.mrb[0].mxu0
  %v3095 = vadd.f32 %v3024, %v3094
  %v3096 = vpop.f32.mrb[0].mxu0
  %3097 = vdwg.mxu0
  %v3098 = vmax.f32 %v3095, 0.0
  %v3099 = vld [vmem:[%s2 + $0x1f8] sm:$0xff]
  %v3100 = vld [vmem:[%s2 + $0x200] sm:$0xff]
  %v3101 = vld [vmem:[%s2 + $0x208] sm:$0xff]
  %v3102 = vld [vmem:[%s2 + $0x210] sm:$0xff]
  %v3103 = vld [vmem:[%s4 + $0x1b] sm:$0x1]
  %v3104 = vlaneseq
  %v3105 = vshrl.u32 %v3104, 7
  %v3106 = vsub.s32 0, %v3105
  %v3107 = vrot.slane %v3103, %v3106
  %v3109 = vsel %vm223, %v3098, 0
  %3111 = vmatprep.subr.mxu0 0.0
  %3112 = vmatpush1.msra.mxu0 %v3099
  %3113 = vmatprep.subr.mxu0 0.0
  %3114 = vmatpush1.msra.mxu0 %v3100
  %3115 = vmatprep.subr.mxu0 0.0
  %3116 = vmatpush1.msra.mxu0 %v3101
  %3117 = vmatprep.subr.mxu0 0.0
  %3118 = vmatpush1.msra.mxu0 %v3102
  %3119 = vmatprep.subr.mxu0 0.0
  %3120 = vmatpush1.msra.mxu0 0.0
  %3121 = vmatprep.subr.mxu0 0.0
  %3122 = vmatpush1.msra.mxu0 0.0
  %3123 = vmatprep.subr.mxu0 0.0
  %3124 = vmatpush1.msra.mxu0 0.0
  %3125 = vmatprep.subr.mxu0 0.0
  %3126 = vmatpush1.msra.mxu0 0.0
  %3127 = vmatprep.subr.mxu0 0.0
  %3128 = vmatpush1.msra.mxu0 0.0
  %3129 = vmatprep.subr.mxu0 0.0
  %3130 = vmatpush1.msra.mxu0 0.0
  %3131 = vmatprep.subr.mxu0 0.0
  %3132 = vmatpush1.msra.mxu0 0.0
  %3133 = vmatprep.subr.mxu0 0.0
  %3134 = vmatpush1.msra.mxu0 0.0
  %3135 = vmatprep.subr.mxu0 0.0
  %3136 = vmatpush1.msra.mxu0 0.0
  %3137 = vmatprep.subr.mxu0 0.0
  %3138 = vmatpush1.msra.mxu0 0.0
  %3139 = vmatprep.subr.mxu0 0.0
  %3140 = vmatpush1.msra.mxu0 0.0
  %3141 = vmatprep.subr.mxu0 0.0
  %3142 = vmatpush1.msra.mxu0 0.0
  %3143 = vmatprep.subr.mxu0 0.0
  %3144 = vmatpush1.msra.mxu0 0.0
  %3145 = vmatprep.subr.mxu0 0.0
  %3146 = vmatpush1.msra.mxu0 0.0
  %3147 = vmatprep.subr.mxu0 0.0
  %3148 = vmatpush1.msra.mxu0 0.0
  %3149 = vmatprep.subr.mxu0 0.0
  %3150 = vmatpush1.msra.mxu0 0.0
  %3151 = vmatprep.subr.mxu0 0.0
  %3152 = vmatpush1.msra.mxu0 0.0
  %3153 = vmatprep.subr.mxu0 0.0
  %3154 = vmatpush1.msra.mxu0 0.0
  %3155 = vmatprep.subr.mxu0 0.0
  %3156 = vmatpush1.msra.mxu0 0.0
  %3157 = vmatprep.subr.mxu0 0.0
  %3158 = vmatpush1.msra.mxu0 0.0
  %3159 = vmatprep.subr.mxu0 0.0
  %3160 = vmatpush1.msra.mxu0 0.0
  %3161 = vmatprep.subr.mxu0 0.0
  %3162 = vmatpush1.msra.mxu0 0.0
  %3163 = vmatprep.subr.mxu0 0.0
  %3164 = vmatpush1.msra.mxu0 0.0
  %3165 = vmatprep.subr.mxu0 0.0
  %3166 = vmatpush1.msra.mxu0 0.0
  %3167 = vmatprep.subr.mxu0 0.0
  %3168 = vmatpush1.msra.mxu0 0.0
  %3169 = vmatprep.subr.mxu0 0.0
  %3170 = vmatpush1.msra.mxu0 0.0
  %3171 = vmatprep.subr.mxu0 0.0
  %3172 = vmatpush1.msra.mxu0 0.0
  %3173 = vmatprep.subr.mxu0 0.0
  %3174 = vmatpush1.msra.mxu0 0.0
  %3175 = vmatprep.mubr.f32.mxu0 0.0
  %3176 = vmatmul.mubr.f32.gmra.mrb[0].mxu0 %v3109
  %v3177 = vpop.f32.mrb[0].mxu0
  %v3178 = vadd.f32 %v3107, %v3177
  %v3179 = vpop.f32.mrb[0].mxu0
  %3180 = vdwg.mxu0
  %v3181 = vmax.f32 %v3178, 0.0
  %v3182 = vld [vmem:[%s2 + $0x218] sm:$0xff]
  %v3183 = vld [vmem:[%s2 + $0x220] sm:$0xff]
  %v3184 = vld [vmem:[%s2 + $0x228] sm:$0xff]
  %v3185 = vld [vmem:[%s2 + $0x230] sm:$0xff]
  %v3186 = vld [vmem:[%s4 + $0x1c] sm:$0x1]
  %v3187 = vlaneseq
  %v3188 = vshrl.u32 %v3187, 7
  %v3189 = vsub.s32 0, %v3188
  %v3190 = vrot.slane %v3186, %v3189
  %v3192 = vsel %vm223, %v3181, 0
  %3194 = vmatprep.subr.mxu0 0.0
  %3195 = vmatpush1.msra.mxu0 %v3182
  %3196 = vmatprep.subr.mxu0 0.0
  %3197 = vmatpush1.msra.mxu0 %v3183
  %3198 = vmatprep.subr.mxu0 0.0
  %3199 = vmatpush1.msra.mxu0 %v3184
  %3200 = vmatprep.subr.mxu0 0.0
  %3201 = vmatpush1.msra.mxu0 %v3185
  %3202 = vmatprep.subr.mxu0 0.0
  %3203 = vmatpush1.msra.mxu0 0.0
  %3204 = vmatprep.subr.mxu0 0.0
  %3205 = vmatpush1.msra.mxu0 0.0
  %3206 = vmatprep.subr.mxu0 0.0
  %3207 = vmatpush1.msra.mxu0 0.0
  %3208 = vmatprep.subr.mxu0 0.0
  %3209 = vmatpush1.msra.mxu0 0.0
  %3210 = vmatprep.subr.mxu0 0.0
  %3211 = vmatpush1.msra.mxu0 0.0
  %3212 = vmatprep.subr.mxu0 0.0
  %3213 = vmatpush1.msra.mxu0 0.0
  %3214 = vmatprep.subr.mxu0 0.0
  %3215 = vmatpush1.msra.mxu0 0.0
  %3216 = vmatprep.subr.mxu0 0.0
  %3217 = vmatpush1.msra.mxu0 0.0
  %3218 = vmatprep.subr.mxu0 0.0
  %3219 = vmatpush1.msra.mxu0 0.0
  %3220 = vmatprep.subr.mxu0 0.0
  %3221 = vmatpush1.msra.mxu0 0.0
  %3222 = vmatprep.subr.mxu0 0.0
  %3223 = vmatpush1.msra.mxu0 0.0
  %3224 = vmatprep.subr.mxu0 0.0
  %3225 = vmatpush1.msra.mxu0 0.0
  %3226 = vmatprep.subr.mxu0 0.0
  %3227 = vmatpush1.msra.mxu0 0.0
  %3228 = vmatprep.subr.mxu0 0.0
  %3229 = vmatpush1.msra.mxu0 0.0
  %3230 = vmatprep.subr.mxu0 0.0
  %3231 = vmatpush1.msra.mxu0 0.0
  %3232 = vmatprep.subr.mxu0 0.0
  %3233 = vmatpush1.msra.mxu0 0.0
  %3234 = vmatprep.subr.mxu0 0.0
  %3235 = vmatpush1.msra.mxu0 0.0
  %3236 = vmatprep.subr.mxu0 0.0
  %3237 = vmatpush1.msra.mxu0 0.0
  %3238 = vmatprep.subr.mxu0 0.0
  %3239 = vmatpush1.msra.mxu0 0.0
  %3240 = vmatprep.subr.mxu0 0.0
  %3241 = vmatpush1.msra.mxu0 0.0
  %3242 = vmatprep.subr.mxu0 0.0
  %3243 = vmatpush1.msra.mxu0 0.0
  %3244 = vmatprep.subr.mxu0 0.0
  %3245 = vmatpush1.msra.mxu0 0.0
  %3246 = vmatprep.subr.mxu0 0.0
  %3247 = vmatpush1.msra.mxu0 0.0
  %3248 = vmatprep.subr.mxu0 0.0
  %3249 = vmatpush1.msra.mxu0 0.0
  %3250 = vmatprep.subr.mxu0 0.0
  %3251 = vmatpush1.msra.mxu0 0.0
  %3252 = vmatprep.subr.mxu0 0.0
  %3253 = vmatpush1.msra.mxu0 0.0
  %3254 = vmatprep.subr.mxu0 0.0
  %3255 = vmatpush1.msra.mxu0 0.0
  %3256 = vmatprep.subr.mxu0 0.0
  %3257 = vmatpush1.msra.mxu0 0.0
  %3258 = vmatprep.mubr.f32.mxu0 0.0
  %3259 = vmatmul.mubr.f32.gmra.mrb[0].mxu0 %v3192
  %v3260 = vpop.f32.mrb[0].mxu0
  %v3261 = vadd.f32 %v3190, %v3260
  %v3262 = vpop.f32.mrb[0].mxu0
  %3263 = vdwg.mxu0
  %v3264 = vadd.f32 %v20, %v120
  %v3265 = vadd.f32 %v3264, %v3261
  %3266 = vset.pattern.permute.xlu0 6
  %3267 = vperm.xlu0 %3266, %v20
  %v3268 = vpop.permute.xlu0 %3267
  %v3270 = vmul.f32 %v3268, %v3265
  %v3271 = vsub.f32 1.0, %v20
  %3273 = vset.pattern.permute.xlu0 6
  %3274 = vperm.xlu0 %3273, %v3271
  %v3275 = vpop.permute.xlu0 %3274
  %v3277 = vmul.f32 %v3275, %v20
  %3279 = vrot.lane.b32.xlu0 %v3277, 124
  %v3280 = vpop.permute.xlu0 %3279
  %v3282 = vadd.f32 %v3270, %v3280
  %3284 = vrot.lane.b32.xlu0 %v3282, 2
  %v3285 = vpop.permute.xlu0 %3284
  %v3287 = vsel %vm130, %v3261, %v3285
  %3288 = vst.msk [vmem:[%s5] sm:$0xff] %vm132, %v3287
  %v3289 = vsub.f32 %v3282, %v20
  %v3290 = vsub.f32 %v3282, %v108
  %v3291 = vmax.f32 %v3290, -1.0
  %v3292 = vmin.f32 %v3291, 1.0
  %v3293 = vsub.f32 %v108, %v3285
  %v3294 = vmax.f32 %v3293, -1.0
  %v3295 = vmin.f32 %v3294, 1.0
  %3297 = vrot.lane.b32.xlu0 %v3292, 2
  %v3298 = vpop.permute.xlu0 %3297
  %3301 = vrot.lane.b32.xlu0 %v3295, 2
  %v3302 = vpop.permute.xlu0 %3301
  %v3304 = vsel %vm130, %v3289, %v3298
  %v3305 = vsel %vm132, %v3304, %v3302
  %v3306 = vld [vmem:[%s2] sm:$0x3f]
  %v3308 = vsel %vm135, %v3305, 0
  %v3311 = vsel %vm139, %v3306, 0
  %3313 = vmatprep.subr.mxu0 0.0
  %3314 = vmatpush1.msra.mxu0 %v3311
  %3315 = vmatprep.subr.mxu0 0.0
  %3316 = vmatpush1.msra.mxu0 0.0
  %3317 = vmatprep.subr.mxu0 0.0
  %3318 = vmatpush1.msra.mxu0 0.0
  %3319 = vmatprep.subr.mxu0 0.0
  %3320 = vmatpush1.msra.mxu0 0.0
  %3321 = vmatprep.subr.mxu0 0.0
  %3322 = vmatpush1.msra.mxu0 0.0
  %3323 = vmatprep.subr.mxu0 0.0
  %3324 = vmatpush1.msra.mxu0 0.0
  %3325 = vmatprep.subr.mxu0 0.0
  %3326 = vmatpush1.msra.mxu0 0.0
  %3327 = vmatprep.subr.mxu0 0.0
  %3328 = vmatpush1.msra.mxu0 0.0
  %3329 = vmatprep.subr.mxu0 0.0
  %3330 = vmatpush1.msra.mxu0 0.0
  %3331 = vmatprep.subr.mxu0 0.0
  %3332 = vmatpush1.msra.mxu0 0.0
  %3333 = vmatprep.subr.mxu0 0.0
  %3334 = vmatpush1.msra.mxu0 0.0
  %3335 = vmatprep.subr.mxu0 0.0
  %3336 = vmatpush1.msra.mxu0 0.0
  %3337 = vmatprep.subr.mxu0 0.0
  %3338 = vmatpush1.msra.mxu0 0.0
  %3339 = vmatprep.subr.mxu0 0.0
  %3340 = vmatpush1.msra.mxu0 0.0
  %3341 = vmatprep.subr.mxu0 0.0
  %3342 = vmatpush1.msra.mxu0 0.0
  %3343 = vmatprep.subr.mxu0 0.0
  %3344 = vmatpush1.msra.mxu0 0.0
  %3345 = vmatprep.subr.mxu0 0.0
  %3346 = vmatpush1.msra.mxu0 0.0
  %3347 = vmatprep.subr.mxu0 0.0
  %3348 = vmatpush1.msra.mxu0 0.0
  %3349 = vmatprep.subr.mxu0 0.0
  %3350 = vmatpush1.msra.mxu0 0.0
  %3351 = vmatprep.subr.mxu0 0.0
  %3352 = vmatpush1.msra.mxu0 0.0
  %3353 = vmatprep.subr.mxu0 0.0
  %3354 = vmatpush1.msra.mxu0 0.0
  %3355 = vmatprep.subr.mxu0 0.0
  %3356 = vmatpush1.msra.mxu0 0.0
  %3357 = vmatprep.subr.mxu0 0.0
  %3358 = vmatpush1.msra.mxu0 0.0
  %3359 = vmatprep.subr.mxu0 0.0
  %3360 = vmatpush1.msra.mxu0 0.0
  %3361 = vmatprep.subr.mxu0 0.0
  %3362 = vmatpush1.msra.mxu0 0.0
  %3363 = vmatprep.subr.mxu0 0.0
  %3364 = vmatpush1.msra.mxu0 0.0
  %3365 = vmatprep.subr.mxu0 0.0
  %3366 = vmatpush1.msra.mxu0 0.0
  %3367 = vmatprep.subr.mxu0 0.0
  %3368 = vmatpush1.msra.mxu0 0.0
  %3369 = vmatprep.subr.mxu0 0.0
  %3370 = vmatpush1.msra.mxu0 0.0
  %3371 = vmatprep.subr.mxu0 0.0
  %3372 = vmatpush1.msra.mxu0 0.0
  %3373 = vmatprep.subr.mxu0 0.0
  %3374 = vmatpush1.msra.mxu0 0.0
  %3375 = vmatprep.subr.mxu0 0.0
  %3376 = vmatpush1.msra.mxu0 0.0
  %3377 = vmatprep.mubr.f32.mxu0 0.0
  %3378 = vmatmul.mubr.f32.gmra.mrb[0].mxu0 %v3308
  %v3379 = vpop.f32.mrb[0].mxu0
  %v3380 = vadd.f32 %v101, %v3379
  %v3381 = vpop.f32.mrb[0].mxu0
  %3382 = vdwg.mxu0
  %v3383 = vmax.f32 %v3380, 0.0
  %v3384 = vld [vmem:[%s2 + $0x10] sm:$0xff]
  %v3385 = vld [vmem:[%s2 + $0x18] sm:$0xff]
  %v3386 = vld [vmem:[%s2 + $0x20] sm:$0xff]
  %v3387 = vld [vmem:[%s2 + $0x28] sm:$0xff]
  %v3388 = vld [vmem:[%s4 + $0x1] sm:$0x1]
  %v3389 = vlaneseq
  %v3390 = vshrl.u32 %v3389, 7
  %v3391 = vsub.s32 0, %v3390
  %v3392 = vrot.slane %v3388, %v3391
  %v3394 = vsel %vm223, %v3383, 0
  %3396 = vmatprep.subr.mxu0 0.0
  %3397 = vmatpush1.msra.mxu0 %v3384
  %3398 = vmatprep.subr.mxu0 0.0
  %3399 = vmatpush1.msra.mxu0 %v3385
  %3400 = vmatprep.subr.mxu0 0.0
  %3401 = vmatpush1.msra.mxu0 %v3386
  %3402 = vmatprep.subr.mxu0 0.0
  %3403 = vmatpush1.msra.mxu0 %v3387
  %3404 = vmatprep.subr.mxu0 0.0
  %3405 = vmatpush1.msra.mxu0 0.0
  %3406 = vmatprep.subr.mxu0 0.0
  %3407 = vmatpush1.msra.mxu0 0.0
  %3408 = vmatprep.subr.mxu0 0.0
  %3409 = vmatpush1.msra.mxu0 0.0
  %3410 = vmatprep.subr.mxu0 0.0
  %3411 = vmatpush1.msra.mxu0 0.0
  %3412 = vmatprep.subr.mxu0 0.0
  %3413 = vmatpush1.msra.mxu0 0.0
  %3414 = vmatprep.subr.mxu0 0.0
  %3415 = vmatpush1.msra.mxu0 0.0
  %3416 = vmatprep.subr.mxu0 0.0
  %3417 = vmatpush1.msra.mxu0 0.0
  %3418 = vmatprep.subr.mxu0 0.0
  %3419 = vmatpush1.msra.mxu0 0.0
  %3420 = vmatprep.subr.mxu0 0.0
  %3421 = vmatpush1.msra.mxu0 0.0
  %3422 = vmatprep.subr.mxu0 0.0
  %3423 = vmatpush1.msra.mxu0 0.0
  %3424 = vmatprep.subr.mxu0 0.0
  %3425 = vmatpush1.msra.mxu0 0.0
  %3426 = vmatprep.subr.mxu0 0.0
  %3427 = vmatpush1.msra.mxu0 0.0
  %3428 = vmatprep.subr.mxu0 0.0
  %3429 = vmatpush1.msra.mxu0 0.0
  %3430 = vmatprep.subr.mxu0 0.0
  %3431 = vmatpush1.msra.mxu0 0.0
  %3432 = vmatprep.subr.mxu0 0.0
  %3433 = vmatpush1.msra.mxu0 0.0
  %3434 = vmatprep.subr.mxu0 0.0
  %3435 = vmatpush1.msra.mxu0 0.0
  %3436 = vmatprep.subr.mxu0 0.0
  %3437 = vmatpush1.msra.mxu0 0.0
  %3438 = vmatprep.subr.mxu0 0.0
  %3439 = vmatpush1.msra.mxu0 0.0
  %3440 = vmatprep.subr.mxu0 0.0
  %3441 = vmatpush1.msra.mxu0 0.0
  %3442 = vmatprep.subr.mxu0 0.0
  %3443 = vmatpush1.msra.mxu0 0.0
  %3444 = vmatprep.subr.mxu0 0.0
  %3445 = vmatpush1.msra.mxu0 0.0
  %3446 = vmatprep.subr.mxu0 0.0
  %3447 = vmatpush1.msra.mxu0 0.0
  %3448 = vmatprep.subr.mxu0 0.0
  %3449 = vmatpush1.msra.mxu0 0.0
  %3450 = vmatprep.subr.mxu0 0.0
  %3451 = vmatpush1.msra.mxu0 0.0
  %3452 = vmatprep.subr.mxu0 0.0
  %3453 = vmatpush1.msra.mxu0 0.0
  %3454 = vmatprep.subr.mxu0 0.0
  %3455 = vmatpush1.msra.mxu0 0.0
  %3456 = vmatprep.subr.mxu0 0.0
  %3457 = vmatpush1.msra.mxu0 0.0
  %3458 = vmatprep.subr.mxu0 0.0
  %3459 = vmatpush1.msra.mxu0 0.0
  %3460 = vmatprep.mubr.f32.mxu0 0.0
  %3461 = vmatmul.mubr.f32.gmra.mrb[0].mxu0 %v3394
  %v3462 = vpop.f32.mrb[0].mxu0
  %v3463 = vadd.f32 %v3392, %v3462
  %v3464 = vpop.f32.mrb[0].mxu0
  %3465 = vdwg.mxu0
  %v3466 = vmax.f32 %v3463, 0.0
  %v3467 = vld [vmem:[%s2 + $0x30] sm:$0xff]
  %v3468 = vld [vmem:[%s2 + $0x38] sm:$0xff]
  %v3469 = vld [vmem:[%s2 + $0x40] sm:$0xff]
  %v3470 = vld [vmem:[%s2 + $0x48] sm:$0xff]
  %v3471 = vld [vmem:[%s4 + $0x2] sm:$0x1]
  %v3472 = vlaneseq
  %v3473 = vshrl.u32 %v3472, 7
  %v3474 = vsub.s32 0, %v3473
  %v3475 = vrot.slane %v3471, %v3474
  %v3477 = vsel %vm223, %v3466, 0
  %3479 = vmatprep.subr.mxu0 0.0
  %3480 = vmatpush1.msra.mxu0 %v3467
  %3481 = vmatprep.subr.mxu0 0.0
  %3482 = vmatpush1.msra.mxu0 %v3468
  %3483 = vmatprep.subr.mxu0 0.0
  %3484 = vmatpush1.msra.mxu0 %v3469
  %3485 = vmatprep.subr.mxu0 0.0
  %3486 = vmatpush1.msra.mxu0 %v3470
  %3487 = vmatprep.subr.mxu0 0.0
  %3488 = vmatpush1.msra.mxu0 0.0
  %3489 = vmatprep.subr.mxu0 0.0
  %3490 = vmatpush1.msra.mxu0 0.0
  %3491 = vmatprep.subr.mxu0 0.0
  %3492 = vmatpush1.msra.mxu0 0.0
  %3493 = vmatprep.subr.mxu0 0.0
  %3494 = vmatpush1.msra.mxu0 0.0
  %3495 = vmatprep.subr.mxu0 0.0
  %3496 = vmatpush1.msra.mxu0 0.0
  %3497 = vmatprep.subr.mxu0 0.0
  %3498 = vmatpush1.msra.mxu0 0.0
  %3499 = vmatprep.subr.mxu0 0.0
  %3500 = vmatpush1.msra.mxu0 0.0
  %3501 = vmatprep.subr.mxu0 0.0
  %3502 = vmatpush1.msra.mxu0 0.0
  %3503 = vmatprep.subr.mxu0 0.0
  %3504 = vmatpush1.msra.mxu0 0.0
  %3505 = vmatprep.subr.mxu0 0.0
  %3506 = vmatpush1.msra.mxu0 0.0
  %3507 = vmatprep.subr.mxu0 0.0
  %3508 = vmatpush1.msra.mxu0 0.0
  %3509 = vmatprep.subr.mxu0 0.0
  %3510 = vmatpush1.msra.mxu0 0.0
  %3511 = vmatprep.subr.mxu0 0.0
  %3512 = vmatpush1.msra.mxu0 0.0
  %3513 = vmatprep.subr.mxu0 0.0
  %3514 = vmatpush1.msra.mxu0 0.0
  %3515 = vmatprep.subr.mxu0 0.0
  %3516 = vmatpush1.msra.mxu0 0.0
  %3517 = vmatprep.subr.mxu0 0.0
  %3518 = vmatpush1.msra.mxu0 0.0
  %3519 = vmatprep.subr.mxu0 0.0
  %3520 = vmatpush1.msra.mxu0 0.0
  %3521 = vmatprep.subr.mxu0 0.0
  %3522 = vmatpush1.msra.mxu0 0.0
  %3523 = vmatprep.subr.mxu0 0.0
  %3524 = vmatpush1.msra.mxu0 0.0
  %3525 = vmatprep.subr.mxu0 0.0
  %3526 = vmatpush1.msra.mxu0 0.0
  %3527 = vmatprep.subr.mxu0 0.0
  %3528 = vmatpush1.msra.mxu0 0.0
  %3529 = vmatprep.subr.mxu0 0.0
  %3530 = vmatpush1.msra.mxu0 0.0
  %3531 = vmatprep.subr.mxu0 0.0
  %3532 = vmatpush1.msra.mxu0 0.0
  %3533 = vmatprep.subr.mxu0 0.0
  %3534 = vmatpush1.msra.mxu0 0.0
  %3535 = vmatprep.subr.mxu0 0.0
  %3536 = vmatpush1.msra.mxu0 0.0
  %3537 = vmatprep.subr.mxu0 0.0
  %3538 = vmatpush1.msra.mxu0 0.0
  %3539 = vmatprep.subr.mxu0 0.0
  %3540 = vmatpush1.msra.mxu0 0.0
  %3541 = vmatprep.subr.mxu0 0.0
  %3542 = vmatpush1.msra.mxu0 0.0
  %3543 = vmatprep.mubr.f32.mxu0 0.0
  %3544 = vmatmul.mubr.f32.gmra.mrb[0].mxu0 %v3477
  %v3545 = vpop.f32.mrb[0].mxu0
  %v3546 = vadd.f32 %v3475, %v3545
  %v3547 = vpop.f32.mrb[0].mxu0
  %3548 = vdwg.mxu0
  %v3549 = vld [vmem:[%s4 + $0x3] sm:$0x1]
  %v3550 = vld [vmem:[%s4 + $0x4] sm:$0x1]
  %v3551 = vsel %vm223, %v3546, 0.0
  %3552 = vadd.xlane.f32.xlu0 %v3551
  %v3553 = vpop.xlane.xlu0 %3552
  %v3554 = vmul.f32 %v3546, %v3546
  %v3555 = vsel %vm223, %v3554, 0.0
  %3556 = vadd.xlane.f32.xlu0 %v3555
  %v3557 = vpop.xlane.xlu0 %3556
  %v3558 = vmul.f32 %v3553, 0.03125
  %v3559 = vmul.f32 %v3557, 0.03125
  %v3560 = vmul.f32 %v3558, %v3558
  %v3561 = vsub.f32 %v3559, %v3560
  %v3562 = vmax.f32 %v3561, 0.0
  %v3563 = vsub.f32 %v3546, %v3558
  %v3564 = vadd.f32 %v3562, 1e-05
  %v3565 = vrsqrt.pop %v3564
  %v3566 = vmul.f32 %v3563, %v3565
  %v3567 = vlaneseq
  %v3568 = vshrl.u32 %v3567, 7
  %v3569 = vsub.s32 0, %v3568
  %v3570 = vrot.slane %v3549, %v3569
  %v3571 = vmul.f32 %v3566, %v3570
  %v3572 = vlaneseq
  %v3573 = vshrl.u32 %v3572, 7
  %v3574 = vsub.s32 0, %v3573
  %v3575 = vrot.slane %v3550, %v3574
  %v3576 = vadd.f32 %v3571, %v3575
  %v3577 = vcombine.high %v3282, %v3282
  %v3579 = vunpack.c.l.s4 1966171168
  %v3580 = vunpack.c.0.s8 %v3579
  %v3581 = vlaneseq
  %v3582 = vshrl.u32 %v3581, 7
  %v3583 = vsub.s32 %v3580, %v3582
  %v3584 = vrot.slane %v3282, %v3583
  %v3586 = vunpack.c.l.s4 1966171168
  %v3587 = vunpack.c.0.s8 %v3586
  %v3588 = vlaneseq
  %v3589 = vshrl.u32 %v3588, 7
  %v3590 = vsub.s32 %v3587, %v3589
  %v3591 = vrot.slane %v3577, %v3590
  %v3592 = vcombine.high %v3584, %v3584
  %v3593 = vcombine.high %v3591, %v3591
  %v3595 = vunpack.c.l.s4 1966171168
  %v3596 = vunpack.c.0.s8 %v3595
  %v3597 = vlaneseq
  %v3598 = vshrl.u32 %v3597, 7
  %v3599 = vsub.s32 %v3596, %v3598
  %v3600 = vrot.slane %v3584, %v3599
  %v3602 = vunpack.c.l.s4 1966171168
  %v3603 = vunpack.c.0.s8 %v3602
  %v3604 = vlaneseq
  %v3605 = vshrl.u32 %v3604, 7
  %v3606 = vsub.s32 %v3603, %v3605
  %v3607 = vrot.slane %v3591, %v3606
  %v3609 = vunpack.c.l.s4 1966171168
  %v3610 = vunpack.c.0.s8 %v3609
  %v3611 = vlaneseq
  %v3612 = vshrl.u32 %v3611, 7
  %v3613 = vsub.s32 %v3610, %v3612
  %v3614 = vrot.slane %v3592, %v3613
  %v3616 = vunpack.c.l.s4 1966171168
  %v3617 = vunpack.c.0.s8 %v3616
  %v3618 = vlaneseq
  %v3619 = vshrl.u32 %v3618, 7
  %v3620 = vsub.s32 %v3617, %v3619
  %v3621 = vrot.slane %v3593, %v3620
  %v3622 = vcombine.high %v3600, %v3600
  %v3623 = vcombine.high %v3607, %v3607
  %v3624 = vcombine.high %v3614, %v3614
  %v3625 = vcombine.high %v3621, %v3621
  %v3626 = vlaneseq
  %v3627 = vshrl.u32 %v3626, 7
  %v3628 = vsub.s32 0, %v3627
  %v3629 = vrot.slane %v3600, %v3628
  %v3630 = vlaneseq
  %v3631 = vshrl.u32 %v3630, 7
  %v3632 = vsub.s32 0, %v3631
  %v3633 = vrot.slane %v3614, %v3632
  %v3634 = vlaneseq
  %v3635 = vshrl.u32 %v3634, 7
  %v3636 = vsub.s32 0, %v3635
  %v3637 = vrot.slane %v3622, %v3636
  %v3638 = vlaneseq
  %v3639 = vshrl.u32 %v3638, 7
  %v3640 = vsub.s32 0, %v3639
  %v3641 = vrot.slane %v3624, %v3640
  %v3642 = vlaneseq
  %v3643 = vshrl.u32 %v3642, 7
  %v3644 = vsub.s32 0, %v3643
  %v3645 = vrot.slane %v3607, %v3644
  %v3646 = vlaneseq
  %v3647 = vshrl.u32 %v3646, 7
  %v3648 = vsub.s32 0, %v3647
  %v3649 = vrot.slane %v3621, %v3648
  %v3650 = vlaneseq
  %v3651 = vshrl.u32 %v3650, 7
  %v3652 = vsub.s32 0, %v3651
  %v3653 = vrot.slane %v3623, %v3652
  %v3654 = vlaneseq
  %v3655 = vshrl.u32 %v3654, 7
  %v3656 = vsub.s32 0, %v3655
  %v3657 = vrot.slane %v3625, %v3656
  %v3666 = vsub.f32 %v3629, %v3282
  %v3667 = vsub.f32 %v3633, %v3282
  %v3668 = vsub.f32 %v3637, %v3282
  %v3669 = vsub.f32 %v3641, %v3282
  %v3670 = vsub.f32 %v3645, %v3282
  %v3671 = vsub.f32 %v3649, %v3282
  %v3672 = vsub.f32 %v3653, %v3282
  %v3673 = vsub.f32 %v3657, %v3282
  %v3674 = vmul.f32 %v3666, %v3666
  %v3675 = vmul.f32 %v3667, %v3667
  %v3676 = vmul.f32 %v3668, %v3668
  %v3677 = vmul.f32 %v3669, %v3669
  %v3678 = vmul.f32 %v3670, %v3670
  %v3679 = vmul.f32 %v3671, %v3671
  %v3680 = vmul.f32 %v3672, %v3672
  %v3681 = vmul.f32 %v3673, %v3673
  %v3682 = vadd.f32 %v3674, 0.0
  %v3683 = vadd.f32 %v3675, 0.0
  %v3684 = vadd.f32 %v3676, 0.0
  %v3685 = vadd.f32 %v3677, 0.0
  %v3686 = vadd.f32 %v3678, 0.0
  %v3687 = vadd.f32 %v3679, 0.0
  %v3688 = vadd.f32 %v3680, 0.0
  %v3689 = vadd.f32 %v3681, 0.0
  %3698 = vrot.lane.b32.xlu0 %v3674, 127
  %v3699 = vpop.permute.xlu0 %3698
  %3700 = vrot.lane.b32.xlu0 %v3675, 127
  %v3701 = vpop.permute.xlu0 %3700
  %3702 = vrot.lane.b32.xlu0 %v3676, 127
  %v3703 = vpop.permute.xlu0 %3702
  %3704 = vrot.lane.b32.xlu0 %v3677, 127
  %v3705 = vpop.permute.xlu0 %3704
  %3706 = vrot.lane.b32.xlu0 %v3678, 127
  %v3707 = vpop.permute.xlu0 %3706
  %3708 = vrot.lane.b32.xlu0 %v3679, 127
  %v3709 = vpop.permute.xlu0 %3708
  %3710 = vrot.lane.b32.xlu0 %v3680, 127
  %v3711 = vpop.permute.xlu0 %3710
  %3712 = vrot.lane.b32.xlu0 %v3681, 127
  %v3713 = vpop.permute.xlu0 %3712
  %v3722 = vadd.f32 %v3682, %v3699
  %v3723 = vadd.f32 %v3683, %v3701
  %v3724 = vadd.f32 %v3684, %v3703
  %v3725 = vadd.f32 %v3685, %v3705
  %v3726 = vadd.f32 %v3686, %v3707
  %v3727 = vadd.f32 %v3687, %v3709
  %v3728 = vadd.f32 %v3688, %v3711
  %v3729 = vadd.f32 %v3689, %v3713
  %v3730 = vrsqrt.pop %v3722
  %v3731 = vmul.f32 %v3722, %v3730
  %vm3732 = vcmp.eq.f32.partialorder %v3722, inf
  %v3733 = vsel %vm3732, %v3722, %v3731
  %vm3734 = vcmp.eq.f32.partialorder %v3722, 0.0
  %v3735 = vand.u32 %v3722, 2147483648
  %v3736 = vsel %vm3734, %v3735, %v3733
  %v3737 = vrsqrt.pop %v3723
  %v3738 = vmul.f32 %v3723, %v3737
  %vm3739 = vcmp.eq.f32.partialorder %v3723, inf
  %v3740 = vsel %vm3739, %v3723, %v3738
  %vm3741 = vcmp.eq.f32.partialorder %v3723, 0.0
  %v3742 = vand.u32 %v3723, 2147483648
  %v3743 = vsel %vm3741, %v3742, %v3740
  %v3744 = vrsqrt.pop %v3724
  %v3745 = vmul.f32 %v3724, %v3744
  %vm3746 = vcmp.eq.f32.partialorder %v3724, inf
  %v3747 = vsel %vm3746, %v3724, %v3745
  %vm3748 = vcmp.eq.f32.partialorder %v3724, 0.0
  %v3749 = vand.u32 %v3724, 2147483648
  %v3750 = vsel %vm3748, %v3749, %v3747
  %v3751 = vrsqrt.pop %v3725
  %v3752 = vmul.f32 %v3725, %v3751
  %vm3753 = vcmp.eq.f32.partialorder %v3725, inf
  %v3754 = vsel %vm3753, %v3725, %v3752
  %vm3755 = vcmp.eq.f32.partialorder %v3725, 0.0
  %v3756 = vand.u32 %v3725, 2147483648
  %v3757 = vsel %vm3755, %v3756, %v3754
  %v3758 = vrsqrt.pop %v3726
  %v3759 = vmul.f32 %v3726, %v3758
  %vm3760 = vcmp.eq.f32.partialorder %v3726, inf
  %v3761 = vsel %vm3760, %v3726, %v3759
  %vm3762 = vcmp.eq.f32.partialorder %v3726, 0.0
  %v3763 = vand.u32 %v3726, 2147483648
  %v3764 = vsel %vm3762, %v3763, %v3761
  %v3765 = vrsqrt.pop %v3727
  %v3766 = vmul.f32 %v3727, %v3765
  %vm3767 = vcmp.eq.f32.partialorder %v3727, inf
  %v3768 = vsel %vm3767, %v3727, %v3766
  %vm3769 = vcmp.eq.f32.partialorder %v3727, 0.0
  %v3770 = vand.u32 %v3727, 2147483648
  %v3771 = vsel %vm3769, %v3770, %v3768
  %v3772 = vrsqrt.pop %v3728
  %v3773 = vmul.f32 %v3728, %v3772
  %vm3774 = vcmp.eq.f32.partialorder %v3728, inf
  %v3775 = vsel %vm3774, %v3728, %v3773
  %vm3776 = vcmp.eq.f32.partialorder %v3728, 0.0
  %v3777 = vand.u32 %v3728, 2147483648
  %v3778 = vsel %vm3776, %v3777, %v3775
  %v3779 = vrsqrt.pop %v3729
  %v3780 = vmul.f32 %v3729, %v3779
  %vm3781 = vcmp.eq.f32.partialorder %v3729, inf
  %v3782 = vsel %vm3781, %v3729, %v3780
  %vm3783 = vcmp.eq.f32.partialorder %v3729, 0.0
  %v3784 = vand.u32 %v3729, 2147483648
  %v3785 = vsel %vm3783, %v3784, %v3782
  %vm3786 = vcmp.le.f32.partialorder %v3736, 1.0
  %vm3787 = vcmp.le.f32.partialorder %v3743, 1.0
  %vm3788 = vcmp.le.f32.partialorder %v3750, 1.0
  %vm3789 = vcmp.le.f32.partialorder %v3757, 1.0
  %vm3790 = vcmp.le.f32.partialorder %v3764, 1.0
  %vm3791 = vcmp.le.f32.partialorder %v3771, 1.0
  %vm3792 = vcmp.le.f32.partialorder %v3778, 1.0
  %vm3793 = vcmp.le.f32.partialorder %v3785, 1.0
  %v3794 = vsel %vm3786, 1, 0
  %v3795 = vsel %vm3787, 1, 0
  %v3796 = vsel %vm3788, 1, 0
  %v3797 = vsel %vm3789, 1, 0
  %v3798 = vsel %vm3790, 1, 0
  %v3799 = vsel %vm3791, 1, 0
  %v3800 = vsel %vm3792, 1, 0
  %v3801 = vsel %vm3793, 1, 0
  %v3802 = vcvt.s32.f32 %v3794
  %v3803 = vcvt.s32.f32 %v3795
  %v3804 = vcvt.s32.f32 %v3796
  %v3805 = vcvt.s32.f32 %v3797
  %v3806 = vcvt.s32.f32 %v3798
  %v3807 = vcvt.s32.f32 %v3799
  %v3808 = vcvt.s32.f32 %v3800
  %v3809 = vcvt.s32.f32 %v3801
  %3818 = vrot.lane.b32.xlu0 %v3736, 2
  %v3819 = vpop.permute.xlu0 %3818
  %3820 = vrot.lane.b32.xlu0 %v3743, 2
  %v3821 = vpop.permute.xlu0 %3820
  %3822 = vrot.lane.b32.xlu0 %v3750, 2
  %v3823 = vpop.permute.xlu0 %3822
  %3824 = vrot.lane.b32.xlu0 %v3757, 2
  %v3825 = vpop.permute.xlu0 %3824
  %3826 = vrot.lane.b32.xlu0 %v3764, 2
  %v3827 = vpop.permute.xlu0 %3826
  %3828 = vrot.lane.b32.xlu0 %v3771, 2
  %v3829 = vpop.permute.xlu0 %3828
  %3830 = vrot.lane.b32.xlu0 %v3778, 2
  %v3831 = vpop.permute.xlu0 %3830
  %3832 = vrot.lane.b32.xlu0 %v3785, 2
  %v3833 = vpop.permute.xlu0 %3832
  %v3842 = vsel %vm130, %v3666, %v3819
  %v3843 = vsel %vm130, %v3667, %v3821
  %v3844 = vsel %vm130, %v3668, %v3823
  %v3845 = vsel %vm130, %v3669, %v3825
  %v3846 = vsel %vm130, %v3670, %v3827
  %v3847 = vsel %vm130, %v3671, %v3829
  %v3848 = vsel %vm130, %v3672, %v3831
  %v3849 = vsel %vm130, %v3673, %v3833
  %v3850 = vld [vmem:[%s2 + $0x50] sm:$0x7]
  %v3851 = vld [vmem:[%s4 + $0x5] sm:$0x1]
  %v3852 = vlaneseq
  %v3853 = vshrl.u32 %v3852, 7
  %v3854 = vsub.s32 0, %v3853
  %v3855 = vrot.slane %v3851, %v3854
  %v3857 = vsel %vm687, %v3842, 0
  %v3860 = vsel %vm687, %v3843, 0
  %v3863 = vsel %vm687, %v3844, 0
  %v3866 = vsel %vm687, %v3845, 0
  %v3869 = vsel %vm687, %v3846, 0
  %v3872 = vsel %vm687, %v3847, 0
  %v3875 = vsel %vm687, %v3848, 0
  %v3878 = vsel %vm687, %v3849, 0
  %v3881 = vsel %vm712, %v3850, 0
  %3883 = vmatprep.subr.mxu0 0.0
  %3884 = vmatpush1.msra.mxu0 %v3881
  %3885 = vmatprep.subr.mxu0 0.0
  %3886 = vmatpush1.msra.mxu0 0.0
  %3887 = vmatprep.subr.mxu0 0.0
  %3888 = vmatpush1.msra.mxu0 0.0
  %3889 = vmatprep.subr.mxu0 0.0
  %3890 = vmatpush1.msra.mxu0 0.0
  %3891 = vmatprep.subr.mxu0 0.0
  %3892 = vmatpush1.msra.mxu0 0.0
  %3893 = vmatprep.subr.mxu0 0.0
  %3894 = vmatpush1.msra.mxu0 0.0
  %3895 = vmatprep.subr.mxu0 0.0
  %3896 = vmatpush1.msra.mxu0 0.0
  %3897 = vmatprep.subr.mxu0 0.0
  %3898 = vmatpush1.msra.mxu0 0.0
  %3899 = vmatprep.subr.mxu0 0.0
  %3900 = vmatpush1.msra.mxu0 0.0
  %3901 = vmatprep.subr.mxu0 0.0
  %3902 = vmatpush1.msra.mxu0 0.0
  %3903 = vmatprep.subr.mxu0 0.0
  %3904 = vmatpush1.msra.mxu0 0.0
  %3905 = vmatprep.subr.mxu0 0.0
  %3906 = vmatpush1.msra.mxu0 0.0
  %3907 = vmatprep.subr.mxu0 0.0
  %3908 = vmatpush1.msra.mxu0 0.0
  %3909 = vmatprep.subr.mxu0 0.0
  %3910 = vmatpush1.msra.mxu0 0.0
  %3911 = vmatprep.subr.mxu0 0.0
  %3912 = vmatpush1.msra.mxu0 0.0
  %3913 = vmatprep.subr.mxu0 0.0
  %3914 = vmatpush1.msra.mxu0 0.0
  %3915 = vmatprep.subr.mxu0 0.0
  %3916 = vmatpush1.msra.mxu0 0.0
  %3917 = vmatprep.subr.mxu0 0.0
  %3918 = vmatpush1.msra.mxu0 0.0
  %3919 = vmatprep.subr.mxu0 0.0
  %3920 = vmatpush1.msra.mxu0 0.0
  %3921 = vmatprep.subr.mxu0 0.0
  %3922 = vmatpush1.msra.mxu0 0.0
  %3923 = vmatprep.subr.mxu0 0.0
  %3924 = vmatpush1.msra.mxu0 0.0
  %3925 = vmatprep.subr.mxu0 0.0
  %3926 = vmatpush1.msra.mxu0 0.0
  %3927 = vmatprep.subr.mxu0 0.0
  %3928 = vmatpush1.msra.mxu0 0.0
  %3929 = vmatprep.subr.mxu0 0.0
  %3930 = vmatpush1.msra.mxu0 0.0
  %3931 = vmatprep.subr.mxu0 0.0
  %3932 = vmatpush1.msra.mxu0 0.0
  %3933 = vmatprep.subr.mxu0 0.0
  %3934 = vmatpush1.msra.mxu0 0.0
  %3935 = vmatprep.subr.mxu0 0.0
  %3936 = vmatpush1.msra.mxu0 0.0
  %3937 = vmatprep.subr.mxu0 0.0
  %3938 = vmatpush1.msra.mxu0 0.0
  %3939 = vmatprep.subr.mxu0 0.0
  %3940 = vmatpush1.msra.mxu0 0.0
  %3941 = vmatprep.subr.mxu0 0.0
  %3942 = vmatpush1.msra.mxu0 0.0
  %3943 = vmatprep.subr.mxu0 0.0
  %3944 = vmatpush1.msra.mxu0 0.0
  %3945 = vmatprep.subr.mxu0 0.0
  %3946 = vmatpush1.msra.mxu0 0.0
  %3947 = vmatprep.mubr.f32.mxu0 0.0
  %3948 = vmatmul.mubr.f32.gmra.mrb[0].mxu0 %v3857
  %v3949 = vpop.f32.mrb[0].mxu0
  %v3950 = vadd.f32 %v3855, %v3949
  %v3951 = vpop.f32.mrb[0].mxu0
  %3952 = vmatprep.mubr.f32.mxu0 0.0
  %3953 = vmatmul.mubr.f32.gmra.mrb[0].mxu0 %v3860
  %v3954 = vpop.f32.mrb[0].mxu0
  %v3955 = vadd.f32 %v3855, %v3954
  %v3956 = vpop.f32.mrb[0].mxu0
  %3957 = vmatprep.mubr.f32.mxu0 0.0
  %3958 = vmatmul.mubr.f32.gmra.mrb[0].mxu0 %v3863
  %v3959 = vpop.f32.mrb[0].mxu0
  %v3960 = vadd.f32 %v3855, %v3959
  %v3961 = vpop.f32.mrb[0].mxu0
  %3962 = vmatprep.mubr.f32.mxu0 0.0
  %3963 = vmatmul.mubr.f32.gmra.mrb[0].mxu0 %v3866
  %v3964 = vpop.f32.mrb[0].mxu0
  %v3965 = vadd.f32 %v3855, %v3964
  %v3966 = vpop.f32.mrb[0].mxu0
  %3967 = vmatprep.mubr.f32.mxu0 0.0
  %3968 = vmatmul.mubr.f32.gmra.mrb[0].mxu0 %v3869
  %v3969 = vpop.f32.mrb[0].mxu0
  %v3970 = vadd.f32 %v3855, %v3969
  %v3971 = vpop.f32.mrb[0].mxu0
  %3972 = vmatprep.mubr.f32.mxu0 0.0
  %3973 = vmatmul.mubr.f32.gmra.mrb[0].mxu0 %v3872
  %v3974 = vpop.f32.mrb[0].mxu0
  %v3975 = vadd.f32 %v3855, %v3974
  %v3976 = vpop.f32.mrb[0].mxu0
  %3977 = vmatprep.mubr.f32.mxu0 0.0
  %3978 = vmatmul.mubr.f32.gmra.mrb[0].mxu0 %v3875
  %v3979 = vpop.f32.mrb[0].mxu0
  %v3980 = vadd.f32 %v3855, %v3979
  %v3981 = vpop.f32.mrb[0].mxu0
  %3982 = vmatprep.mubr.f32.mxu0 0.0
  %3983 = vmatmul.mubr.f32.gmra.mrb[0].mxu0 %v3878
  %v3984 = vpop.f32.mrb[0].mxu0
  %v3985 = vadd.f32 %v3855, %v3984
  %v3986 = vpop.f32.mrb[0].mxu0
  %3987 = vdwg.mxu0
  %v3988 = vmax.f32 %v3950, 0.0
  %v3989 = vmax.f32 %v3955, 0.0
  %v3990 = vmax.f32 %v3960, 0.0
  %v3991 = vmax.f32 %v3965, 0.0
  %v3992 = vmax.f32 %v3970, 0.0
  %v3993 = vmax.f32 %v3975, 0.0
  %v3994 = vmax.f32 %v3980, 0.0
  %v3995 = vmax.f32 %v3985, 0.0
  %v3996 = vld [vmem:[%s2 + $0x58] sm:$0xff]
  %v3997 = vld [vmem:[%s2 + $0x60] sm:$0xff]
  %v3998 = vld [vmem:[%s2 + $0x68] sm:$0xff]
  %v3999 = vld [vmem:[%s2 + $0x70] sm:$0xff]
  %v4000 = vld [vmem:[%s4 + $0x6] sm:$0x1]
  %v4001 = vlaneseq
  %v4002 = vshrl.u32 %v4001, 7
  %v4003 = vsub.s32 0, %v4002
  %v4004 = vrot.slane %v4000, %v4003
  %v4006 = vsel %vm223, %v3988, 0
  %v4009 = vsel %vm223, %v3989, 0
  %v4012 = vsel %vm223, %v3990, 0
  %v4015 = vsel %vm223, %v3991, 0
  %v4018 = vsel %vm223, %v3992, 0
  %v4021 = vsel %vm223, %v3993, 0
  %v4024 = vsel %vm223, %v3994, 0
  %v4027 = vsel %vm223, %v3995, 0
  %4029 = vmatprep.subr.mxu0 0.0
  %4030 = vmatpush1.msra.mxu0 %v3996
  %4031 = vmatprep.subr.mxu0 0.0
  %4032 = vmatpush1.msra.mxu0 %v3997
  %4033 = vmatprep.subr.mxu0 0.0
  %4034 = vmatpush1.msra.mxu0 %v3998
  %4035 = vmatprep.subr.mxu0 0.0
  %4036 = vmatpush1.msra.mxu0 %v3999
  %4037 = vmatprep.subr.mxu0 0.0
  %4038 = vmatpush1.msra.mxu0 0.0
  %4039 = vmatprep.subr.mxu0 0.0
  %4040 = vmatpush1.msra.mxu0 0.0
  %4041 = vmatprep.subr.mxu0 0.0
  %4042 = vmatpush1.msra.mxu0 0.0
  %4043 = vmatprep.subr.mxu0 0.0
  %4044 = vmatpush1.msra.mxu0 0.0
  %4045 = vmatprep.subr.mxu0 0.0
  %4046 = vmatpush1.msra.mxu0 0.0
  %4047 = vmatprep.subr.mxu0 0.0
  %4048 = vmatpush1.msra.mxu0 0.0
  %4049 = vmatprep.subr.mxu0 0.0
  %4050 = vmatpush1.msra.mxu0 0.0
  %4051 = vmatprep.subr.mxu0 0.0
  %4052 = vmatpush1.msra.mxu0 0.0
  %4053 = vmatprep.subr.mxu0 0.0
  %4054 = vmatpush1.msra.mxu0 0.0
  %4055 = vmatprep.subr.mxu0 0.0
  %4056 = vmatpush1.msra.mxu0 0.0
  %4057 = vmatprep.subr.mxu0 0.0
  %4058 = vmatpush1.msra.mxu0 0.0
  %4059 = vmatprep.subr.mxu0 0.0
  %4060 = vmatpush1.msra.mxu0 0.0
  %4061 = vmatprep.subr.mxu0 0.0
  %4062 = vmatpush1.msra.mxu0 0.0
  %4063 = vmatprep.subr.mxu0 0.0
  %4064 = vmatpush1.msra.mxu0 0.0
  %4065 = vmatprep.subr.mxu0 0.0
  %4066 = vmatpush1.msra.mxu0 0.0
  %4067 = vmatprep.subr.mxu0 0.0
  %4068 = vmatpush1.msra.mxu0 0.0
  %4069 = vmatprep.subr.mxu0 0.0
  %4070 = vmatpush1.msra.mxu0 0.0
  %4071 = vmatprep.subr.mxu0 0.0
  %4072 = vmatpush1.msra.mxu0 0.0
  %4073 = vmatprep.subr.mxu0 0.0
  %4074 = vmatpush1.msra.mxu0 0.0
  %4075 = vmatprep.subr.mxu0 0.0
  %4076 = vmatpush1.msra.mxu0 0.0
  %4077 = vmatprep.subr.mxu0 0.0
  %4078 = vmatpush1.msra.mxu0 0.0
  %4079 = vmatprep.subr.mxu0 0.0
  %4080 = vmatpush1.msra.mxu0 0.0
  %4081 = vmatprep.subr.mxu0 0.0
  %4082 = vmatpush1.msra.mxu0 0.0
  %4083 = vmatprep.subr.mxu0 0.0
  %4084 = vmatpush1.msra.mxu0 0.0
  %4085 = vmatprep.subr.mxu0 0.0
  %4086 = vmatpush1.msra.mxu0 0.0
  %4087 = vmatprep.subr.mxu0 0.0
  %4088 = vmatpush1.msra.mxu0 0.0
  %4089 = vmatprep.subr.mxu0 0.0
  %4090 = vmatpush1.msra.mxu0 0.0
  %4091 = vmatprep.subr.mxu0 0.0
  %4092 = vmatpush1.msra.mxu0 0.0
  %4093 = vmatprep.mubr.f32.mxu0 0.0
  %4094 = vmatmul.mubr.f32.gmra.mrb[0].mxu0 %v4006
  %v4095 = vpop.f32.mrb[0].mxu0
  %v4096 = vadd.f32 %v4004, %v4095
  %v4097 = vpop.f32.mrb[0].mxu0
  %4098 = vmatprep.mubr.f32.mxu0 0.0
  %4099 = vmatmul.mubr.f32.gmra.mrb[0].mxu0 %v4009
  %v4100 = vpop.f32.mrb[0].mxu0
  %v4101 = vadd.f32 %v4004, %v4100
  %v4102 = vpop.f32.mrb[0].mxu0
  %4103 = vmatprep.mubr.f32.mxu0 0.0
  %4104 = vmatmul.mubr.f32.gmra.mrb[0].mxu0 %v4012
  %v4105 = vpop.f32.mrb[0].mxu0
  %v4106 = vadd.f32 %v4004, %v4105
  %v4107 = vpop.f32.mrb[0].mxu0
  %4108 = vmatprep.mubr.f32.mxu0 0.0
  %4109 = vmatmul.mubr.f32.gmra.mrb[0].mxu0 %v4015
  %v4110 = vpop.f32.mrb[0].mxu0
  %v4111 = vadd.f32 %v4004, %v4110
  %v4112 = vpop.f32.mrb[0].mxu0
  %4113 = vmatprep.mubr.f32.mxu0 0.0
  %4114 = vmatmul.mubr.f32.gmra.mrb[0].mxu0 %v4018
  %v4115 = vpop.f32.mrb[0].mxu0
  %v4116 = vadd.f32 %v4004, %v4115
  %v4117 = vpop.f32.mrb[0].mxu0
  %4118 = vmatprep.mubr.f32.mxu0 0.0
  %4119 = vmatmul.mubr.f32.gmra.mrb[0].mxu0 %v4021
  %v4120 = vpop.f32.mrb[0].mxu0
  %v4121 = vadd.f32 %v4004, %v4120
  %v4122 = vpop.f32.mrb[0].mxu0
  %4123 = vmatprep.mubr.f32.mxu0 0.0
  %4124 = vmatmul.mubr.f32.gmra.mrb[0].mxu0 %v4024
  %v4125 = vpop.f32.mrb[0].mxu0
  %v4126 = vadd.f32 %v4004, %v4125
  %v4127 = vpop.f32.mrb[0].mxu0
  %4128 = vmatprep.mubr.f32.mxu0 0.0
  %4129 = vmatmul.mubr.f32.gmra.mrb[0].mxu0 %v4027
  %v4130 = vpop.f32.mrb[0].mxu0
  %v4131 = vadd.f32 %v4004, %v4130
  %v4132 = vpop.f32.mrb[0].mxu0
  %4133 = vdwg.mxu0
  %v4134 = vmax.f32 %v4096, 0.0
  %v4135 = vmax.f32 %v4101, 0.0
  %v4136 = vmax.f32 %v4106, 0.0
  %v4137 = vmax.f32 %v4111, 0.0
  %v4138 = vmax.f32 %v4116, 0.0
  %v4139 = vmax.f32 %v4121, 0.0
  %v4140 = vmax.f32 %v4126, 0.0
  %v4141 = vmax.f32 %v4131, 0.0
  %v4142 = vld [vmem:[%s2 + $0x78] sm:$0xff]
  %v4143 = vld [vmem:[%s2 + $0x80] sm:$0xff]
  %v4144 = vld [vmem:[%s2 + $0x88] sm:$0xff]
  %v4145 = vld [vmem:[%s2 + $0x90] sm:$0xff]
  %v4146 = vld [vmem:[%s4 + $0x7] sm:$0x1]
  %v4147 = vlaneseq
  %v4148 = vshrl.u32 %v4147, 7
  %v4149 = vsub.s32 0, %v4148
  %v4150 = vrot.slane %v4146, %v4149
  %v4152 = vsel %vm223, %v4134, 0
  %v4155 = vsel %vm223, %v4135, 0
  %v4158 = vsel %vm223, %v4136, 0
  %v4161 = vsel %vm223, %v4137, 0
  %v4164 = vsel %vm223, %v4138, 0
  %v4167 = vsel %vm223, %v4139, 0
  %v4170 = vsel %vm223, %v4140, 0
  %v4173 = vsel %vm223, %v4141, 0
  %4175 = vmatprep.subr.mxu0 0.0
  %4176 = vmatpush1.msra.mxu0 %v4142
  %4177 = vmatprep.subr.mxu0 0.0
  %4178 = vmatpush1.msra.mxu0 %v4143
  %4179 = vmatprep.subr.mxu0 0.0
  %4180 = vmatpush1.msra.mxu0 %v4144
  %4181 = vmatprep.subr.mxu0 0.0
  %4182 = vmatpush1.msra.mxu0 %v4145
  %4183 = vmatprep.subr.mxu0 0.0
  %4184 = vmatpush1.msra.mxu0 0.0
  %4185 = vmatprep.subr.mxu0 0.0
  %4186 = vmatpush1.msra.mxu0 0.0
  %4187 = vmatprep.subr.mxu0 0.0
  %4188 = vmatpush1.msra.mxu0 0.0
  %4189 = vmatprep.subr.mxu0 0.0
  %4190 = vmatpush1.msra.mxu0 0.0
  %4191 = vmatprep.subr.mxu0 0.0
  %4192 = vmatpush1.msra.mxu0 0.0
  %4193 = vmatprep.subr.mxu0 0.0
  %4194 = vmatpush1.msra.mxu0 0.0
  %4195 = vmatprep.subr.mxu0 0.0
  %4196 = vmatpush1.msra.mxu0 0.0
  %4197 = vmatprep.subr.mxu0 0.0
  %4198 = vmatpush1.msra.mxu0 0.0
  %4199 = vmatprep.subr.mxu0 0.0
  %4200 = vmatpush1.msra.mxu0 0.0
  %4201 = vmatprep.subr.mxu0 0.0
  %4202 = vmatpush1.msra.mxu0 0.0
  %4203 = vmatprep.subr.mxu0 0.0
  %4204 = vmatpush1.msra.mxu0 0.0
  %4205 = vmatprep.subr.mxu0 0.0
  %4206 = vmatpush1.msra.mxu0 0.0
  %4207 = vmatprep.subr.mxu0 0.0
  %4208 = vmatpush1.msra.mxu0 0.0
  %4209 = vmatprep.subr.mxu0 0.0
  %4210 = vmatpush1.msra.mxu0 0.0
  %4211 = vmatprep.subr.mxu0 0.0
  %4212 = vmatpush1.msra.mxu0 0.0
  %4213 = vmatprep.subr.mxu0 0.0
  %4214 = vmatpush1.msra.mxu0 0.0
  %4215 = vmatprep.subr.mxu0 0.0
  %4216 = vmatpush1.msra.mxu0 0.0
  %4217 = vmatprep.subr.mxu0 0.0
  %4218 = vmatpush1.msra.mxu0 0.0
  %4219 = vmatprep.subr.mxu0 0.0
  %4220 = vmatpush1.msra.mxu0 0.0
  %4221 = vmatprep.subr.mxu0 0.0
  %4222 = vmatpush1.msra.mxu0 0.0
  %4223 = vmatprep.subr.mxu0 0.0
  %4224 = vmatpush1.msra.mxu0 0.0
  %4225 = vmatprep.subr.mxu0 0.0
  %4226 = vmatpush1.msra.mxu0 0.0
  %4227 = vmatprep.subr.mxu0 0.0
  %4228 = vmatpush1.msra.mxu0 0.0
  %4229 = vmatprep.subr.mxu0 0.0
  %4230 = vmatpush1.msra.mxu0 0.0
  %4231 = vmatprep.subr.mxu0 0.0
  %4232 = vmatpush1.msra.mxu0 0.0
  %4233 = vmatprep.subr.mxu0 0.0
  %4234 = vmatpush1.msra.mxu0 0.0
  %4235 = vmatprep.subr.mxu0 0.0
  %4236 = vmatpush1.msra.mxu0 0.0
  %4237 = vmatprep.subr.mxu0 0.0
  %4238 = vmatpush1.msra.mxu0 0.0
  %4239 = vmatprep.mubr.f32.mxu0 0.0
  %4240 = vmatmul.mubr.f32.gmra.mrb[0].mxu0 %v4152
  %v4241 = vpop.f32.mrb[0].mxu0
  %v4242 = vadd.f32 %v4150, %v4241
  %v4243 = vpop.f32.mrb[0].mxu0
  %4244 = vmatprep.mubr.f32.mxu0 0.0
  %4245 = vmatmul.mubr.f32.gmra.mrb[0].mxu0 %v4155
  %v4246 = vpop.f32.mrb[0].mxu0
  %v4247 = vadd.f32 %v4150, %v4246
  %v4248 = vpop.f32.mrb[0].mxu0
  %4249 = vmatprep.mubr.f32.mxu0 0.0
  %4250 = vmatmul.mubr.f32.gmra.mrb[0].mxu0 %v4158
  %v4251 = vpop.f32.mrb[0].mxu0
  %v4252 = vadd.f32 %v4150, %v4251
  %v4253 = vpop.f32.mrb[0].mxu0
  %4254 = vmatprep.mubr.f32.mxu0 0.0
  %4255 = vmatmul.mubr.f32.gmra.mrb[0].mxu0 %v4161
  %v4256 = vpop.f32.mrb[0].mxu0
  %v4257 = vadd.f32 %v4150, %v4256
  %v4258 = vpop.f32.mrb[0].mxu0
  %4259 = vmatprep.mubr.f32.mxu0 0.0
  %4260 = vmatmul.mubr.f32.gmra.mrb[0].mxu0 %v4164
  %v4261 = vpop.f32.mrb[0].mxu0
  %v4262 = vadd.f32 %v4150, %v4261
  %v4263 = vpop.f32.mrb[0].mxu0
  %4264 = vmatprep.mubr.f32.mxu0 0.0
  %4265 = vmatmul.mubr.f32.gmra.mrb[0].mxu0 %v4167
  %v4266 = vpop.f32.mrb[0].mxu0
  %v4267 = vadd.f32 %v4150, %v4266
  %v4268 = vpop.f32.mrb[0].mxu0
  %4269 = vmatprep.mubr.f32.mxu0 0.0
  %4270 = vmatmul.mubr.f32.gmra.mrb[0].mxu0 %v4170
  %v4271 = vpop.f32.mrb[0].mxu0
  %v4272 = vadd.f32 %v4150, %v4271
  %v4273 = vpop.f32.mrb[0].mxu0
  %4274 = vmatprep.mubr.f32.mxu0 0.0
  %4275 = vmatmul.mubr.f32.gmra.mrb[0].mxu0 %v4173
  %v4276 = vpop.f32.mrb[0].mxu0
  %v4277 = vadd.f32 %v4150, %v4276
  %v4278 = vpop.f32.mrb[0].mxu0
  %4279 = vdwg.mxu0
  %v4280 = vld [vmem:[%s4 + $0x8] sm:$0x1]
  %v4281 = vld [vmem:[%s4 + $0x9] sm:$0x1]
  %v4282 = vsel %vm223, %v4242, 0.0
  %4283 = vadd.xlane.f32.xlu0 %v4282
  %v4284 = vpop.xlane.xlu0 %4283
  %v4285 = vsel %vm223, %v4247, 0.0
  %4286 = vadd.xlane.f32.xlu0 %v4285
  %v4287 = vpop.xlane.xlu0 %4286
  %v4288 = vsel %vm223, %v4252, 0.0
  %4289 = vadd.xlane.f32.xlu0 %v4288
  %v4290 = vpop.xlane.xlu0 %4289
  %v4291 = vsel %vm223, %v4257, 0.0
  %4292 = vadd.xlane.f32.xlu0 %v4291
  %v4293 = vpop.xlane.xlu0 %4292
  %v4294 = vsel %vm223, %v4262, 0.0
  %4295 = vadd.xlane.f32.xlu0 %v4294
  %v4296 = vpop.xlane.xlu0 %4295
  %v4297 = vsel %vm223, %v4267, 0.0
  %4298 = vadd.xlane.f32.xlu0 %v4297
  %v4299 = vpop.xlane.xlu0 %4298
  %v4300 = vsel %vm223, %v4272, 0.0
  %4301 = vadd.xlane.f32.xlu0 %v4300
  %v4302 = vpop.xlane.xlu0 %4301
  %v4303 = vsel %vm223, %v4277, 0.0
  %4304 = vadd.xlane.f32.xlu0 %v4303
  %v4305 = vpop.xlane.xlu0 %4304
  %v4306 = vmul.f32 %v4242, %v4242
  %v4307 = vmul.f32 %v4247, %v4247
  %v4308 = vmul.f32 %v4252, %v4252
  %v4309 = vmul.f32 %v4257, %v4257
  %v4310 = vmul.f32 %v4262, %v4262
  %v4311 = vmul.f32 %v4267, %v4267
  %v4312 = vmul.f32 %v4272, %v4272
  %v4313 = vmul.f32 %v4277, %v4277
  %v4314 = vsel %vm223, %v4306, 0.0
  %4315 = vadd.xlane.f32.xlu0 %v4314
  %v4316 = vpop.xlane.xlu0 %4315
  %v4317 = vsel %vm223, %v4307, 0.0
  %4318 = vadd.xlane.f32.xlu0 %v4317
  %v4319 = vpop.xlane.xlu0 %4318
  %v4320 = vsel %vm223, %v4308, 0.0
  %4321 = vadd.xlane.f32.xlu0 %v4320
  %v4322 = vpop.xlane.xlu0 %4321
  %v4323 = vsel %vm223, %v4309, 0.0
  %4324 = vadd.xlane.f32.xlu0 %v4323
  %v4325 = vpop.xlane.xlu0 %4324
  %v4326 = vsel %vm223, %v4310, 0.0
  %4327 = vadd.xlane.f32.xlu0 %v4326
  %v4328 = vpop.xlane.xlu0 %4327
  %v4329 = vsel %vm223, %v4311, 0.0
  %4330 = vadd.xlane.f32.xlu0 %v4329
  %v4331 = vpop.xlane.xlu0 %4330
  %v4332 = vsel %vm223, %v4312, 0.0
  %4333 = vadd.xlane.f32.xlu0 %v4332
  %v4334 = vpop.xlane.xlu0 %4333
  %v4335 = vsel %vm223, %v4313, 0.0
  %4336 = vadd.xlane.f32.xlu0 %v4335
  %v4337 = vpop.xlane.xlu0 %4336
  %v4338 = vmul.f32 %v4284, 0.03125
  %v4339 = vmul.f32 %v4287, 0.03125
  %v4340 = vmul.f32 %v4290, 0.03125
  %v4341 = vmul.f32 %v4293, 0.03125
  %v4342 = vmul.f32 %v4296, 0.03125
  %v4343 = vmul.f32 %v4299, 0.03125
  %v4344 = vmul.f32 %v4302, 0.03125
  %v4345 = vmul.f32 %v4305, 0.03125
  %v4346 = vmul.f32 %v4316, 0.03125
  %v4347 = vmul.f32 %v4319, 0.03125
  %v4348 = vmul.f32 %v4322, 0.03125
  %v4349 = vmul.f32 %v4325, 0.03125
  %v4350 = vmul.f32 %v4328, 0.03125
  %v4351 = vmul.f32 %v4331, 0.03125
  %v4352 = vmul.f32 %v4334, 0.03125
  %v4353 = vmul.f32 %v4337, 0.03125
  %v4354 = vmul.f32 %v4338, %v4338
  %v4355 = vmul.f32 %v4339, %v4339
  %v4356 = vmul.f32 %v4340, %v4340
  %v4357 = vmul.f32 %v4341, %v4341
  %v4358 = vmul.f32 %v4342, %v4342
  %v4359 = vmul.f32 %v4343, %v4343
  %v4360 = vmul.f32 %v4344, %v4344
  %v4361 = vmul.f32 %v4345, %v4345
  %v4362 = vsub.f32 %v4346, %v4354
  %v4363 = vsub.f32 %v4347, %v4355
  %v4364 = vsub.f32 %v4348, %v4356
  %v4365 = vsub.f32 %v4349, %v4357
  %v4366 = vsub.f32 %v4350, %v4358
  %v4367 = vsub.f32 %v4351, %v4359
  %v4368 = vsub.f32 %v4352, %v4360
  %v4369 = vsub.f32 %v4353, %v4361
  %v4370 = vmax.f32 %v4362, 0.0
  %v4371 = vmax.f32 %v4363, 0.0
  %v4372 = vmax.f32 %v4364, 0.0
  %v4373 = vmax.f32 %v4365, 0.0
  %v4374 = vmax.f32 %v4366, 0.0
  %v4375 = vmax.f32 %v4367, 0.0
  %v4376 = vmax.f32 %v4368, 0.0
  %v4377 = vmax.f32 %v4369, 0.0
  %v4378 = vsub.f32 %v4242, %v4338
  %v4379 = vsub.f32 %v4247, %v4339
  %v4380 = vsub.f32 %v4252, %v4340
  %v4381 = vsub.f32 %v4257, %v4341
  %v4382 = vsub.f32 %v4262, %v4342
  %v4383 = vsub.f32 %v4267, %v4343
  %v4384 = vsub.f32 %v4272, %v4344
  %v4385 = vsub.f32 %v4277, %v4345
  %v4386 = vadd.f32 %v4370, 1e-05
  %v4387 = vadd.f32 %v4371, 1e-05
  %v4388 = vadd.f32 %v4372, 1e-05
  %v4389 = vadd.f32 %v4373, 1e-05
  %v4390 = vadd.f32 %v4374, 1e-05
  %v4391 = vadd.f32 %v4375, 1e-05
  %v4392 = vadd.f32 %v4376, 1e-05
  %v4393 = vadd.f32 %v4377, 1e-05
  %v4394 = vrsqrt.pop %v4386
  %v4395 = vrsqrt.pop %v4387
  %v4396 = vrsqrt.pop %v4388
  %v4397 = vrsqrt.pop %v4389
  %v4398 = vrsqrt.pop %v4390
  %v4399 = vrsqrt.pop %v4391
  %v4400 = vrsqrt.pop %v4392
  %v4401 = vrsqrt.pop %v4393
  %v4402 = vmul.f32 %v4378, %v4394
  %v4403 = vmul.f32 %v4379, %v4395
  %v4404 = vmul.f32 %v4380, %v4396
  %v4405 = vmul.f32 %v4381, %v4397
  %v4406 = vmul.f32 %v4382, %v4398
  %v4407 = vmul.f32 %v4383, %v4399
  %v4408 = vmul.f32 %v4384, %v4400
  %v4409 = vmul.f32 %v4385, %v4401
  %v4410 = vlaneseq
  %v4411 = vshrl.u32 %v4410, 7
  %v4412 = vsub.s32 0, %v4411
  %v4413 = vrot.slane %v4280, %v4412
  %v4414 = vmul.f32 %v4402, %v4413
  %v4415 = vmul.f32 %v4403, %v4413
  %v4416 = vmul.f32 %v4404, %v4413
  %v4417 = vmul.f32 %v4405, %v4413
  %v4418 = vmul.f32 %v4406, %v4413
  %v4419 = vmul.f32 %v4407, %v4413
  %v4420 = vmul.f32 %v4408, %v4413
  %v4421 = vmul.f32 %v4409, %v4413
  %v4422 = vlaneseq
  %v4423 = vshrl.u32 %v4422, 7
  %v4424 = vsub.s32 0, %v4423
  %v4425 = vrot.slane %v4281, %v4424
  %v4426 = vadd.f32 %v4414, %v4425
  %v4427 = vadd.f32 %v4415, %v4425
  %v4428 = vadd.f32 %v4416, %v4425
  %v4429 = vadd.f32 %v4417, %v4425
  %v4430 = vadd.f32 %v4418, %v4425
  %v4431 = vadd.f32 %v4419, %v4425
  %v4432 = vadd.f32 %v4420, %v4425
  %v4433 = vadd.f32 %v4421, %v4425
  %v4434 = vld [vmem:[%s3] sm:$0xff]
  %v4435 = vld [vmem:[%s3 + $0x8] sm:$0xff]
  %v4436 = vld [vmem:[%s3 + $0x10] sm:$0xff]
  %v4437 = vld [vmem:[%s3 + $0x18] sm:$0xff]
  %v4439 = vsel %vm223, %v3576, 0
  %4441 = vmatprep.subr.mxu0 0.0
  %4442 = vmatpush1.msra.mxu0 %v4434
  %4443 = vmatprep.subr.mxu0 0.0
  %4444 = vmatpush1.msra.mxu0 %v4435
  %4445 = vmatprep.subr.mxu0 0.0
  %4446 = vmatpush1.msra.mxu0 %v4436
  %4447 = vmatprep.subr.mxu0 0.0
  %4448 = vmatpush1.msra.mxu0 %v4437
  %4449 = vmatprep.subr.mxu0 0.0
  %4450 = vmatpush1.msra.mxu0 0.0
  %4451 = vmatprep.subr.mxu0 0.0
  %4452 = vmatpush1.msra.mxu0 0.0
  %4453 = vmatprep.subr.mxu0 0.0
  %4454 = vmatpush1.msra.mxu0 0.0
  %4455 = vmatprep.subr.mxu0 0.0
  %4456 = vmatpush1.msra.mxu0 0.0
  %4457 = vmatprep.subr.mxu0 0.0
  %4458 = vmatpush1.msra.mxu0 0.0
  %4459 = vmatprep.subr.mxu0 0.0
  %4460 = vmatpush1.msra.mxu0 0.0
  %4461 = vmatprep.subr.mxu0 0.0
  %4462 = vmatpush1.msra.mxu0 0.0
  %4463 = vmatprep.subr.mxu0 0.0
  %4464 = vmatpush1.msra.mxu0 0.0
  %4465 = vmatprep.subr.mxu0 0.0
  %4466 = vmatpush1.msra.mxu0 0.0
  %4467 = vmatprep.subr.mxu0 0.0
  %4468 = vmatpush1.msra.mxu0 0.0
  %4469 = vmatprep.subr.mxu0 0.0
  %4470 = vmatpush1.msra.mxu0 0.0
  %4471 = vmatprep.subr.mxu0 0.0
  %4472 = vmatpush1.msra.mxu0 0.0
  %4473 = vmatprep.subr.mxu0 0.0
  %4474 = vmatpush1.msra.mxu0 0.0
  %4475 = vmatprep.subr.mxu0 0.0
  %4476 = vmatpush1.msra.mxu0 0.0
  %4477 = vmatprep.subr.mxu0 0.0
  %4478 = vmatpush1.msra.mxu0 0.0
  %4479 = vmatprep.subr.mxu0 0.0
  %4480 = vmatpush1.msra.mxu0 0.0
  %4481 = vmatprep.subr.mxu0 0.0
  %4482 = vmatpush1.msra.mxu0 0.0
  %4483 = vmatprep.subr.mxu0 0.0
  %4484 = vmatpush1.msra.mxu0 0.0
  %4485 = vmatprep.subr.mxu0 0.0
  %4486 = vmatpush1.msra.mxu0 0.0
  %4487 = vmatprep.subr.mxu0 0.0
  %4488 = vmatpush1.msra.mxu0 0.0
  %4489 = vmatprep.subr.mxu0 0.0
  %4490 = vmatpush1.msra.mxu0 0.0
  %4491 = vmatprep.subr.mxu0 0.0
  %4492 = vmatpush1.msra.mxu0 0.0
  %4493 = vmatprep.subr.mxu0 0.0
  %4494 = vmatpush1.msra.mxu0 0.0
  %4495 = vmatprep.subr.mxu0 0.0
  %4496 = vmatpush1.msra.mxu0 0.0
  %4497 = vmatprep.subr.mxu0 0.0
  %4498 = vmatpush1.msra.mxu0 0.0
  %4499 = vmatprep.subr.mxu0 0.0
  %4500 = vmatpush1.msra.mxu0 0.0
  %4501 = vmatprep.subr.mxu0 0.0
  %4502 = vmatpush1.msra.mxu0 0.0
  %4503 = vmatprep.subr.mxu0 0.0
  %4504 = vmatpush1.msra.mxu0 0.0
  %4505 = vmatprep.mubr.f32.mxu0 0.0
  %4506 = vmatmul.mubr.f32.gmra.mrb[0].mxu0 %v4439
  %v4507 = vpop.f32.mrb[0].mxu0
  %v4508 = vadd.f32 0.0, %v4507
  %v4509 = vpop.f32.mrb[0].mxu0
  %4510 = vdwg.mxu0
  %v4511 = vld [vmem:[%s2 + $0x98] sm:$0xff]
  %v4512 = vld [vmem:[%s2 + $0xa0] sm:$0xff]
  %v4513 = vld [vmem:[%s2 + $0xa8] sm:$0xff]
  %v4514 = vld [vmem:[%s2 + $0xb0] sm:$0xff]
  %v4516 = vsel %vm223, %v4426, 0
  %v4519 = vsel %vm223, %v4427, 0
  %v4522 = vsel %vm223, %v4428, 0
  %v4525 = vsel %vm223, %v4429, 0
  %v4528 = vsel %vm223, %v4430, 0
  %v4531 = vsel %vm223, %v4431, 0
  %v4534 = vsel %vm223, %v4432, 0
  %v4537 = vsel %vm223, %v4433, 0
  %4539 = vmatprep.subr.mxu0 0.0
  %4540 = vmatpush1.msra.mxu0 %v4511
  %4541 = vmatprep.subr.mxu0 0.0
  %4542 = vmatpush1.msra.mxu0 %v4512
  %4543 = vmatprep.subr.mxu0 0.0
  %4544 = vmatpush1.msra.mxu0 %v4513
  %4545 = vmatprep.subr.mxu0 0.0
  %4546 = vmatpush1.msra.mxu0 %v4514
  %4547 = vmatprep.subr.mxu0 0.0
  %4548 = vmatpush1.msra.mxu0 0.0
  %4549 = vmatprep.subr.mxu0 0.0
  %4550 = vmatpush1.msra.mxu0 0.0
  %4551 = vmatprep.subr.mxu0 0.0
  %4552 = vmatpush1.msra.mxu0 0.0
  %4553 = vmatprep.subr.mxu0 0.0
  %4554 = vmatpush1.msra.mxu0 0.0
  %4555 = vmatprep.subr.mxu0 0.0
  %4556 = vmatpush1.msra.mxu0 0.0
  %4557 = vmatprep.subr.mxu0 0.0
  %4558 = vmatpush1.msra.mxu0 0.0
  %4559 = vmatprep.subr.mxu0 0.0
  %4560 = vmatpush1.msra.mxu0 0.0
  %4561 = vmatprep.subr.mxu0 0.0
  %4562 = vmatpush1.msra.mxu0 0.0
  %4563 = vmatprep.subr.mxu0 0.0
  %4564 = vmatpush1.msra.mxu0 0.0
  %4565 = vmatprep.subr.mxu0 0.0
  %4566 = vmatpush1.msra.mxu0 0.0
  %4567 = vmatprep.subr.mxu0 0.0
  %4568 = vmatpush1.msra.mxu0 0.0
  %4569 = vmatprep.subr.mxu0 0.0
  %4570 = vmatpush1.msra.mxu0 0.0
  %4571 = vmatprep.subr.mxu0 0.0
  %4572 = vmatpush1.msra.mxu0 0.0
  %4573 = vmatprep.subr.mxu0 0.0
  %4574 = vmatpush1.msra.mxu0 0.0
  %4575 = vmatprep.subr.mxu0 0.0
  %4576 = vmatpush1.msra.mxu0 0.0
  %4577 = vmatprep.subr.mxu0 0.0
  %4578 = vmatpush1.msra.mxu0 0.0
  %4579 = vmatprep.subr.mxu0 0.0
  %4580 = vmatpush1.msra.mxu0 0.0
  %4581 = vmatprep.subr.mxu0 0.0
  %4582 = vmatpush1.msra.mxu0 0.0
  %4583 = vmatprep.subr.mxu0 0.0
  %4584 = vmatpush1.msra.mxu0 0.0
  %4585 = vmatprep.subr.mxu0 0.0
  %4586 = vmatpush1.msra.mxu0 0.0
  %4587 = vmatprep.subr.mxu0 0.0
  %4588 = vmatpush1.msra.mxu0 0.0
  %4589 = vmatprep.subr.mxu0 0.0
  %4590 = vmatpush1.msra.mxu0 0.0
  %4591 = vmatprep.subr.mxu0 0.0
  %4592 = vmatpush1.msra.mxu0 0.0
  %4593 = vmatprep.subr.mxu0 0.0
  %4594 = vmatpush1.msra.mxu0 0.0
  %4595 = vmatprep.subr.mxu0 0.0
  %4596 = vmatpush1.msra.mxu0 0.0
  %4597 = vmatprep.subr.mxu0 0.0
  %4598 = vmatpush1.msra.mxu0 0.0
  %4599 = vmatprep.subr.mxu0 0.0
  %4600 = vmatpush1.msra.mxu0 0.0
  %4601 = vmatprep.subr.mxu0 0.0
  %4602 = vmatpush1.msra.mxu0 0.0
  %4603 = vmatprep.mubr.f32.mxu0 0.0
  %4604 = vmatmul.mubr.f32.gmra.mrb[0].mxu0 %v4516
  %v4605 = vpop.f32.mrb[0].mxu0
  %v4606 = vadd.f32 0.0, %v4605
  %v4607 = vpop.f32.mrb[0].mxu0
  %4608 = vmatprep.mubr.f32.mxu0 0.0
  %4609 = vmatmul.mubr.f32.gmra.mrb[0].mxu0 %v4519
  %v4610 = vpop.f32.mrb[0].mxu0
  %v4611 = vadd.f32 0.0, %v4610
  %v4612 = vpop.f32.mrb[0].mxu0
  %4613 = vmatprep.mubr.f32.mxu0 0.0
  %4614 = vmatmul.mubr.f32.gmra.mrb[0].mxu0 %v4522
  %v4615 = vpop.f32.mrb[0].mxu0
  %v4616 = vadd.f32 0.0, %v4615
  %v4617 = vpop.f32.mrb[0].mxu0
  %4618 = vmatprep.mubr.f32.mxu0 0.0
  %4619 = vmatmul.mubr.f32.gmra.mrb[0].mxu0 %v4525
  %v4620 = vpop.f32.mrb[0].mxu0
  %v4621 = vadd.f32 0.0, %v4620
  %v4622 = vpop.f32.mrb[0].mxu0
  %4623 = vmatprep.mubr.f32.mxu0 0.0
  %4624 = vmatmul.mubr.f32.gmra.mrb[0].mxu0 %v4528
  %v4625 = vpop.f32.mrb[0].mxu0
  %v4626 = vadd.f32 0.0, %v4625
  %v4627 = vpop.f32.mrb[0].mxu0
  %4628 = vmatprep.mubr.f32.mxu0 0.0
  %4629 = vmatmul.mubr.f32.gmra.mrb[0].mxu0 %v4531
  %v4630 = vpop.f32.mrb[0].mxu0
  %v4631 = vadd.f32 0.0, %v4630
  %v4632 = vpop.f32.mrb[0].mxu0
  %4633 = vmatprep.mubr.f32.mxu0 0.0
  %4634 = vmatmul.mubr.f32.gmra.mrb[0].mxu0 %v4534
  %v4635 = vpop.f32.mrb[0].mxu0
  %v4636 = vadd.f32 0.0, %v4635
  %v4637 = vpop.f32.mrb[0].mxu0
  %4638 = vmatprep.mubr.f32.mxu0 0.0
  %4639 = vmatmul.mubr.f32.gmra.mrb[0].mxu0 %v4537
  %v4640 = vpop.f32.mrb[0].mxu0
  %v4641 = vadd.f32 0.0, %v4640
  %v4642 = vpop.f32.mrb[0].mxu0
  %4643 = vdwg.mxu0
  %v4645 = vcombine.high %v4508, %v4508
  %v4647 = vunpack.c.l.s4 1966171168
  %v4648 = vunpack.c.0.s8 %v4647
  %v4649 = vlaneseq
  %v4650 = vshrl.u32 %v4649, 7
  %v4651 = vsub.s32 %v4648, %v4650
  %v4652 = vrot.slane %v4508, %v4651
  %v4654 = vunpack.c.l.s4 1966171168
  %v4655 = vunpack.c.0.s8 %v4654
  %v4656 = vlaneseq
  %v4657 = vshrl.u32 %v4656, 7
  %v4658 = vsub.s32 %v4655, %v4657
  %v4659 = vrot.slane %v4645, %v4658
  %v4660 = vcombine.high %v4652, %v4652
  %v4661 = vcombine.high %v4659, %v4659
  %v4663 = vunpack.c.l.s4 1966171168
  %v4664 = vunpack.c.0.s8 %v4663
  %v4665 = vlaneseq
  %v4666 = vshrl.u32 %v4665, 7
  %v4667 = vsub.s32 %v4664, %v4666
  %v4668 = vrot.slane %v4652, %v4667
  %v4670 = vunpack.c.l.s4 1966171168
  %v4671 = vunpack.c.0.s8 %v4670
  %v4672 = vlaneseq
  %v4673 = vshrl.u32 %v4672, 7
  %v4674 = vsub.s32 %v4671, %v4673
  %v4675 = vrot.slane %v4659, %v4674
  %v4677 = vunpack.c.l.s4 1966171168
  %v4678 = vunpack.c.0.s8 %v4677
  %v4679 = vlaneseq
  %v4680 = vshrl.u32 %v4679, 7
  %v4681 = vsub.s32 %v4678, %v4680
  %v4682 = vrot.slane %v4660, %v4681
  %v4684 = vunpack.c.l.s4 1966171168
  %v4685 = vunpack.c.0.s8 %v4684
  %v4686 = vlaneseq
  %v4687 = vshrl.u32 %v4686, 7
  %v4688 = vsub.s32 %v4685, %v4687
  %v4689 = vrot.slane %v4661, %v4688
  %v4690 = vcombine.high %v4668, %v4668
  %v4691 = vcombine.high %v4675, %v4675
  %v4692 = vcombine.high %v4682, %v4682
  %v4693 = vcombine.high %v4689, %v4689
  %v4694 = vlaneseq
  %v4695 = vshrl.u32 %v4694, 7
  %v4696 = vsub.s32 0, %v4695
  %v4697 = vrot.slane %v4668, %v4696
  %v4698 = vlaneseq
  %v4699 = vshrl.u32 %v4698, 7
  %v4700 = vsub.s32 0, %v4699
  %v4701 = vrot.slane %v4682, %v4700
  %v4702 = vlaneseq
  %v4703 = vshrl.u32 %v4702, 7
  %v4704 = vsub.s32 0, %v4703
  %v4705 = vrot.slane %v4690, %v4704
  %v4706 = vlaneseq
  %v4707 = vshrl.u32 %v4706, 7
  %v4708 = vsub.s32 0, %v4707
  %v4709 = vrot.slane %v4692, %v4708
  %v4710 = vlaneseq
  %v4711 = vshrl.u32 %v4710, 7
  %v4712 = vsub.s32 0, %v4711
  %v4713 = vrot.slane %v4675, %v4712
  %v4714 = vlaneseq
  %v4715 = vshrl.u32 %v4714, 7
  %v4716 = vsub.s32 0, %v4715
  %v4717 = vrot.slane %v4689, %v4716
  %v4718 = vlaneseq
  %v4719 = vshrl.u32 %v4718, 7
  %v4720 = vsub.s32 0, %v4719
  %v4721 = vrot.slane %v4691, %v4720
  %v4722 = vlaneseq
  %v4723 = vshrl.u32 %v4722, 7
  %v4724 = vsub.s32 0, %v4723
  %v4725 = vrot.slane %v4693, %v4724
  %v4734 = vadd.f32 %v4606, %v4697
  %v4735 = vadd.f32 %v4611, %v4701
  %v4736 = vadd.f32 %v4616, %v4705
  %v4737 = vadd.f32 %v4621, %v4709
  %v4738 = vadd.f32 %v4626, %v4713
  %v4739 = vadd.f32 %v4631, %v4717
  %v4740 = vadd.f32 %v4636, %v4721
  %v4741 = vadd.f32 %v4641, %v4725
  %4742 = vrot.lane.b32.xlu0 %v4508, 96
  %v4743 = vpop.permute.xlu0 %4742
  %v4745 = vadd.f32 %v4734, %v4743
  %v4746 = vadd.f32 %v4735, %v4743
  %v4747 = vadd.f32 %v4736, %v4743
  %v4748 = vadd.f32 %v4737, %v4743
  %v4749 = vadd.f32 %v4738, %v4743
  %v4750 = vadd.f32 %v4739, %v4743
  %v4751 = vadd.f32 %v4740, %v4743
  %v4752 = vadd.f32 %v4741, %v4743
  %v4753 = vld [vmem:[%s4 + $0xa] sm:$0x1]
  %v4754 = vlaneseq
  %v4755 = vshrl.u32 %v4754, 7
  %v4756 = vsub.s32 0, %v4755
  %v4757 = vrot.slane %v4753, %v4756
  %v4758 = vadd.f32 %v4745, %v4757
  %v4759 = vadd.f32 %v4746, %v4757
  %v4760 = vadd.f32 %v4747, %v4757
  %v4761 = vadd.f32 %v4748, %v4757
  %v4762 = vadd.f32 %v4749, %v4757
  %v4763 = vadd.f32 %v4750, %v4757
  %v4764 = vadd.f32 %v4751, %v4757
  %v4765 = vadd.f32 %v4752, %v4757
  %v4766 = vmax.f32 %v4758, 0.0
  %v4767 = vmax.f32 %v4759, 0.0
  %v4768 = vmax.f32 %v4760, 0.0
  %v4769 = vmax.f32 %v4761, 0.0
  %v4770 = vmax.f32 %v4762, 0.0
  %v4771 = vmax.f32 %v4763, 0.0
  %v4772 = vmax.f32 %v4764, 0.0
  %v4773 = vmax.f32 %v4765, 0.0
  %v4774 = vld [vmem:[%s2 + $0xb8] sm:$0xff]
  %v4775 = vld [vmem:[%s2 + $0xc0] sm:$0xff]
  %v4776 = vld [vmem:[%s2 + $0xc8] sm:$0xff]
  %v4777 = vld [vmem:[%s2 + $0xd0] sm:$0xff]
  %v4778 = vld [vmem:[%s4 + $0xb] sm:$0x1]
  %v4779 = vlaneseq
  %v4780 = vshrl.u32 %v4779, 7
  %v4781 = vsub.s32 0, %v4780
  %v4782 = vrot.slane %v4778, %v4781
  %v4784 = vsel %vm223, %v4766, 0
  %v4787 = vsel %vm223, %v4767, 0
  %v4790 = vsel %vm223, %v4768, 0
  %v4793 = vsel %vm223, %v4769, 0
  %v4796 = vsel %vm223, %v4770, 0
  %v4799 = vsel %vm223, %v4771, 0
  %v4802 = vsel %vm223, %v4772, 0
  %v4805 = vsel %vm223, %v4773, 0
  %4807 = vmatprep.subr.mxu0 0.0
  %4808 = vmatpush1.msra.mxu0 %v4774
  %4809 = vmatprep.subr.mxu0 0.0
  %4810 = vmatpush1.msra.mxu0 %v4775
  %4811 = vmatprep.subr.mxu0 0.0
  %4812 = vmatpush1.msra.mxu0 %v4776
  %4813 = vmatprep.subr.mxu0 0.0
  %4814 = vmatpush1.msra.mxu0 %v4777
  %4815 = vmatprep.subr.mxu0 0.0
  %4816 = vmatpush1.msra.mxu0 0.0
  %4817 = vmatprep.subr.mxu0 0.0
  %4818 = vmatpush1.msra.mxu0 0.0
  %4819 = vmatprep.subr.mxu0 0.0
  %4820 = vmatpush1.msra.mxu0 0.0
  %4821 = vmatprep.subr.mxu0 0.0
  %4822 = vmatpush1.msra.mxu0 0.0
  %4823 = vmatprep.subr.mxu0 0.0
  %4824 = vmatpush1.msra.mxu0 0.0
  %4825 = vmatprep.subr.mxu0 0.0
  %4826 = vmatpush1.msra.mxu0 0.0
  %4827 = vmatprep.subr.mxu0 0.0
  %4828 = vmatpush1.msra.mxu0 0.0
  %4829 = vmatprep.subr.mxu0 0.0
  %4830 = vmatpush1.msra.mxu0 0.0
  %4831 = vmatprep.subr.mxu0 0.0
  %4832 = vmatpush1.msra.mxu0 0.0
  %4833 = vmatprep.subr.mxu0 0.0
  %4834 = vmatpush1.msra.mxu0 0.0
  %4835 = vmatprep.subr.mxu0 0.0
  %4836 = vmatpush1.msra.mxu0 0.0
  %4837 = vmatprep.subr.mxu0 0.0
  %4838 = vmatpush1.msra.mxu0 0.0
  %4839 = vmatprep.subr.mxu0 0.0
  %4840 = vmatpush1.msra.mxu0 0.0
  %4841 = vmatprep.subr.mxu0 0.0
  %4842 = vmatpush1.msra.mxu0 0.0
  %4843 = vmatprep.subr.mxu0 0.0
  %4844 = vmatpush1.msra.mxu0 0.0
  %4845 = vmatprep.subr.mxu0 0.0
  %4846 = vmatpush1.msra.mxu0 0.0
  %4847 = vmatprep.subr.mxu0 0.0
  %4848 = vmatpush1.msra.mxu0 0.0
  %4849 = vmatprep.subr.mxu0 0.0
  %4850 = vmatpush1.msra.mxu0 0.0
  %4851 = vmatprep.subr.mxu0 0.0
  %4852 = vmatpush1.msra.mxu0 0.0
  %4853 = vmatprep.subr.mxu0 0.0
  %4854 = vmatpush1.msra.mxu0 0.0
  %4855 = vmatprep.subr.mxu0 0.0
  %4856 = vmatpush1.msra.mxu0 0.0
  %4857 = vmatprep.subr.mxu0 0.0
  %4858 = vmatpush1.msra.mxu0 0.0
  %4859 = vmatprep.subr.mxu0 0.0
  %4860 = vmatpush1.msra.mxu0 0.0
  %4861 = vmatprep.subr.mxu0 0.0
  %4862 = vmatpush1.msra.mxu0 0.0
  %4863 = vmatprep.subr.mxu0 0.0
  %4864 = vmatpush1.msra.mxu0 0.0
  %4865 = vmatprep.subr.mxu0 0.0
  %4866 = vmatpush1.msra.mxu0 0.0
  %4867 = vmatprep.subr.mxu0 0.0
  %4868 = vmatpush1.msra.mxu0 0.0
  %4869 = vmatprep.subr.mxu0 0.0
  %4870 = vmatpush1.msra.mxu0 0.0
  %4871 = vmatprep.mubr.f32.mxu0 0.0
  %4872 = vmatmul.mubr.f32.gmra.mrb[0].mxu0 %v4784
  %v4873 = vpop.f32.mrb[0].mxu0
  %v4874 = vadd.f32 %v4782, %v4873
  %v4875 = vpop.f32.mrb[0].mxu0
  %4876 = vmatprep.mubr.f32.mxu0 0.0
  %4877 = vmatmul.mubr.f32.gmra.mrb[0].mxu0 %v4787
  %v4878 = vpop.f32.mrb[0].mxu0
  %v4879 = vadd.f32 %v4782, %v4878
  %v4880 = vpop.f32.mrb[0].mxu0
  %4881 = vmatprep.mubr.f32.mxu0 0.0
  %4882 = vmatmul.mubr.f32.gmra.mrb[0].mxu0 %v4790
  %v4883 = vpop.f32.mrb[0].mxu0
  %v4884 = vadd.f32 %v4782, %v4883
  %v4885 = vpop.f32.mrb[0].mxu0
  %4886 = vmatprep.mubr.f32.mxu0 0.0
  %4887 = vmatmul.mubr.f32.gmra.mrb[0].mxu0 %v4793
  %v4888 = vpop.f32.mrb[0].mxu0
  %v4889 = vadd.f32 %v4782, %v4888
  %v4890 = vpop.f32.mrb[0].mxu0
  %4891 = vmatprep.mubr.f32.mxu0 0.0
  %4892 = vmatmul.mubr.f32.gmra.mrb[0].mxu0 %v4796
  %v4893 = vpop.f32.mrb[0].mxu0
  %v4894 = vadd.f32 %v4782, %v4893
  %v4895 = vpop.f32.mrb[0].mxu0
  %4896 = vmatprep.mubr.f32.mxu0 0.0
  %4897 = vmatmul.mubr.f32.gmra.mrb[0].mxu0 %v4799
  %v4898 = vpop.f32.mrb[0].mxu0
  %v4899 = vadd.f32 %v4782, %v4898
  %v4900 = vpop.f32.mrb[0].mxu0
  %4901 = vmatprep.mubr.f32.mxu0 0.0
  %4902 = vmatmul.mubr.f32.gmra.mrb[0].mxu0 %v4802
  %v4903 = vpop.f32.mrb[0].mxu0
  %v4904 = vadd.f32 %v4782, %v4903
  %v4905 = vpop.f32.mrb[0].mxu0
  %4906 = vmatprep.mubr.f32.mxu0 0.0
  %4907 = vmatmul.mubr.f32.gmra.mrb[0].mxu0 %v4805
  %v4908 = vpop.f32.mrb[0].mxu0
  %v4909 = vadd.f32 %v4782, %v4908
  %v4910 = vpop.f32.mrb[0].mxu0
  %4911 = vdwg.mxu0
  %v4912 = vld [vmem:[%s4 + $0xc] sm:$0x1]
  %v4913 = vld [vmem:[%s4 + $0xd] sm:$0x1]
  %v4914 = vsel %vm223, %v4874, 0.0
  %4915 = vadd.xlane.f32.xlu0 %v4914
  %v4916 = vpop.xlane.xlu0 %4915
  %v4917 = vsel %vm223, %v4879, 0.0
  %4918 = vadd.xlane.f32.xlu0 %v4917
  %v4919 = vpop.xlane.xlu0 %4918
  %v4920 = vsel %vm223, %v4884, 0.0
  %4921 = vadd.xlane.f32.xlu0 %v4920
  %v4922 = vpop.xlane.xlu0 %4921
  %v4923 = vsel %vm223, %v4889, 0.0
  %4924 = vadd.xlane.f32.xlu0 %v4923
  %v4925 = vpop.xlane.xlu0 %4924
  %v4926 = vsel %vm223, %v4894, 0.0
  %4927 = vadd.xlane.f32.xlu0 %v4926
  %v4928 = vpop.xlane.xlu0 %4927
  %v4929 = vsel %vm223, %v4899, 0.0
  %4930 = vadd.xlane.f32.xlu0 %v4929
  %v4931 = vpop.xlane.xlu0 %4930
  %v4932 = vsel %vm223, %v4904, 0.0
  %4933 = vadd.xlane.f32.xlu0 %v4932
  %v4934 = vpop.xlane.xlu0 %4933
  %v4935 = vsel %vm223, %v4909, 0.0
  %4936 = vadd.xlane.f32.xlu0 %v4935
  %v4937 = vpop.xlane.xlu0 %4936
  %v4938 = vmul.f32 %v4874, %v4874
  %v4939 = vmul.f32 %v4879, %v4879
  %v4940 = vmul.f32 %v4884, %v4884
  %v4941 = vmul.f32 %v4889, %v4889
  %v4942 = vmul.f32 %v4894, %v4894
  %v4943 = vmul.f32 %v4899, %v4899
  %v4944 = vmul.f32 %v4904, %v4904
  %v4945 = vmul.f32 %v4909, %v4909
  %v4946 = vsel %vm223, %v4938, 0.0
  %4947 = vadd.xlane.f32.xlu0 %v4946
  %v4948 = vpop.xlane.xlu0 %4947
  %v4949 = vsel %vm223, %v4939, 0.0
  %4950 = vadd.xlane.f32.xlu0 %v4949
  %v4951 = vpop.xlane.xlu0 %4950
  %v4952 = vsel %vm223, %v4940, 0.0
  %4953 = vadd.xlane.f32.xlu0 %v4952
  %v4954 = vpop.xlane.xlu0 %4953
  %v4955 = vsel %vm223, %v4941, 0.0
  %4956 = vadd.xlane.f32.xlu0 %v4955
  %v4957 = vpop.xlane.xlu0 %4956
  %v4958 = vsel %vm223, %v4942, 0.0
  %4959 = vadd.xlane.f32.xlu0 %v4958
  %v4960 = vpop.xlane.xlu0 %4959
  %v4961 = vsel %vm223, %v4943, 0.0
  %4962 = vadd.xlane.f32.xlu0 %v4961
  %v4963 = vpop.xlane.xlu0 %4962
  %v4964 = vsel %vm223, %v4944, 0.0
  %4965 = vadd.xlane.f32.xlu0 %v4964
  %v4966 = vpop.xlane.xlu0 %4965
  %v4967 = vsel %vm223, %v4945, 0.0
  %4968 = vadd.xlane.f32.xlu0 %v4967
  %v4969 = vpop.xlane.xlu0 %4968
  %v4970 = vmul.f32 %v4916, 0.03125
  %v4971 = vmul.f32 %v4919, 0.03125
  %v4972 = vmul.f32 %v4922, 0.03125
  %v4973 = vmul.f32 %v4925, 0.03125
  %v4974 = vmul.f32 %v4928, 0.03125
  %v4975 = vmul.f32 %v4931, 0.03125
  %v4976 = vmul.f32 %v4934, 0.03125
  %v4977 = vmul.f32 %v4937, 0.03125
  %v4978 = vmul.f32 %v4948, 0.03125
  %v4979 = vmul.f32 %v4951, 0.03125
  %v4980 = vmul.f32 %v4954, 0.03125
  %v4981 = vmul.f32 %v4957, 0.03125
  %v4982 = vmul.f32 %v4960, 0.03125
  %v4983 = vmul.f32 %v4963, 0.03125
  %v4984 = vmul.f32 %v4966, 0.03125
  %v4985 = vmul.f32 %v4969, 0.03125
  %v4986 = vmul.f32 %v4970, %v4970
  %v4987 = vmul.f32 %v4971, %v4971
  %v4988 = vmul.f32 %v4972, %v4972
  %v4989 = vmul.f32 %v4973, %v4973
  %v4990 = vmul.f32 %v4974, %v4974
  %v4991 = vmul.f32 %v4975, %v4975
  %v4992 = vmul.f32 %v4976, %v4976
  %v4993 = vmul.f32 %v4977, %v4977
  %v4994 = vsub.f32 %v4978, %v4986
  %v4995 = vsub.f32 %v4979, %v4987
  %v4996 = vsub.f32 %v4980, %v4988
  %v4997 = vsub.f32 %v4981, %v4989
  %v4998 = vsub.f32 %v4982, %v4990
  %v4999 = vsub.f32 %v4983, %v4991
  %v5000 = vsub.f32 %v4984, %v4992
  %v5001 = vsub.f32 %v4985, %v4993
  %v5002 = vmax.f32 %v4994, 0.0
  %v5003 = vmax.f32 %v4995, 0.0
  %v5004 = vmax.f32 %v4996, 0.0
  %v5005 = vmax.f32 %v4997, 0.0
  %v5006 = vmax.f32 %v4998, 0.0
  %v5007 = vmax.f32 %v4999, 0.0
  %v5008 = vmax.f32 %v5000, 0.0
  %v5009 = vmax.f32 %v5001, 0.0
  %v5010 = vsub.f32 %v4874, %v4970
  %v5011 = vsub.f32 %v4879, %v4971
  %v5012 = vsub.f32 %v4884, %v4972
  %v5013 = vsub.f32 %v4889, %v4973
  %v5014 = vsub.f32 %v4894, %v4974
  %v5015 = vsub.f32 %v4899, %v4975
  %v5016 = vsub.f32 %v4904, %v4976
  %v5017 = vsub.f32 %v4909, %v4977
  %v5018 = vadd.f32 %v5002, 1e-05
  %v5019 = vadd.f32 %v5003, 1e-05
  %v5020 = vadd.f32 %v5004, 1e-05
  %v5021 = vadd.f32 %v5005, 1e-05
  %v5022 = vadd.f32 %v5006, 1e-05
  %v5023 = vadd.f32 %v5007, 1e-05
  %v5024 = vadd.f32 %v5008, 1e-05
  %v5025 = vadd.f32 %v5009, 1e-05
  %v5026 = vrsqrt.pop %v5018
  %v5027 = vrsqrt.pop %v5019
  %v5028 = vrsqrt.pop %v5020
  %v5029 = vrsqrt.pop %v5021
  %v5030 = vrsqrt.pop %v5022
  %v5031 = vrsqrt.pop %v5023
  %v5032 = vrsqrt.pop %v5024
  %v5033 = vrsqrt.pop %v5025
  %v5034 = vmul.f32 %v5010, %v5026
  %v5035 = vmul.f32 %v5011, %v5027
  %v5036 = vmul.f32 %v5012, %v5028
  %v5037 = vmul.f32 %v5013, %v5029
  %v5038 = vmul.f32 %v5014, %v5030
  %v5039 = vmul.f32 %v5015, %v5031
  %v5040 = vmul.f32 %v5016, %v5032
  %v5041 = vmul.f32 %v5017, %v5033
  %v5042 = vlaneseq
  %v5043 = vshrl.u32 %v5042, 7
  %v5044 = vsub.s32 0, %v5043
  %v5045 = vrot.slane %v4912, %v5044
  %v5046 = vmul.f32 %v5034, %v5045
  %v5047 = vmul.f32 %v5035, %v5045
  %v5048 = vmul.f32 %v5036, %v5045
  %v5049 = vmul.f32 %v5037, %v5045
  %v5050 = vmul.f32 %v5038, %v5045
  %v5051 = vmul.f32 %v5039, %v5045
  %v5052 = vmul.f32 %v5040, %v5045
  %v5053 = vmul.f32 %v5041, %v5045
  %v5054 = vlaneseq
  %v5055 = vshrl.u32 %v5054, 7
  %v5056 = vsub.s32 0, %v5055
  %v5057 = vrot.slane %v4913, %v5056
  %v5058 = vadd.f32 %v5046, %v5057
  %v5059 = vadd.f32 %v5047, %v5057
  %v5060 = vadd.f32 %v5048, %v5057
  %v5061 = vadd.f32 %v5049, %v5057
  %v5062 = vadd.f32 %v5050, %v5057
  %v5063 = vadd.f32 %v5051, %v5057
  %v5064 = vadd.f32 %v5052, %v5057
  %v5065 = vadd.f32 %v5053, %v5057
  %5067 = vset.pattern.permute.xlu0 0
  %5068 = vperm.xlu0 %5067, %v3802
  %v5069 = vpop.permute.xlu0 %5068
  %5072 = vset.pattern.permute.xlu0 0
  %5073 = vperm.xlu0 %5072, %v3803
  %v5074 = vpop.permute.xlu0 %5073
  %5077 = vset.pattern.permute.xlu0 0
  %5078 = vperm.xlu0 %5077, %v3804
  %v5079 = vpop.permute.xlu0 %5078
  %5082 = vset.pattern.permute.xlu0 0
  %5083 = vperm.xlu0 %5082, %v3805
  %v5084 = vpop.permute.xlu0 %5083
  %5087 = vset.pattern.permute.xlu0 0
  %5088 = vperm.xlu0 %5087, %v3806
  %v5089 = vpop.permute.xlu0 %5088
  %5092 = vset.pattern.permute.xlu0 0
  %5093 = vperm.xlu0 %5092, %v3807
  %v5094 = vpop.permute.xlu0 %5093
  %5097 = vset.pattern.permute.xlu0 0
  %5098 = vperm.xlu0 %5097, %v3808
  %v5099 = vpop.permute.xlu0 %5098
  %5102 = vset.pattern.permute.xlu0 0
  %5103 = vperm.xlu0 %5102, %v3809
  %v5104 = vpop.permute.xlu0 %5103
  %v5106 = vmul.f32 %v5069, %v5058
  %v5107 = vmul.f32 %v5074, %v5059
  %v5108 = vmul.f32 %v5079, %v5060
  %v5109 = vmul.f32 %v5084, %v5061
  %v5110 = vmul.f32 %v5089, %v5062
  %v5111 = vmul.f32 %v5094, %v5063
  %v5112 = vmul.f32 %v5099, %v5064
  %v5113 = vmul.f32 %v5104, %v5065
  %v5114 = vadd.f32 %v5106, %v5107
  %v5115 = vadd.f32 %v5108, %v5109
  %v5116 = vadd.f32 %v5110, %v5111
  %v5117 = vadd.f32 %v5112, %v5113
  %v5118 = vadd.f32 %v5114, %v5115
  %v5119 = vadd.f32 %v5116, %v5117
  %v5120 = vadd.f32 %v5118, %v5119
  %5122 = vrot.lane.b32.xlu0 %v5120, 32
  %v5123 = vpop.permute.xlu0 %5122
  %v5125 = vsel %vm223, %v3576, %v5123
  %v5126 = vld [vmem:[%s2 + $0xd8] sm:$0xff]
  %v5127 = vld [vmem:[%s2 + $0xe0] sm:$0xff]
  %v5128 = vld [vmem:[%s2 + $0xe8] sm:$0xff]
  %v5129 = vld [vmem:[%s2 + $0xf0] sm:$0xff]
  %v5130 = vld [vmem:[%s2 + $0xf8] sm:$0xff]
  %v5131 = vld [vmem:[%s2 + $0x100] sm:$0xff]
  %v5132 = vld [vmem:[%s2 + $0x108] sm:$0xff]
  %v5133 = vld [vmem:[%s2 + $0x110] sm:$0xff]
  %v5134 = vld [vmem:[%s4 + $0xe] sm:$0x1]
  %v5135 = vlaneseq
  %v5136 = vshrl.u32 %v5135, 7
  %v5137 = vsub.s32 0, %v5136
  %v5138 = vrot.slane %v5134, %v5137
  %v5140 = vsel %vm1972, %v5125, 0
  %5142 = vmatprep.subr.mxu0 0.0
  %5143 = vmatpush1.msra.mxu0 %v5126
  %5144 = vmatprep.subr.mxu0 0.0
  %5145 = vmatpush1.msra.mxu0 %v5127
  %5146 = vmatprep.subr.mxu0 0.0
  %5147 = vmatpush1.msra.mxu0 %v5128
  %5148 = vmatprep.subr.mxu0 0.0
  %5149 = vmatpush1.msra.mxu0 %v5129
  %5150 = vmatprep.subr.mxu0 0.0
  %5151 = vmatpush1.msra.mxu0 %v5130
  %5152 = vmatprep.subr.mxu0 0.0
  %5153 = vmatpush1.msra.mxu0 %v5131
  %5154 = vmatprep.subr.mxu0 0.0
  %5155 = vmatpush1.msra.mxu0 %v5132
  %5156 = vmatprep.subr.mxu0 0.0
  %5157 = vmatpush1.msra.mxu0 %v5133
  %5158 = vmatprep.subr.mxu0 0.0
  %5159 = vmatpush1.msra.mxu0 0.0
  %5160 = vmatprep.subr.mxu0 0.0
  %5161 = vmatpush1.msra.mxu0 0.0
  %5162 = vmatprep.subr.mxu0 0.0
  %5163 = vmatpush1.msra.mxu0 0.0
  %5164 = vmatprep.subr.mxu0 0.0
  %5165 = vmatpush1.msra.mxu0 0.0
  %5166 = vmatprep.subr.mxu0 0.0
  %5167 = vmatpush1.msra.mxu0 0.0
  %5168 = vmatprep.subr.mxu0 0.0
  %5169 = vmatpush1.msra.mxu0 0.0
  %5170 = vmatprep.subr.mxu0 0.0
  %5171 = vmatpush1.msra.mxu0 0.0
  %5172 = vmatprep.subr.mxu0 0.0
  %5173 = vmatpush1.msra.mxu0 0.0
  %5174 = vmatprep.subr.mxu0 0.0
  %5175 = vmatpush1.msra.mxu0 0.0
  %5176 = vmatprep.subr.mxu0 0.0
  %5177 = vmatpush1.msra.mxu0 0.0
  %5178 = vmatprep.subr.mxu0 0.0
  %5179 = vmatpush1.msra.mxu0 0.0
  %5180 = vmatprep.subr.mxu0 0.0
  %5181 = vmatpush1.msra.mxu0 0.0
  %5182 = vmatprep.subr.mxu0 0.0
  %5183 = vmatpush1.msra.mxu0 0.0
  %5184 = vmatprep.subr.mxu0 0.0
  %5185 = vmatpush1.msra.mxu0 0.0
  %5186 = vmatprep.subr.mxu0 0.0
  %5187 = vmatpush1.msra.mxu0 0.0
  %5188 = vmatprep.subr.mxu0 0.0
  %5189 = vmatpush1.msra.mxu0 0.0
  %5190 = vmatprep.subr.mxu0 0.0
  %5191 = vmatpush1.msra.mxu0 0.0
  %5192 = vmatprep.subr.mxu0 0.0
  %5193 = vmatpush1.msra.mxu0 0.0
  %5194 = vmatprep.subr.mxu0 0.0
  %5195 = vmatpush1.msra.mxu0 0.0
  %5196 = vmatprep.subr.mxu0 0.0
  %5197 = vmatpush1.msra.mxu0 0.0
  %5198 = vmatprep.subr.mxu0 0.0
  %5199 = vmatpush1.msra.mxu0 0.0
  %5200 = vmatprep.subr.mxu0 0.0
  %5201 = vmatpush1.msra.mxu0 0.0
  %5202 = vmatprep.subr.mxu0 0.0
  %5203 = vmatpush1.msra.mxu0 0.0
  %5204 = vmatprep.subr.mxu0 0.0
  %5205 = vmatpush1.msra.mxu0 0.0
  %5206 = vmatprep.mubr.f32.mxu0 0.0
  %5207 = vmatmul.mubr.f32.gmra.mrb[0].mxu0 %v5140
  %v5208 = vpop.f32.mrb[0].mxu0
  %v5209 = vadd.f32 %v5138, %v5208
  %v5210 = vpop.f32.mrb[0].mxu0
  %5211 = vdwg.mxu0
  %v5212 = vmax.f32 %v5209, 0.0
  %v5213 = vld [vmem:[%s2 + $0x118] sm:$0xff]
  %v5214 = vld [vmem:[%s2 + $0x120] sm:$0xff]
  %v5215 = vld [vmem:[%s2 + $0x128] sm:$0xff]
  %v5216 = vld [vmem:[%s2 + $0x130] sm:$0xff]
  %v5217 = vld [vmem:[%s4 + $0xf] sm:$0x1]
  %v5218 = vlaneseq
  %v5219 = vshrl.u32 %v5218, 7
  %v5220 = vsub.s32 0, %v5219
  %v5221 = vrot.slane %v5217, %v5220
  %v5223 = vsel %vm223, %v5212, 0
  %5225 = vmatprep.subr.mxu0 0.0
  %5226 = vmatpush1.msra.mxu0 %v5213
  %5227 = vmatprep.subr.mxu0 0.0
  %5228 = vmatpush1.msra.mxu0 %v5214
  %5229 = vmatprep.subr.mxu0 0.0
  %5230 = vmatpush1.msra.mxu0 %v5215
  %5231 = vmatprep.subr.mxu0 0.0
  %5232 = vmatpush1.msra.mxu0 %v5216
  %5233 = vmatprep.subr.mxu0 0.0
  %5234 = vmatpush1.msra.mxu0 0.0
  %5235 = vmatprep.subr.mxu0 0.0
  %5236 = vmatpush1.msra.mxu0 0.0
  %5237 = vmatprep.subr.mxu0 0.0
  %5238 = vmatpush1.msra.mxu0 0.0
  %5239 = vmatprep.subr.mxu0 0.0
  %5240 = vmatpush1.msra.mxu0 0.0
  %5241 = vmatprep.subr.mxu0 0.0
  %5242 = vmatpush1.msra.mxu0 0.0
  %5243 = vmatprep.subr.mxu0 0.0
  %5244 = vmatpush1.msra.mxu0 0.0
  %5245 = vmatprep.subr.mxu0 0.0
  %5246 = vmatpush1.msra.mxu0 0.0
  %5247 = vmatprep.subr.mxu0 0.0
  %5248 = vmatpush1.msra.mxu0 0.0
  %5249 = vmatprep.subr.mxu0 0.0
  %5250 = vmatpush1.msra.mxu0 0.0
  %5251 = vmatprep.subr.mxu0 0.0
  %5252 = vmatpush1.msra.mxu0 0.0
  %5253 = vmatprep.subr.mxu0 0.0
  %5254 = vmatpush1.msra.mxu0 0.0
  %5255 = vmatprep.subr.mxu0 0.0
  %5256 = vmatpush1.msra.mxu0 0.0
  %5257 = vmatprep.subr.mxu0 0.0
  %5258 = vmatpush1.msra.mxu0 0.0
  %5259 = vmatprep.subr.mxu0 0.0
  %5260 = vmatpush1.msra.mxu0 0.0
  %5261 = vmatprep.subr.mxu0 0.0
  %5262 = vmatpush1.msra.mxu0 0.0
  %5263 = vmatprep.subr.mxu0 0.0
  %5264 = vmatpush1.msra.mxu0 0.0
  %5265 = vmatprep.subr.mxu0 0.0
  %5266 = vmatpush1.msra.mxu0 0.0
  %5267 = vmatprep.subr.mxu0 0.0
  %5268 = vmatpush1.msra.mxu0 0.0
  %5269 = vmatprep.subr.mxu0 0.0
  %5270 = vmatpush1.msra.mxu0 0.0
  %5271 = vmatprep.subr.mxu0 0.0
  %5272 = vmatpush1.msra.mxu0 0.0
  %5273 = vmatprep.subr.mxu0 0.0
  %5274 = vmatpush1.msra.mxu0 0.0
  %5275 = vmatprep.subr.mxu0 0.0
  %5276 = vmatpush1.msra.mxu0 0.0
  %5277 = vmatprep.subr.mxu0 0.0
  %5278 = vmatpush1.msra.mxu0 0.0
  %5279 = vmatprep.subr.mxu0 0.0
  %5280 = vmatpush1.msra.mxu0 0.0
  %5281 = vmatprep.subr.mxu0 0.0
  %5282 = vmatpush1.msra.mxu0 0.0
  %5283 = vmatprep.subr.mxu0 0.0
  %5284 = vmatpush1.msra.mxu0 0.0
  %5285 = vmatprep.subr.mxu0 0.0
  %5286 = vmatpush1.msra.mxu0 0.0
  %5287 = vmatprep.subr.mxu0 0.0
  %5288 = vmatpush1.msra.mxu0 0.0
  %5289 = vmatprep.mubr.f32.mxu0 0.0
  %5290 = vmatmul.mubr.f32.gmra.mrb[0].mxu0 %v5223
  %v5291 = vpop.f32.mrb[0].mxu0
  %v5292 = vadd.f32 %v5221, %v5291
  %v5293 = vpop.f32.mrb[0].mxu0
  %5294 = vdwg.mxu0
  %v5295 = vld [vmem:[%s4 + $0x10] sm:$0x1]
  %v5296 = vld [vmem:[%s4 + $0x11] sm:$0x1]
  %v5297 = vsel %vm223, %v5292, 0.0
  %5298 = vadd.xlane.f32.xlu0 %v5297
  %v5299 = vpop.xlane.xlu0 %5298
  %v5300 = vmul.f32 %v5292, %v5292
  %v5301 = vsel %vm223, %v5300, 0.0
  %5302 = vadd.xlane.f32.xlu0 %v5301
  %v5303 = vpop.xlane.xlu0 %5302
  %v5304 = vmul.f32 %v5299, 0.03125
  %v5305 = vmul.f32 %v5303, 0.03125
  %v5306 = vmul.f32 %v5304, %v5304
  %v5307 = vsub.f32 %v5305, %v5306
  %v5308 = vmax.f32 %v5307, 0.0
  %v5309 = vsub.f32 %v5292, %v5304
  %v5310 = vadd.f32 %v5308, 1e-05
  %v5311 = vrsqrt.pop %v5310
  %v5312 = vmul.f32 %v5309, %v5311
  %v5313 = vlaneseq
  %v5314 = vshrl.u32 %v5313, 7
  %v5315 = vsub.s32 0, %v5314
  %v5316 = vrot.slane %v5295, %v5315
  %v5317 = vmul.f32 %v5312, %v5316
  %v5318 = vlaneseq
  %v5319 = vshrl.u32 %v5318, 7
  %v5320 = vsub.s32 0, %v5319
  %v5321 = vrot.slane %v5296, %v5320
  %v5322 = vadd.f32 %v5317, %v5321
  %v5323 = vadd.f32 %v3576, %v5322
  %v5324 = vadd.f32 %v4426, %v5058
  %v5325 = vadd.f32 %v4427, %v5059
  %v5326 = vadd.f32 %v4428, %v5060
  %v5327 = vadd.f32 %v4429, %v5061
  %v5328 = vadd.f32 %v4430, %v5062
  %v5329 = vadd.f32 %v4431, %v5063
  %v5330 = vadd.f32 %v4432, %v5064
  %v5331 = vadd.f32 %v4433, %v5065
  %v5332 = vld [vmem:[%s3 + $0x20] sm:$0xff]
  %v5333 = vld [vmem:[%s3 + $0x28] sm:$0xff]
  %v5334 = vld [vmem:[%s3 + $0x30] sm:$0xff]
  %v5335 = vld [vmem:[%s3 + $0x38] sm:$0xff]
  %v5337 = vsel %vm223, %v5323, 0
  %5339 = vmatprep.subr.mxu0 0.0
  %5340 = vmatpush1.msra.mxu0 %v5332
  %5341 = vmatprep.subr.mxu0 0.0
  %5342 = vmatpush1.msra.mxu0 %v5333
  %5343 = vmatprep.subr.mxu0 0.0
  %5344 = vmatpush1.msra.mxu0 %v5334
  %5345 = vmatprep.subr.mxu0 0.0
  %5346 = vmatpush1.msra.mxu0 %v5335
  %5347 = vmatprep.subr.mxu0 0.0
  %5348 = vmatpush1.msra.mxu0 0.0
  %5349 = vmatprep.subr.mxu0 0.0
  %5350 = vmatpush1.msra.mxu0 0.0
  %5351 = vmatprep.subr.mxu0 0.0
  %5352 = vmatpush1.msra.mxu0 0.0
  %5353 = vmatprep.subr.mxu0 0.0
  %5354 = vmatpush1.msra.mxu0 0.0
  %5355 = vmatprep.subr.mxu0 0.0
  %5356 = vmatpush1.msra.mxu0 0.0
  %5357 = vmatprep.subr.mxu0 0.0
  %5358 = vmatpush1.msra.mxu0 0.0
  %5359 = vmatprep.subr.mxu0 0.0
  %5360 = vmatpush1.msra.mxu0 0.0
  %5361 = vmatprep.subr.mxu0 0.0
  %5362 = vmatpush1.msra.mxu0 0.0
  %5363 = vmatprep.subr.mxu0 0.0
  %5364 = vmatpush1.msra.mxu0 0.0
  %5365 = vmatprep.subr.mxu0 0.0
  %5366 = vmatpush1.msra.mxu0 0.0
  %5367 = vmatprep.subr.mxu0 0.0
  %5368 = vmatpush1.msra.mxu0 0.0
  %5369 = vmatprep.subr.mxu0 0.0
  %5370 = vmatpush1.msra.mxu0 0.0
  %5371 = vmatprep.subr.mxu0 0.0
  %5372 = vmatpush1.msra.mxu0 0.0
  %5373 = vmatprep.subr.mxu0 0.0
  %5374 = vmatpush1.msra.mxu0 0.0
  %5375 = vmatprep.subr.mxu0 0.0
  %5376 = vmatpush1.msra.mxu0 0.0
  %5377 = vmatprep.subr.mxu0 0.0
  %5378 = vmatpush1.msra.mxu0 0.0
  %5379 = vmatprep.subr.mxu0 0.0
  %5380 = vmatpush1.msra.mxu0 0.0
  %5381 = vmatprep.subr.mxu0 0.0
  %5382 = vmatpush1.msra.mxu0 0.0
  %5383 = vmatprep.subr.mxu0 0.0
  %5384 = vmatpush1.msra.mxu0 0.0
  %5385 = vmatprep.subr.mxu0 0.0
  %5386 = vmatpush1.msra.mxu0 0.0
  %5387 = vmatprep.subr.mxu0 0.0
  %5388 = vmatpush1.msra.mxu0 0.0
  %5389 = vmatprep.subr.mxu0 0.0
  %5390 = vmatpush1.msra.mxu0 0.0
  %5391 = vmatprep.subr.mxu0 0.0
  %5392 = vmatpush1.msra.mxu0 0.0
  %5393 = vmatprep.subr.mxu0 0.0
  %5394 = vmatpush1.msra.mxu0 0.0
  %5395 = vmatprep.subr.mxu0 0.0
  %5396 = vmatpush1.msra.mxu0 0.0
  %5397 = vmatprep.subr.mxu0 0.0
  %5398 = vmatpush1.msra.mxu0 0.0
  %5399 = vmatprep.subr.mxu0 0.0
  %5400 = vmatpush1.msra.mxu0 0.0
  %5401 = vmatprep.subr.mxu0 0.0
  %5402 = vmatpush1.msra.mxu0 0.0
  %5403 = vmatprep.mubr.f32.mxu0 0.0
  %5404 = vmatmul.mubr.f32.gmra.mrb[0].mxu0 %v5337
  %v5405 = vpop.f32.mrb[0].mxu0
  %v5406 = vadd.f32 0.0, %v5405
  %v5407 = vpop.f32.mrb[0].mxu0
  %5408 = vdwg.mxu0
  %v5409 = vld [vmem:[%s2 + $0x138] sm:$0xff]
  %v5410 = vld [vmem:[%s2 + $0x140] sm:$0xff]
  %v5411 = vld [vmem:[%s2 + $0x148] sm:$0xff]
  %v5412 = vld [vmem:[%s2 + $0x150] sm:$0xff]
  %v5414 = vsel %vm223, %v5324, 0
  %v5417 = vsel %vm223, %v5325, 0
  %v5420 = vsel %vm223, %v5326, 0
  %v5423 = vsel %vm223, %v5327, 0
  %v5426 = vsel %vm223, %v5328, 0
  %v5429 = vsel %vm223, %v5329, 0
  %v5432 = vsel %vm223, %v5330, 0
  %v5435 = vsel %vm223, %v5331, 0
  %5437 = vmatprep.subr.mxu0 0.0
  %5438 = vmatpush1.msra.mxu0 %v5409
  %5439 = vmatprep.subr.mxu0 0.0
  %5440 = vmatpush1.msra.mxu0 %v5410
  %5441 = vmatprep.subr.mxu0 0.0
  %5442 = vmatpush1.msra.mxu0 %v5411
  %5443 = vmatprep.subr.mxu0 0.0
  %5444 = vmatpush1.msra.mxu0 %v5412
  %5445 = vmatprep.subr.mxu0 0.0
  %5446 = vmatpush1.msra.mxu0 0.0
  %5447 = vmatprep.subr.mxu0 0.0
  %5448 = vmatpush1.msra.mxu0 0.0
  %5449 = vmatprep.subr.mxu0 0.0
  %5450 = vmatpush1.msra.mxu0 0.0
  %5451 = vmatprep.subr.mxu0 0.0
  %5452 = vmatpush1.msra.mxu0 0.0
  %5453 = vmatprep.subr.mxu0 0.0
  %5454 = vmatpush1.msra.mxu0 0.0
  %5455 = vmatprep.subr.mxu0 0.0
  %5456 = vmatpush1.msra.mxu0 0.0
  %5457 = vmatprep.subr.mxu0 0.0
  %5458 = vmatpush1.msra.mxu0 0.0
  %5459 = vmatprep.subr.mxu0 0.0
  %5460 = vmatpush1.msra.mxu0 0.0
  %5461 = vmatprep.subr.mxu0 0.0
  %5462 = vmatpush1.msra.mxu0 0.0
  %5463 = vmatprep.subr.mxu0 0.0
  %5464 = vmatpush1.msra.mxu0 0.0
  %5465 = vmatprep.subr.mxu0 0.0
  %5466 = vmatpush1.msra.mxu0 0.0
  %5467 = vmatprep.subr.mxu0 0.0
  %5468 = vmatpush1.msra.mxu0 0.0
  %5469 = vmatprep.subr.mxu0 0.0
  %5470 = vmatpush1.msra.mxu0 0.0
  %5471 = vmatprep.subr.mxu0 0.0
  %5472 = vmatpush1.msra.mxu0 0.0
  %5473 = vmatprep.subr.mxu0 0.0
  %5474 = vmatpush1.msra.mxu0 0.0
  %5475 = vmatprep.subr.mxu0 0.0
  %5476 = vmatpush1.msra.mxu0 0.0
  %5477 = vmatprep.subr.mxu0 0.0
  %5478 = vmatpush1.msra.mxu0 0.0
  %5479 = vmatprep.subr.mxu0 0.0
  %5480 = vmatpush1.msra.mxu0 0.0
  %5481 = vmatprep.subr.mxu0 0.0
  %5482 = vmatpush1.msra.mxu0 0.0
  %5483 = vmatprep.subr.mxu0 0.0
  %5484 = vmatpush1.msra.mxu0 0.0
  %5485 = vmatprep.subr.mxu0 0.0
  %5486 = vmatpush1.msra.mxu0 0.0
  %5487 = vmatprep.subr.mxu0 0.0
  %5488 = vmatpush1.msra.mxu0 0.0
  %5489 = vmatprep.subr.mxu0 0.0
  %5490 = vmatpush1.msra.mxu0 0.0
  %5491 = vmatprep.subr.mxu0 0.0
  %5492 = vmatpush1.msra.mxu0 0.0
  %5493 = vmatprep.subr.mxu0 0.0
  %5494 = vmatpush1.msra.mxu0 0.0
  %5495 = vmatprep.subr.mxu0 0.0
  %5496 = vmatpush1.msra.mxu0 0.0
  %5497 = vmatprep.subr.mxu0 0.0
  %5498 = vmatpush1.msra.mxu0 0.0
  %5499 = vmatprep.subr.mxu0 0.0
  %5500 = vmatpush1.msra.mxu0 0.0
  %5501 = vmatprep.mubr.f32.mxu0 0.0
  %5502 = vmatmul.mubr.f32.gmra.mrb[0].mxu0 %v5414
  %v5503 = vpop.f32.mrb[0].mxu0
  %v5504 = vadd.f32 0.0, %v5503
  %v5505 = vpop.f32.mrb[0].mxu0
  %5506 = vmatprep.mubr.f32.mxu0 0.0
  %5507 = vmatmul.mubr.f32.gmra.mrb[0].mxu0 %v5417
  %v5508 = vpop.f32.mrb[0].mxu0
  %v5509 = vadd.f32 0.0, %v5508
  %v5510 = vpop.f32.mrb[0].mxu0
  %5511 = vmatprep.mubr.f32.mxu0 0.0
  %5512 = vmatmul.mubr.f32.gmra.mrb[0].mxu0 %v5420
  %v5513 = vpop.f32.mrb[0].mxu0
  %v5514 = vadd.f32 0.0, %v5513
  %v5515 = vpop.f32.mrb[0].mxu0
  %5516 = vmatprep.mubr.f32.mxu0 0.0
  %5517 = vmatmul.mubr.f32.gmra.mrb[0].mxu0 %v5423
  %v5518 = vpop.f32.mrb[0].mxu0
  %v5519 = vadd.f32 0.0, %v5518
  %v5520 = vpop.f32.mrb[0].mxu0
  %5521 = vmatprep.mubr.f32.mxu0 0.0
  %5522 = vmatmul.mubr.f32.gmra.mrb[0].mxu0 %v5426
  %v5523 = vpop.f32.mrb[0].mxu0
  %v5524 = vadd.f32 0.0, %v5523
  %v5525 = vpop.f32.mrb[0].mxu0
  %5526 = vmatprep.mubr.f32.mxu0 0.0
  %5527 = vmatmul.mubr.f32.gmra.mrb[0].mxu0 %v5429
  %v5528 = vpop.f32.mrb[0].mxu0
  %v5529 = vadd.f32 0.0, %v5528
  %v5530 = vpop.f32.mrb[0].mxu0
  %5531 = vmatprep.mubr.f32.mxu0 0.0
  %5532 = vmatmul.mubr.f32.gmra.mrb[0].mxu0 %v5432
  %v5533 = vpop.f32.mrb[0].mxu0
  %v5534 = vadd.f32 0.0, %v5533
  %v5535 = vpop.f32.mrb[0].mxu0
  %5536 = vmatprep.mubr.f32.mxu0 0.0
  %5537 = vmatmul.mubr.f32.gmra.mrb[0].mxu0 %v5435
  %v5538 = vpop.f32.mrb[0].mxu0
  %v5539 = vadd.f32 0.0, %v5538
  %v5540 = vpop.f32.mrb[0].mxu0
  %5541 = vdwg.mxu0
  %v5543 = vcombine.high %v5406, %v5406
  %v5545 = vunpack.c.l.s4 1966171168
  %v5546 = vunpack.c.0.s8 %v5545
  %v5547 = vlaneseq
  %v5548 = vshrl.u32 %v5547, 7
  %v5549 = vsub.s32 %v5546, %v5548
  %v5550 = vrot.slane %v5406, %v5549
  %v5552 = vunpack.c.l.s4 1966171168
  %v5553 = vunpack.c.0.s8 %v5552
  %v5554 = vlaneseq
  %v5555 = vshrl.u32 %v5554, 7
  %v5556 = vsub.s32 %v5553, %v5555
  %v5557 = vrot.slane %v5543, %v5556
  %v5558 = vcombine.high %v5550, %v5550
  %v5559 = vcombine.high %v5557, %v5557
  %v5561 = vunpack.c.l.s4 1966171168
  %v5562 = vunpack.c.0.s8 %v5561
  %v5563 = vlaneseq
  %v5564 = vshrl.u32 %v5563, 7
  %v5565 = vsub.s32 %v5562, %v5564
  %v5566 = vrot.slane %v5550, %v5565
  %v5568 = vunpack.c.l.s4 1966171168
  %v5569 = vunpack.c.0.s8 %v5568
  %v5570 = vlaneseq
  %v5571 = vshrl.u32 %v5570, 7
  %v5572 = vsub.s32 %v5569, %v5571
  %v5573 = vrot.slane %v5557, %v5572
  %v5575 = vunpack.c.l.s4 1966171168
  %v5576 = vunpack.c.0.s8 %v5575
  %v5577 = vlaneseq
  %v5578 = vshrl.u32 %v5577, 7
  %v5579 = vsub.s32 %v5576, %v5578
  %v5580 = vrot.slane %v5558, %v5579
  %v5582 = vunpack.c.l.s4 1966171168
  %v5583 = vunpack.c.0.s8 %v5582
  %v5584 = vlaneseq
  %v5585 = vshrl.u32 %v5584, 7
  %v5586 = vsub.s32 %v5583, %v5585
  %v5587 = vrot.slane %v5559, %v5586
  %v5588 = vcombine.high %v5566, %v5566
  %v5589 = vcombine.high %v5573, %v5573
  %v5590 = vcombine.high %v5580, %v5580
  %v5591 = vcombine.high %v5587, %v5587
  %v5592 = vlaneseq
  %v5593 = vshrl.u32 %v5592, 7
  %v5594 = vsub.s32 0, %v5593
  %v5595 = vrot.slane %v5566, %v5594
  %v5596 = vlaneseq
  %v5597 = vshrl.u32 %v5596, 7
  %v5598 = vsub.s32 0, %v5597
  %v5599 = vrot.slane %v5580, %v5598
  %v5600 = vlaneseq
  %v5601 = vshrl.u32 %v5600, 7
  %v5602 = vsub.s32 0, %v5601
  %v5603 = vrot.slane %v5588, %v5602
  %v5604 = vlaneseq
  %v5605 = vshrl.u32 %v5604, 7
  %v5606 = vsub.s32 0, %v5605
  %v5607 = vrot.slane %v5590, %v5606
  %v5608 = vlaneseq
  %v5609 = vshrl.u32 %v5608, 7
  %v5610 = vsub.s32 0, %v5609
  %v5611 = vrot.slane %v5573, %v5610
  %v5612 = vlaneseq
  %v5613 = vshrl.u32 %v5612, 7
  %v5614 = vsub.s32 0, %v5613
  %v5615 = vrot.slane %v5587, %v5614
  %v5616 = vlaneseq
  %v5617 = vshrl.u32 %v5616, 7
  %v5618 = vsub.s32 0, %v5617
  %v5619 = vrot.slane %v5589, %v5618
  %v5620 = vlaneseq
  %v5621 = vshrl.u32 %v5620, 7
  %v5622 = vsub.s32 0, %v5621
  %v5623 = vrot.slane %v5591, %v5622
  %v5632 = vadd.f32 %v5504, %v5595
  %v5633 = vadd.f32 %v5509, %v5599
  %v5634 = vadd.f32 %v5514, %v5603
  %v5635 = vadd.f32 %v5519, %v5607
  %v5636 = vadd.f32 %v5524, %v5611
  %v5637 = vadd.f32 %v5529, %v5615
  %v5638 = vadd.f32 %v5534, %v5619
  %v5639 = vadd.f32 %v5539, %v5623
  %5640 = vrot.lane.b32.xlu0 %v5406, 96
  %v5641 = vpop.permute.xlu0 %5640
  %v5643 = vadd.f32 %v5632, %v5641
  %v5644 = vadd.f32 %v5633, %v5641
  %v5645 = vadd.f32 %v5634, %v5641
  %v5646 = vadd.f32 %v5635, %v5641
  %v5647 = vadd.f32 %v5636, %v5641
  %v5648 = vadd.f32 %v5637, %v5641
  %v5649 = vadd.f32 %v5638, %v5641
  %v5650 = vadd.f32 %v5639, %v5641
  %v5651 = vld [vmem:[%s4 + $0x12] sm:$0x1]
  %v5652 = vlaneseq
  %v5653 = vshrl.u32 %v5652, 7
  %v5654 = vsub.s32 0, %v5653
  %v5655 = vrot.slane %v5651, %v5654
  %v5656 = vadd.f32 %v5643, %v5655
  %v5657 = vadd.f32 %v5644, %v5655
  %v5658 = vadd.f32 %v5645, %v5655
  %v5659 = vadd.f32 %v5646, %v5655
  %v5660 = vadd.f32 %v5647, %v5655
  %v5661 = vadd.f32 %v5648, %v5655
  %v5662 = vadd.f32 %v5649, %v5655
  %v5663 = vadd.f32 %v5650, %v5655
  %v5664 = vmax.f32 %v5656, 0.0
  %v5665 = vmax.f32 %v5657, 0.0
  %v5666 = vmax.f32 %v5658, 0.0
  %v5667 = vmax.f32 %v5659, 0.0
  %v5668 = vmax.f32 %v5660, 0.0
  %v5669 = vmax.f32 %v5661, 0.0
  %v5670 = vmax.f32 %v5662, 0.0
  %v5671 = vmax.f32 %v5663, 0.0
  %v5672 = vld [vmem:[%s2 + $0x158] sm:$0xff]
  %v5673 = vld [vmem:[%s2 + $0x160] sm:$0xff]
  %v5674 = vld [vmem:[%s2 + $0x168] sm:$0xff]
  %v5675 = vld [vmem:[%s2 + $0x170] sm:$0xff]
  %v5676 = vld [vmem:[%s4 + $0x13] sm:$0x1]
  %v5677 = vlaneseq
  %v5678 = vshrl.u32 %v5677, 7
  %v5679 = vsub.s32 0, %v5678
  %v5680 = vrot.slane %v5676, %v5679
  %v5682 = vsel %vm223, %v5664, 0
  %v5685 = vsel %vm223, %v5665, 0
  %v5688 = vsel %vm223, %v5666, 0
  %v5691 = vsel %vm223, %v5667, 0
  %v5694 = vsel %vm223, %v5668, 0
  %v5697 = vsel %vm223, %v5669, 0
  %v5700 = vsel %vm223, %v5670, 0
  %v5703 = vsel %vm223, %v5671, 0
  %5705 = vmatprep.subr.mxu0 0.0
  %5706 = vmatpush1.msra.mxu0 %v5672
  %5707 = vmatprep.subr.mxu0 0.0
  %5708 = vmatpush1.msra.mxu0 %v5673
  %5709 = vmatprep.subr.mxu0 0.0
  %5710 = vmatpush1.msra.mxu0 %v5674
  %5711 = vmatprep.subr.mxu0 0.0
  %5712 = vmatpush1.msra.mxu0 %v5675
  %5713 = vmatprep.subr.mxu0 0.0
  %5714 = vmatpush1.msra.mxu0 0.0
  %5715 = vmatprep.subr.mxu0 0.0
  %5716 = vmatpush1.msra.mxu0 0.0
  %5717 = vmatprep.subr.mxu0 0.0
  %5718 = vmatpush1.msra.mxu0 0.0
  %5719 = vmatprep.subr.mxu0 0.0
  %5720 = vmatpush1.msra.mxu0 0.0
  %5721 = vmatprep.subr.mxu0 0.0
  %5722 = vmatpush1.msra.mxu0 0.0
  %5723 = vmatprep.subr.mxu0 0.0
  %5724 = vmatpush1.msra.mxu0 0.0
  %5725 = vmatprep.subr.mxu0 0.0
  %5726 = vmatpush1.msra.mxu0 0.0
  %5727 = vmatprep.subr.mxu0 0.0
  %5728 = vmatpush1.msra.mxu0 0.0
  %5729 = vmatprep.subr.mxu0 0.0
  %5730 = vmatpush1.msra.mxu0 0.0
  %5731 = vmatprep.subr.mxu0 0.0
  %5732 = vmatpush1.msra.mxu0 0.0
  %5733 = vmatprep.subr.mxu0 0.0
  %5734 = vmatpush1.msra.mxu0 0.0
  %5735 = vmatprep.subr.mxu0 0.0
  %5736 = vmatpush1.msra.mxu0 0.0
  %5737 = vmatprep.subr.mxu0 0.0
  %5738 = vmatpush1.msra.mxu0 0.0
  %5739 = vmatprep.subr.mxu0 0.0
  %5740 = vmatpush1.msra.mxu0 0.0
  %5741 = vmatprep.subr.mxu0 0.0
  %5742 = vmatpush1.msra.mxu0 0.0
  %5743 = vmatprep.subr.mxu0 0.0
  %5744 = vmatpush1.msra.mxu0 0.0
  %5745 = vmatprep.subr.mxu0 0.0
  %5746 = vmatpush1.msra.mxu0 0.0
  %5747 = vmatprep.subr.mxu0 0.0
  %5748 = vmatpush1.msra.mxu0 0.0
  %5749 = vmatprep.subr.mxu0 0.0
  %5750 = vmatpush1.msra.mxu0 0.0
  %5751 = vmatprep.subr.mxu0 0.0
  %5752 = vmatpush1.msra.mxu0 0.0
  %5753 = vmatprep.subr.mxu0 0.0
  %5754 = vmatpush1.msra.mxu0 0.0
  %5755 = vmatprep.subr.mxu0 0.0
  %5756 = vmatpush1.msra.mxu0 0.0
  %5757 = vmatprep.subr.mxu0 0.0
  %5758 = vmatpush1.msra.mxu0 0.0
  %5759 = vmatprep.subr.mxu0 0.0
  %5760 = vmatpush1.msra.mxu0 0.0
  %5761 = vmatprep.subr.mxu0 0.0
  %5762 = vmatpush1.msra.mxu0 0.0
  %5763 = vmatprep.subr.mxu0 0.0
  %5764 = vmatpush1.msra.mxu0 0.0
  %5765 = vmatprep.subr.mxu0 0.0
  %5766 = vmatpush1.msra.mxu0 0.0
  %5767 = vmatprep.subr.mxu0 0.0
  %5768 = vmatpush1.msra.mxu0 0.0
  %5769 = vmatprep.mubr.f32.mxu0 0.0
  %5770 = vmatmul.mubr.f32.gmra.mrb[0].mxu0 %v5682
  %v5771 = vpop.f32.mrb[0].mxu0
  %v5772 = vadd.f32 %v5680, %v5771
  %v5773 = vpop.f32.mrb[0].mxu0
  %5774 = vmatprep.mubr.f32.mxu0 0.0
  %5775 = vmatmul.mubr.f32.gmra.mrb[0].mxu0 %v5685
  %v5776 = vpop.f32.mrb[0].mxu0
  %v5777 = vadd.f32 %v5680, %v5776
  %v5778 = vpop.f32.mrb[0].mxu0
  %5779 = vmatprep.mubr.f32.mxu0 0.0
  %5780 = vmatmul.mubr.f32.gmra.mrb[0].mxu0 %v5688
  %v5781 = vpop.f32.mrb[0].mxu0
  %v5782 = vadd.f32 %v5680, %v5781
  %v5783 = vpop.f32.mrb[0].mxu0
  %5784 = vmatprep.mubr.f32.mxu0 0.0
  %5785 = vmatmul.mubr.f32.gmra.mrb[0].mxu0 %v5691
  %v5786 = vpop.f32.mrb[0].mxu0
  %v5787 = vadd.f32 %v5680, %v5786
  %v5788 = vpop.f32.mrb[0].mxu0
  %5789 = vmatprep.mubr.f32.mxu0 0.0
  %5790 = vmatmul.mubr.f32.gmra.mrb[0].mxu0 %v5694
  %v5791 = vpop.f32.mrb[0].mxu0
  %v5792 = vadd.f32 %v5680, %v5791
  %v5793 = vpop.f32.mrb[0].mxu0
  %5794 = vmatprep.mubr.f32.mxu0 0.0
  %5795 = vmatmul.mubr.f32.gmra.mrb[0].mxu0 %v5697
  %v5796 = vpop.f32.mrb[0].mxu0
  %v5797 = vadd.f32 %v5680, %v5796
  %v5798 = vpop.f32.mrb[0].mxu0
  %5799 = vmatprep.mubr.f32.mxu0 0.0
  %5800 = vmatmul.mubr.f32.gmra.mrb[0].mxu0 %v5700
  %v5801 = vpop.f32.mrb[0].mxu0
  %v5802 = vadd.f32 %v5680, %v5801
  %v5803 = vpop.f32.mrb[0].mxu0
  %5804 = vmatprep.mubr.f32.mxu0 0.0
  %5805 = vmatmul.mubr.f32.gmra.mrb[0].mxu0 %v5703
  %v5806 = vpop.f32.mrb[0].mxu0
  %v5807 = vadd.f32 %v5680, %v5806
  %v5808 = vpop.f32.mrb[0].mxu0
  %5809 = vdwg.mxu0
  %v5810 = vld [vmem:[%s4 + $0x14] sm:$0x1]
  %v5811 = vld [vmem:[%s4 + $0x15] sm:$0x1]
  %v5812 = vsel %vm223, %v5772, 0.0
  %5813 = vadd.xlane.f32.xlu0 %v5812
  %v5814 = vpop.xlane.xlu0 %5813
  %v5815 = vsel %vm223, %v5777, 0.0
  %5816 = vadd.xlane.f32.xlu0 %v5815
  %v5817 = vpop.xlane.xlu0 %5816
  %v5818 = vsel %vm223, %v5782, 0.0
  %5819 = vadd.xlane.f32.xlu0 %v5818
  %v5820 = vpop.xlane.xlu0 %5819
  %v5821 = vsel %vm223, %v5787, 0.0
  %5822 = vadd.xlane.f32.xlu0 %v5821
  %v5823 = vpop.xlane.xlu0 %5822
  %v5824 = vsel %vm223, %v5792, 0.0
  %5825 = vadd.xlane.f32.xlu0 %v5824
  %v5826 = vpop.xlane.xlu0 %5825
  %v5827 = vsel %vm223, %v5797, 0.0
  %5828 = vadd.xlane.f32.xlu0 %v5827
  %v5829 = vpop.xlane.xlu0 %5828
  %v5830 = vsel %vm223, %v5802, 0.0
  %5831 = vadd.xlane.f32.xlu0 %v5830
  %v5832 = vpop.xlane.xlu0 %5831
  %v5833 = vsel %vm223, %v5807, 0.0
  %5834 = vadd.xlane.f32.xlu0 %v5833
  %v5835 = vpop.xlane.xlu0 %5834
  %v5836 = vmul.f32 %v5772, %v5772
  %v5837 = vmul.f32 %v5777, %v5777
  %v5838 = vmul.f32 %v5782, %v5782
  %v5839 = vmul.f32 %v5787, %v5787
  %v5840 = vmul.f32 %v5792, %v5792
  %v5841 = vmul.f32 %v5797, %v5797
  %v5842 = vmul.f32 %v5802, %v5802
  %v5843 = vmul.f32 %v5807, %v5807
  %v5844 = vsel %vm223, %v5836, 0.0
  %5845 = vadd.xlane.f32.xlu0 %v5844
  %v5846 = vpop.xlane.xlu0 %5845
  %v5847 = vsel %vm223, %v5837, 0.0
  %5848 = vadd.xlane.f32.xlu0 %v5847
  %v5849 = vpop.xlane.xlu0 %5848
  %v5850 = vsel %vm223, %v5838, 0.0
  %5851 = vadd.xlane.f32.xlu0 %v5850
  %v5852 = vpop.xlane.xlu0 %5851
  %v5853 = vsel %vm223, %v5839, 0.0
  %5854 = vadd.xlane.f32.xlu0 %v5853
  %v5855 = vpop.xlane.xlu0 %5854
  %v5856 = vsel %vm223, %v5840, 0.0
  %5857 = vadd.xlane.f32.xlu0 %v5856
  %v5858 = vpop.xlane.xlu0 %5857
  %v5859 = vsel %vm223, %v5841, 0.0
  %5860 = vadd.xlane.f32.xlu0 %v5859
  %v5861 = vpop.xlane.xlu0 %5860
  %v5862 = vsel %vm223, %v5842, 0.0
  %5863 = vadd.xlane.f32.xlu0 %v5862
  %v5864 = vpop.xlane.xlu0 %5863
  %v5865 = vsel %vm223, %v5843, 0.0
  %5866 = vadd.xlane.f32.xlu0 %v5865
  %v5867 = vpop.xlane.xlu0 %5866
  %v5868 = vmul.f32 %v5814, 0.03125
  %v5869 = vmul.f32 %v5817, 0.03125
  %v5870 = vmul.f32 %v5820, 0.03125
  %v5871 = vmul.f32 %v5823, 0.03125
  %v5872 = vmul.f32 %v5826, 0.03125
  %v5873 = vmul.f32 %v5829, 0.03125
  %v5874 = vmul.f32 %v5832, 0.03125
  %v5875 = vmul.f32 %v5835, 0.03125
  %v5876 = vmul.f32 %v5846, 0.03125
  %v5877 = vmul.f32 %v5849, 0.03125
  %v5878 = vmul.f32 %v5852, 0.03125
  %v5879 = vmul.f32 %v5855, 0.03125
  %v5880 = vmul.f32 %v5858, 0.03125
  %v5881 = vmul.f32 %v5861, 0.03125
  %v5882 = vmul.f32 %v5864, 0.03125
  %v5883 = vmul.f32 %v5867, 0.03125
  %v5884 = vmul.f32 %v5868, %v5868
  %v5885 = vmul.f32 %v5869, %v5869
  %v5886 = vmul.f32 %v5870, %v5870
  %v5887 = vmul.f32 %v5871, %v5871
  %v5888 = vmul.f32 %v5872, %v5872
  %v5889 = vmul.f32 %v5873, %v5873
  %v5890 = vmul.f32 %v5874, %v5874
  %v5891 = vmul.f32 %v5875, %v5875
  %v5892 = vsub.f32 %v5876, %v5884
  %v5893 = vsub.f32 %v5877, %v5885
  %v5894 = vsub.f32 %v5878, %v5886
  %v5895 = vsub.f32 %v5879, %v5887
  %v5896 = vsub.f32 %v5880, %v5888
  %v5897 = vsub.f32 %v5881, %v5889
  %v5898 = vsub.f32 %v5882, %v5890
  %v5899 = vsub.f32 %v5883, %v5891
  %v5900 = vmax.f32 %v5892, 0.0
  %v5901 = vmax.f32 %v5893, 0.0
  %v5902 = vmax.f32 %v5894, 0.0
  %v5903 = vmax.f32 %v5895, 0.0
  %v5904 = vmax.f32 %v5896, 0.0
  %v5905 = vmax.f32 %v5897, 0.0
  %v5906 = vmax.f32 %v5898, 0.0
  %v5907 = vmax.f32 %v5899, 0.0
  %v5908 = vsub.f32 %v5772, %v5868
  %v5909 = vsub.f32 %v5777, %v5869
  %v5910 = vsub.f32 %v5782, %v5870
  %v5911 = vsub.f32 %v5787, %v5871
  %v5912 = vsub.f32 %v5792, %v5872
  %v5913 = vsub.f32 %v5797, %v5873
  %v5914 = vsub.f32 %v5802, %v5874
  %v5915 = vsub.f32 %v5807, %v5875
  %v5916 = vadd.f32 %v5900, 1e-05
  %v5917 = vadd.f32 %v5901, 1e-05
  %v5918 = vadd.f32 %v5902, 1e-05
  %v5919 = vadd.f32 %v5903, 1e-05
  %v5920 = vadd.f32 %v5904, 1e-05
  %v5921 = vadd.f32 %v5905, 1e-05
  %v5922 = vadd.f32 %v5906, 1e-05
  %v5923 = vadd.f32 %v5907, 1e-05
  %v5924 = vrsqrt.pop %v5916
  %v5925 = vrsqrt.pop %v5917
  %v5926 = vrsqrt.pop %v5918
  %v5927 = vrsqrt.pop %v5919
  %v5928 = vrsqrt.pop %v5920
  %v5929 = vrsqrt.pop %v5921
  %v5930 = vrsqrt.pop %v5922
  %v5931 = vrsqrt.pop %v5923
  %v5932 = vmul.f32 %v5908, %v5924
  %v5933 = vmul.f32 %v5909, %v5925
  %v5934 = vmul.f32 %v5910, %v5926
  %v5935 = vmul.f32 %v5911, %v5927
  %v5936 = vmul.f32 %v5912, %v5928
  %v5937 = vmul.f32 %v5913, %v5929
  %v5938 = vmul.f32 %v5914, %v5930
  %v5939 = vmul.f32 %v5915, %v5931
  %v5940 = vlaneseq
  %v5941 = vshrl.u32 %v5940, 7
  %v5942 = vsub.s32 0, %v5941
  %v5943 = vrot.slane %v5810, %v5942
  %v5944 = vmul.f32 %v5932, %v5943
  %v5945 = vmul.f32 %v5933, %v5943
  %v5946 = vmul.f32 %v5934, %v5943
  %v5947 = vmul.f32 %v5935, %v5943
  %v5948 = vmul.f32 %v5936, %v5943
  %v5949 = vmul.f32 %v5937, %v5943
  %v5950 = vmul.f32 %v5938, %v5943
  %v5951 = vmul.f32 %v5939, %v5943
  %v5952 = vlaneseq
  %v5953 = vshrl.u32 %v5952, 7
  %v5954 = vsub.s32 0, %v5953
  %v5955 = vrot.slane %v5811, %v5954
  %v5956 = vadd.f32 %v5944, %v5955
  %v5957 = vadd.f32 %v5945, %v5955
  %v5958 = vadd.f32 %v5946, %v5955
  %v5959 = vadd.f32 %v5947, %v5955
  %v5960 = vadd.f32 %v5948, %v5955
  %v5961 = vadd.f32 %v5949, %v5955
  %v5962 = vadd.f32 %v5950, %v5955
  %v5963 = vadd.f32 %v5951, %v5955
  %v5964 = vmul.f32 %v5069, %v5956
  %v5965 = vmul.f32 %v5074, %v5957
  %v5966 = vmul.f32 %v5079, %v5958
  %v5967 = vmul.f32 %v5084, %v5959
  %v5968 = vmul.f32 %v5089, %v5960
  %v5969 = vmul.f32 %v5094, %v5961
  %v5970 = vmul.f32 %v5099, %v5962
  %v5971 = vmul.f32 %v5104, %v5963
  %v5972 = vadd.f32 %v5964, %v5965
  %v5973 = vadd.f32 %v5966, %v5967
  %v5974 = vadd.f32 %v5968, %v5969
  %v5975 = vadd.f32 %v5970, %v5971
  %v5976 = vadd.f32 %v5972, %v5973
  %v5977 = vadd.f32 %v5974, %v5975
  %v5978 = vadd.f32 %v5976, %v5977
  %5980 = vrot.lane.b32.xlu0 %v5978, 32
  %v5981 = vpop.permute.xlu0 %5980
  %v5983 = vsel %vm223, %v5323, %v5981
  %v5984 = vld [vmem:[%s2 + $0x178] sm:$0xff]
  %v5985 = vld [vmem:[%s2 + $0x180] sm:$0xff]
  %v5986 = vld [vmem:[%s2 + $0x188] sm:$0xff]
  %v5987 = vld [vmem:[%s2 + $0x190] sm:$0xff]
  %v5988 = vld [vmem:[%s2 + $0x198] sm:$0xff]
  %v5989 = vld [vmem:[%s2 + $0x1a0] sm:$0xff]
  %v5990 = vld [vmem:[%s2 + $0x1a8] sm:$0xff]
  %v5991 = vld [vmem:[%s2 + $0x1b0] sm:$0xff]
  %v5992 = vld [vmem:[%s4 + $0x16] sm:$0x1]
  %v5993 = vlaneseq
  %v5994 = vshrl.u32 %v5993, 7
  %v5995 = vsub.s32 0, %v5994
  %v5996 = vrot.slane %v5992, %v5995
  %v5998 = vsel %vm1972, %v5983, 0
  %6000 = vmatprep.subr.mxu0 0.0
  %6001 = vmatpush1.msra.mxu0 %v5984
  %6002 = vmatprep.subr.mxu0 0.0
  %6003 = vmatpush1.msra.mxu0 %v5985
  %6004 = vmatprep.subr.mxu0 0.0
  %6005 = vmatpush1.msra.mxu0 %v5986
  %6006 = vmatprep.subr.mxu0 0.0
  %6007 = vmatpush1.msra.mxu0 %v5987
  %6008 = vmatprep.subr.mxu0 0.0
  %6009 = vmatpush1.msra.mxu0 %v5988
  %6010 = vmatprep.subr.mxu0 0.0
  %6011 = vmatpush1.msra.mxu0 %v5989
  %6012 = vmatprep.subr.mxu0 0.0
  %6013 = vmatpush1.msra.mxu0 %v5990
  %6014 = vmatprep.subr.mxu0 0.0
  %6015 = vmatpush1.msra.mxu0 %v5991
  %6016 = vmatprep.subr.mxu0 0.0
  %6017 = vmatpush1.msra.mxu0 0.0
  %6018 = vmatprep.subr.mxu0 0.0
  %6019 = vmatpush1.msra.mxu0 0.0
  %6020 = vmatprep.subr.mxu0 0.0
  %6021 = vmatpush1.msra.mxu0 0.0
  %6022 = vmatprep.subr.mxu0 0.0
  %6023 = vmatpush1.msra.mxu0 0.0
  %6024 = vmatprep.subr.mxu0 0.0
  %6025 = vmatpush1.msra.mxu0 0.0
  %6026 = vmatprep.subr.mxu0 0.0
  %6027 = vmatpush1.msra.mxu0 0.0
  %6028 = vmatprep.subr.mxu0 0.0
  %6029 = vmatpush1.msra.mxu0 0.0
  %6030 = vmatprep.subr.mxu0 0.0
  %6031 = vmatpush1.msra.mxu0 0.0
  %6032 = vmatprep.subr.mxu0 0.0
  %6033 = vmatpush1.msra.mxu0 0.0
  %6034 = vmatprep.subr.mxu0 0.0
  %6035 = vmatpush1.msra.mxu0 0.0
  %6036 = vmatprep.subr.mxu0 0.0
  %6037 = vmatpush1.msra.mxu0 0.0
  %6038 = vmatprep.subr.mxu0 0.0
  %6039 = vmatpush1.msra.mxu0 0.0
  %6040 = vmatprep.subr.mxu0 0.0
  %6041 = vmatpush1.msra.mxu0 0.0
  %6042 = vmatprep.subr.mxu0 0.0
  %6043 = vmatpush1.msra.mxu0 0.0
  %6044 = vmatprep.subr.mxu0 0.0
  %6045 = vmatpush1.msra.mxu0 0.0
  %6046 = vmatprep.subr.mxu0 0.0
  %6047 = vmatpush1.msra.mxu0 0.0
  %6048 = vmatprep.subr.mxu0 0.0
  %6049 = vmatpush1.msra.mxu0 0.0
  %6050 = vmatprep.subr.mxu0 0.0
  %6051 = vmatpush1.msra.mxu0 0.0
  %6052 = vmatprep.subr.mxu0 0.0
  %6053 = vmatpush1.msra.mxu0 0.0
  %6054 = vmatprep.subr.mxu0 0.0
  %6055 = vmatpush1.msra.mxu0 0.0
  %6056 = vmatprep.subr.mxu0 0.0
  %6057 = vmatpush1.msra.mxu0 0.0
  %6058 = vmatprep.subr.mxu0 0.0
  %6059 = vmatpush1.msra.mxu0 0.0
  %6060 = vmatprep.subr.mxu0 0.0
  %6061 = vmatpush1.msra.mxu0 0.0
  %6062 = vmatprep.subr.mxu0 0.0
  %6063 = vmatpush1.msra.mxu0 0.0
  %6064 = vmatprep.mubr.f32.mxu0 0.0
  %6065 = vmatmul.mubr.f32.gmra.mrb[0].mxu0 %v5998
  %v6066 = vpop.f32.mrb[0].mxu0
  %v6067 = vadd.f32 %v5996, %v6066
  %v6068 = vpop.f32.mrb[0].mxu0
  %6069 = vdwg.mxu0
  %v6070 = vmax.f32 %v6067, 0.0
  %v6071 = vld [vmem:[%s2 + $0x1b8] sm:$0xff]
  %v6072 = vld [vmem:[%s2 + $0x1c0] sm:$0xff]
  %v6073 = vld [vmem:[%s2 + $0x1c8] sm:$0xff]
  %v6074 = vld [vmem:[%s2 + $0x1d0] sm:$0xff]
  %v6075 = vld [vmem:[%s4 + $0x17] sm:$0x1]
  %v6076 = vlaneseq
  %v6077 = vshrl.u32 %v6076, 7
  %v6078 = vsub.s32 0, %v6077
  %v6079 = vrot.slane %v6075, %v6078
  %v6081 = vsel %vm223, %v6070, 0
  %6083 = vmatprep.subr.mxu0 0.0
  %6084 = vmatpush1.msra.mxu0 %v6071
  %6085 = vmatprep.subr.mxu0 0.0
  %6086 = vmatpush1.msra.mxu0 %v6072
  %6087 = vmatprep.subr.mxu0 0.0
  %6088 = vmatpush1.msra.mxu0 %v6073
  %6089 = vmatprep.subr.mxu0 0.0
  %6090 = vmatpush1.msra.mxu0 %v6074
  %6091 = vmatprep.subr.mxu0 0.0
  %6092 = vmatpush1.msra.mxu0 0.0
  %6093 = vmatprep.subr.mxu0 0.0
  %6094 = vmatpush1.msra.mxu0 0.0
  %6095 = vmatprep.subr.mxu0 0.0
  %6096 = vmatpush1.msra.mxu0 0.0
  %6097 = vmatprep.subr.mxu0 0.0
  %6098 = vmatpush1.msra.mxu0 0.0
  %6099 = vmatprep.subr.mxu0 0.0
  %6100 = vmatpush1.msra.mxu0 0.0
  %6101 = vmatprep.subr.mxu0 0.0
  %6102 = vmatpush1.msra.mxu0 0.0
  %6103 = vmatprep.subr.mxu0 0.0
  %6104 = vmatpush1.msra.mxu0 0.0
  %6105 = vmatprep.subr.mxu0 0.0
  %6106 = vmatpush1.msra.mxu0 0.0
  %6107 = vmatprep.subr.mxu0 0.0
  %6108 = vmatpush1.msra.mxu0 0.0
  %6109 = vmatprep.subr.mxu0 0.0
  %6110 = vmatpush1.msra.mxu0 0.0
  %6111 = vmatprep.subr.mxu0 0.0
  %6112 = vmatpush1.msra.mxu0 0.0
  %6113 = vmatprep.subr.mxu0 0.0
  %6114 = vmatpush1.msra.mxu0 0.0
  %6115 = vmatprep.subr.mxu0 0.0
  %6116 = vmatpush1.msra.mxu0 0.0
  %6117 = vmatprep.subr.mxu0 0.0
  %6118 = vmatpush1.msra.mxu0 0.0
  %6119 = vmatprep.subr.mxu0 0.0
  %6120 = vmatpush1.msra.mxu0 0.0
  %6121 = vmatprep.subr.mxu0 0.0
  %6122 = vmatpush1.msra.mxu0 0.0
  %6123 = vmatprep.subr.mxu0 0.0
  %6124 = vmatpush1.msra.mxu0 0.0
  %6125 = vmatprep.subr.mxu0 0.0
  %6126 = vmatpush1.msra.mxu0 0.0
  %6127 = vmatprep.subr.mxu0 0.0
  %6128 = vmatpush1.msra.mxu0 0.0
  %6129 = vmatprep.subr.mxu0 0.0
  %6130 = vmatpush1.msra.mxu0 0.0
  %6131 = vmatprep.subr.mxu0 0.0
  %6132 = vmatpush1.msra.mxu0 0.0
  %6133 = vmatprep.subr.mxu0 0.0
  %6134 = vmatpush1.msra.mxu0 0.0
  %6135 = vmatprep.subr.mxu0 0.0
  %6136 = vmatpush1.msra.mxu0 0.0
  %6137 = vmatprep.subr.mxu0 0.0
  %6138 = vmatpush1.msra.mxu0 0.0
  %6139 = vmatprep.subr.mxu0 0.0
  %6140 = vmatpush1.msra.mxu0 0.0
  %6141 = vmatprep.subr.mxu0 0.0
  %6142 = vmatpush1.msra.mxu0 0.0
  %6143 = vmatprep.subr.mxu0 0.0
  %6144 = vmatpush1.msra.mxu0 0.0
  %6145 = vmatprep.subr.mxu0 0.0
  %6146 = vmatpush1.msra.mxu0 0.0
  %6147 = vmatprep.mubr.f32.mxu0 0.0
  %6148 = vmatmul.mubr.f32.gmra.mrb[0].mxu0 %v6081
  %v6149 = vpop.f32.mrb[0].mxu0
  %v6150 = vadd.f32 %v6079, %v6149
  %v6151 = vpop.f32.mrb[0].mxu0
  %6152 = vdwg.mxu0
  %v6153 = vld [vmem:[%s4 + $0x18] sm:$0x1]
  %v6154 = vld [vmem:[%s4 + $0x19] sm:$0x1]
  %v6155 = vsel %vm223, %v6150, 0.0
  %6156 = vadd.xlane.f32.xlu0 %v6155
  %v6157 = vpop.xlane.xlu0 %6156
  %v6158 = vmul.f32 %v6150, %v6150
  %v6159 = vsel %vm223, %v6158, 0.0
  %6160 = vadd.xlane.f32.xlu0 %v6159
  %v6161 = vpop.xlane.xlu0 %6160
  %v6162 = vmul.f32 %v6157, 0.03125
  %v6163 = vmul.f32 %v6161, 0.03125
  %v6164 = vmul.f32 %v6162, %v6162
  %v6165 = vsub.f32 %v6163, %v6164
  %v6166 = vmax.f32 %v6165, 0.0
  %v6167 = vsub.f32 %v6150, %v6162
  %v6168 = vadd.f32 %v6166, 1e-05
  %v6169 = vrsqrt.pop %v6168
  %v6170 = vmul.f32 %v6167, %v6169
  %v6171 = vlaneseq
  %v6172 = vshrl.u32 %v6171, 7
  %v6173 = vsub.s32 0, %v6172
  %v6174 = vrot.slane %v6153, %v6173
  %v6175 = vmul.f32 %v6170, %v6174
  %v6176 = vlaneseq
  %v6177 = vshrl.u32 %v6176, 7
  %v6178 = vsub.s32 0, %v6177
  %v6179 = vrot.slane %v6154, %v6178
  %v6180 = vadd.f32 %v6175, %v6179
  %v6181 = vadd.f32 %v5323, %v6180
  %v6182 = vld [vmem:[%s2 + $0x1d8] sm:$0xff]
  %v6183 = vld [vmem:[%s2 + $0x1e0] sm:$0xff]
  %v6184 = vld [vmem:[%s2 + $0x1e8] sm:$0xff]
  %v6185 = vld [vmem:[%s2 + $0x1f0] sm:$0xff]
  %v6186 = vld [vmem:[%s4 + $0x1a] sm:$0x1]
  %v6187 = vlaneseq
  %v6188 = vshrl.u32 %v6187, 7
  %v6189 = vsub.s32 0, %v6188
  %v6190 = vrot.slane %v6186, %v6189
  %v6192 = vsel %vm223, %v6181, 0
  %6194 = vmatprep.subr.mxu0 0.0
  %6195 = vmatpush1.msra.mxu0 %v6182
  %6196 = vmatprep.subr.mxu0 0.0
  %6197 = vmatpush1.msra.mxu0 %v6183
  %6198 = vmatprep.subr.mxu0 0.0
  %6199 = vmatpush1.msra.mxu0 %v6184
  %6200 = vmatprep.subr.mxu0 0.0
  %6201 = vmatpush1.msra.mxu0 %v6185
  %6202 = vmatprep.subr.mxu0 0.0
  %6203 = vmatpush1.msra.mxu0 0.0
  %6204 = vmatprep.subr.mxu0 0.0
  %6205 = vmatpush1.msra.mxu0 0.0
  %6206 = vmatprep.subr.mxu0 0.0
  %6207 = vmatpush1.msra.mxu0 0.0
  %6208 = vmatprep.subr.mxu0 0.0
  %6209 = vmatpush1.msra.mxu0 0.0
  %6210 = vmatprep.subr.mxu0 0.0
  %6211 = vmatpush1.msra.mxu0 0.0
  %6212 = vmatprep.subr.mxu0 0.0
  %6213 = vmatpush1.msra.mxu0 0.0
  %6214 = vmatprep.subr.mxu0 0.0
  %6215 = vmatpush1.msra.mxu0 0.0
  %6216 = vmatprep.subr.mxu0 0.0
  %6217 = vmatpush1.msra.mxu0 0.0
  %6218 = vmatprep.subr.mxu0 0.0
  %6219 = vmatpush1.msra.mxu0 0.0
  %6220 = vmatprep.subr.mxu0 0.0
  %6221 = vmatpush1.msra.mxu0 0.0
  %6222 = vmatprep.subr.mxu0 0.0
  %6223 = vmatpush1.msra.mxu0 0.0
  %6224 = vmatprep.subr.mxu0 0.0
  %6225 = vmatpush1.msra.mxu0 0.0
  %6226 = vmatprep.subr.mxu0 0.0
  %6227 = vmatpush1.msra.mxu0 0.0
  %6228 = vmatprep.subr.mxu0 0.0
  %6229 = vmatpush1.msra.mxu0 0.0
  %6230 = vmatprep.subr.mxu0 0.0
  %6231 = vmatpush1.msra.mxu0 0.0
  %6232 = vmatprep.subr.mxu0 0.0
  %6233 = vmatpush1.msra.mxu0 0.0
  %6234 = vmatprep.subr.mxu0 0.0
  %6235 = vmatpush1.msra.mxu0 0.0
  %6236 = vmatprep.subr.mxu0 0.0
  %6237 = vmatpush1.msra.mxu0 0.0
  %6238 = vmatprep.subr.mxu0 0.0
  %6239 = vmatpush1.msra.mxu0 0.0
  %6240 = vmatprep.subr.mxu0 0.0
  %6241 = vmatpush1.msra.mxu0 0.0
  %6242 = vmatprep.subr.mxu0 0.0
  %6243 = vmatpush1.msra.mxu0 0.0
  %6244 = vmatprep.subr.mxu0 0.0
  %6245 = vmatpush1.msra.mxu0 0.0
  %6246 = vmatprep.subr.mxu0 0.0
  %6247 = vmatpush1.msra.mxu0 0.0
  %6248 = vmatprep.subr.mxu0 0.0
  %6249 = vmatpush1.msra.mxu0 0.0
  %6250 = vmatprep.subr.mxu0 0.0
  %6251 = vmatpush1.msra.mxu0 0.0
  %6252 = vmatprep.subr.mxu0 0.0
  %6253 = vmatpush1.msra.mxu0 0.0
  %6254 = vmatprep.subr.mxu0 0.0
  %6255 = vmatpush1.msra.mxu0 0.0
  %6256 = vmatprep.subr.mxu0 0.0
  %6257 = vmatpush1.msra.mxu0 0.0
  %6258 = vmatprep.mubr.f32.mxu0 0.0
  %6259 = vmatmul.mubr.f32.gmra.mrb[0].mxu0 %v6192
  %v6260 = vpop.f32.mrb[0].mxu0
  %v6261 = vadd.f32 %v6190, %v6260
  %v6262 = vpop.f32.mrb[0].mxu0
  %6263 = vdwg.mxu0
  %v6264 = vmax.f32 %v6261, 0.0
  %v6265 = vld [vmem:[%s2 + $0x1f8] sm:$0xff]
  %v6266 = vld [vmem:[%s2 + $0x200] sm:$0xff]
  %v6267 = vld [vmem:[%s2 + $0x208] sm:$0xff]
  %v6268 = vld [vmem:[%s2 + $0x210] sm:$0xff]
  %v6269 = vld [vmem:[%s4 + $0x1b] sm:$0x1]
  %v6270 = vlaneseq
  %v6271 = vshrl.u32 %v6270, 7
  %v6272 = vsub.s32 0, %v6271
  %v6273 = vrot.slane %v6269, %v6272
  %v6275 = vsel %vm223, %v6264, 0
  %6277 = vmatprep.subr.mxu0 0.0
  %6278 = vmatpush1.msra.mxu0 %v6265
  %6279 = vmatprep.subr.mxu0 0.0
  %6280 = vmatpush1.msra.mxu0 %v6266
  %6281 = vmatprep.subr.mxu0 0.0
  %6282 = vmatpush1.msra.mxu0 %v6267
  %6283 = vmatprep.subr.mxu0 0.0
  %6284 = vmatpush1.msra.mxu0 %v6268
  %6285 = vmatprep.subr.mxu0 0.0
  %6286 = vmatpush1.msra.mxu0 0.0
  %6287 = vmatprep.subr.mxu0 0.0
  %6288 = vmatpush1.msra.mxu0 0.0
  %6289 = vmatprep.subr.mxu0 0.0
  %6290 = vmatpush1.msra.mxu0 0.0
  %6291 = vmatprep.subr.mxu0 0.0
  %6292 = vmatpush1.msra.mxu0 0.0
  %6293 = vmatprep.subr.mxu0 0.0
  %6294 = vmatpush1.msra.mxu0 0.0
  %6295 = vmatprep.subr.mxu0 0.0
  %6296 = vmatpush1.msra.mxu0 0.0
  %6297 = vmatprep.subr.mxu0 0.0
  %6298 = vmatpush1.msra.mxu0 0.0
  %6299 = vmatprep.subr.mxu0 0.0
  %6300 = vmatpush1.msra.mxu0 0.0
  %6301 = vmatprep.subr.mxu0 0.0
  %6302 = vmatpush1.msra.mxu0 0.0
  %6303 = vmatprep.subr.mxu0 0.0
  %6304 = vmatpush1.msra.mxu0 0.0
  %6305 = vmatprep.subr.mxu0 0.0
  %6306 = vmatpush1.msra.mxu0 0.0
  %6307 = vmatprep.subr.mxu0 0.0
  %6308 = vmatpush1.msra.mxu0 0.0
  %6309 = vmatprep.subr.mxu0 0.0
  %6310 = vmatpush1.msra.mxu0 0.0
  %6311 = vmatprep.subr.mxu0 0.0
  %6312 = vmatpush1.msra.mxu0 0.0
  %6313 = vmatprep.subr.mxu0 0.0
  %6314 = vmatpush1.msra.mxu0 0.0
  %6315 = vmatprep.subr.mxu0 0.0
  %6316 = vmatpush1.msra.mxu0 0.0
  %6317 = vmatprep.subr.mxu0 0.0
  %6318 = vmatpush1.msra.mxu0 0.0
  %6319 = vmatprep.subr.mxu0 0.0
  %6320 = vmatpush1.msra.mxu0 0.0
  %6321 = vmatprep.subr.mxu0 0.0
  %6322 = vmatpush1.msra.mxu0 0.0
  %6323 = vmatprep.subr.mxu0 0.0
  %6324 = vmatpush1.msra.mxu0 0.0
  %6325 = vmatprep.subr.mxu0 0.0
  %6326 = vmatpush1.msra.mxu0 0.0
  %6327 = vmatprep.subr.mxu0 0.0
  %6328 = vmatpush1.msra.mxu0 0.0
  %6329 = vmatprep.subr.mxu0 0.0
  %6330 = vmatpush1.msra.mxu0 0.0
  %6331 = vmatprep.subr.mxu0 0.0
  %6332 = vmatpush1.msra.mxu0 0.0
  %6333 = vmatprep.subr.mxu0 0.0
  %6334 = vmatpush1.msra.mxu0 0.0
  %6335 = vmatprep.subr.mxu0 0.0
  %6336 = vmatpush1.msra.mxu0 0.0
  %6337 = vmatprep.subr.mxu0 0.0
  %6338 = vmatpush1.msra.mxu0 0.0
  %6339 = vmatprep.subr.mxu0 0.0
  %6340 = vmatpush1.msra.mxu0 0.0
  %6341 = vmatprep.mubr.f32.mxu0 0.0
  %6342 = vmatmul.mubr.f32.gmra.mrb[0].mxu0 %v6275
  %v6343 = vpop.f32.mrb[0].mxu0
  %v6344 = vadd.f32 %v6273, %v6343
  %v6345 = vpop.f32.mrb[0].mxu0
  %6346 = vdwg.mxu0
  %v6347 = vmax.f32 %v6344, 0.0
  %v6348 = vld [vmem:[%s2 + $0x218] sm:$0xff]
  %v6349 = vld [vmem:[%s2 + $0x220] sm:$0xff]
  %v6350 = vld [vmem:[%s2 + $0x228] sm:$0xff]
  %v6351 = vld [vmem:[%s2 + $0x230] sm:$0xff]
  %v6352 = vld [vmem:[%s4 + $0x1c] sm:$0x1]
  %v6353 = vlaneseq
  %v6354 = vshrl.u32 %v6353, 7
  %v6355 = vsub.s32 0, %v6354
  %v6356 = vrot.slane %v6352, %v6355
  %v6358 = vsel %vm223, %v6347, 0
  %6360 = vmatprep.subr.mxu0 0.0
  %6361 = vmatpush1.msra.mxu0 %v6348
  %6362 = vmatprep.subr.mxu0 0.0
  %6363 = vmatpush1.msra.mxu0 %v6349
  %6364 = vmatprep.subr.mxu0 0.0
  %6365 = vmatpush1.msra.mxu0 %v6350
  %6366 = vmatprep.subr.mxu0 0.0
  %6367 = vmatpush1.msra.mxu0 %v6351
  %6368 = vmatprep.subr.mxu0 0.0
  %6369 = vmatpush1.msra.mxu0 0.0
  %6370 = vmatprep.subr.mxu0 0.0
  %6371 = vmatpush1.msra.mxu0 0.0
  %6372 = vmatprep.subr.mxu0 0.0
  %6373 = vmatpush1.msra.mxu0 0.0
  %6374 = vmatprep.subr.mxu0 0.0
  %6375 = vmatpush1.msra.mxu0 0.0
  %6376 = vmatprep.subr.mxu0 0.0
  %6377 = vmatpush1.msra.mxu0 0.0
  %6378 = vmatprep.subr.mxu0 0.0
  %6379 = vmatpush1.msra.mxu0 0.0
  %6380 = vmatprep.subr.mxu0 0.0
  %6381 = vmatpush1.msra.mxu0 0.0
  %6382 = vmatprep.subr.mxu0 0.0
  %6383 = vmatpush1.msra.mxu0 0.0
  %6384 = vmatprep.subr.mxu0 0.0
  %6385 = vmatpush1.msra.mxu0 0.0
  %6386 = vmatprep.subr.mxu0 0.0
  %6387 = vmatpush1.msra.mxu0 0.0
  %6388 = vmatprep.subr.mxu0 0.0
  %6389 = vmatpush1.msra.mxu0 0.0
  %6390 = vmatprep.subr.mxu0 0.0
  %6391 = vmatpush1.msra.mxu0 0.0
  %6392 = vmatprep.subr.mxu0 0.0
  %6393 = vmatpush1.msra.mxu0 0.0
  %6394 = vmatprep.subr.mxu0 0.0
  %6395 = vmatpush1.msra.mxu0 0.0
  %6396 = vmatprep.subr.mxu0 0.0
  %6397 = vmatpush1.msra.mxu0 0.0
  %6398 = vmatprep.subr.mxu0 0.0
  %6399 = vmatpush1.msra.mxu0 0.0
  %6400 = vmatprep.subr.mxu0 0.0
  %6401 = vmatpush1.msra.mxu0 0.0
  %6402 = vmatprep.subr.mxu0 0.0
  %6403 = vmatpush1.msra.mxu0 0.0
  %6404 = vmatprep.subr.mxu0 0.0
  %6405 = vmatpush1.msra.mxu0 0.0
  %6406 = vmatprep.subr.mxu0 0.0
  %6407 = vmatpush1.msra.mxu0 0.0
  %6408 = vmatprep.subr.mxu0 0.0
  %6409 = vmatpush1.msra.mxu0 0.0
  %6410 = vmatprep.subr.mxu0 0.0
  %6411 = vmatpush1.msra.mxu0 0.0
  %6412 = vmatprep.subr.mxu0 0.0
  %6413 = vmatpush1.msra.mxu0 0.0
  %6414 = vmatprep.subr.mxu0 0.0
  %6415 = vmatpush1.msra.mxu0 0.0
  %6416 = vmatprep.subr.mxu0 0.0
  %6417 = vmatpush1.msra.mxu0 0.0
  %6418 = vmatprep.subr.mxu0 0.0
  %6419 = vmatpush1.msra.mxu0 0.0
  %6420 = vmatprep.subr.mxu0 0.0
  %6421 = vmatpush1.msra.mxu0 0.0
  %6422 = vmatprep.subr.mxu0 0.0
  %6423 = vmatpush1.msra.mxu0 0.0
  %6424 = vmatprep.mubr.f32.mxu0 0.0
  %6425 = vmatmul.mubr.f32.gmra.mrb[0].mxu0 %v6358
  %v6426 = vpop.f32.mrb[0].mxu0
  %v6427 = vadd.f32 %v6356, %v6426
  %v6428 = vpop.f32.mrb[0].mxu0
  %6429 = vdwg.mxu0
  %v6430 = vadd.f32 %v3282, %v3289
  %v6431 = vadd.f32 %v6430, %v6427
  %v6432 = vmul.f32 %v3268, %v6431
  %v6433 = vadd.f32 %v6432, %v3280
  %6435 = vrot.lane.b32.xlu0 %v6433, 2
  %v6436 = vpop.permute.xlu0 %6435
  %v6438 = vsel %vm130, %v6427, %v6436
  %s6439 = scalar_lea.vmem %s5, 8
  %6440 = vst.msk [vmem:[%s6439] sm:$0xff] %vm132, %v6438
  // Predicated region
  $region22: #{gns_forward.1} parent=0 // pred_check
    _
  $region23: #{gns_forward.1} parent=0 // pred_check_branch
    %6442 = sbr.rel (0) target = $region25
  $region24: #{gns_forward.1} parent=0 // pred_region
    _
  $region25: #{gns_forward.1} parent=0 // pred_fallthru
    _
  // Predicated region
  $region26: #{gns_forward.1} parent=0 // pred_check
    _
  $region27: #{gns_forward.1} parent=0 // pred_check_branch
    %6444 = sbr.rel (0) target = $region29
  $region28: #{gns_forward.1} parent=0 // pred_region
    _
  $region29: #{gns_forward.1} parent=0 // pred_fallthru
    _

</llo_original>
